<compile_context>
chip_gen: v6e
topology: v6e:2x2x1
jax: 0.10.0
libtpu: 0.0.40
codegen_flags: <defaults>
</compile_context>

<pallas_src>
import functools

import jax
import jax.numpy as jnp
from jax.experimental import pallas as pl
from jax.experimental.pallas import tpu as pltpu


# ----------------------------------------------------------------------------
# tiling helpers
# ----------------------------------------------------------------------------
_TM_MAX = 256     # rows per output tile
_TN_MAX = 512     # single-block N up to this, else tile at 256
_TK_MAX = 1024    # single-block K up to this, else tile at 512


def _round_up(x, m):
    return ((x + m - 1) // m) * m


def _pad_k(k):
    kp = _round_up(k, 128)
    return kp if kp <= _TK_MAX else _round_up(kp, 512)


def _pad_n(n):
    np_ = _round_up(n, 128)
    return np_ if np_ <= _TN_MAX else _round_up(np_, 256)


def _tile_k(kp):
    return kp if kp <= _TK_MAX else 512


def _tile_n(np_):
    return np_ if np_ <= _TN_MAX else 256


# ----------------------------------------------------------------------------
# Pallas kernels
# ----------------------------------------------------------------------------
def _matmul_bias_act_kernel(a_ref, w_ref, b_ref, o_ref, acc_ref, *, act):
    """Tiled A@W + bias (+ activation) with f32 VMEM accumulator over the K axis."""
    @pl.when(pl.program_id(2) == 0)
    def _():
        acc_ref[...] = jnp.zeros_like(acc_ref)

    acc_ref[...] += jnp.dot(a_ref[...], w_ref[...],
                            preferred_element_type=jnp.float32)

    @pl.when(pl.program_id(2) == pl.num_programs(2) - 1)
    def _():
        y = acc_ref[...] + b_ref[...]          # (1, TN) broadcasts over rows
        if act == "relu":
            y = jnp.maximum(y, 0.0)
        elif act == "sigmoid":
            # EUP reciprocal keeps the epilogue off the VALU; clip guards the
            # approximate reciprocal so the output stays in [0, 1].
            y = jnp.clip(pl.reciprocal(1.0 + jnp.exp(-y), approx=True), 0.0, 1.0)
        o_ref[...] = y.astype(o_ref.dtype)


def _latent_kernel(enz_ref, mw_ref, mb_ref, lw_ref, lb_ref, eps_ref,
                   mu_ref, lv_ref, z_ref):
    """Fused mean head + logvar head + reparameterization (all stays in VMEM)."""
    enz = enz_ref[...]
    mu = jnp.dot(enz, mw_ref[...], preferred_element_type=jnp.float32) + mb_ref[...]
    lv = jnp.dot(enz, lw_ref[...], preferred_element_type=jnp.float32) + lb_ref[...]
    mu_ref[...] = mu
    lv_ref[...] = lv
    z_ref[...] = mu + jnp.exp(0.5 * lv) * eps_ref[...]


# ----------------------------------------------------------------------------
# kernel wrappers
# ----------------------------------------------------------------------------
def matmul_bias_act(a, w_p, b_p, n_out, act=None, out_dtype=jnp.float32):
    """a:(M,K) @ w_p:(Kp,Np)[bf16, pre-padded] + b_p:(1,Np)[f32] -> (M, n_out)."""
    M, K = a.shape
    Kp, Np = w_p.shape
    TM = min(_round_up(max(M, 1), 16), _TM_MAX)
    TK = _tile_k(Kp)
    TN = _tile_n(Np)
    Mp = _round_up(M, TM)

    a_p = a.astype(jnp.bfloat16)
    if (Mp, Kp) != (M, K):
        a_p = jnp.pad(a_p, ((0, Mp - M), (0, Kp - K)))

    grid = (Mp // TM, Np // TN, Kp // TK)
    out = pl.pallas_call(
        functools.partial(_matmul_bias_act_kernel, act=act),
        out_shape=jax.ShapeDtypeStruct((Mp, Np), out_dtype),
        grid_spec=pltpu.PrefetchScalarGridSpec(
            num_scalar_prefetch=0,
            grid=grid,
            in_specs=[
                pl.BlockSpec((TM, TK), lambda i, j, k: (i, k)),
                pl.BlockSpec((TK, TN), lambda i, j, k: (k, j)),
                pl.BlockSpec((1, TN), lambda i, j, k: (0, j)),
            ],
            out_specs=pl.BlockSpec((TM, TN), lambda i, j, k: (i, j)),
            scratch_shapes=[pltpu.VMEM((TM, TN), jnp.float32)],
        ),
        compiler_params=pltpu.CompilerParams(
            dimension_semantics=("parallel", "parallel", "arbitrary")),
    )(a_p, w_p, b_p)
    return out[:M, :n_out]


def latent_heads(en_z, eps, mw_p, mb_p, lw_p, lb_p):
    """mu = en_z@Wm+bm, log_var = en_z@Wl+bl, z = mu + exp(0.5*log_var)*eps."""
    B, E = en_z.shape
    Ep = mw_p.shape[0]
    Bp = _round_up(B, 8)

    def pad2(t):
        return jnp.pad(t.astype(jnp.float32), ((0, Bp - B), (0, Ep - E)))

    mu_p, lv_p, z_p = pl.pallas_call(
        _latent_kernel,
        out_shape=tuple(jax.ShapeDtypeStruct((Bp, Ep), jnp.float32)
                        for _ in range(3)),
    )(pad2(en_z), mw_p, mb_p, lw_p, lb_p, pad2(eps))
    return mu_p[:B, :E], lv_p[:B, :E], z_p[:B, :E]


# ----------------------------------------------------------------------------
# conv layers lowered to the fused matmul kernel
# ----------------------------------------------------------------------------
def _extract_patches(x, stride, pad_h, pad_w):
    """3x3 patches of NHWC x -> (B*OH*OW, 9*C); tap-major, channel-minor."""
    # TODO(synk): for large image sizes, fuse patch extraction into the matmul
    # kernel (shifted-window accumulation) instead of materializing im2col.
    B, H, W, C = x.shape
    xp = jnp.pad(x, ((0, 0), pad_h, pad_w, (0, 0)))
    Hp, Wp = xp.shape[1], xp.shape[2]
    OH = (Hp - 3) // stride + 1
    OW = (Wp - 3) // stride + 1
    cols = [xp[:, di:di + OH * stride:stride, dj:dj + OW * stride:stride, :]
            for di in range(3) for dj in range(3)]
    p = jnp.concatenate(cols, axis=-1)               # (B, OH, OW, 9*C)
    return p.reshape(B * OH * OW, 9 * C), OH, OW


def conv2d(x, w_p, b_p, cout, stride, pad_h, pad_w, act, out_dtype=jnp.bfloat16):
    """x NHWC; w_p is the pre-packed (9*Cin -> Kp, Cout -> Np) matmul weight."""
    B = x.shape[0]
    patches, OH, OW = _extract_patches(x, stride, pad_h, pad_w)
    out = matmul_bias_act(patches, w_p, b_p, cout, act, out_dtype)
    return out.reshape(B, OH, OW, cout)


def conv2d_transpose_s2_same(x, w_p, b_p, cout, act, out_dtype=jnp.bfloat16):
    """Conv2DTranspose(3x3, stride 2, 'same') via 4-phase subpixel decomposition.

    out[2i+p, 2j+q] depends only on x[i-1:i+1, j-1:j+1]; the four phases are
    computed by a single matmul against a combined (4*Cin, 4*Cout) weight built
    at init, then interleaved (depth-to-space). No zero-dilated input.
    """
    B, H, W, Cin = x.shape

    def shift(up, left):                 # y[b,i,j] = x[b, i-up, j-left] (zero-pad)
        return jnp.pad(x, ((0, 0), (up, 0), (left, 0), (0, 0)))[:, :H, :W, :]

    patches = jnp.concatenate(
        [shift(1, 1), shift(1, 0), shift(0, 1), shift(0, 0)],
        axis=-1).reshape(B * H * W, 4 * Cin)
    out = matmul_bias_act(patches, w_p, b_p, 4 * cout, act, out_dtype)
    out = out.reshape(B, H, W, 2, 2, cout)                    # (..., p, q, c)
    out = out.transpose(0, 1, 3, 2, 4, 5).reshape(B, 2 * H, 2 * W, cout)
    return out


# ----------------------------------------------------------------------------
# parameters: raw init + one-time packing (pad + bf16 cast + phase layout)
# ----------------------------------------------------------------------------
def init_raw_params(key, image_size, channels, embedding_dim):
    hb = image_size // 8
    flat = hb * hb * 128
    shapes = dict(
        enc_c1_w=(3, 3, channels, 32), enc_c1_b=(32,),
        enc_c2_w=(3, 3, 32, 64),       enc_c2_b=(64,),
        enc_c3_w=(3, 3, 64, 128),      enc_c3_b=(128,),
        enc_d_w=(flat, embedding_dim), enc_d_b=(embedding_dim,),
        mean_w=(embedding_dim, embedding_dim),  mean_b=(embedding_dim,),
        lvar_w=(embedding_dim, embedding_dim),  lvar_b=(embedding_dim,),
        dec_d_w=(embedding_dim, flat), dec_d_b=(flat,),
        dec_t1_w=(3, 3, 128, 128),     dec_t1_b=(128,),
        dec_t2_w=(3, 3, 128, 64),      dec_t2_b=(64,),
        dec_t3_w=(3, 3, 64, 32),       dec_t3_b=(32,),
        dec_o_w=(3, 3, 32, channels),  dec_o_b=(channels,),
    )
    params = {}
    keys = jax.random.split(key, len(shapes))
    for k_rng, (name, shp) in zip(keys, sorted(shapes.items())):
        scale = 0.01 if name.endswith("_b") else 0.05
        params[name] = scale * jax.random.normal(k_rng, shp, jnp.float32)
    return params


def _pack_dense(w, b):
    K, N = w.shape
    Kp, Np = _pad_k(K), _pad_n(N)
    w_p = jnp.pad(w.astype(jnp.bfloat16), ((0, Kp - K), (0, Np - N)))
    b_p = jnp.pad(b.astype(jnp.float32), (0, Np - N)).reshape(1, Np)
    return w_p, b_p


def _pack_conv(w, b):
    kh, kw, cin, cout = w.shape
    return _pack_dense(w.reshape(kh * kw * cin, cout), b)


def _pack_tconv(w, b):
    """Combined 4-phase weight for ConvTranspose(3x3, s=2, 'same').

    Row blocks (input taps): [x[i-1,j-1], x[i-1,j], x[i,j-1], x[i,j]]
    Column blocks (output phases): [(0,0) | (0,1) | (1,0) | (1,1)]
    """
    _, _, cin, cout = w.shape
    Z = jnp.zeros((cin, cout), w.dtype)
    col00 = jnp.concatenate([w[2, 2], w[2, 0], w[0, 2], w[0, 0]], axis=0)
    col01 = jnp.concatenate([Z,       w[2, 1], Z,       w[0, 1]], axis=0)
    col10 = jnp.concatenate([Z,       Z,       w[1, 2], w[1, 0]], axis=0)
    col11 = jnp.concatenate([Z,       Z,       Z,       w[1, 1]], axis=0)
    wc = jnp.concatenate([col00, col01, col10, col11], axis=1)   # (4*cin, 4*cout)
    bc = jnp.tile(b, 4)
    return _pack_dense(wc, bc)


def _pack_latent(w, b):
    E = w.shape[0]
    Ep = _round_up(E, 128)
    w_p = jnp.pad(w.astype(jnp.float32), ((0, Ep - E), (0, Ep - E)))
    b_p = jnp.pad(b.astype(jnp.float32), (0, Ep - E)).reshape(1, Ep)
    return w_p, b_p


def pack_params(raw):
    return dict(
        enc_c1=_pack_conv(raw["enc_c1_w"], raw["enc_c1_b"]),
        enc_c2=_pack_conv(raw["enc_c2_w"], raw["enc_c2_b"]),
        enc_c3=_pack_conv(raw["enc_c3_w"], raw["enc_c3_b"]),
        enc_d=_pack_dense(raw["enc_d_w"], raw["enc_d_b"]),
        mean=_pack_latent(raw["mean_w"], raw["mean_b"]),
        lvar=_pack_latent(raw["lvar_w"], raw["lvar_b"]),
        dec_d=_pack_dense(raw["dec_d_w"], raw["dec_d_b"]),
        dec_t1=_pack_tconv(raw["dec_t1_w"], raw["dec_t1_b"]),
        dec_t2=_pack_tconv(raw["dec_t2_w"], raw["dec_t2_b"]),
        dec_t3=_pack_tconv(raw["dec_t3_w"], raw["dec_t3_b"]),
        dec_o=_pack_conv(raw["dec_o_w"], raw["dec_o_b"]),
    )


# ----------------------------------------------------------------------------
# VAE forward
# ----------------------------------------------------------------------------
def vae_forward(packed, x_nchw, eps):
    """Returns (x_hat [NCHW], mu, log_var, z), matching the PyTorch forward."""
    x = jnp.transpose(x_nchw, (0, 2, 3, 1))            # NCHW -> NHWC
    B, H, W, C = x.shape
    E = eps.shape[1]
    hb = H // 8

    # --- encoder: three stride-2 'same' convs + relu, flatten, dense ---
    h = conv2d(x, *packed["enc_c1"], 32, 2, (0, 1), (0, 1), "relu")
    h = conv2d(h, *packed["enc_c2"], 64, 2, (0, 1), (0, 1), "relu")
    h = conv2d(h, *packed["enc_c3"], 128, 2, (0, 1), (0, 1), "relu")
    en_z = matmul_bias_act(h.reshape(B, -1), *packed["enc_d"], E,
                           act=None, out_dtype=jnp.float32)

    # --- fused latent heads + reparameterization ---
    mu, log_var, z = latent_heads(en_z, eps, *packed["mean"], *packed["lvar"])

    # --- decoder ---
    d = matmul_bias_act(z, *packed["dec_d"], hb * hb * 128,
                        act=None, out_dtype=jnp.bfloat16).reshape(B, hb, hb, 128)
    d = conv2d_transpose_s2_same(d, *packed["dec_t1"], 128, "relu")
    d = conv2d_transpose_s2_same(d, *packed["dec_t2"], 64, "relu")
    d = conv2d_transpose_s2_same(d, *packed["dec_t3"], 32, "relu")
    x_hat = conv2d(d, *packed["dec_o"], C, 1, (1, 1), (1, 1), "sigmoid",
                   out_dtype=jnp.float32)

    return jnp.transpose(x_hat, (0, 3, 1, 2)), mu, log_var, z


# ----------------------------------------------------------------------------
# pure-JAX (XLA) reference for correctness checking
# ----------------------------------------------------------------------------
def vae_forward_ref(raw, x_nchw, eps):
    dn = ("NHWC", "HWIO", "NHWC")
    x = jnp.transpose(x_nchw, (0, 2, 3, 1))
    B, H = x.shape[0], x.shape[1]

    def conv(v, w, b, stride, pad):
        y = jax.lax.conv_general_dilated(v, w, (stride, stride), pad,
                                         dimension_numbers=dn)
        return y + b

    h = jax.nn.relu(conv(x, raw["enc_c1_w"], raw["enc_c1_b"], 2, ((0, 1), (0, 1))))
    h = jax.nn.relu(conv(h, raw["enc_c2_w"], raw["enc_c2_b"], 2, ((0, 1), (0, 1))))
    h = jax.nn.relu(conv(h, raw["enc_c3_w"], raw["enc_c3_b"], 2, ((0, 1), (0, 1))))
    en_z = h.reshape(B, -1) @ raw["enc_d_w"] + raw["enc_d_b"]
    mu = en_z @ raw["mean_w"] + raw["mean_b"]
    log_var = en_z @ raw["lvar_w"] + raw["lvar_b"]
    z = mu + jnp.exp(0.5 * log_var) * eps
    hb = H // 8
    d = (z @ raw["dec_d_w"] + raw["dec_d_b"]).reshape(B, hb, hb, 128)

    def tconv(v, w, b):
        y = jax.lax.conv_general_dilated(v, w[::-1, ::-1, :, :], (1, 1),
                                         ((2, 1), (2, 1)), lhs_dilation=(2, 2),
                                         dimension_numbers=dn)
        return jax.nn.relu(y + b)

    d = tconv(d, raw["dec_t1_w"], raw["dec_t1_b"])
    d = tconv(d, raw["dec_t2_w"], raw["dec_t2_b"])
    d = tconv(d, raw["dec_t3_w"], raw["dec_t3_b"])
    x_hat = jax.nn.sigmoid(conv(d, raw["dec_o_w"], raw["dec_o_b"], 1,
                                ((1, 1), (1, 1))))
    return jnp.transpose(x_hat, (0, 3, 1, 2)), mu, log_var, z


if __name__ == "__main__":
    B, C, HW, E = 2, 4, 16, 32
    key = jax.random.PRNGKey(0)
    k_x, k_eps, k_p = jax.random.split(key, 3)

    x = jax.random.uniform(k_x, (B, C, HW, HW), jnp.float32)   # NCHW input
    eps = jax.random.normal(k_eps, (B, E), jnp.float32)        # torch.randn_like(log_var)
    raw = init_raw_params(k_p, HW, C, E)
    packed = pack_params(raw)

    fwd = jax.jit(vae_forward)
    x_hat, mu, log_var, z = fwd(packed, x, eps)
    jax.block_until_ready((x_hat, mu, log_var, z))

    assert x_hat.shape == (B, C, HW, HW)
    assert mu.shape == (B, E) and log_var.shape == (B, E) and z.shape == (B, E)
    assert bool(jnp.all(jnp.isfinite(x_hat)))
    assert bool(jnp.all((x_hat >= 0.0) & (x_hat <= 1.0)))      # sigmoid output

    # Numerical check vs. a pure-JAX/XLA reference (bf16 MXU inputs -> loose tol).
    xr, mr, lr, zr = vae_forward_ref(raw, x, eps)
    assert float(jnp.max(jnp.abs(mu - mr))) < 2e-2
    assert float(jnp.max(jnp.abs(log_var - lr))) < 2e-2
    assert float(jnp.max(jnp.abs(z - zr))) < 2e-2
    assert float(jnp.max(jnp.abs(x_hat - xr))) < 3e-2
    print("KERNEL_OK")
</pallas_src>

<mosaic_0001>
module attributes {stable_mosaic.version = 11 : i64} {
  func.func @_matmul_bias_act_kernel(%arg0: i32, %arg1: i32, %arg2: i32, %arg3: memref<128x128xbf16, #tpu.memory_space<vmem>>, %arg4: memref<128x128xbf16, #tpu.memory_space<vmem>>, %arg5: memref<1x128xf32, #tpu.memory_space<vmem>>, %arg6: memref<128x128xbf16, #tpu.memory_space<vmem>>, %arg7: memref<128x128xf32, #tpu.memory_space<vmem>>) attributes {dimension_semantics = [#tpu.dimension_semantics<parallel>, #tpu.dimension_semantics<parallel>, #tpu.dimension_semantics<arbitrary>], iteration_bounds = array<i64: 1, 1, 1>, scalar_prefetch = 0 : i64, scratch_operands = 1 : i64, tpu.core_type = #tpu.core_type<tc>, window_params = [{transform_indices = @transform_0, window_bounds = array<i64: 128, 128>}, {transform_indices = @transform_1, window_bounds = array<i64: 128, 128>}, {transform_indices = @transform_2, window_bounds = array<i64: 1, 128>}, {transform_indices = @transform_3, window_bounds = array<i64: 128, 128>}]} {
    %c0_i32 = arith.constant 0 : i32
    %0 = arith.cmpi eq, %arg2, %c0_i32 : i32
    %1 = arith.extui %0 : i1 to i32
    %c0_i32_0 = arith.constant 0 : i32
    %2 = arith.cmpi ne, %1, %c0_i32_0 : i32
    scf.if %2 {
      %cst_10 = arith.constant 0.000000e+00 : f32
      %12 = vector.broadcast %cst_10 : f32 to vector<128x128xf32>
      %c0_11 = arith.constant 0 : index
      %c0_12 = arith.constant 0 : index
      %13 = vector.load %arg7[%c0_11, %c0_12] : memref<128x128xf32, #tpu.memory_space<vmem>>, vector<128x128xf32>
      tpu.vector_store %arg7[%c0_11, %c0_12], %12 {strides = array<i32>} : memref<128x128xf32, #tpu.memory_space<vmem>>, vector<128x128xf32>,
    } else {
    }
    %c0 = arith.constant 0 : index
    %c0_1 = arith.constant 0 : index
    %3 = vector.load %arg7[%c0, %c0_1] : memref<128x128xf32, #tpu.memory_space<vmem>>, vector<128x128xf32>
    %c0_2 = arith.constant 0 : index
    %c0_3 = arith.constant 0 : index
    %4 = vector.load %arg3[%c0_2, %c0_3] : memref<128x128xbf16, #tpu.memory_space<vmem>>, vector<128x128xbf16>
    %c0_4 = arith.constant 0 : index
    %c0_5 = arith.constant 0 : index
    %5 = vector.load %arg4[%c0_4, %c0_5] : memref<128x128xbf16, #tpu.memory_space<vmem>>, vector<128x128xbf16>
    %cst = arith.constant dense<0.000000e+00> : vector<128x128xf32>
    %6 = tpu.matmul %4, %5, %cst {dimension_numbers = #tpu.dot_dimension_numbers<[1], [0], [0], [1], [0, 0, 1, 1], [], []>} : vector<128x128xbf16>, vector<128x128xbf16>, vector<128x128xf32> -> vector<128x128xf32>
    %7 = arith.addf %3, %6 : vector<128x128xf32>
    %c0_6 = arith.constant 0 : index
    %c0_7 = arith.constant 0 : index
    %8 = vector.load %arg7[%c0_6, %c0_7] : memref<128x128xf32, #tpu.memory_space<vmem>>, vector<128x128xf32>
    tpu.vector_store %arg7[%c0_6, %c0_7], %7 {strides = array<i32>} : memref<128x128xf32, #tpu.memory_space<vmem>>, vector<128x128xf32>,
    %c0_i32_8 = arith.constant 0 : i32
    %9 = arith.cmpi eq, %arg2, %c0_i32_8 : i32
    %10 = arith.extui %9 : i1 to i32
    %c0_i32_9 = arith.constant 0 : i32
    %11 = arith.cmpi ne, %10, %c0_i32_9 : i32
    scf.if %11 {
      %c0_10 = arith.constant 0 : index
      %c0_11 = arith.constant 0 : index
      %12 = vector.load %arg7[%c0_10, %c0_11] : memref<128x128xf32, #tpu.memory_space<vmem>>, vector<128x128xf32>
      %c0_12 = arith.constant 0 : index
      %c0_13 = arith.constant 0 : index
      %13 = vector.load %arg5[%c0_12, %c0_13] : memref<1x128xf32, #tpu.memory_space<vmem>>, vector<1x128xf32>
      %14 = vector.broadcast %13 : vector<1x128xf32> to vector<128x128xf32>
      %15 = arith.addf %12, %14 : vector<128x128xf32>
      %cst_14 = arith.constant 0.000000e+00 : f32
      %16 = vector.broadcast %cst_14 : f32 to vector<128x128xf32>
      %17 = arith.maximumf %15, %16 : vector<128x128xf32>
      %18 = arith.truncf %17 : vector<128x128xf32> to vector<128x128xbf16>
      %c0_15 = arith.constant 0 : index
      %c0_16 = arith.constant 0 : index
      %19 = vector.load %arg6[%c0_15, %c0_16] : memref<128x128xbf16, #tpu.memory_space<vmem>>, vector<128x128xbf16>
      tpu.vector_store %arg6[%c0_15, %c0_16], %18 {strides = array<i32>} : memref<128x128xbf16, #tpu.memory_space<vmem>>, vector<128x128xbf16>,
    } else {
    }
    return
  }
  func.func @transform_0(%arg0: i32, %arg1: i32, %arg2: i32) -> (i32, i32) {
    %c0_i32 = arith.constant 0 : i32
    return %arg0, %arg2 : i32, i32
  }
  func.func @transform_1(%arg0: i32, %arg1: i32, %arg2: i32) -> (i32, i32) {
    %c0_i32 = arith.constant 0 : i32
    return %arg2, %arg1 : i32, i32
  }
  func.func @transform_2(%arg0: i32, %arg1: i32, %arg2: i32) -> (i32, i32) {
    %c0_i32 = arith.constant 0 : i32
    %c0_i32_0 = arith.constant 0 : i32
    return %c0_i32, %arg1 : i32, i32
  }
  func.func @transform_3(%arg0: i32, %arg1: i32, %arg2: i32) -> (i32, i32) {
    %c0_i32 = arith.constant 0 : i32
    return %arg0, %arg1 : i32, i32
  }
}

module attributes {stable_mosaic.version = 11 : i64} {
  func.func @_matmul_bias_act_kernel(%arg0: i32, %arg1: i32, %arg2: i32, %arg3: memref<16x640xbf16, #tpu.memory_space<vmem>>, %arg4: memref<640x128xbf16, #tpu.memory_space<vmem>>, %arg5: memref<1x128xf32, #tpu.memory_space<vmem>>, %arg6: memref<16x128xbf16, #tpu.memory_space<vmem>>, %arg7: memref<16x128xf32, #tpu.memory_space<vmem>>) attributes {dimension_semantics = [#tpu.dimension_semantics<parallel>, #tpu.dimension_semantics<parallel>, #tpu.dimension_semantics<arbitrary>], iteration_bounds = array<i64: 1, 1, 1>, scalar_prefetch = 0 : i64, scratch_operands = 1 : i64, tpu.core_type = #tpu.core_type<tc>, window_params = [{transform_indices = @transform_0, window_bounds = array<i64: 16, 640>}, {transform_indices = @transform_1, window_bounds = array<i64: 640, 128>}, {transform_indices = @transform_2, window_bounds = array<i64: 1, 128>}, {transform_indices = @transform_3, window_bounds = array<i64: 16, 128>}]} {
    %c0_i32 = arith.constant 0 : i32
    %0 = arith.cmpi eq, %arg2, %c0_i32 : i32
    %1 = arith.extui %0 : i1 to i32
    %c0_i32_0 = arith.constant 0 : i32
    %2 = arith.cmpi ne, %1, %c0_i32_0 : i32
    scf.if %2 {
      %cst_10 = arith.constant 0.000000e+00 : f32
      %12 = vector.broadcast %cst_10 : f32 to vector<16x128xf32>
      %c0_11 = arith.constant 0 : index
      %c0_12 = arith.constant 0 : index
      %13 = vector.load %arg7[%c0_11, %c0_12] : memref<16x128xf32, #tpu.memory_space<vmem>>, vector<16x128xf32>
      tpu.vector_store %arg7[%c0_11, %c0_12], %12 {strides = array<i32>} : memref<16x128xf32, #tpu.memory_space<vmem>>, vector<16x128xf32>,
    } else {
    }
    %c0 = arith.constant 0 : index
    %c0_1 = arith.constant 0 : index
    %3 = vector.load %arg7[%c0, %c0_1] : memref<16x128xf32, #tpu.memory_space<vmem>>, vector<16x128xf32>
    %c0_2 = arith.constant 0 : index
    %c0_3 = arith.constant 0 : index
    %4 = vector.load %arg3[%c0_2, %c0_3] : memref<16x640xbf16, #tpu.memory_space<vmem>>, vector<16x640xbf16>
    %c0_4 = arith.constant 0 : index
    %c0_5 = arith.constant 0 : index
    %5 = vector.load %arg4[%c0_4, %c0_5] : memref<640x128xbf16, #tpu.memory_space<vmem>>, vector<640x128xbf16>
    %cst = arith.constant dense<0.000000e+00> : vector<16x128xf32>
    %6 = tpu.matmul %4, %5, %cst {dimension_numbers = #tpu.dot_dimension_numbers<[1], [0], [0], [1], [0, 0, 1, 1], [], []>} : vector<16x640xbf16>, vector<640x128xbf16>, vector<16x128xf32> -> vector<16x128xf32>
    %7 = arith.addf %3, %6 : vector<16x128xf32>
    %c0_6 = arith.constant 0 : index
    %c0_7 = arith.constant 0 : index
    %8 = vector.load %arg7[%c0_6, %c0_7] : memref<16x128xf32, #tpu.memory_space<vmem>>, vector<16x128xf32>
    tpu.vector_store %arg7[%c0_6, %c0_7], %7 {strides = array<i32>} : memref<16x128xf32, #tpu.memory_space<vmem>>, vector<16x128xf32>,
    %c0_i32_8 = arith.constant 0 : i32
    %9 = arith.cmpi eq, %arg2, %c0_i32_8 : i32
    %10 = arith.extui %9 : i1 to i32
    %c0_i32_9 = arith.constant 0 : i32
    %11 = arith.cmpi ne, %10, %c0_i32_9 : i32
    scf.if %11 {
      %c0_10 = arith.constant 0 : index
      %c0_11 = arith.constant 0 : index
      %12 = vector.load %arg7[%c0_10, %c0_11] : memref<16x128xf32, #tpu.memory_space<vmem>>, vector<16x128xf32>
      %c0_12 = arith.constant 0 : index
      %c0_13 = arith.constant 0 : index
      %13 = vector.load %arg5[%c0_12, %c0_13] : memref<1x128xf32, #tpu.memory_space<vmem>>, vector<1x128xf32>
      %14 = vector.broadcast %13 : vector<1x128xf32> to vector<16x128xf32>
      %15 = arith.addf %12, %14 : vector<16x128xf32>
      %cst_14 = arith.constant 0.000000e+00 : f32
      %16 = vector.broadcast %cst_14 : f32 to vector<16x128xf32>
      %17 = arith.maximumf %15, %16 : vector<16x128xf32>
      %18 = arith.truncf %17 : vector<16x128xf32> to vector<16x128xbf16>
      %c0_15 = arith.constant 0 : index
      %c0_16 = arith.constant 0 : index
      %19 = vector.load %arg6[%c0_15, %c0_16] : memref<16x128xbf16, #tpu.memory_space<vmem>>, vector<16x128xbf16>
      tpu.vector_store %arg6[%c0_15, %c0_16], %18 {strides = array<i32>} : memref<16x128xbf16, #tpu.memory_space<vmem>>, vector<16x128xbf16>,
    } else {
    }
    return
  }
  func.func @transform_0(%arg0: i32, %arg1: i32, %arg2: i32) -> (i32, i32) {
    %c0_i32 = arith.constant 0 : i32
    return %arg0, %arg2 : i32, i32
  }
  func.func @transform_1(%arg0: i32, %arg1: i32, %arg2: i32) -> (i32, i32) {
    %c0_i32 = arith.constant 0 : i32
    return %arg2, %arg1 : i32, i32
  }
  func.func @transform_2(%arg0: i32, %arg1: i32, %arg2: i32) -> (i32, i32) {
    %c0_i32 = arith.constant 0 : i32
    %c0_i32_0 = arith.constant 0 : i32
    return %c0_i32, %arg1 : i32, i32
  }
  func.func @transform_3(%arg0: i32, %arg1: i32, %arg2: i32) -> (i32, i32) {
    %c0_i32 = arith.constant 0 : i32
    return %arg0, %arg1 : i32, i32
  }
}

module attributes {stable_mosaic.version = 11 : i64} {
  func.func @_matmul_bias_act_kernel(%arg0: i32, %arg1: i32, %arg2: i32, %arg3: memref<32x384xbf16, #tpu.memory_space<vmem>>, %arg4: memref<384x128xbf16, #tpu.memory_space<vmem>>, %arg5: memref<1x128xf32, #tpu.memory_space<vmem>>, %arg6: memref<32x128xbf16, #tpu.memory_space<vmem>>, %arg7: memref<32x128xf32, #tpu.memory_space<vmem>>) attributes {dimension_semantics = [#tpu.dimension_semantics<parallel>, #tpu.dimension_semantics<parallel>, #tpu.dimension_semantics<arbitrary>], iteration_bounds = array<i64: 1, 1, 1>, scalar_prefetch = 0 : i64, scratch_operands = 1 : i64, tpu.core_type = #tpu.core_type<tc>, window_params = [{transform_indices = @transform_0, window_bounds = array<i64: 32, 384>}, {transform_indices = @transform_1, window_bounds = array<i64: 384, 128>}, {transform_indices = @transform_2, window_bounds = array<i64: 1, 128>}, {transform_indices = @transform_3, window_bounds = array<i64: 32, 128>}]} {
    %c0_i32 = arith.constant 0 : i32
    %0 = arith.cmpi eq, %arg2, %c0_i32 : i32
    %1 = arith.extui %0 : i1 to i32
    %c0_i32_0 = arith.constant 0 : i32
    %2 = arith.cmpi ne, %1, %c0_i32_0 : i32
    scf.if %2 {
      %cst_10 = arith.constant 0.000000e+00 : f32
      %12 = vector.broadcast %cst_10 : f32 to vector<32x128xf32>
      %c0_11 = arith.constant 0 : index
      %c0_12 = arith.constant 0 : index
      %13 = vector.load %arg7[%c0_11, %c0_12] : memref<32x128xf32, #tpu.memory_space<vmem>>, vector<32x128xf32>
      tpu.vector_store %arg7[%c0_11, %c0_12], %12 {strides = array<i32>} : memref<32x128xf32, #tpu.memory_space<vmem>>, vector<32x128xf32>,
    } else {
    }
    %c0 = arith.constant 0 : index
    %c0_1 = arith.constant 0 : index
    %3 = vector.load %arg7[%c0, %c0_1] : memref<32x128xf32, #tpu.memory_space<vmem>>, vector<32x128xf32>
    %c0_2 = arith.constant 0 : index
    %c0_3 = arith.constant 0 : index
    %4 = vector.load %arg3[%c0_2, %c0_3] : memref<32x384xbf16, #tpu.memory_space<vmem>>, vector<32x384xbf16>
    %c0_4 = arith.constant 0 : index
    %c0_5 = arith.constant 0 : index
    %5 = vector.load %arg4[%c0_4, %c0_5] : memref<384x128xbf16, #tpu.memory_space<vmem>>, vector<384x128xbf16>
    %cst = arith.constant dense<0.000000e+00> : vector<32x128xf32>
    %6 = tpu.matmul %4, %5, %cst {dimension_numbers = #tpu.dot_dimension_numbers<[1], [0], [0], [1], [0, 0, 1, 1], [], []>} : vector<32x384xbf16>, vector<384x128xbf16>, vector<32x128xf32> -> vector<32x128xf32>
    %7 = arith.addf %3, %6 : vector<32x128xf32>
    %c0_6 = arith.constant 0 : index
    %c0_7 = arith.constant 0 : index
    %8 = vector.load %arg7[%c0_6, %c0_7] : memref<32x128xf32, #tpu.memory_space<vmem>>, vector<32x128xf32>
    tpu.vector_store %arg7[%c0_6, %c0_7], %7 {strides = array<i32>} : memref<32x128xf32, #tpu.memory_space<vmem>>, vector<32x128xf32>,
    %c0_i32_8 = arith.constant 0 : i32
    %9 = arith.cmpi eq, %arg2, %c0_i32_8 : i32
    %10 = arith.extui %9 : i1 to i32
    %c0_i32_9 = arith.constant 0 : i32
    %11 = arith.cmpi ne, %10, %c0_i32_9 : i32
    scf.if %11 {
      %c0_10 = arith.constant 0 : index
      %c0_11 = arith.constant 0 : index
      %12 = vector.load %arg7[%c0_10, %c0_11] : memref<32x128xf32, #tpu.memory_space<vmem>>, vector<32x128xf32>
      %c0_12 = arith.constant 0 : index
      %c0_13 = arith.constant 0 : index
      %13 = vector.load %arg5[%c0_12, %c0_13] : memref<1x128xf32, #tpu.memory_space<vmem>>, vector<1x128xf32>
      %14 = vector.broadcast %13 : vector<1x128xf32> to vector<32x128xf32>
      %15 = arith.addf %12, %14 : vector<32x128xf32>
      %cst_14 = arith.constant 0.000000e+00 : f32
      %16 = vector.broadcast %cst_14 : f32 to vector<32x128xf32>
      %17 = arith.maximumf %15, %16 : vector<32x128xf32>
      %18 = arith.truncf %17 : vector<32x128xf32> to vector<32x128xbf16>
      %c0_15 = arith.constant 0 : index
      %c0_16 = arith.constant 0 : index
      %19 = vector.load %arg6[%c0_15, %c0_16] : memref<32x128xbf16, #tpu.memory_space<vmem>>, vector<32x128xbf16>
      tpu.vector_store %arg6[%c0_15, %c0_16], %18 {strides = array<i32>} : memref<32x128xbf16, #tpu.memory_space<vmem>>, vector<32x128xbf16>,
    } else {
    }
    return
  }
  func.func @transform_0(%arg0: i32, %arg1: i32, %arg2: i32) -> (i32, i32) {
    %c0_i32 = arith.constant 0 : i32
    return %arg0, %arg2 : i32, i32
  }
  func.func @transform_1(%arg0: i32, %arg1: i32, %arg2: i32) -> (i32, i32) {
    %c0_i32 = arith.constant 0 : i32
    return %arg2, %arg1 : i32, i32
  }
  func.func @transform_2(%arg0: i32, %arg1: i32, %arg2: i32) -> (i32, i32) {
    %c0_i32 = arith.constant 0 : i32
    %c0_i32_0 = arith.constant 0 : i32
    return %c0_i32, %arg1 : i32, i32
  }
  func.func @transform_3(%arg0: i32, %arg1: i32, %arg2: i32) -> (i32, i32) {
    %c0_i32 = arith.constant 0 : i32
    return %arg0, %arg1 : i32, i32
  }
}

module attributes {stable_mosaic.version = 11 : i64} {
  func.func @_matmul_bias_act_kernel(%arg0: i32, %arg1: i32, %arg2: i32, %arg3: memref<16x512xbf16, #tpu.memory_space<vmem>>, %arg4: memref<512x128xbf16, #tpu.memory_space<vmem>>, %arg5: memref<1x128xf32, #tpu.memory_space<vmem>>, %arg6: memref<16x128xf32, #tpu.memory_space<vmem>>, %arg7: memref<16x128xf32, #tpu.memory_space<vmem>>) attributes {dimension_semantics = [#tpu.dimension_semantics<parallel>, #tpu.dimension_semantics<parallel>, #tpu.dimension_semantics<arbitrary>], iteration_bounds = array<i64: 1, 1, 1>, scalar_prefetch = 0 : i64, scratch_operands = 1 : i64, tpu.core_type = #tpu.core_type<tc>, window_params = [{transform_indices = @transform_0, window_bounds = array<i64: 16, 512>}, {transform_indices = @transform_1, window_bounds = array<i64: 512, 128>}, {transform_indices = @transform_2, window_bounds = array<i64: 1, 128>}, {transform_indices = @transform_3, window_bounds = array<i64: 16, 128>}]} {
    %c0_i32 = arith.constant 0 : i32
    %0 = arith.cmpi eq, %arg2, %c0_i32 : i32
    %1 = arith.extui %0 : i1 to i32
    %c0_i32_0 = arith.constant 0 : i32
    %2 = arith.cmpi ne, %1, %c0_i32_0 : i32
    scf.if %2 {
      %cst_10 = arith.constant 0.000000e+00 : f32
      %12 = vector.broadcast %cst_10 : f32 to vector<16x128xf32>
      %c0_11 = arith.constant 0 : index
      %c0_12 = arith.constant 0 : index
      %13 = vector.load %arg7[%c0_11, %c0_12] : memref<16x128xf32, #tpu.memory_space<vmem>>, vector<16x128xf32>
      tpu.vector_store %arg7[%c0_11, %c0_12], %12 {strides = array<i32>} : memref<16x128xf32, #tpu.memory_space<vmem>>, vector<16x128xf32>,
    } else {
    }
    %c0 = arith.constant 0 : index
    %c0_1 = arith.constant 0 : index
    %3 = vector.load %arg7[%c0, %c0_1] : memref<16x128xf32, #tpu.memory_space<vmem>>, vector<16x128xf32>
    %c0_2 = arith.constant 0 : index
    %c0_3 = arith.constant 0 : index
    %4 = vector.load %arg3[%c0_2, %c0_3] : memref<16x512xbf16, #tpu.memory_space<vmem>>, vector<16x512xbf16>
    %c0_4 = arith.constant 0 : index
    %c0_5 = arith.constant 0 : index
    %5 = vector.load %arg4[%c0_4, %c0_5] : memref<512x128xbf16, #tpu.memory_space<vmem>>, vector<512x128xbf16>
    %cst = arith.constant dense<0.000000e+00> : vector<16x128xf32>
    %6 = tpu.matmul %4, %5, %cst {dimension_numbers = #tpu.dot_dimension_numbers<[1], [0], [0], [1], [0, 0, 1, 1], [], []>} : vector<16x512xbf16>, vector<512x128xbf16>, vector<16x128xf32> -> vector<16x128xf32>
    %7 = arith.addf %3, %6 : vector<16x128xf32>
    %c0_6 = arith.constant 0 : index
    %c0_7 = arith.constant 0 : index
    %8 = vector.load %arg7[%c0_6, %c0_7] : memref<16x128xf32, #tpu.memory_space<vmem>>, vector<16x128xf32>
    tpu.vector_store %arg7[%c0_6, %c0_7], %7 {strides = array<i32>} : memref<16x128xf32, #tpu.memory_space<vmem>>, vector<16x128xf32>,
    %c0_i32_8 = arith.constant 0 : i32
    %9 = arith.cmpi eq, %arg2, %c0_i32_8 : i32
    %10 = arith.extui %9 : i1 to i32
    %c0_i32_9 = arith.constant 0 : i32
    %11 = arith.cmpi ne, %10, %c0_i32_9 : i32
    scf.if %11 {
      %c0_10 = arith.constant 0 : index
      %c0_11 = arith.constant 0 : index
      %12 = vector.load %arg7[%c0_10, %c0_11] : memref<16x128xf32, #tpu.memory_space<vmem>>, vector<16x128xf32>
      %c0_12 = arith.constant 0 : index
      %c0_13 = arith.constant 0 : index
      %13 = vector.load %arg5[%c0_12, %c0_13] : memref<1x128xf32, #tpu.memory_space<vmem>>, vector<1x128xf32>
      %14 = vector.broadcast %13 : vector<1x128xf32> to vector<16x128xf32>
      %15 = arith.addf %12, %14 : vector<16x128xf32>
      %c0_14 = arith.constant 0 : index
      %c0_15 = arith.constant 0 : index
      %16 = vector.load %arg6[%c0_14, %c0_15] : memref<16x128xf32, #tpu.memory_space<vmem>>, vector<16x128xf32>
      tpu.vector_store %arg6[%c0_14, %c0_15], %15 {strides = array<i32>} : memref<16x128xf32, #tpu.memory_space<vmem>>, vector<16x128xf32>,
    } else {
    }
    return
  }
  func.func @transform_0(%arg0: i32, %arg1: i32, %arg2: i32) -> (i32, i32) {
    %c0_i32 = arith.constant 0 : i32
    return %arg0, %arg2 : i32, i32
  }
  func.func @transform_1(%arg0: i32, %arg1: i32, %arg2: i32) -> (i32, i32) {
    %c0_i32 = arith.constant 0 : i32
    return %arg2, %arg1 : i32, i32
  }
  func.func @transform_2(%arg0: i32, %arg1: i32, %arg2: i32) -> (i32, i32) {
    %c0_i32 = arith.constant 0 : i32
    %c0_i32_0 = arith.constant 0 : i32
    return %c0_i32, %arg1 : i32, i32
  }
  func.func @transform_3(%arg0: i32, %arg1: i32, %arg2: i32) -> (i32, i32) {
    %c0_i32 = arith.constant 0 : i32
    return %arg0, %arg1 : i32, i32
  }
}

module attributes {stable_mosaic.version = 11 : i64} {
  func.func @_latent_kernel(%arg0: memref<8x128xf32, #tpu.memory_space<vmem>>, %arg1: memref<128x128xf32, #tpu.memory_space<vmem>>, %arg2: memref<1x128xf32, #tpu.memory_space<vmem>>, %arg3: memref<128x128xf32, #tpu.memory_space<vmem>>, %arg4: memref<1x128xf32, #tpu.memory_space<vmem>>, %arg5: memref<8x128xf32, #tpu.memory_space<vmem>>, %arg6: memref<8x128xf32, #tpu.memory_space<vmem>>, %arg7: memref<8x128xf32, #tpu.memory_space<vmem>>, %arg8: memref<8x128xf32, #tpu.memory_space<vmem>>) attributes {dimension_semantics = [], scalar_prefetch = 0 : i64, scratch_operands = 0 : i64, tpu.core_type = #tpu.core_type<tc>} {
    %c0 = arith.constant 0 : index
    %c0_0 = arith.constant 0 : index
    %0 = vector.load %arg0[%c0, %c0_0] : memref<8x128xf32, #tpu.memory_space<vmem>>, vector<8x128xf32>
    %c0_1 = arith.constant 0 : index
    %c0_2 = arith.constant 0 : index
    %1 = vector.load %arg1[%c0_1, %c0_2] : memref<128x128xf32, #tpu.memory_space<vmem>>, vector<128x128xf32>
    %cst = arith.constant dense<0.000000e+00> : vector<8x128xf32>
    %2 = tpu.matmul %0, %1, %cst {dimension_numbers = #tpu.dot_dimension_numbers<[1], [0], [0], [1], [0, 0, 1, 1], [], []>} : vector<8x128xf32>, vector<128x128xf32>, vector<8x128xf32> -> vector<8x128xf32>
    %c0_3 = arith.constant 0 : index
    %c0_4 = arith.constant 0 : index
    %3 = vector.load %arg2[%c0_3, %c0_4] : memref<1x128xf32, #tpu.memory_space<vmem>>, vector<1x128xf32>
    %4 = vector.broadcast %3 : vector<1x128xf32> to vector<8x128xf32>
    %5 = arith.addf %2, %4 : vector<8x128xf32>
    %c0_5 = arith.constant 0 : index
    %c0_6 = arith.constant 0 : index
    %6 = vector.load %arg3[%c0_5, %c0_6] : memref<128x128xf32, #tpu.memory_space<vmem>>, vector<128x128xf32>
    %cst_7 = arith.constant dense<0.000000e+00> : vector<8x128xf32>
    %7 = tpu.matmul %0, %6, %cst_7 {dimension_numbers = #tpu.dot_dimension_numbers<[1], [0], [0], [1], [0, 0, 1, 1], [], []>} : vector<8x128xf32>, vector<128x128xf32>, vector<8x128xf32> -> vector<8x128xf32>
    %c0_8 = arith.constant 0 : index
    %c0_9 = arith.constant 0 : index
    %8 = vector.load %arg4[%c0_8, %c0_9] : memref<1x128xf32, #tpu.memory_space<vmem>>, vector<1x128xf32>
    %9 = vector.broadcast %8 : vector<1x128xf32> to vector<8x128xf32>
    %10 = arith.addf %7, %9 : vector<8x128xf32>
    %c0_10 = arith.constant 0 : index
    %c0_11 = arith.constant 0 : index
    %11 = vector.load %arg6[%c0_10, %c0_11] : memref<8x128xf32, #tpu.memory_space<vmem>>, vector<8x128xf32>
    tpu.vector_store %arg6[%c0_10, %c0_11], %5 {strides = array<i32>} : memref<8x128xf32, #tpu.memory_space<vmem>>, vector<8x128xf32>,
    %c0_12 = arith.constant 0 : index
    %c0_13 = arith.constant 0 : index
    %12 = vector.load %arg7[%c0_12, %c0_13] : memref<8x128xf32, #tpu.memory_space<vmem>>, vector<8x128xf32>
    tpu.vector_store %arg7[%c0_12, %c0_13], %10 {strides = array<i32>} : memref<8x128xf32, #tpu.memory_space<vmem>>, vector<8x128xf32>,
    %cst_14 = arith.constant 5.000000e-01 : f32
    %13 = vector.broadcast %cst_14 : f32 to vector<8x128xf32>
    %14 = arith.mulf %13, %10 : vector<8x128xf32>
    %15 = math.exp %14 : vector<8x128xf32>
    %c0_15 = arith.constant 0 : index
    %c0_16 = arith.constant 0 : index
    %16 = vector.load %arg5[%c0_15, %c0_16] : memref<8x128xf32, #tpu.memory_space<vmem>>, vector<8x128xf32>
    %17 = arith.mulf %15, %16 : vector<8x128xf32>
    %18 = arith.addf %5, %17 : vector<8x128xf32>
    %c0_17 = arith.constant 0 : index
    %c0_18 = arith.constant 0 : index
    %19 = vector.load %arg8[%c0_17, %c0_18] : memref<8x128xf32, #tpu.memory_space<vmem>>, vector<8x128xf32>
    tpu.vector_store %arg8[%c0_17, %c0_18], %18 {strides = array<i32>} : memref<8x128xf32, #tpu.memory_space<vmem>>, vector<8x128xf32>,
    return
  }
}

module attributes {stable_mosaic.version = 11 : i64} {
  func.func @_matmul_bias_act_kernel(%arg0: i32, %arg1: i32, %arg2: i32, %arg3: memref<16x128xbf16, #tpu.memory_space<vmem>>, %arg4: memref<128x512xbf16, #tpu.memory_space<vmem>>, %arg5: memref<1x512xf32, #tpu.memory_space<vmem>>, %arg6: memref<16x512xbf16, #tpu.memory_space<vmem>>, %arg7: memref<16x512xf32, #tpu.memory_space<vmem>>) attributes {dimension_semantics = [#tpu.dimension_semantics<parallel>, #tpu.dimension_semantics<parallel>, #tpu.dimension_semantics<arbitrary>], iteration_bounds = array<i64: 1, 1, 1>, scalar_prefetch = 0 : i64, scratch_operands = 1 : i64, tpu.core_type = #tpu.core_type<tc>, window_params = [{transform_indices = @transform_0, window_bounds = array<i64: 16, 128>}, {transform_indices = @transform_1, window_bounds = array<i64: 128, 512>}, {transform_indices = @transform_2, window_bounds = array<i64: 1, 512>}, {transform_indices = @transform_3, window_bounds = array<i64: 16, 512>}]} {
    %c0_i32 = arith.constant 0 : i32
    %0 = arith.cmpi eq, %arg2, %c0_i32 : i32
    %1 = arith.extui %0 : i1 to i32
    %c0_i32_0 = arith.constant 0 : i32
    %2 = arith.cmpi ne, %1, %c0_i32_0 : i32
    scf.if %2 {
      %cst_10 = arith.constant 0.000000e+00 : f32
      %12 = vector.broadcast %cst_10 : f32 to vector<16x512xf32>
      %c0_11 = arith.constant 0 : index
      %c0_12 = arith.constant 0 : index
      %13 = vector.load %arg7[%c0_11, %c0_12] : memref<16x512xf32, #tpu.memory_space<vmem>>, vector<16x512xf32>
      tpu.vector_store %arg7[%c0_11, %c0_12], %12 {strides = array<i32>} : memref<16x512xf32, #tpu.memory_space<vmem>>, vector<16x512xf32>,
    } else {
    }
    %c0 = arith.constant 0 : index
    %c0_1 = arith.constant 0 : index
    %3 = vector.load %arg7[%c0, %c0_1] : memref<16x512xf32, #tpu.memory_space<vmem>>, vector<16x512xf32>
    %c0_2 = arith.constant 0 : index
    %c0_3 = arith.constant 0 : index
    %4 = vector.load %arg3[%c0_2, %c0_3] : memref<16x128xbf16, #tpu.memory_space<vmem>>, vector<16x128xbf16>
    %c0_4 = arith.constant 0 : index
    %c0_5 = arith.constant 0 : index
    %5 = vector.load %arg4[%c0_4, %c0_5] : memref<128x512xbf16, #tpu.memory_space<vmem>>, vector<128x512xbf16>
    %cst = arith.constant dense<0.000000e+00> : vector<16x512xf32>
    %6 = tpu.matmul %4, %5, %cst {dimension_numbers = #tpu.dot_dimension_numbers<[1], [0], [0], [1], [0, 0, 1, 1], [], []>} : vector<16x128xbf16>, vector<128x512xbf16>, vector<16x512xf32> -> vector<16x512xf32>
    %7 = arith.addf %3, %6 : vector<16x512xf32>
    %c0_6 = arith.constant 0 : index
    %c0_7 = arith.constant 0 : index
    %8 = vector.load %arg7[%c0_6, %c0_7] : memref<16x512xf32, #tpu.memory_space<vmem>>, vector<16x512xf32>
    tpu.vector_store %arg7[%c0_6, %c0_7], %7 {strides = array<i32>} : memref<16x512xf32, #tpu.memory_space<vmem>>, vector<16x512xf32>,
    %c0_i32_8 = arith.constant 0 : i32
    %9 = arith.cmpi eq, %arg2, %c0_i32_8 : i32
    %10 = arith.extui %9 : i1 to i32
    %c0_i32_9 = arith.constant 0 : i32
    %11 = arith.cmpi ne, %10, %c0_i32_9 : i32
    scf.if %11 {
      %c0_10 = arith.constant 0 : index
      %c0_11 = arith.constant 0 : index
      %12 = vector.load %arg7[%c0_10, %c0_11] : memref<16x512xf32, #tpu.memory_space<vmem>>, vector<16x512xf32>
      %c0_12 = arith.constant 0 : index
      %c0_13 = arith.constant 0 : index
      %13 = vector.load %arg5[%c0_12, %c0_13] : memref<1x512xf32, #tpu.memory_space<vmem>>, vector<1x512xf32>
      %14 = vector.broadcast %13 : vector<1x512xf32> to vector<16x512xf32>
      %15 = arith.addf %12, %14 : vector<16x512xf32>
      %16 = arith.truncf %15 : vector<16x512xf32> to vector<16x512xbf16>
      %c0_14 = arith.constant 0 : index
      %c0_15 = arith.constant 0 : index
      %17 = vector.load %arg6[%c0_14, %c0_15] : memref<16x512xbf16, #tpu.memory_space<vmem>>, vector<16x512xbf16>
      tpu.vector_store %arg6[%c0_14, %c0_15], %16 {strides = array<i32>} : memref<16x512xbf16, #tpu.memory_space<vmem>>, vector<16x512xbf16>,
    } else {
    }
    return
  }
  func.func @transform_0(%arg0: i32, %arg1: i32, %arg2: i32) -> (i32, i32) {
    %c0_i32 = arith.constant 0 : i32
    return %arg0, %arg2 : i32, i32
  }
  func.func @transform_1(%arg0: i32, %arg1: i32, %arg2: i32) -> (i32, i32) {
    %c0_i32 = arith.constant 0 : i32
    return %arg2, %arg1 : i32, i32
  }
  func.func @transform_2(%arg0: i32, %arg1: i32, %arg2: i32) -> (i32, i32) {
    %c0_i32 = arith.constant 0 : i32
    %c0_i32_0 = arith.constant 0 : i32
    return %c0_i32, %arg1 : i32, i32
  }
  func.func @transform_3(%arg0: i32, %arg1: i32, %arg2: i32) -> (i32, i32) {
    %c0_i32 = arith.constant 0 : i32
    return %arg0, %arg1 : i32, i32
  }
}

module attributes {stable_mosaic.version = 11 : i64} {
  func.func @_matmul_bias_act_kernel(%arg0: i32, %arg1: i32, %arg2: i32, %arg3: memref<16x512xbf16, #tpu.memory_space<vmem>>, %arg4: memref<512x512xbf16, #tpu.memory_space<vmem>>, %arg5: memref<1x512xf32, #tpu.memory_space<vmem>>, %arg6: memref<16x512xbf16, #tpu.memory_space<vmem>>, %arg7: memref<16x512xf32, #tpu.memory_space<vmem>>) attributes {dimension_semantics = [#tpu.dimension_semantics<parallel>, #tpu.dimension_semantics<parallel>, #tpu.dimension_semantics<arbitrary>], iteration_bounds = array<i64: 1, 1, 1>, scalar_prefetch = 0 : i64, scratch_operands = 1 : i64, tpu.core_type = #tpu.core_type<tc>, window_params = [{transform_indices = @transform_0, window_bounds = array<i64: 16, 512>}, {transform_indices = @transform_1, window_bounds = array<i64: 512, 512>}, {transform_indices = @transform_2, window_bounds = array<i64: 1, 512>}, {transform_indices = @transform_3, window_bounds = array<i64: 16, 512>}]} {
    %c0_i32 = arith.constant 0 : i32
    %0 = arith.cmpi eq, %arg2, %c0_i32 : i32
    %1 = arith.extui %0 : i1 to i32
    %c0_i32_0 = arith.constant 0 : i32
    %2 = arith.cmpi ne, %1, %c0_i32_0 : i32
    scf.if %2 {
      %cst_10 = arith.constant 0.000000e+00 : f32
      %12 = vector.broadcast %cst_10 : f32 to vector<16x512xf32>
      %c0_11 = arith.constant 0 : index
      %c0_12 = arith.constant 0 : index
      %13 = vector.load %arg7[%c0_11, %c0_12] : memref<16x512xf32, #tpu.memory_space<vmem>>, vector<16x512xf32>
      tpu.vector_store %arg7[%c0_11, %c0_12], %12 {strides = array<i32>} : memref<16x512xf32, #tpu.memory_space<vmem>>, vector<16x512xf32>,
    } else {
    }
    %c0 = arith.constant 0 : index
    %c0_1 = arith.constant 0 : index
    %3 = vector.load %arg7[%c0, %c0_1] : memref<16x512xf32, #tpu.memory_space<vmem>>, vector<16x512xf32>
    %c0_2 = arith.constant 0 : index
    %c0_3 = arith.constant 0 : index
    %4 = vector.load %arg3[%c0_2, %c0_3] : memref<16x512xbf16, #tpu.memory_space<vmem>>, vector<16x512xbf16>
    %c0_4 = arith.constant 0 : index
    %c0_5 = arith.constant 0 : index
    %5 = vector.load %arg4[%c0_4, %c0_5] : memref<512x512xbf16, #tpu.memory_space<vmem>>, vector<512x512xbf16>
    %cst = arith.constant dense<0.000000e+00> : vector<16x512xf32>
    %6 = tpu.matmul %4, %5, %cst {dimension_numbers = #tpu.dot_dimension_numbers<[1], [0], [0], [1], [0, 0, 1, 1], [], []>} : vector<16x512xbf16>, vector<512x512xbf16>, vector<16x512xf32> -> vector<16x512xf32>
    %7 = arith.addf %3, %6 : vector<16x512xf32>
    %c0_6 = arith.constant 0 : index
    %c0_7 = arith.constant 0 : index
    %8 = vector.load %arg7[%c0_6, %c0_7] : memref<16x512xf32, #tpu.memory_space<vmem>>, vector<16x512xf32>
    tpu.vector_store %arg7[%c0_6, %c0_7], %7 {strides = array<i32>} : memref<16x512xf32, #tpu.memory_space<vmem>>, vector<16x512xf32>,
    %c0_i32_8 = arith.constant 0 : i32
    %9 = arith.cmpi eq, %arg2, %c0_i32_8 : i32
    %10 = arith.extui %9 : i1 to i32
    %c0_i32_9 = arith.constant 0 : i32
    %11 = arith.cmpi ne, %10, %c0_i32_9 : i32
    scf.if %11 {
      %c0_10 = arith.constant 0 : index
      %c0_11 = arith.constant 0 : index
      %12 = vector.load %arg7[%c0_10, %c0_11] : memref<16x512xf32, #tpu.memory_space<vmem>>, vector<16x512xf32>
      %c0_12 = arith.constant 0 : index
      %c0_13 = arith.constant 0 : index
      %13 = vector.load %arg5[%c0_12, %c0_13] : memref<1x512xf32, #tpu.memory_space<vmem>>, vector<1x512xf32>
      %14 = vector.broadcast %13 : vector<1x512xf32> to vector<16x512xf32>
      %15 = arith.addf %12, %14 : vector<16x512xf32>
      %cst_14 = arith.constant 0.000000e+00 : f32
      %16 = vector.broadcast %cst_14 : f32 to vector<16x512xf32>
      %17 = arith.maximumf %15, %16 : vector<16x512xf32>
      %18 = arith.truncf %17 : vector<16x512xf32> to vector<16x512xbf16>
      %c0_15 = arith.constant 0 : index
      %c0_16 = arith.constant 0 : index
      %19 = vector.load %arg6[%c0_15, %c0_16] : memref<16x512xbf16, #tpu.memory_space<vmem>>, vector<16x512xbf16>
      tpu.vector_store %arg6[%c0_15, %c0_16], %18 {strides = array<i32>} : memref<16x512xbf16, #tpu.memory_space<vmem>>, vector<16x512xbf16>,
    } else {
    }
    return
  }
  func.func @transform_0(%arg0: i32, %arg1: i32, %arg2: i32) -> (i32, i32) {
    %c0_i32 = arith.constant 0 : i32
    return %arg0, %arg2 : i32, i32
  }
  func.func @transform_1(%arg0: i32, %arg1: i32, %arg2: i32) -> (i32, i32) {
    %c0_i32 = arith.constant 0 : i32
    return %arg2, %arg1 : i32, i32
  }
  func.func @transform_2(%arg0: i32, %arg1: i32, %arg2: i32) -> (i32, i32) {
    %c0_i32 = arith.constant 0 : i32
    %c0_i32_0 = arith.constant 0 : i32
    return %c0_i32, %arg1 : i32, i32
  }
  func.func @transform_3(%arg0: i32, %arg1: i32, %arg2: i32) -> (i32, i32) {
    %c0_i32 = arith.constant 0 : i32
    return %arg0, %arg1 : i32, i32
  }
}

module attributes {stable_mosaic.version = 11 : i64} {
  func.func @_matmul_bias_act_kernel(%arg0: i32, %arg1: i32, %arg2: i32, %arg3: memref<128x256xbf16, #tpu.memory_space<vmem>>, %arg4: memref<256x128xbf16, #tpu.memory_space<vmem>>, %arg5: memref<1x128xf32, #tpu.memory_space<vmem>>, %arg6: memref<128x128xbf16, #tpu.memory_space<vmem>>, %arg7: memref<128x128xf32, #tpu.memory_space<vmem>>) attributes {dimension_semantics = [#tpu.dimension_semantics<parallel>, #tpu.dimension_semantics<parallel>, #tpu.dimension_semantics<arbitrary>], iteration_bounds = array<i64: 1, 1, 1>, scalar_prefetch = 0 : i64, scratch_operands = 1 : i64, tpu.core_type = #tpu.core_type<tc>, window_params = [{transform_indices = @transform_0, window_bounds = array<i64: 128, 256>}, {transform_indices = @transform_1, window_bounds = array<i64: 256, 128>}, {transform_indices = @transform_2, window_bounds = array<i64: 1, 128>}, {transform_indices = @transform_3, window_bounds = array<i64: 128, 128>}]} {
    %c0_i32 = arith.constant 0 : i32
    %0 = arith.cmpi eq, %arg2, %c0_i32 : i32
    %1 = arith.extui %0 : i1 to i32
    %c0_i32_0 = arith.constant 0 : i32
    %2 = arith.cmpi ne, %1, %c0_i32_0 : i32
    scf.if %2 {
      %cst_10 = arith.constant 0.000000e+00 : f32
      %12 = vector.broadcast %cst_10 : f32 to vector<128x128xf32>
      %c0_11 = arith.constant 0 : index
      %c0_12 = arith.constant 0 : index
      %13 = vector.load %arg7[%c0_11, %c0_12] : memref<128x128xf32, #tpu.memory_space<vmem>>, vector<128x128xf32>
      tpu.vector_store %arg7[%c0_11, %c0_12], %12 {strides = array<i32>} : memref<128x128xf32, #tpu.memory_space<vmem>>, vector<128x128xf32>,
    } else {
    }
    %c0 = arith.constant 0 : index
    %c0_1 = arith.constant 0 : index
    %3 = vector.load %arg7[%c0, %c0_1] : memref<128x128xf32, #tpu.memory_space<vmem>>, vector<128x128xf32>
    %c0_2 = arith.constant 0 : index
    %c0_3 = arith.constant 0 : index
    %4 = vector.load %arg3[%c0_2, %c0_3] : memref<128x256xbf16, #tpu.memory_space<vmem>>, vector<128x256xbf16>
    %c0_4 = arith.constant 0 : index
    %c0_5 = arith.constant 0 : index
    %5 = vector.load %arg4[%c0_4, %c0_5] : memref<256x128xbf16, #tpu.memory_space<vmem>>, vector<256x128xbf16>
    %cst = arith.constant dense<0.000000e+00> : vector<128x128xf32>
    %6 = tpu.matmul %4, %5, %cst {dimension_numbers = #tpu.dot_dimension_numbers<[1], [0], [0], [1], [0, 0, 1, 1], [], []>} : vector<128x256xbf16>, vector<256x128xbf16>, vector<128x128xf32> -> vector<128x128xf32>
    %7 = arith.addf %3, %6 : vector<128x128xf32>
    %c0_6 = arith.constant 0 : index
    %c0_7 = arith.constant 0 : index
    %8 = vector.load %arg7[%c0_6, %c0_7] : memref<128x128xf32, #tpu.memory_space<vmem>>, vector<128x128xf32>
    tpu.vector_store %arg7[%c0_6, %c0_7], %7 {strides = array<i32>} : memref<128x128xf32, #tpu.memory_space<vmem>>, vector<128x128xf32>,
    %c0_i32_8 = arith.constant 0 : i32
    %9 = arith.cmpi eq, %arg2, %c0_i32_8 : i32
    %10 = arith.extui %9 : i1 to i32
    %c0_i32_9 = arith.constant 0 : i32
    %11 = arith.cmpi ne, %10, %c0_i32_9 : i32
    scf.if %11 {
      %c0_10 = arith.constant 0 : index
      %c0_11 = arith.constant 0 : index
      %12 = vector.load %arg7[%c0_10, %c0_11] : memref<128x128xf32, #tpu.memory_space<vmem>>, vector<128x128xf32>
      %c0_12 = arith.constant 0 : index
      %c0_13 = arith.constant 0 : index
      %13 = vector.load %arg5[%c0_12, %c0_13] : memref<1x128xf32, #tpu.memory_space<vmem>>, vector<1x128xf32>
      %14 = vector.broadcast %13 : vector<1x128xf32> to vector<128x128xf32>
      %15 = arith.addf %12, %14 : vector<128x128xf32>
      %cst_14 = arith.constant 0.000000e+00 : f32
      %16 = vector.broadcast %cst_14 : f32 to vector<128x128xf32>
      %17 = arith.maximumf %15, %16 : vector<128x128xf32>
      %18 = arith.truncf %17 : vector<128x128xf32> to vector<128x128xbf16>
      %c0_15 = arith.constant 0 : index
      %c0_16 = arith.constant 0 : index
      %19 = vector.load %arg6[%c0_15, %c0_16] : memref<128x128xbf16, #tpu.memory_space<vmem>>, vector<128x128xbf16>
      tpu.vector_store %arg6[%c0_15, %c0_16], %18 {strides = array<i32>} : memref<128x128xbf16, #tpu.memory_space<vmem>>, vector<128x128xbf16>,
    } else {
    }
    return
  }
  func.func @transform_0(%arg0: i32, %arg1: i32, %arg2: i32) -> (i32, i32) {
    %c0_i32 = arith.constant 0 : i32
    return %arg0, %arg2 : i32, i32
  }
  func.func @transform_1(%arg0: i32, %arg1: i32, %arg2: i32) -> (i32, i32) {
    %c0_i32 = arith.constant 0 : i32
    return %arg2, %arg1 : i32, i32
  }
  func.func @transform_2(%arg0: i32, %arg1: i32, %arg2: i32) -> (i32, i32) {
    %c0_i32 = arith.constant 0 : i32
    %c0_i32_0 = arith.constant 0 : i32
    return %c0_i32, %arg1 : i32, i32
  }
  func.func @transform_3(%arg0: i32, %arg1: i32, %arg2: i32) -> (i32, i32) {
    %c0_i32 = arith.constant 0 : i32
    return %arg0, %arg1 : i32, i32
  }
}

module attributes {stable_mosaic.version = 11 : i64} {
  func.func @_matmul_bias_act_kernel(%arg0: i32, %arg1: i32, %arg2: i32, %arg3: memref<32x512xbf16, #tpu.memory_space<vmem>>, %arg4: memref<512x256xbf16, #tpu.memory_space<vmem>>, %arg5: memref<1x256xf32, #tpu.memory_space<vmem>>, %arg6: memref<32x256xbf16, #tpu.memory_space<vmem>>, %arg7: memref<32x256xf32, #tpu.memory_space<vmem>>) attributes {dimension_semantics = [#tpu.dimension_semantics<parallel>, #tpu.dimension_semantics<parallel>, #tpu.dimension_semantics<arbitrary>], iteration_bounds = array<i64: 1, 1, 1>, scalar_prefetch = 0 : i64, scratch_operands = 1 : i64, tpu.core_type = #tpu.core_type<tc>, window_params = [{transform_indices = @transform_0, window_bounds = array<i64: 32, 512>}, {transform_indices = @transform_1, window_bounds = array<i64: 512, 256>}, {transform_indices = @transform_2, window_bounds = array<i64: 1, 256>}, {transform_indices = @transform_3, window_bounds = array<i64: 32, 256>}]} {
    %c0_i32 = arith.constant 0 : i32
    %0 = arith.cmpi eq, %arg2, %c0_i32 : i32
    %1 = arith.extui %0 : i1 to i32
    %c0_i32_0 = arith.constant 0 : i32
    %2 = arith.cmpi ne, %1, %c0_i32_0 : i32
    scf.if %2 {
      %cst_10 = arith.constant 0.000000e+00 : f32
      %12 = vector.broadcast %cst_10 : f32 to vector<32x256xf32>
      %c0_11 = arith.constant 0 : index
      %c0_12 = arith.constant 0 : index
      %13 = vector.load %arg7[%c0_11, %c0_12] : memref<32x256xf32, #tpu.memory_space<vmem>>, vector<32x256xf32>
      tpu.vector_store %arg7[%c0_11, %c0_12], %12 {strides = array<i32>} : memref<32x256xf32, #tpu.memory_space<vmem>>, vector<32x256xf32>,
    } else {
    }
    %c0 = arith.constant 0 : index
    %c0_1 = arith.constant 0 : index
    %3 = vector.load %arg7[%c0, %c0_1] : memref<32x256xf32, #tpu.memory_space<vmem>>, vector<32x256xf32>
    %c0_2 = arith.constant 0 : index
    %c0_3 = arith.constant 0 : index
    %4 = vector.load %arg3[%c0_2, %c0_3] : memref<32x512xbf16, #tpu.memory_space<vmem>>, vector<32x512xbf16>
    %c0_4 = arith.constant 0 : index
    %c0_5 = arith.constant 0 : index
    %5 = vector.load %arg4[%c0_4, %c0_5] : memref<512x256xbf16, #tpu.memory_space<vmem>>, vector<512x256xbf16>
    %cst = arith.constant dense<0.000000e+00> : vector<32x256xf32>
    %6 = tpu.matmul %4, %5, %cst {dimension_numbers = #tpu.dot_dimension_numbers<[1], [0], [0], [1], [0, 0, 1, 1], [], []>} : vector<32x512xbf16>, vector<512x256xbf16>, vector<32x256xf32> -> vector<32x256xf32>
    %7 = arith.addf %3, %6 : vector<32x256xf32>
    %c0_6 = arith.constant 0 : index
    %c0_7 = arith.constant 0 : index
    %8 = vector.load %arg7[%c0_6, %c0_7] : memref<32x256xf32, #tpu.memory_space<vmem>>, vector<32x256xf32>
    tpu.vector_store %arg7[%c0_6, %c0_7], %7 {strides = array<i32>} : memref<32x256xf32, #tpu.memory_space<vmem>>, vector<32x256xf32>,
    %c0_i32_8 = arith.constant 0 : i32
    %9 = arith.cmpi eq, %arg2, %c0_i32_8 : i32
    %10 = arith.extui %9 : i1 to i32
    %c0_i32_9 = arith.constant 0 : i32
    %11 = arith.cmpi ne, %10, %c0_i32_9 : i32
    scf.if %11 {
      %c0_10 = arith.constant 0 : index
      %c0_11 = arith.constant 0 : index
      %12 = vector.load %arg7[%c0_10, %c0_11] : memref<32x256xf32, #tpu.memory_space<vmem>>, vector<32x256xf32>
      %c0_12 = arith.constant 0 : index
      %c0_13 = arith.constant 0 : index
      %13 = vector.load %arg5[%c0_12, %c0_13] : memref<1x256xf32, #tpu.memory_space<vmem>>, vector<1x256xf32>
      %14 = vector.broadcast %13 : vector<1x256xf32> to vector<32x256xf32>
      %15 = arith.addf %12, %14 : vector<32x256xf32>
      %cst_14 = arith.constant 0.000000e+00 : f32
      %16 = vector.broadcast %cst_14 : f32 to vector<32x256xf32>
      %17 = arith.maximumf %15, %16 : vector<32x256xf32>
      %18 = arith.truncf %17 : vector<32x256xf32> to vector<32x256xbf16>
      %c0_15 = arith.constant 0 : index
      %c0_16 = arith.constant 0 : index
      %19 = vector.load %arg6[%c0_15, %c0_16] : memref<32x256xbf16, #tpu.memory_space<vmem>>, vector<32x256xbf16>
      tpu.vector_store %arg6[%c0_15, %c0_16], %18 {strides = array<i32>} : memref<32x256xbf16, #tpu.memory_space<vmem>>, vector<32x256xbf16>,
    } else {
    }
    return
  }
  func.func @transform_0(%arg0: i32, %arg1: i32, %arg2: i32) -> (i32, i32) {
    %c0_i32 = arith.constant 0 : i32
    return %arg0, %arg2 : i32, i32
  }
  func.func @transform_1(%arg0: i32, %arg1: i32, %arg2: i32) -> (i32, i32) {
    %c0_i32 = arith.constant 0 : i32
    return %arg2, %arg1 : i32, i32
  }
  func.func @transform_2(%arg0: i32, %arg1: i32, %arg2: i32) -> (i32, i32) {
    %c0_i32 = arith.constant 0 : i32
    %c0_i32_0 = arith.constant 0 : i32
    return %c0_i32, %arg1 : i32, i32
  }
  func.func @transform_3(%arg0: i32, %arg1: i32, %arg2: i32) -> (i32, i32) {
    %c0_i32 = arith.constant 0 : i32
    return %arg0, %arg1 : i32, i32
  }
}

module attributes {stable_mosaic.version = 11 : i64} {
  func.func @_matmul_bias_act_kernel(%arg0: i32, %arg1: i32, %arg2: i32, %arg3: memref<256x384xbf16, #tpu.memory_space<vmem>>, %arg4: memref<384x128xbf16, #tpu.memory_space<vmem>>, %arg5: memref<1x128xf32, #tpu.memory_space<vmem>>, %arg6: memref<256x128xf32, #tpu.memory_space<vmem>>, %arg7: memref<256x128xf32, #tpu.memory_space<vmem>>) attributes {dimension_semantics = [#tpu.dimension_semantics<parallel>, #tpu.dimension_semantics<parallel>, #tpu.dimension_semantics<arbitrary>], iteration_bounds = array<i64: 2, 1, 1>, scalar_prefetch = 0 : i64, scratch_operands = 1 : i64, tpu.core_type = #tpu.core_type<tc>, window_params = [{transform_indices = @transform_0, window_bounds = array<i64: 256, 384>}, {transform_indices = @transform_1, window_bounds = array<i64: 384, 128>}, {transform_indices = @transform_2, window_bounds = array<i64: 1, 128>}, {transform_indices = @transform_3, window_bounds = array<i64: 256, 128>}]} {
    %c0_i32 = arith.constant 0 : i32
    %0 = arith.cmpi eq, %arg2, %c0_i32 : i32
    %1 = arith.extui %0 : i1 to i32
    %c0_i32_0 = arith.constant 0 : i32
    %2 = arith.cmpi ne, %1, %c0_i32_0 : i32
    scf.if %2 {
      %cst_10 = arith.constant 0.000000e+00 : f32
      %12 = vector.broadcast %cst_10 : f32 to vector<256x128xf32>
      %c0_11 = arith.constant 0 : index
      %c0_12 = arith.constant 0 : index
      %13 = vector.load %arg7[%c0_11, %c0_12] : memref<256x128xf32, #tpu.memory_space<vmem>>, vector<256x128xf32>
      tpu.vector_store %arg7[%c0_11, %c0_12], %12 {strides = array<i32>} : memref<256x128xf32, #tpu.memory_space<vmem>>, vector<256x128xf32>,
    } else {
    }
    %c0 = arith.constant 0 : index
    %c0_1 = arith.constant 0 : index
    %3 = vector.load %arg7[%c0, %c0_1] : memref<256x128xf32, #tpu.memory_space<vmem>>, vector<256x128xf32>
    %c0_2 = arith.constant 0 : index
    %c0_3 = arith.constant 0 : index
    %4 = vector.load %arg3[%c0_2, %c0_3] : memref<256x384xbf16, #tpu.memory_space<vmem>>, vector<256x384xbf16>
    %c0_4 = arith.constant 0 : index
    %c0_5 = arith.constant 0 : index
    %5 = vector.load %arg4[%c0_4, %c0_5] : memref<384x128xbf16, #tpu.memory_space<vmem>>, vector<384x128xbf16>
    %cst = arith.constant dense<0.000000e+00> : vector<256x128xf32>
    %6 = tpu.matmul %4, %5, %cst {dimension_numbers = #tpu.dot_dimension_numbers<[1], [0], [0], [1], [0, 0, 1, 1], [], []>} : vector<256x384xbf16>, vector<384x128xbf16>, vector<256x128xf32> -> vector<256x128xf32>
    %7 = arith.addf %3, %6 : vector<256x128xf32>
    %c0_6 = arith.constant 0 : index
    %c0_7 = arith.constant 0 : index
    %8 = vector.load %arg7[%c0_6, %c0_7] : memref<256x128xf32, #tpu.memory_space<vmem>>, vector<256x128xf32>
    tpu.vector_store %arg7[%c0_6, %c0_7], %7 {strides = array<i32>} : memref<256x128xf32, #tpu.memory_space<vmem>>, vector<256x128xf32>,
    %c0_i32_8 = arith.constant 0 : i32
    %9 = arith.cmpi eq, %arg2, %c0_i32_8 : i32
    %10 = arith.extui %9 : i1 to i32
    %c0_i32_9 = arith.constant 0 : i32
    %11 = arith.cmpi ne, %10, %c0_i32_9 : i32
    scf.if %11 {
      %c0_10 = arith.constant 0 : index
      %c0_11 = arith.constant 0 : index
      %12 = vector.load %arg7[%c0_10, %c0_11] : memref<256x128xf32, #tpu.memory_space<vmem>>, vector<256x128xf32>
      %c0_12 = arith.constant 0 : index
      %c0_13 = arith.constant 0 : index
      %13 = vector.load %arg5[%c0_12, %c0_13] : memref<1x128xf32, #tpu.memory_space<vmem>>, vector<1x128xf32>
      %14 = vector.broadcast %13 : vector<1x128xf32> to vector<256x128xf32>
      %15 = arith.addf %12, %14 : vector<256x128xf32>
      %cst_14 = arith.constant 0.000000e+00 : f32
      %16 = vector.broadcast %cst_14 : f32 to vector<256x128xf32>
      %17 = arith.subf %16, %15 : vector<256x128xf32>
      %18 = math.exp %17 : vector<256x128xf32>
      %cst_15 = arith.constant 1.000000e+00 : f32
      %19 = vector.broadcast %cst_15 : f32 to vector<256x128xf32>
      %20 = arith.addf %19, %18 : vector<256x128xf32>
      %21 = tpu.reciprocal %20 {approx = true} : vector<256x128xf32> -> vector<256x128xf32>
      %cst_16 = arith.constant 0.000000e+00 : f32
      %cst_17 = arith.constant 1.000000e+00 : f32
      %22 = vector.broadcast %cst_16 : f32 to vector<256x128xf32>
      %23 = arith.maximumf %22, %21 : vector<256x128xf32>
      %24 = vector.broadcast %cst_17 : f32 to vector<256x128xf32>
      %25 = arith.minimumf %24, %23 : vector<256x128xf32>
      %c0_18 = arith.constant 0 : index
      %c0_19 = arith.constant 0 : index
      %26 = vector.load %arg6[%c0_18, %c0_19] : memref<256x128xf32, #tpu.memory_space<vmem>>, vector<256x128xf32>
      tpu.vector_store %arg6[%c0_18, %c0_19], %25 {strides = array<i32>} : memref<256x128xf32, #tpu.memory_space<vmem>>, vector<256x128xf32>,
    } else {
    }
    return
  }
  func.func @transform_0(%arg0: i32, %arg1: i32, %arg2: i32) -> (i32, i32) {
    %c0_i32 = arith.constant 0 : i32
    return %arg0, %arg2 : i32, i32
  }
  func.func @transform_1(%arg0: i32, %arg1: i32, %arg2: i32) -> (i32, i32) {
    %c0_i32 = arith.constant 0 : i32
    return %arg2, %arg1 : i32, i32
  }
  func.func @transform_2(%arg0: i32, %arg1: i32, %arg2: i32) -> (i32, i32) {
    %c0_i32 = arith.constant 0 : i32
    %c0_i32_0 = arith.constant 0 : i32
    return %c0_i32, %arg1 : i32, i32
  }
  func.func @transform_3(%arg0: i32, %arg1: i32, %arg2: i32) -> (i32, i32) {
    %c0_i32 = arith.constant 0 : i32
    return %arg0, %arg1 : i32, i32
  }
}

</mosaic_0001>

<llo_original>
// kernel: vae_forward.10
$region0: #{vae_forward.10}
  #allocation0 [shape = 'u32[]', space=smem, size = 0x4, offset = 0x4, fixed_abs, tag = 'smem constant byte address 0x4 - core index']
  #allocation1 [shape = 'u32[144,128]{1,0:T(1,128)}', space=vmem, size = 0x12000, scoped, tag = 'internal scratch']
  #allocation2 [shape = 'f32[128,128]{1,0:T(8,128)}', space=vmem, size = 0x10000, scoped, tag = 'scratch operand']
  %s0 = inlined_call_operand.vmem [shape: bf16[128,128], index: 0, kind: input, shape index: {}]
  %s1 = inlined_call_operand.vmem [shape: bf16[128,128], index: 1, kind: input, shape index: {}]
  %s2 = inlined_call_operand.vmem [shape: f32[1,128], index: 2, kind: input, shape index: {}]
  %s3 = inlined_call_operand.vmem [shape: bf16[128,128], index: 3, kind: output, shape index: {}]
  %s4 = sld [smem:[#allocation0]]
  $region30: #{vae_forward.10} parent=0
    _
  %s6 = ssub.s32 1, %s4
  %s7 = scalar_select 0, %s6, %s4
  // Predicated region
  $region2: #{vae_forward.10} parent=0 // pred_check
    _
  $region3: #{vae_forward.10} parent=0 // pred_check_branch
    %9 = sbr.rel (0) target = $region5
  $region4: #{vae_forward.10} parent=0 // pred_region
    _
  $region5: #{vae_forward.10} parent=0 // pred_fallthru
    _
  // Predicated region
  $region6: #{vae_forward.10} parent=0 // pred_check
    _
  $region7: #{vae_forward.10} parent=0 // pred_check_branch
    %11 = sbr.rel (0) target = $region9
  $region8: #{vae_forward.10} parent=0 // pred_region
    _
  $region9: #{vae_forward.10} parent=0 // pred_fallthru
    _
  // Predicated region
  $region10: #{vae_forward.10} parent=0 // pred_check
    _
  $region11: #{vae_forward.10} parent=0 // pred_check_branch
    %13 = sbr.rel (0) target = $region13
  $region12: #{vae_forward.10} parent=0 // pred_region
    _
  $region13: #{vae_forward.10} parent=0 // pred_fallthru
    _
  %p15 = scmp.eq.s32.totalorder 0, 0
  // Predicated region
  $region14: #{vae_forward.10} parent=0 // pred_check
    %p16 = pneg %p15
  $region15: #{vae_forward.10} parent=0 // pred_check_branch
    %18 = sbr.rel (%p16) target = $region17
  $region16: #{vae_forward.10} parent=0 // pred_region
    %19 = vst [vmem:[#allocation2] sm:$0xff] 0.0
    %20 = vst [vmem:[#allocation2 + $0x8] sm:$0xff] 0.0
    %21 = vst [vmem:[#allocation2 + $0x10] sm:$0xff] 0.0
    %22 = vst [vmem:[#allocation2 + $0x18] sm:$0xff] 0.0
    %23 = vst [vmem:[#allocation2 + $0x20] sm:$0xff] 0.0
    %24 = vst [vmem:[#allocation2 + $0x28] sm:$0xff] 0.0
    %25 = vst [vmem:[#allocation2 + $0x30] sm:$0xff] 0.0
    %26 = vst [vmem:[#allocation2 + $0x38] sm:$0xff] 0.0
    %27 = vst [vmem:[#allocation2 + $0x40] sm:$0xff] 0.0
    %28 = vst [vmem:[#allocation2 + $0x48] sm:$0xff] 0.0
    %29 = vst [vmem:[#allocation2 + $0x50] sm:$0xff] 0.0
    %30 = vst [vmem:[#allocation2 + $0x58] sm:$0xff] 0.0
    %31 = vst [vmem:[#allocation2 + $0x60] sm:$0xff] 0.0
    %32 = vst [vmem:[#allocation2 + $0x68] sm:$0xff] 0.0
    %33 = vst [vmem:[#allocation2 + $0x70] sm:$0xff] 0.0
    %34 = vst [vmem:[#allocation2 + $0x78] sm:$0xff] 0.0
  $region17: #{vae_forward.10} parent=0 // pred_fallthru
    _
  %v35 = vld [vmem:[#allocation2] sm:$0xff]
  %v36 = vld [vmem:[#allocation2 + $0x8] sm:$0xff]
  %v37 = vld [vmem:[#allocation2 + $0x10] sm:$0xff]
  %v38 = vld [vmem:[#allocation2 + $0x18] sm:$0xff]
  %v39 = vld [vmem:[#allocation2 + $0x20] sm:$0xff]
  %v40 = vld [vmem:[#allocation2 + $0x28] sm:$0xff]
  %v41 = vld [vmem:[#allocation2 + $0x30] sm:$0xff]
  %v42 = vld [vmem:[#allocation2 + $0x38] sm:$0xff]
  %v43 = vld [vmem:[#allocation2 + $0x40] sm:$0xff]
  %v44 = vld [vmem:[#allocation2 + $0x48] sm:$0xff]
  %v45 = vld [vmem:[#allocation2 + $0x50] sm:$0xff]
  %v46 = vld [vmem:[#allocation2 + $0x58] sm:$0xff]
  %v47 = vld [vmem:[#allocation2 + $0x60] sm:$0xff]
  %v48 = vld [vmem:[#allocation2 + $0x68] sm:$0xff]
  %v49 = vld [vmem:[#allocation2 + $0x70] sm:$0xff]
  %v50 = vld [vmem:[#allocation2 + $0x78] sm:$0xff]
  %v51 = vld [vmem:[%s0] sm:$0xf]
  %v52 = vld [vmem:[%s0 + $0x4] sm:$0xf]
  %v53 = vld [vmem:[%s0 + $0x8] sm:$0xf]
  %v54 = vld [vmem:[%s0 + $0xc] sm:$0xf]
  %v55 = vld [vmem:[%s0 + $0x10] sm:$0xf]
  %v56 = vld [vmem:[%s0 + $0x14] sm:$0xf]
  %v57 = vld [vmem:[%s0 + $0x18] sm:$0xf]
  %v58 = vld [vmem:[%s0 + $0x1c] sm:$0xf]
  %v59 = vld [vmem:[%s0 + $0x20] sm:$0xf]
  %v60 = vld [vmem:[%s0 + $0x24] sm:$0xf]
  %v61 = vld [vmem:[%s0 + $0x28] sm:$0xf]
  %v62 = vld [vmem:[%s0 + $0x2c] sm:$0xf]
  %v63 = vld [vmem:[%s0 + $0x30] sm:$0xf]
  %v64 = vld [vmem:[%s0 + $0x34] sm:$0xf]
  %v65 = vld [vmem:[%s0 + $0x38] sm:$0xf]
  %v66 = vld [vmem:[%s0 + $0x3c] sm:$0xf]
  %v67 = vld [vmem:[%s1] sm:$0xf]
  %v68 = vld [vmem:[%s1 + $0x4] sm:$0xf]
  %v69 = vld [vmem:[%s1 + $0x8] sm:$0xf]
  %v70 = vld [vmem:[%s1 + $0xc] sm:$0xf]
  %v71 = vld [vmem:[%s1 + $0x10] sm:$0xf]
  %v72 = vld [vmem:[%s1 + $0x14] sm:$0xf]
  %v73 = vld [vmem:[%s1 + $0x18] sm:$0xf]
  %v74 = vld [vmem:[%s1 + $0x1c] sm:$0xf]
  %v75 = vld [vmem:[%s1 + $0x20] sm:$0xf]
  %v76 = vld [vmem:[%s1 + $0x24] sm:$0xf]
  %v77 = vld [vmem:[%s1 + $0x28] sm:$0xf]
  %v78 = vld [vmem:[%s1 + $0x2c] sm:$0xf]
  %v79 = vld [vmem:[%s1 + $0x30] sm:$0xf]
  %v80 = vld [vmem:[%s1 + $0x34] sm:$0xf]
  %v81 = vld [vmem:[%s1 + $0x38] sm:$0xf]
  %v82 = vld [vmem:[%s1 + $0x3c] sm:$0xf]
  %v99 = vunpack.c.l.b16 %v51
  %v100 = vunpack.c.l.b16 %v52
  %v101 = vunpack.c.l.b16 %v53
  %v102 = vunpack.c.l.b16 %v54
  %v103 = vunpack.c.l.b16 %v55
  %v104 = vunpack.c.l.b16 %v56
  %v105 = vunpack.c.l.b16 %v57
  %v106 = vunpack.c.l.b16 %v58
  %v107 = vunpack.c.l.b16 %v59
  %v108 = vunpack.c.l.b16 %v60
  %v109 = vunpack.c.l.b16 %v61
  %v110 = vunpack.c.l.b16 %v62
  %v111 = vunpack.c.l.b16 %v63
  %v112 = vunpack.c.l.b16 %v64
  %v113 = vunpack.c.l.b16 %v65
  %v114 = vunpack.c.l.b16 %v66
  %v115 = vpack.c.b16 %v100, %v99
  %v116 = vpack.c.b16 %v102, %v101
  %v117 = vpack.c.b16 %v104, %v103
  %v118 = vpack.c.b16 %v106, %v105
  %v119 = vpack.c.b16 %v108, %v107
  %v120 = vpack.c.b16 %v110, %v109
  %v121 = vpack.c.b16 %v112, %v111
  %v122 = vpack.c.b16 %v114, %v113
  %v147 = vunpack.c.l.b16 %v67
  %v148 = vunpack.c.l.b16 %v68
  %v149 = vunpack.c.l.b16 %v69
  %v150 = vunpack.c.l.b16 %v70
  %v151 = vunpack.c.l.b16 %v71
  %v152 = vunpack.c.l.b16 %v72
  %v153 = vunpack.c.l.b16 %v73
  %v154 = vunpack.c.l.b16 %v74
  %v155 = vunpack.c.l.b16 %v75
  %v156 = vunpack.c.l.b16 %v76
  %v157 = vunpack.c.l.b16 %v77
  %v158 = vunpack.c.l.b16 %v78
  %v159 = vunpack.c.l.b16 %v79
  %v160 = vunpack.c.l.b16 %v80
  %v161 = vunpack.c.l.b16 %v81
  %v162 = vunpack.c.l.b16 %v82
  %v163 = vpack.c.b16 %v148, %v147
  %v164 = vpack.c.b16 %v150, %v149
  %v165 = vpack.c.b16 %v152, %v151
  %v166 = vpack.c.b16 %v154, %v153
  %v167 = vpack.c.b16 %v156, %v155
  %v168 = vpack.c.b16 %v158, %v157
  %v169 = vpack.c.b16 %v160, %v159
  %v170 = vpack.c.b16 %v162, %v161
  %179 = vmatprep.subr.bf16.mxu0 0
  %180 = vmatpush1.bf16.msra.mxu0 %v170
  %181 = vmatprep.subr.bf16.mxu0 0
  %182 = vmatpush1.bf16.msra.mxu0 %v169
  %183 = vmatprep.subr.bf16.mxu0 0
  %184 = vmatpush1.bf16.msra.mxu0 %v168
  %185 = vmatprep.subr.bf16.mxu0 0
  %186 = vmatpush1.bf16.msra.mxu0 %v167
  %187 = vmatprep.subr.bf16.mxu0 0
  %188 = vmatpush1.bf16.msra.mxu0 %v166
  %189 = vmatprep.subr.bf16.mxu0 0
  %190 = vmatpush1.bf16.msra.mxu0 %v165
  %191 = vmatprep.subr.bf16.mxu0 0
  %192 = vmatpush1.bf16.msra.mxu0 %v164
  %193 = vmatprep.subr.bf16.mxu0 0
  %194 = vmatpush1.bf16.msra.mxu0 %v163
  %195 = vmatprep.subr.bf16.mxu0 0
  %196 = vmatpush2.bf16.msra.mxu0 0
  %197 = vmatprep.subr.bf16.mxu0 0
  %198 = vmatpush2.bf16.msra.mxu0 0
  %199 = vmatprep.subr.bf16.mxu0 0
  %200 = vmatpush2.bf16.msra.mxu0 0
  %201 = vmatprep.subr.bf16.mxu0 0
  %202 = vmatpush2.bf16.msra.mxu0 0
  %203 = vmatprep.subr.bf16.mxu0 0
  %204 = vmatpush2.bf16.msra.mxu0 0
  %205 = vmatprep.subr.bf16.mxu0 0
  %206 = vmatpush2.bf16.msra.mxu0 0
  %207 = vmatprep.subr.bf16.mxu0 0
  %208 = vmatpush2.bf16.msra.mxu0 0
  %209 = vmatprep.subr.bf16.mxu0 0
  %210 = vmatpush2.bf16.msra.mxu0 0
  %211 = vmatprep.mubr.bf16.mxu0 0
  %212 = vmatmul.mubr.bf16.gmra.mxu0 %v115
  %v213 = vpop.f32.mrf.mxu0
  %v214 = vadd.f32 0.0, %v213
  %v215 = vpop.f32.mrf.mxu0
  %v216 = vpop.f32.mrf.mxu0
  %v217 = vadd.f32 0.0, %v216
  %v218 = vpop.f32.mrf.mxu0
  %219 = vmatprep.mubr.bf16.mxu0 0
  %220 = vmatmul.mubr.bf16.gmra.mxu0 %v116
  %v221 = vpop.f32.mrf.mxu0
  %v222 = vadd.f32 0.0, %v221
  %v223 = vpop.f32.mrf.mxu0
  %v224 = vpop.f32.mrf.mxu0
  %v225 = vadd.f32 0.0, %v224
  %v226 = vpop.f32.mrf.mxu0
  %227 = vmatprep.mubr.bf16.mxu0 0
  %228 = vmatmul.mubr.bf16.gmra.mxu0 %v117
  %v229 = vpop.f32.mrf.mxu0
  %v230 = vadd.f32 0.0, %v229
  %v231 = vpop.f32.mrf.mxu0
  %v232 = vpop.f32.mrf.mxu0
  %v233 = vadd.f32 0.0, %v232
  %v234 = vpop.f32.mrf.mxu0
  %235 = vmatprep.mubr.bf16.mxu0 0
  %236 = vmatmul.mubr.bf16.gmra.mxu0 %v118
  %v237 = vpop.f32.mrf.mxu0
  %v238 = vadd.f32 0.0, %v237
  %v239 = vpop.f32.mrf.mxu0
  %v240 = vpop.f32.mrf.mxu0
  %v241 = vadd.f32 0.0, %v240
  %v242 = vpop.f32.mrf.mxu0
  %243 = vmatprep.mubr.bf16.mxu0 0
  %244 = vmatmul.mubr.bf16.gmra.mxu0 %v119
  %v245 = vpop.f32.mrf.mxu0
  %v246 = vadd.f32 0.0, %v245
  %v247 = vpop.f32.mrf.mxu0
  %v248 = vpop.f32.mrf.mxu0
  %v249 = vadd.f32 0.0, %v248
  %v250 = vpop.f32.mrf.mxu0
  %251 = vmatprep.mubr.bf16.mxu0 0
  %252 = vmatmul.mubr.bf16.gmra.mxu0 %v120
  %v253 = vpop.f32.mrf.mxu0
  %v254 = vadd.f32 0.0, %v253
  %v255 = vpop.f32.mrf.mxu0
  %v256 = vpop.f32.mrf.mxu0
  %v257 = vadd.f32 0.0, %v256
  %v258 = vpop.f32.mrf.mxu0
  %259 = vmatprep.mubr.bf16.mxu0 0
  %260 = vmatmul.mubr.bf16.gmra.mxu0 %v121
  %v261 = vpop.f32.mrf.mxu0
  %v262 = vadd.f32 0.0, %v261
  %v263 = vpop.f32.mrf.mxu0
  %v264 = vpop.f32.mrf.mxu0
  %v265 = vadd.f32 0.0, %v264
  %v266 = vpop.f32.mrf.mxu0
  %267 = vmatprep.mubr.bf16.mxu0 0
  %268 = vmatmul.mubr.bf16.gmra.mxu0 %v122
  %v269 = vpop.f32.mrf.mxu0
  %v270 = vadd.f32 0.0, %v269
  %v271 = vpop.f32.mrf.mxu0
  %v272 = vpop.f32.mrf.mxu0
  %v273 = vadd.f32 0.0, %v272
  %v274 = vpop.f32.mrf.mxu0
  %275 = vdwg.mxu0
  %v276 = vadd.f32 %v35, %v214
  %v277 = vadd.f32 %v36, %v217
  %v278 = vadd.f32 %v37, %v222
  %v279 = vadd.f32 %v38, %v225
  %v280 = vadd.f32 %v39, %v230
  %v281 = vadd.f32 %v40, %v233
  %v282 = vadd.f32 %v41, %v238
  %v283 = vadd.f32 %v42, %v241
  %v284 = vadd.f32 %v43, %v246
  %v285 = vadd.f32 %v44, %v249
  %v286 = vadd.f32 %v45, %v254
  %v287 = vadd.f32 %v46, %v257
  %v288 = vadd.f32 %v47, %v262
  %v289 = vadd.f32 %v48, %v265
  %v290 = vadd.f32 %v49, %v270
  %v291 = vadd.f32 %v50, %v273
  %292 = vst [vmem:[#allocation2] sm:$0xff] %v276
  %293 = vst [vmem:[#allocation2 + $0x8] sm:$0xff] %v277
  %294 = vst [vmem:[#allocation2 + $0x10] sm:$0xff] %v278
  %295 = vst [vmem:[#allocation2 + $0x18] sm:$0xff] %v279
  %296 = vst [vmem:[#allocation2 + $0x20] sm:$0xff] %v280
  %297 = vst [vmem:[#allocation2 + $0x28] sm:$0xff] %v281
  %298 = vst [vmem:[#allocation2 + $0x30] sm:$0xff] %v282
  %299 = vst [vmem:[#allocation2 + $0x38] sm:$0xff] %v283
  %300 = vst [vmem:[#allocation2 + $0x40] sm:$0xff] %v284
  %301 = vst [vmem:[#allocation2 + $0x48] sm:$0xff] %v285
  %302 = vst [vmem:[#allocation2 + $0x50] sm:$0xff] %v286
  %303 = vst [vmem:[#allocation2 + $0x58] sm:$0xff] %v287
  %304 = vst [vmem:[#allocation2 + $0x60] sm:$0xff] %v288
  %305 = vst [vmem:[#allocation2 + $0x68] sm:$0xff] %v289
  %306 = vst [vmem:[#allocation2 + $0x70] sm:$0xff] %v290
  %307 = vst [vmem:[#allocation2 + $0x78] sm:$0xff] %v291
  // Predicated region
  $region18: #{vae_forward.10} parent=0 // pred_check
    %p308 = pneg %p15
  $region19: #{vae_forward.10} parent=0 // pred_check_branch
    %310 = sbr.rel (%p308) target = $region21
  $region20: #{vae_forward.10} parent=0 // pred_region
    %v311 = vld [vmem:[#allocation2] sm:$0xff]
    %v312 = vld [vmem:[#allocation2 + $0x8] sm:$0xff]
    %v313 = vld [vmem:[#allocation2 + $0x10] sm:$0xff]
    %v314 = vld [vmem:[#allocation2 + $0x18] sm:$0xff]
    %v315 = vld [vmem:[#allocation2 + $0x20] sm:$0xff]
    %v316 = vld [vmem:[#allocation2 + $0x28] sm:$0xff]
    %v317 = vld [vmem:[#allocation2 + $0x30] sm:$0xff]
    %v318 = vld [vmem:[#allocation2 + $0x38] sm:$0xff]
    %v319 = vld [vmem:[#allocation2 + $0x40] sm:$0xff]
    %v320 = vld [vmem:[#allocation2 + $0x48] sm:$0xff]
    %v321 = vld [vmem:[#allocation2 + $0x50] sm:$0xff]
    %v322 = vld [vmem:[#allocation2 + $0x58] sm:$0xff]
    %v323 = vld [vmem:[#allocation2 + $0x60] sm:$0xff]
    %v324 = vld [vmem:[#allocation2 + $0x68] sm:$0xff]
    %v325 = vld [vmem:[#allocation2 + $0x70] sm:$0xff]
    %v326 = vld [vmem:[#allocation2 + $0x78] sm:$0xff]
    %v327 = vld [vmem:[%s2] sm:$0x1]
    %v329 = vlaneseq
    %v330 = vshrl.u32 %v329, 7
    %v331 = vsub.s32 0, %v330
    %v332 = vrot.slane %v327, %v331
    %v334 = vadd.f32 %v311, %v332
    %v335 = vadd.f32 %v312, %v332
    %v336 = vadd.f32 %v313, %v332
    %v337 = vadd.f32 %v314, %v332
    %v338 = vadd.f32 %v315, %v332
    %v339 = vadd.f32 %v316, %v332
    %v340 = vadd.f32 %v317, %v332
    %v341 = vadd.f32 %v318, %v332
    %v342 = vadd.f32 %v319, %v332
    %v343 = vadd.f32 %v320, %v332
    %v344 = vadd.f32 %v321, %v332
    %v345 = vadd.f32 %v322, %v332
    %v346 = vadd.f32 %v323, %v332
    %v347 = vadd.f32 %v324, %v332
    %v348 = vadd.f32 %v325, %v332
    %v349 = vadd.f32 %v326, %v332
    %v350 = vmax.f32 %v334, 0.0
    %v351 = vmax.f32 %v335, 0.0
    %v352 = vmax.f32 %v336, 0.0
    %v353 = vmax.f32 %v337, 0.0
    %v354 = vmax.f32 %v338, 0.0
    %v355 = vmax.f32 %v339, 0.0
    %v356 = vmax.f32 %v340, 0.0
    %v357 = vmax.f32 %v341, 0.0
    %v358 = vmax.f32 %v342, 0.0
    %v359 = vmax.f32 %v343, 0.0
    %v360 = vmax.f32 %v344, 0.0
    %v361 = vmax.f32 %v345, 0.0
    %v362 = vmax.f32 %v346, 0.0
    %v363 = vmax.f32 %v347, 0.0
    %v364 = vmax.f32 %v348, 0.0
    %v365 = vmax.f32 %v349, 0.0
    %v366 = vpack.c.bf16 %v351, %v350
    %v367 = vpack.c.bf16 %v353, %v352
    %v368 = vpack.c.bf16 %v355, %v354
    %v369 = vpack.c.bf16 %v357, %v356
    %v370 = vpack.c.bf16 %v359, %v358
    %v371 = vpack.c.bf16 %v361, %v360
    %v372 = vpack.c.bf16 %v363, %v362
    %v373 = vpack.c.bf16 %v365, %v364
    %v382 = vunpack.c.l.b16 %v366
    %v383 = vunpack.c.h.b16 %v366
    %v384 = vunpack.c.l.b16 %v367
    %v385 = vunpack.c.h.b16 %v367
    %v386 = vunpack.c.l.b16 %v368
    %v387 = vunpack.c.h.b16 %v368
    %v388 = vunpack.c.l.b16 %v369
    %v389 = vunpack.c.h.b16 %v369
    %v390 = vunpack.c.l.b16 %v370
    %v391 = vunpack.c.h.b16 %v370
    %v392 = vunpack.c.l.b16 %v371
    %v393 = vunpack.c.h.b16 %v371
    %v394 = vunpack.c.l.b16 %v372
    %v395 = vunpack.c.h.b16 %v372
    %v396 = vunpack.c.l.b16 %v373
    %v397 = vunpack.c.h.b16 %v373
    %v398 = vpack.c.b16 %v382, %v382
    %v399 = vpack.c.b16 %v383, %v383
    %v400 = vpack.c.b16 %v384, %v384
    %v401 = vpack.c.b16 %v385, %v385
    %v402 = vpack.c.b16 %v386, %v386
    %v403 = vpack.c.b16 %v387, %v387
    %v404 = vpack.c.b16 %v388, %v388
    %v405 = vpack.c.b16 %v389, %v389
    %v406 = vpack.c.b16 %v390, %v390
    %v407 = vpack.c.b16 %v391, %v391
    %v408 = vpack.c.b16 %v392, %v392
    %v409 = vpack.c.b16 %v393, %v393
    %v410 = vpack.c.b16 %v394, %v394
    %v411 = vpack.c.b16 %v395, %v395
    %v412 = vpack.c.b16 %v396, %v396
    %v413 = vpack.c.b16 %v397, %v397
    %430 = vst [vmem:[%s3] sm:$0xf] %v398
    %431 = vst [vmem:[%s3 + $0x4] sm:$0xf] %v399
    %432 = vst [vmem:[%s3 + $0x8] sm:$0xf] %v400
    %433 = vst [vmem:[%s3 + $0xc] sm:$0xf] %v401
    %434 = vst [vmem:[%s3 + $0x10] sm:$0xf] %v402
    %435 = vst [vmem:[%s3 + $0x14] sm:$0xf] %v403
    %436 = vst [vmem:[%s3 + $0x18] sm:$0xf] %v404
    %437 = vst [vmem:[%s3 + $0x1c] sm:$0xf] %v405
    %438 = vst [vmem:[%s3 + $0x20] sm:$0xf] %v406
    %439 = vst [vmem:[%s3 + $0x24] sm:$0xf] %v407
    %440 = vst [vmem:[%s3 + $0x28] sm:$0xf] %v408
    %441 = vst [vmem:[%s3 + $0x2c] sm:$0xf] %v409
    %442 = vst [vmem:[%s3 + $0x30] sm:$0xf] %v410
    %443 = vst [vmem:[%s3 + $0x34] sm:$0xf] %v411
    %444 = vst [vmem:[%s3 + $0x38] sm:$0xf] %v412
    %445 = vst [vmem:[%s3 + $0x3c] sm:$0xf] %v413
  $region21: #{vae_forward.10} parent=0 // pred_fallthru
    _
  // Predicated region
  $region22: #{vae_forward.10} parent=0 // pred_check
    _
  $region23: #{vae_forward.10} parent=0 // pred_check_branch
    %447 = sbr.rel (0) target = $region25
  $region24: #{vae_forward.10} parent=0 // pred_region
    _
  $region25: #{vae_forward.10} parent=0 // pred_fallthru
    _
  // Predicated region
  $region26: #{vae_forward.10} parent=0 // pred_check
    _
  $region27: #{vae_forward.10} parent=0 // pred_check_branch
    %449 = sbr.rel (0) target = $region29
  $region28: #{vae_forward.10} parent=0 // pred_region
    _
  $region29: #{vae_forward.10} parent=0 // pred_fallthru
    _

// kernel: vae_forward.12
$region0: #{vae_forward.12}
  #allocation0 [shape = 'u32[]', space=smem, size = 0x4, offset = 0x4, fixed_abs, tag = 'smem constant byte address 0x4 - core index']
  #allocation1 [shape = 'u32[144,128]{1,0:T(1,128)}', space=vmem, size = 0x12000, scoped, tag = 'internal scratch']
  #allocation2 [shape = 'f32[16,128]{1,0:T(8,128)}', space=vmem, size = 0x2000, scoped, tag = 'scratch operand']
  %s0 = inlined_call_operand.vmem [shape: bf16[16,640], index: 0, kind: input, shape index: {}]
  %s1 = inlined_call_operand.vmem [shape: bf16[640,128], index: 1, kind: input, shape index: {}]
  %s2 = inlined_call_operand.vmem [shape: f32[1,128], index: 2, kind: input, shape index: {}]
  %s3 = inlined_call_operand.vmem [shape: bf16[16,128], index: 3, kind: output, shape index: {}]
  %s4 = sld [smem:[#allocation0]]
  $region30: #{vae_forward.12} parent=0
    _
  %s6 = ssub.s32 1, %s4
  %s7 = scalar_select 0, %s6, %s4
  // Predicated region
  $region2: #{vae_forward.12} parent=0 // pred_check
    _
  $region3: #{vae_forward.12} parent=0 // pred_check_branch
    %9 = sbr.rel (0) target = $region5
  $region4: #{vae_forward.12} parent=0 // pred_region
    _
  $region5: #{vae_forward.12} parent=0 // pred_fallthru
    _
  // Predicated region
  $region6: #{vae_forward.12} parent=0 // pred_check
    _
  $region7: #{vae_forward.12} parent=0 // pred_check_branch
    %11 = sbr.rel (0) target = $region9
  $region8: #{vae_forward.12} parent=0 // pred_region
    _
  $region9: #{vae_forward.12} parent=0 // pred_fallthru
    _
  // Predicated region
  $region10: #{vae_forward.12} parent=0 // pred_check
    _
  $region11: #{vae_forward.12} parent=0 // pred_check_branch
    %13 = sbr.rel (0) target = $region13
  $region12: #{vae_forward.12} parent=0 // pred_region
    _
  $region13: #{vae_forward.12} parent=0 // pred_fallthru
    _
  %p15 = scmp.eq.s32.totalorder 0, 0
  // Predicated region
  $region14: #{vae_forward.12} parent=0 // pred_check
    %p16 = pneg %p15
  $region15: #{vae_forward.12} parent=0 // pred_check_branch
    %18 = sbr.rel (%p16) target = $region17
  $region16: #{vae_forward.12} parent=0 // pred_region
    %19 = vst [vmem:[#allocation2] sm:$0xff] 0.0
    %20 = vst [vmem:[#allocation2 + $0x8] sm:$0xff] 0.0
  $region17: #{vae_forward.12} parent=0 // pred_fallthru
    _
  %v21 = vld [vmem:[#allocation2] sm:$0xff]
  %v22 = vld [vmem:[#allocation2 + $0x8] sm:$0xff]
  %v23 = vld [vmem:[%s0] sm:$0xff]
  %v24 = vld [vmem:[%s0 + $0x8] sm:$0xff]
  %v25 = vld [vmem:[%s0 + $0x10] sm:$0xf]
  %v26 = vld [vmem:[%s0 + $0x14] sm:$0xff]
  %v27 = vld [vmem:[%s0 + $0x1c] sm:$0xff]
  %v28 = vld [vmem:[%s0 + $0x24] sm:$0xf]
  %v29 = vld [vmem:[%s1] sm:$0xf]
  %v30 = vld [vmem:[%s1 + $0x4] sm:$0xf]
  %v31 = vld [vmem:[%s1 + $0x8] sm:$0xf]
  %v32 = vld [vmem:[%s1 + $0xc] sm:$0xf]
  %v33 = vld [vmem:[%s1 + $0x10] sm:$0xf]
  %v34 = vld [vmem:[%s1 + $0x14] sm:$0xf]
  %v35 = vld [vmem:[%s1 + $0x18] sm:$0xf]
  %v36 = vld [vmem:[%s1 + $0x1c] sm:$0xf]
  %v37 = vld [vmem:[%s1 + $0x20] sm:$0xf]
  %v38 = vld [vmem:[%s1 + $0x24] sm:$0xf]
  %v39 = vld [vmem:[%s1 + $0x28] sm:$0xf]
  %v40 = vld [vmem:[%s1 + $0x2c] sm:$0xf]
  %v41 = vld [vmem:[%s1 + $0x30] sm:$0xf]
  %v42 = vld [vmem:[%s1 + $0x34] sm:$0xf]
  %v43 = vld [vmem:[%s1 + $0x38] sm:$0xf]
  %v44 = vld [vmem:[%s1 + $0x3c] sm:$0xf]
  %v45 = vld [vmem:[%s1 + $0x40] sm:$0xf]
  %v46 = vld [vmem:[%s1 + $0x44] sm:$0xf]
  %v47 = vld [vmem:[%s1 + $0x48] sm:$0xf]
  %v48 = vld [vmem:[%s1 + $0x4c] sm:$0xf]
  %v49 = vld [vmem:[%s1 + $0x50] sm:$0xf]
  %v50 = vld [vmem:[%s1 + $0x54] sm:$0xf]
  %v51 = vld [vmem:[%s1 + $0x58] sm:$0xf]
  %v52 = vld [vmem:[%s1 + $0x5c] sm:$0xf]
  %v53 = vld [vmem:[%s1 + $0x60] sm:$0xf]
  %v54 = vld [vmem:[%s1 + $0x64] sm:$0xf]
  %v55 = vld [vmem:[%s1 + $0x68] sm:$0xf]
  %v56 = vld [vmem:[%s1 + $0x6c] sm:$0xf]
  %v57 = vld [vmem:[%s1 + $0x70] sm:$0xf]
  %v58 = vld [vmem:[%s1 + $0x74] sm:$0xf]
  %v59 = vld [vmem:[%s1 + $0x78] sm:$0xf]
  %v60 = vld [vmem:[%s1 + $0x7c] sm:$0xf]
  %v61 = vld [vmem:[%s1 + $0x80] sm:$0xf]
  %v62 = vld [vmem:[%s1 + $0x84] sm:$0xf]
  %v63 = vld [vmem:[%s1 + $0x88] sm:$0xf]
  %v64 = vld [vmem:[%s1 + $0x8c] sm:$0xf]
  %v65 = vld [vmem:[%s1 + $0x90] sm:$0xf]
  %v66 = vld [vmem:[%s1 + $0x94] sm:$0xf]
  %v67 = vld [vmem:[%s1 + $0x98] sm:$0xf]
  %v68 = vld [vmem:[%s1 + $0x9c] sm:$0xf]
  %v69 = vld [vmem:[%s1 + $0xa0] sm:$0xf]
  %v70 = vld [vmem:[%s1 + $0xa4] sm:$0xf]
  %v71 = vld [vmem:[%s1 + $0xa8] sm:$0xf]
  %v72 = vld [vmem:[%s1 + $0xac] sm:$0xf]
  %v73 = vld [vmem:[%s1 + $0xb0] sm:$0xf]
  %v74 = vld [vmem:[%s1 + $0xb4] sm:$0xf]
  %v75 = vld [vmem:[%s1 + $0xb8] sm:$0xf]
  %v76 = vld [vmem:[%s1 + $0xbc] sm:$0xf]
  %v77 = vld [vmem:[%s1 + $0xc0] sm:$0xf]
  %v78 = vld [vmem:[%s1 + $0xc4] sm:$0xf]
  %v79 = vld [vmem:[%s1 + $0xc8] sm:$0xf]
  %v80 = vld [vmem:[%s1 + $0xcc] sm:$0xf]
  %v81 = vld [vmem:[%s1 + $0xd0] sm:$0xf]
  %v82 = vld [vmem:[%s1 + $0xd4] sm:$0xf]
  %v83 = vld [vmem:[%s1 + $0xd8] sm:$0xf]
  %v84 = vld [vmem:[%s1 + $0xdc] sm:$0xf]
  %v85 = vld [vmem:[%s1 + $0xe0] sm:$0xf]
  %v86 = vld [vmem:[%s1 + $0xe4] sm:$0xf]
  %v87 = vld [vmem:[%s1 + $0xe8] sm:$0xf]
  %v88 = vld [vmem:[%s1 + $0xec] sm:$0xf]
  %v89 = vld [vmem:[%s1 + $0xf0] sm:$0xf]
  %v90 = vld [vmem:[%s1 + $0xf4] sm:$0xf]
  %v91 = vld [vmem:[%s1 + $0xf8] sm:$0xf]
  %v92 = vld [vmem:[%s1 + $0xfc] sm:$0xf]
  %v93 = vld [vmem:[%s1 + $0x100] sm:$0xf]
  %v94 = vld [vmem:[%s1 + $0x104] sm:$0xf]
  %v95 = vld [vmem:[%s1 + $0x108] sm:$0xf]
  %v96 = vld [vmem:[%s1 + $0x10c] sm:$0xf]
  %v97 = vld [vmem:[%s1 + $0x110] sm:$0xf]
  %v98 = vld [vmem:[%s1 + $0x114] sm:$0xf]
  %v99 = vld [vmem:[%s1 + $0x118] sm:$0xf]
  %v100 = vld [vmem:[%s1 + $0x11c] sm:$0xf]
  %v101 = vld [vmem:[%s1 + $0x120] sm:$0xf]
  %v102 = vld [vmem:[%s1 + $0x124] sm:$0xf]
  %v103 = vld [vmem:[%s1 + $0x128] sm:$0xf]
  %v104 = vld [vmem:[%s1 + $0x12c] sm:$0xf]
  %v105 = vld [vmem:[%s1 + $0x130] sm:$0xf]
  %v106 = vld [vmem:[%s1 + $0x134] sm:$0xf]
  %v107 = vld [vmem:[%s1 + $0x138] sm:$0xf]
  %v108 = vld [vmem:[%s1 + $0x13c] sm:$0xf]
  %v115 = vunpack.c.l.b16 %v23
  %v116 = vunpack.c.h.b16 %v23
  %v117 = vunpack.c.l.b16 %v24
  %v118 = vunpack.c.h.b16 %v24
  %v119 = vunpack.c.l.b16 %v25
  %v120 = vunpack.c.l.b16 %v26
  %v121 = vunpack.c.h.b16 %v26
  %v122 = vunpack.c.l.b16 %v27
  %v123 = vunpack.c.h.b16 %v27
  %v124 = vunpack.c.l.b16 %v28
  %v125 = vpack.c.b16 %v120, %v115
  %v126 = vpack.c.b16 %v121, %v116
  %v127 = vpack.c.b16 %v122, %v117
  %v128 = vpack.c.b16 %v123, %v118
  %v129 = vpack.c.b16 %v124, %v119
  %v215 = vunpack.c.l.b16 %v29
  %v216 = vunpack.c.l.b16 %v30
  %v217 = vunpack.c.l.b16 %v31
  %v218 = vunpack.c.l.b16 %v32
  %v219 = vunpack.c.l.b16 %v33
  %v220 = vunpack.c.l.b16 %v34
  %v221 = vunpack.c.l.b16 %v35
  %v222 = vunpack.c.l.b16 %v36
  %v223 = vunpack.c.l.b16 %v37
  %v224 = vunpack.c.l.b16 %v38
  %v225 = vunpack.c.l.b16 %v39
  %v226 = vunpack.c.l.b16 %v40
  %v227 = vunpack.c.l.b16 %v41
  %v228 = vunpack.c.l.b16 %v42
  %v229 = vunpack.c.l.b16 %v43
  %v230 = vunpack.c.l.b16 %v44
  %v231 = vunpack.c.l.b16 %v45
  %v232 = vunpack.c.l.b16 %v46
  %v233 = vunpack.c.l.b16 %v47
  %v234 = vunpack.c.l.b16 %v48
  %v235 = vunpack.c.l.b16 %v49
  %v236 = vunpack.c.l.b16 %v50
  %v237 = vunpack.c.l.b16 %v51
  %v238 = vunpack.c.l.b16 %v52
  %v239 = vunpack.c.l.b16 %v53
  %v240 = vunpack.c.l.b16 %v54
  %v241 = vunpack.c.l.b16 %v55
  %v242 = vunpack.c.l.b16 %v56
  %v243 = vunpack.c.l.b16 %v57
  %v244 = vunpack.c.l.b16 %v58
  %v245 = vunpack.c.l.b16 %v59
  %v246 = vunpack.c.l.b16 %v60
  %v247 = vunpack.c.l.b16 %v61
  %v248 = vunpack.c.l.b16 %v62
  %v249 = vunpack.c.l.b16 %v63
  %v250 = vunpack.c.l.b16 %v64
  %v251 = vunpack.c.l.b16 %v65
  %v252 = vunpack.c.l.b16 %v66
  %v253 = vunpack.c.l.b16 %v67
  %v254 = vunpack.c.l.b16 %v68
  %v255 = vunpack.c.l.b16 %v69
  %v256 = vunpack.c.l.b16 %v70
  %v257 = vunpack.c.l.b16 %v71
  %v258 = vunpack.c.l.b16 %v72
  %v259 = vunpack.c.l.b16 %v73
  %v260 = vunpack.c.l.b16 %v74
  %v261 = vunpack.c.l.b16 %v75
  %v262 = vunpack.c.l.b16 %v76
  %v263 = vunpack.c.l.b16 %v77
  %v264 = vunpack.c.l.b16 %v78
  %v265 = vunpack.c.l.b16 %v79
  %v266 = vunpack.c.l.b16 %v80
  %v267 = vunpack.c.l.b16 %v81
  %v268 = vunpack.c.l.b16 %v82
  %v269 = vunpack.c.l.b16 %v83
  %v270 = vunpack.c.l.b16 %v84
  %v271 = vunpack.c.l.b16 %v85
  %v272 = vunpack.c.l.b16 %v86
  %v273 = vunpack.c.l.b16 %v87
  %v274 = vunpack.c.l.b16 %v88
  %v275 = vunpack.c.l.b16 %v89
  %v276 = vunpack.c.l.b16 %v90
  %v277 = vunpack.c.l.b16 %v91
  %v278 = vunpack.c.l.b16 %v92
  %v279 = vunpack.c.l.b16 %v93
  %v280 = vunpack.c.l.b16 %v94
  %v281 = vunpack.c.l.b16 %v95
  %v282 = vunpack.c.l.b16 %v96
  %v283 = vunpack.c.l.b16 %v97
  %v284 = vunpack.c.l.b16 %v98
  %v285 = vunpack.c.l.b16 %v99
  %v286 = vunpack.c.l.b16 %v100
  %v287 = vunpack.c.l.b16 %v101
  %v288 = vunpack.c.l.b16 %v102
  %v289 = vunpack.c.l.b16 %v103
  %v290 = vunpack.c.l.b16 %v104
  %v291 = vunpack.c.l.b16 %v105
  %v292 = vunpack.c.l.b16 %v106
  %v293 = vunpack.c.l.b16 %v107
  %v294 = vunpack.c.l.b16 %v108
  %v295 = vpack.c.b16 %v216, %v215
  %v296 = vpack.c.b16 %v218, %v217
  %v297 = vpack.c.b16 %v220, %v219
  %v298 = vpack.c.b16 %v222, %v221
  %v299 = vpack.c.b16 %v224, %v223
  %v300 = vpack.c.b16 %v226, %v225
  %v301 = vpack.c.b16 %v228, %v227
  %v302 = vpack.c.b16 %v230, %v229
  %v303 = vpack.c.b16 %v232, %v231
  %v304 = vpack.c.b16 %v234, %v233
  %v305 = vpack.c.b16 %v236, %v235
  %v306 = vpack.c.b16 %v238, %v237
  %v307 = vpack.c.b16 %v240, %v239
  %v308 = vpack.c.b16 %v242, %v241
  %v309 = vpack.c.b16 %v244, %v243
  %v310 = vpack.c.b16 %v246, %v245
  %v311 = vpack.c.b16 %v248, %v247
  %v312 = vpack.c.b16 %v250, %v249
  %v313 = vpack.c.b16 %v252, %v251
  %v314 = vpack.c.b16 %v254, %v253
  %v315 = vpack.c.b16 %v256, %v255
  %v316 = vpack.c.b16 %v258, %v257
  %v317 = vpack.c.b16 %v260, %v259
  %v318 = vpack.c.b16 %v262, %v261
  %v319 = vpack.c.b16 %v264, %v263
  %v320 = vpack.c.b16 %v266, %v265
  %v321 = vpack.c.b16 %v268, %v267
  %v322 = vpack.c.b16 %v270, %v269
  %v323 = vpack.c.b16 %v272, %v271
  %v324 = vpack.c.b16 %v274, %v273
  %v325 = vpack.c.b16 %v276, %v275
  %v326 = vpack.c.b16 %v278, %v277
  %v327 = vpack.c.b16 %v280, %v279
  %v328 = vpack.c.b16 %v282, %v281
  %v329 = vpack.c.b16 %v284, %v283
  %v330 = vpack.c.b16 %v286, %v285
  %v331 = vpack.c.b16 %v288, %v287
  %v332 = vpack.c.b16 %v290, %v289
  %v333 = vpack.c.b16 %v292, %v291
  %v334 = vpack.c.b16 %v294, %v293
  %375 = vmatprep.subr.bf16.mxu0 0
  %376 = vmatpush1.bf16.msra.mxu0 %v302
  %377 = vmatprep.subr.bf16.mxu0 0
  %378 = vmatpush1.bf16.msra.mxu0 %v301
  %379 = vmatprep.subr.bf16.mxu0 0
  %380 = vmatpush1.bf16.msra.mxu0 %v300
  %381 = vmatprep.subr.bf16.mxu0 0
  %382 = vmatpush1.bf16.msra.mxu0 %v299
  %383 = vmatprep.subr.bf16.mxu0 0
  %384 = vmatpush1.bf16.msra.mxu0 %v298
  %385 = vmatprep.subr.bf16.mxu0 0
  %386 = vmatpush1.bf16.msra.mxu0 %v297
  %387 = vmatprep.subr.bf16.mxu0 0
  %388 = vmatpush1.bf16.msra.mxu0 %v296
  %389 = vmatprep.subr.bf16.mxu0 0
  %390 = vmatpush1.bf16.msra.mxu0 %v295
  %391 = vmatprep.subr.bf16.mxu0 0
  %392 = vmatpush2.bf16.msra.mxu0 %v310
  %393 = vmatprep.subr.bf16.mxu0 0
  %394 = vmatpush2.bf16.msra.mxu0 %v309
  %395 = vmatprep.subr.bf16.mxu0 0
  %396 = vmatpush2.bf16.msra.mxu0 %v308
  %397 = vmatprep.subr.bf16.mxu0 0
  %398 = vmatpush2.bf16.msra.mxu0 %v307
  %399 = vmatprep.subr.bf16.mxu0 0
  %400 = vmatpush2.bf16.msra.mxu0 %v306
  %401 = vmatprep.subr.bf16.mxu0 0
  %402 = vmatpush2.bf16.msra.mxu0 %v305
  %403 = vmatprep.subr.bf16.mxu0 0
  %404 = vmatpush2.bf16.msra.mxu0 %v304
  %405 = vmatprep.subr.bf16.mxu0 0
  %406 = vmatpush2.bf16.msra.mxu0 %v303
  %407 = vmatprep.mubr.bf16.mxu0 %v126
  %408 = vmatmul.mubr.bf16.gmra.mxu0 %v125
  %v409 = vpop.f32.mrf.mxu0
  %v410 = vadd.f32 0.0, %v409
  %v411 = vpop.f32.mrf.mxu0
  %v412 = vpop.f32.mrf.mxu0
  %v413 = vadd.f32 0.0, %v412
  %v414 = vpop.f32.mrf.mxu0
  %415 = vdwg.mxu0
  %416 = vmatprep.subr.bf16.mxu0 0
  %417 = vmatpush1.bf16.msra.mxu0 %v318
  %418 = vmatprep.subr.bf16.mxu0 0
  %419 = vmatpush1.bf16.msra.mxu0 %v317
  %420 = vmatprep.subr.bf16.mxu0 0
  %421 = vmatpush1.bf16.msra.mxu0 %v316
  %422 = vmatprep.subr.bf16.mxu0 0
  %423 = vmatpush1.bf16.msra.mxu0 %v315
  %424 = vmatprep.subr.bf16.mxu0 0
  %425 = vmatpush1.bf16.msra.mxu0 %v314
  %426 = vmatprep.subr.bf16.mxu0 0
  %427 = vmatpush1.bf16.msra.mxu0 %v313
  %428 = vmatprep.subr.bf16.mxu0 0
  %429 = vmatpush1.bf16.msra.mxu0 %v312
  %430 = vmatprep.subr.bf16.mxu0 0
  %431 = vmatpush1.bf16.msra.mxu0 %v311
  %432 = vmatprep.subr.bf16.mxu0 0
  %433 = vmatpush2.bf16.msra.mxu0 %v326
  %434 = vmatprep.subr.bf16.mxu0 0
  %435 = vmatpush2.bf16.msra.mxu0 %v325
  %436 = vmatprep.subr.bf16.mxu0 0
  %437 = vmatpush2.bf16.msra.mxu0 %v324
  %438 = vmatprep.subr.bf16.mxu0 0
  %439 = vmatpush2.bf16.msra.mxu0 %v323
  %440 = vmatprep.subr.bf16.mxu0 0
  %441 = vmatpush2.bf16.msra.mxu0 %v322
  %442 = vmatprep.subr.bf16.mxu0 0
  %443 = vmatpush2.bf16.msra.mxu0 %v321
  %444 = vmatprep.subr.bf16.mxu0 0
  %445 = vmatpush2.bf16.msra.mxu0 %v320
  %446 = vmatprep.subr.bf16.mxu0 0
  %447 = vmatpush2.bf16.msra.mxu0 %v319
  %448 = vmatprep.mubr.bf16.mxu0 %v128
  %449 = vmatmul.mubr.bf16.gmra.mxu0 %v127
  %v450 = vpop.f32.mrf.mxu0
  %v451 = vadd.f32 %v410, %v450
  %v452 = vpop.f32.mrf.mxu0
  %v453 = vpop.f32.mrf.mxu0
  %v454 = vadd.f32 %v413, %v453
  %v455 = vpop.f32.mrf.mxu0
  %456 = vdwg.mxu0
  %457 = vmatprep.subr.bf16.mxu0 0
  %458 = vmatpush1.bf16.msra.mxu0 %v334
  %459 = vmatprep.subr.bf16.mxu0 0
  %460 = vmatpush1.bf16.msra.mxu0 %v333
  %461 = vmatprep.subr.bf16.mxu0 0
  %462 = vmatpush1.bf16.msra.mxu0 %v332
  %463 = vmatprep.subr.bf16.mxu0 0
  %464 = vmatpush1.bf16.msra.mxu0 %v331
  %465 = vmatprep.subr.bf16.mxu0 0
  %466 = vmatpush1.bf16.msra.mxu0 %v330
  %467 = vmatprep.subr.bf16.mxu0 0
  %468 = vmatpush1.bf16.msra.mxu0 %v329
  %469 = vmatprep.subr.bf16.mxu0 0
  %470 = vmatpush1.bf16.msra.mxu0 %v328
  %471 = vmatprep.subr.bf16.mxu0 0
  %472 = vmatpush1.bf16.msra.mxu0 %v327
  %473 = vmatprep.subr.bf16.mxu0 0
  %474 = vmatpush2.bf16.msra.mxu0 0
  %475 = vmatprep.subr.bf16.mxu0 0
  %476 = vmatpush2.bf16.msra.mxu0 0
  %477 = vmatprep.subr.bf16.mxu0 0
  %478 = vmatpush2.bf16.msra.mxu0 0
  %479 = vmatprep.subr.bf16.mxu0 0
  %480 = vmatpush2.bf16.msra.mxu0 0
  %481 = vmatprep.subr.bf16.mxu0 0
  %482 = vmatpush2.bf16.msra.mxu0 0
  %483 = vmatprep.subr.bf16.mxu0 0
  %484 = vmatpush2.bf16.msra.mxu0 0
  %485 = vmatprep.subr.bf16.mxu0 0
  %486 = vmatpush2.bf16.msra.mxu0 0
  %487 = vmatprep.subr.bf16.mxu0 0
  %488 = vmatpush2.bf16.msra.mxu0 0
  %489 = vmatprep.mubr.bf16.mxu0 0
  %490 = vmatmul.mubr.bf16.gmra.mxu0 %v129
  %v491 = vpop.f32.mrf.mxu0
  %v492 = vadd.f32 %v451, %v491
  %v493 = vpop.f32.mrf.mxu0
  %v494 = vpop.f32.mrf.mxu0
  %v495 = vadd.f32 %v454, %v494
  %v496 = vpop.f32.mrf.mxu0
  %497 = vdwg.mxu0
  %v498 = vadd.f32 %v21, %v492
  %v499 = vadd.f32 %v22, %v495
  %500 = vst [vmem:[#allocation2] sm:$0xff] %v498
  %501 = vst [vmem:[#allocation2 + $0x8] sm:$0xff] %v499
  // Predicated region
  $region18: #{vae_forward.12} parent=0 // pred_check
    %p502 = pneg %p15
  $region19: #{vae_forward.12} parent=0 // pred_check_branch
    %504 = sbr.rel (%p502) target = $region21
  $region20: #{vae_forward.12} parent=0 // pred_region
    %v505 = vld [vmem:[#allocation2] sm:$0xff]
    %v506 = vld [vmem:[#allocation2 + $0x8] sm:$0xff]
    %v507 = vld [vmem:[%s2] sm:$0x1]
    %v509 = vlaneseq
    %v510 = vshrl.u32 %v509, 7
    %v511 = vsub.s32 0, %v510
    %v512 = vrot.slane %v507, %v511
    %v514 = vadd.f32 %v505, %v512
    %v515 = vadd.f32 %v506, %v512
    %v516 = vmax.f32 %v514, 0.0
    %v517 = vmax.f32 %v515, 0.0
    %v518 = vpack.c.bf16 %v517, %v516
    %v520 = vunpack.c.l.b16 %v518
    %v521 = vunpack.c.h.b16 %v518
    %v522 = vpack.c.b16 %v520, %v520
    %v523 = vpack.c.b16 %v521, %v521
    %526 = vst [vmem:[%s3] sm:$0xf] %v522
    %527 = vst [vmem:[%s3 + $0x4] sm:$0xf] %v523
  $region21: #{vae_forward.12} parent=0 // pred_fallthru
    _
  // Predicated region
  $region22: #{vae_forward.12} parent=0 // pred_check
    _
  $region23: #{vae_forward.12} parent=0 // pred_check_branch
    %529 = sbr.rel (0) target = $region25
  $region24: #{vae_forward.12} parent=0 // pred_region
    _
  $region25: #{vae_forward.12} parent=0 // pred_fallthru
    _
  // Predicated region
  $region26: #{vae_forward.12} parent=0 // pred_check
    _
  $region27: #{vae_forward.12} parent=0 // pred_check_branch
    %531 = sbr.rel (0) target = $region29
  $region28: #{vae_forward.12} parent=0 // pred_region
    _
  $region29: #{vae_forward.12} parent=0 // pred_fallthru
    _

// kernel: vae_forward.11
$region0: #{vae_forward.11}
  #allocation0 [shape = 'u32[]', space=smem, size = 0x4, offset = 0x4, fixed_abs, tag = 'smem constant byte address 0x4 - core index']
  #allocation1 [shape = 'u32[144,128]{1,0:T(1,128)}', space=vmem, size = 0x12000, scoped, tag = 'internal scratch']
  #allocation2 [shape = 'f32[32,128]{1,0:T(8,128)}', space=vmem, size = 0x4000, scoped, tag = 'scratch operand']
  %s0 = inlined_call_operand.vmem [shape: bf16[32,384], index: 0, kind: input, shape index: {}]
  %s1 = inlined_call_operand.vmem [shape: bf16[384,128], index: 1, kind: input, shape index: {}]
  %s2 = inlined_call_operand.vmem [shape: f32[1,128], index: 2, kind: input, shape index: {}]
  %s3 = inlined_call_operand.vmem [shape: bf16[32,128], index: 3, kind: output, shape index: {}]
  %s4 = sld [smem:[#allocation0]]
  $region30: #{vae_forward.11} parent=0
    _
  %s6 = ssub.s32 1, %s4
  %s7 = scalar_select 0, %s6, %s4
  // Predicated region
  $region2: #{vae_forward.11} parent=0 // pred_check
    _
  $region3: #{vae_forward.11} parent=0 // pred_check_branch
    %9 = sbr.rel (0) target = $region5
  $region4: #{vae_forward.11} parent=0 // pred_region
    _
  $region5: #{vae_forward.11} parent=0 // pred_fallthru
    _
  // Predicated region
  $region6: #{vae_forward.11} parent=0 // pred_check
    _
  $region7: #{vae_forward.11} parent=0 // pred_check_branch
    %11 = sbr.rel (0) target = $region9
  $region8: #{vae_forward.11} parent=0 // pred_region
    _
  $region9: #{vae_forward.11} parent=0 // pred_fallthru
    _
  // Predicated region
  $region10: #{vae_forward.11} parent=0 // pred_check
    _
  $region11: #{vae_forward.11} parent=0 // pred_check_branch
    %13 = sbr.rel (0) target = $region13
  $region12: #{vae_forward.11} parent=0 // pred_region
    _
  $region13: #{vae_forward.11} parent=0 // pred_fallthru
    _
  %p15 = scmp.eq.s32.totalorder 0, 0
  // Predicated region
  $region14: #{vae_forward.11} parent=0 // pred_check
    %p16 = pneg %p15
  $region15: #{vae_forward.11} parent=0 // pred_check_branch
    %18 = sbr.rel (%p16) target = $region17
  $region16: #{vae_forward.11} parent=0 // pred_region
    %19 = vst [vmem:[#allocation2] sm:$0xff] 0.0
    %20 = vst [vmem:[#allocation2 + $0x8] sm:$0xff] 0.0
    %21 = vst [vmem:[#allocation2 + $0x10] sm:$0xff] 0.0
    %22 = vst [vmem:[#allocation2 + $0x18] sm:$0xff] 0.0
  $region17: #{vae_forward.11} parent=0 // pred_fallthru
    _
  %v23 = vld [vmem:[#allocation2] sm:$0xff]
  %v24 = vld [vmem:[#allocation2 + $0x8] sm:$0xff]
  %v25 = vld [vmem:[#allocation2 + $0x10] sm:$0xff]
  %v26 = vld [vmem:[#allocation2 + $0x18] sm:$0xff]
  %v27 = vld [vmem:[%s0] sm:$0xff]
  %v28 = vld [vmem:[%s0 + $0x8] sm:$0xf]
  %v29 = vld [vmem:[%s0 + $0xc] sm:$0xff]
  %v30 = vld [vmem:[%s0 + $0x14] sm:$0xf]
  %v31 = vld [vmem:[%s0 + $0x18] sm:$0xff]
  %v32 = vld [vmem:[%s0 + $0x20] sm:$0xf]
  %v33 = vld [vmem:[%s0 + $0x24] sm:$0xff]
  %v34 = vld [vmem:[%s0 + $0x2c] sm:$0xf]
  %v35 = vld [vmem:[%s1] sm:$0xf]
  %v36 = vld [vmem:[%s1 + $0x4] sm:$0xf]
  %v37 = vld [vmem:[%s1 + $0x8] sm:$0xf]
  %v38 = vld [vmem:[%s1 + $0xc] sm:$0xf]
  %v39 = vld [vmem:[%s1 + $0x10] sm:$0xf]
  %v40 = vld [vmem:[%s1 + $0x14] sm:$0xf]
  %v41 = vld [vmem:[%s1 + $0x18] sm:$0xf]
  %v42 = vld [vmem:[%s1 + $0x1c] sm:$0xf]
  %v43 = vld [vmem:[%s1 + $0x20] sm:$0xf]
  %v44 = vld [vmem:[%s1 + $0x24] sm:$0xf]
  %v45 = vld [vmem:[%s1 + $0x28] sm:$0xf]
  %v46 = vld [vmem:[%s1 + $0x2c] sm:$0xf]
  %v47 = vld [vmem:[%s1 + $0x30] sm:$0xf]
  %v48 = vld [vmem:[%s1 + $0x34] sm:$0xf]
  %v49 = vld [vmem:[%s1 + $0x38] sm:$0xf]
  %v50 = vld [vmem:[%s1 + $0x3c] sm:$0xf]
  %v51 = vld [vmem:[%s1 + $0x40] sm:$0xf]
  %v52 = vld [vmem:[%s1 + $0x44] sm:$0xf]
  %v53 = vld [vmem:[%s1 + $0x48] sm:$0xf]
  %v54 = vld [vmem:[%s1 + $0x4c] sm:$0xf]
  %v55 = vld [vmem:[%s1 + $0x50] sm:$0xf]
  %v56 = vld [vmem:[%s1 + $0x54] sm:$0xf]
  %v57 = vld [vmem:[%s1 + $0x58] sm:$0xf]
  %v58 = vld [vmem:[%s1 + $0x5c] sm:$0xf]
  %v59 = vld [vmem:[%s1 + $0x60] sm:$0xf]
  %v60 = vld [vmem:[%s1 + $0x64] sm:$0xf]
  %v61 = vld [vmem:[%s1 + $0x68] sm:$0xf]
  %v62 = vld [vmem:[%s1 + $0x6c] sm:$0xf]
  %v63 = vld [vmem:[%s1 + $0x70] sm:$0xf]
  %v64 = vld [vmem:[%s1 + $0x74] sm:$0xf]
  %v65 = vld [vmem:[%s1 + $0x78] sm:$0xf]
  %v66 = vld [vmem:[%s1 + $0x7c] sm:$0xf]
  %v67 = vld [vmem:[%s1 + $0x80] sm:$0xf]
  %v68 = vld [vmem:[%s1 + $0x84] sm:$0xf]
  %v69 = vld [vmem:[%s1 + $0x88] sm:$0xf]
  %v70 = vld [vmem:[%s1 + $0x8c] sm:$0xf]
  %v71 = vld [vmem:[%s1 + $0x90] sm:$0xf]
  %v72 = vld [vmem:[%s1 + $0x94] sm:$0xf]
  %v73 = vld [vmem:[%s1 + $0x98] sm:$0xf]
  %v74 = vld [vmem:[%s1 + $0x9c] sm:$0xf]
  %v75 = vld [vmem:[%s1 + $0xa0] sm:$0xf]
  %v76 = vld [vmem:[%s1 + $0xa4] sm:$0xf]
  %v77 = vld [vmem:[%s1 + $0xa8] sm:$0xf]
  %v78 = vld [vmem:[%s1 + $0xac] sm:$0xf]
  %v79 = vld [vmem:[%s1 + $0xb0] sm:$0xf]
  %v80 = vld [vmem:[%s1 + $0xb4] sm:$0xf]
  %v81 = vld [vmem:[%s1 + $0xb8] sm:$0xf]
  %v82 = vld [vmem:[%s1 + $0xbc] sm:$0xf]
  %v91 = vunpack.c.l.b16 %v27
  %v92 = vunpack.c.h.b16 %v27
  %v93 = vunpack.c.l.b16 %v28
  %v94 = vunpack.c.l.b16 %v29
  %v95 = vunpack.c.h.b16 %v29
  %v96 = vunpack.c.l.b16 %v30
  %v97 = vunpack.c.l.b16 %v31
  %v98 = vunpack.c.h.b16 %v31
  %v99 = vunpack.c.l.b16 %v32
  %v100 = vunpack.c.l.b16 %v33
  %v101 = vunpack.c.h.b16 %v33
  %v102 = vunpack.c.l.b16 %v34
  %v103 = vpack.c.b16 %v94, %v91
  %v104 = vpack.c.b16 %v95, %v92
  %v105 = vpack.c.b16 %v96, %v93
  %v106 = vpack.c.b16 %v100, %v97
  %v107 = vpack.c.b16 %v101, %v98
  %v108 = vpack.c.b16 %v102, %v99
  %v163 = vunpack.c.l.b16 %v35
  %v164 = vunpack.c.l.b16 %v36
  %v165 = vunpack.c.l.b16 %v37
  %v166 = vunpack.c.l.b16 %v38
  %v167 = vunpack.c.l.b16 %v39
  %v168 = vunpack.c.l.b16 %v40
  %v169 = vunpack.c.l.b16 %v41
  %v170 = vunpack.c.l.b16 %v42
  %v171 = vunpack.c.l.b16 %v43
  %v172 = vunpack.c.l.b16 %v44
  %v173 = vunpack.c.l.b16 %v45
  %v174 = vunpack.c.l.b16 %v46
  %v175 = vunpack.c.l.b16 %v47
  %v176 = vunpack.c.l.b16 %v48
  %v177 = vunpack.c.l.b16 %v49
  %v178 = vunpack.c.l.b16 %v50
  %v179 = vunpack.c.l.b16 %v51
  %v180 = vunpack.c.l.b16 %v52
  %v181 = vunpack.c.l.b16 %v53
  %v182 = vunpack.c.l.b16 %v54
  %v183 = vunpack.c.l.b16 %v55
  %v184 = vunpack.c.l.b16 %v56
  %v185 = vunpack.c.l.b16 %v57
  %v186 = vunpack.c.l.b16 %v58
  %v187 = vunpack.c.l.b16 %v59
  %v188 = vunpack.c.l.b16 %v60
  %v189 = vunpack.c.l.b16 %v61
  %v190 = vunpack.c.l.b16 %v62
  %v191 = vunpack.c.l.b16 %v63
  %v192 = vunpack.c.l.b16 %v64
  %v193 = vunpack.c.l.b16 %v65
  %v194 = vunpack.c.l.b16 %v66
  %v195 = vunpack.c.l.b16 %v67
  %v196 = vunpack.c.l.b16 %v68
  %v197 = vunpack.c.l.b16 %v69
  %v198 = vunpack.c.l.b16 %v70
  %v199 = vunpack.c.l.b16 %v71
  %v200 = vunpack.c.l.b16 %v72
  %v201 = vunpack.c.l.b16 %v73
  %v202 = vunpack.c.l.b16 %v74
  %v203 = vunpack.c.l.b16 %v75
  %v204 = vunpack.c.l.b16 %v76
  %v205 = vunpack.c.l.b16 %v77
  %v206 = vunpack.c.l.b16 %v78
  %v207 = vunpack.c.l.b16 %v79
  %v208 = vunpack.c.l.b16 %v80
  %v209 = vunpack.c.l.b16 %v81
  %v210 = vunpack.c.l.b16 %v82
  %v211 = vpack.c.b16 %v164, %v163
  %v212 = vpack.c.b16 %v166, %v165
  %v213 = vpack.c.b16 %v168, %v167
  %v214 = vpack.c.b16 %v170, %v169
  %v215 = vpack.c.b16 %v172, %v171
  %v216 = vpack.c.b16 %v174, %v173
  %v217 = vpack.c.b16 %v176, %v175
  %v218 = vpack.c.b16 %v178, %v177
  %v219 = vpack.c.b16 %v180, %v179
  %v220 = vpack.c.b16 %v182, %v181
  %v221 = vpack.c.b16 %v184, %v183
  %v222 = vpack.c.b16 %v186, %v185
  %v223 = vpack.c.b16 %v188, %v187
  %v224 = vpack.c.b16 %v190, %v189
  %v225 = vpack.c.b16 %v192, %v191
  %v226 = vpack.c.b16 %v194, %v193
  %v227 = vpack.c.b16 %v196, %v195
  %v228 = vpack.c.b16 %v198, %v197
  %v229 = vpack.c.b16 %v200, %v199
  %v230 = vpack.c.b16 %v202, %v201
  %v231 = vpack.c.b16 %v204, %v203
  %v232 = vpack.c.b16 %v206, %v205
  %v233 = vpack.c.b16 %v208, %v207
  %v234 = vpack.c.b16 %v210, %v209
  %259 = vmatprep.subr.bf16.mxu0 0
  %260 = vmatpush1.bf16.msra.mxu0 %v218
  %261 = vmatprep.subr.bf16.mxu0 0
  %262 = vmatpush1.bf16.msra.mxu0 %v217
  %263 = vmatprep.subr.bf16.mxu0 0
  %264 = vmatpush1.bf16.msra.mxu0 %v216
  %265 = vmatprep.subr.bf16.mxu0 0
  %266 = vmatpush1.bf16.msra.mxu0 %v215
  %267 = vmatprep.subr.bf16.mxu0 0
  %268 = vmatpush1.bf16.msra.mxu0 %v214
  %269 = vmatprep.subr.bf16.mxu0 0
  %270 = vmatpush1.bf16.msra.mxu0 %v213
  %271 = vmatprep.subr.bf16.mxu0 0
  %272 = vmatpush1.bf16.msra.mxu0 %v212
  %273 = vmatprep.subr.bf16.mxu0 0
  %274 = vmatpush1.bf16.msra.mxu0 %v211
  %275 = vmatprep.subr.bf16.mxu0 0
  %276 = vmatpush2.bf16.msra.mxu0 %v226
  %277 = vmatprep.subr.bf16.mxu0 0
  %278 = vmatpush2.bf16.msra.mxu0 %v225
  %279 = vmatprep.subr.bf16.mxu0 0
  %280 = vmatpush2.bf16.msra.mxu0 %v224
  %281 = vmatprep.subr.bf16.mxu0 0
  %282 = vmatpush2.bf16.msra.mxu0 %v223
  %283 = vmatprep.subr.bf16.mxu0 0
  %284 = vmatpush2.bf16.msra.mxu0 %v222
  %285 = vmatprep.subr.bf16.mxu0 0
  %286 = vmatpush2.bf16.msra.mxu0 %v221
  %287 = vmatprep.subr.bf16.mxu0 0
  %288 = vmatpush2.bf16.msra.mxu0 %v220
  %289 = vmatprep.subr.bf16.mxu0 0
  %290 = vmatpush2.bf16.msra.mxu0 %v219
  %291 = vmatprep.mubr.bf16.mxu0 %v104
  %292 = vmatmul.mubr.bf16.gmra.mxu0 %v103
  %v293 = vpop.f32.mrf.mxu0
  %v294 = vadd.f32 0.0, %v293
  %v295 = vpop.f32.mrf.mxu0
  %v296 = vpop.f32.mrf.mxu0
  %v297 = vadd.f32 0.0, %v296
  %v298 = vpop.f32.mrf.mxu0
  %299 = vmatprep.mubr.bf16.mxu0 %v107
  %300 = vmatmul.mubr.bf16.gmra.mxu0 %v106
  %v301 = vpop.f32.mrf.mxu0
  %v302 = vadd.f32 0.0, %v301
  %v303 = vpop.f32.mrf.mxu0
  %v304 = vpop.f32.mrf.mxu0
  %v305 = vadd.f32 0.0, %v304
  %v306 = vpop.f32.mrf.mxu0
  %307 = vdwg.mxu0
  %308 = vmatprep.subr.bf16.mxu0 0
  %309 = vmatpush1.bf16.msra.mxu0 %v234
  %310 = vmatprep.subr.bf16.mxu0 0
  %311 = vmatpush1.bf16.msra.mxu0 %v233
  %312 = vmatprep.subr.bf16.mxu0 0
  %313 = vmatpush1.bf16.msra.mxu0 %v232
  %314 = vmatprep.subr.bf16.mxu0 0
  %315 = vmatpush1.bf16.msra.mxu0 %v231
  %316 = vmatprep.subr.bf16.mxu0 0
  %317 = vmatpush1.bf16.msra.mxu0 %v230
  %318 = vmatprep.subr.bf16.mxu0 0
  %319 = vmatpush1.bf16.msra.mxu0 %v229
  %320 = vmatprep.subr.bf16.mxu0 0
  %321 = vmatpush1.bf16.msra.mxu0 %v228
  %322 = vmatprep.subr.bf16.mxu0 0
  %323 = vmatpush1.bf16.msra.mxu0 %v227
  %324 = vmatprep.subr.bf16.mxu0 0
  %325 = vmatpush2.bf16.msra.mxu0 0
  %326 = vmatprep.subr.bf16.mxu0 0
  %327 = vmatpush2.bf16.msra.mxu0 0
  %328 = vmatprep.subr.bf16.mxu0 0
  %329 = vmatpush2.bf16.msra.mxu0 0
  %330 = vmatprep.subr.bf16.mxu0 0
  %331 = vmatpush2.bf16.msra.mxu0 0
  %332 = vmatprep.subr.bf16.mxu0 0
  %333 = vmatpush2.bf16.msra.mxu0 0
  %334 = vmatprep.subr.bf16.mxu0 0
  %335 = vmatpush2.bf16.msra.mxu0 0
  %336 = vmatprep.subr.bf16.mxu0 0
  %337 = vmatpush2.bf16.msra.mxu0 0
  %338 = vmatprep.subr.bf16.mxu0 0
  %339 = vmatpush2.bf16.msra.mxu0 0
  %340 = vmatprep.mubr.bf16.mxu0 0
  %341 = vmatmul.mubr.bf16.gmra.mxu0 %v105
  %v342 = vpop.f32.mrf.mxu0
  %v343 = vadd.f32 %v294, %v342
  %v344 = vpop.f32.mrf.mxu0
  %v345 = vpop.f32.mrf.mxu0
  %v346 = vadd.f32 %v297, %v345
  %v347 = vpop.f32.mrf.mxu0
  %348 = vmatprep.mubr.bf16.mxu0 0
  %349 = vmatmul.mubr.bf16.gmra.mxu0 %v108
  %v350 = vpop.f32.mrf.mxu0
  %v351 = vadd.f32 %v302, %v350
  %v352 = vpop.f32.mrf.mxu0
  %v353 = vpop.f32.mrf.mxu0
  %v354 = vadd.f32 %v305, %v353
  %v355 = vpop.f32.mrf.mxu0
  %356 = vdwg.mxu0
  %v357 = vadd.f32 %v23, %v343
  %v358 = vadd.f32 %v24, %v346
  %v359 = vadd.f32 %v25, %v351
  %v360 = vadd.f32 %v26, %v354
  %361 = vst [vmem:[#allocation2] sm:$0xff] %v357
  %362 = vst [vmem:[#allocation2 + $0x8] sm:$0xff] %v358
  %363 = vst [vmem:[#allocation2 + $0x10] sm:$0xff] %v359
  %364 = vst [vmem:[#allocation2 + $0x18] sm:$0xff] %v360
  // Predicated region
  $region18: #{vae_forward.11} parent=0 // pred_check
    %p365 = pneg %p15
  $region19: #{vae_forward.11} parent=0 // pred_check_branch
    %367 = sbr.rel (%p365) target = $region21
  $region20: #{vae_forward.11} parent=0 // pred_region
    %v368 = vld [vmem:[#allocation2] sm:$0xff]
    %v369 = vld [vmem:[#allocation2 + $0x8] sm:$0xff]
    %v370 = vld [vmem:[#allocation2 + $0x10] sm:$0xff]
    %v371 = vld [vmem:[#allocation2 + $0x18] sm:$0xff]
    %v372 = vld [vmem:[%s2] sm:$0x1]
    %v374 = vlaneseq
    %v375 = vshrl.u32 %v374, 7
    %v376 = vsub.s32 0, %v375
    %v377 = vrot.slane %v372, %v376
    %v379 = vadd.f32 %v368, %v377
    %v380 = vadd.f32 %v369, %v377
    %v381 = vadd.f32 %v370, %v377
    %v382 = vadd.f32 %v371, %v377
    %v383 = vmax.f32 %v379, 0.0
    %v384 = vmax.f32 %v380, 0.0
    %v385 = vmax.f32 %v381, 0.0
    %v386 = vmax.f32 %v382, 0.0
    %v387 = vpack.c.bf16 %v384, %v383
    %v388 = vpack.c.bf16 %v386, %v385
    %v391 = vunpack.c.l.b16 %v387
    %v392 = vunpack.c.h.b16 %v387
    %v393 = vunpack.c.l.b16 %v388
    %v394 = vunpack.c.h.b16 %v388
    %v395 = vpack.c.b16 %v391, %v391
    %v396 = vpack.c.b16 %v392, %v392
    %v397 = vpack.c.b16 %v393, %v393
    %v398 = vpack.c.b16 %v394, %v394
    %403 = vst [vmem:[%s3] sm:$0xf] %v395
    %404 = vst [vmem:[%s3 + $0x4] sm:$0xf] %v396
    %405 = vst [vmem:[%s3 + $0x8] sm:$0xf] %v397
    %406 = vst [vmem:[%s3 + $0xc] sm:$0xf] %v398
  $region21: #{vae_forward.11} parent=0 // pred_fallthru
    _
  // Predicated region
  $region22: #{vae_forward.11} parent=0 // pred_check
    _
  $region23: #{vae_forward.11} parent=0 // pred_check_branch
    %408 = sbr.rel (0) target = $region25
  $region24: #{vae_forward.11} parent=0 // pred_region
    _
  $region25: #{vae_forward.11} parent=0 // pred_fallthru
    _
  // Predicated region
  $region26: #{vae_forward.11} parent=0 // pred_check
    _
  $region27: #{vae_forward.11} parent=0 // pred_check_branch
    %410 = sbr.rel (0) target = $region29
  $region28: #{vae_forward.11} parent=0 // pred_region
    _
  $region29: #{vae_forward.11} parent=0 // pred_fallthru
    _

// kernel: vae_forward.13
$region0: #{vae_forward.13}
  #allocation0 [shape = 'u32[]', space=smem, size = 0x4, offset = 0x4, fixed_abs, tag = 'smem constant byte address 0x4 - core index']
  #allocation1 [shape = 'u32[144,128]{1,0:T(1,128)}', space=vmem, size = 0x12000, scoped, tag = 'internal scratch']
  #allocation2 [shape = 'f32[16,128]{1,0:T(8,128)}', space=vmem, size = 0x2000, scoped, tag = 'scratch operand']
  %s0 = inlined_call_operand.vmem [shape: bf16[16,512], index: 0, kind: input, shape index: {}]
  %s1 = inlined_call_operand.vmem [shape: bf16[512,128], index: 1, kind: input, shape index: {}]
  %s2 = inlined_call_operand.vmem [shape: f32[1,128], index: 2, kind: input, shape index: {}]
  %s3 = inlined_call_operand.vmem [shape: f32[16,128], index: 3, kind: output, shape index: {}]
  %s4 = sld [smem:[#allocation0]]
  $region30: #{vae_forward.13} parent=0
    _
  %s6 = ssub.s32 1, %s4
  %s7 = scalar_select 0, %s6, %s4
  // Predicated region
  $region2: #{vae_forward.13} parent=0 // pred_check
    _
  $region3: #{vae_forward.13} parent=0 // pred_check_branch
    %9 = sbr.rel (0) target = $region5
  $region4: #{vae_forward.13} parent=0 // pred_region
    _
  $region5: #{vae_forward.13} parent=0 // pred_fallthru
    _
  // Predicated region
  $region6: #{vae_forward.13} parent=0 // pred_check
    _
  $region7: #{vae_forward.13} parent=0 // pred_check_branch
    %11 = sbr.rel (0) target = $region9
  $region8: #{vae_forward.13} parent=0 // pred_region
    _
  $region9: #{vae_forward.13} parent=0 // pred_fallthru
    _
  // Predicated region
  $region10: #{vae_forward.13} parent=0 // pred_check
    _
  $region11: #{vae_forward.13} parent=0 // pred_check_branch
    %13 = sbr.rel (0) target = $region13
  $region12: #{vae_forward.13} parent=0 // pred_region
    _
  $region13: #{vae_forward.13} parent=0 // pred_fallthru
    _
  %p15 = scmp.eq.s32.totalorder 0, 0
  // Predicated region
  $region14: #{vae_forward.13} parent=0 // pred_check
    %p16 = pneg %p15
  $region15: #{vae_forward.13} parent=0 // pred_check_branch
    %18 = sbr.rel (%p16) target = $region17
  $region16: #{vae_forward.13} parent=0 // pred_region
    %19 = vst [vmem:[#allocation2] sm:$0xff] 0.0
    %20 = vst [vmem:[#allocation2 + $0x8] sm:$0xff] 0.0
  $region17: #{vae_forward.13} parent=0 // pred_fallthru
    _
  %v21 = vld [vmem:[#allocation2] sm:$0xff]
  %v22 = vld [vmem:[#allocation2 + $0x8] sm:$0xff]
  %v23 = vld [vmem:[%s0] sm:$0xff]
  %v24 = vld [vmem:[%s0 + $0x8] sm:$0xff]
  %v25 = vld [vmem:[%s0 + $0x10] sm:$0xff]
  %v26 = vld [vmem:[%s0 + $0x18] sm:$0xff]
  %v27 = vld [vmem:[%s1] sm:$0xf]
  %v28 = vld [vmem:[%s1 + $0x4] sm:$0xf]
  %v29 = vld [vmem:[%s1 + $0x8] sm:$0xf]
  %v30 = vld [vmem:[%s1 + $0xc] sm:$0xf]
  %v31 = vld [vmem:[%s1 + $0x10] sm:$0xf]
  %v32 = vld [vmem:[%s1 + $0x14] sm:$0xf]
  %v33 = vld [vmem:[%s1 + $0x18] sm:$0xf]
  %v34 = vld [vmem:[%s1 + $0x1c] sm:$0xf]
  %v35 = vld [vmem:[%s1 + $0x20] sm:$0xf]
  %v36 = vld [vmem:[%s1 + $0x24] sm:$0xf]
  %v37 = vld [vmem:[%s1 + $0x28] sm:$0xf]
  %v38 = vld [vmem:[%s1 + $0x2c] sm:$0xf]
  %v39 = vld [vmem:[%s1 + $0x30] sm:$0xf]
  %v40 = vld [vmem:[%s1 + $0x34] sm:$0xf]
  %v41 = vld [vmem:[%s1 + $0x38] sm:$0xf]
  %v42 = vld [vmem:[%s1 + $0x3c] sm:$0xf]
  %v43 = vld [vmem:[%s1 + $0x40] sm:$0xf]
  %v44 = vld [vmem:[%s1 + $0x44] sm:$0xf]
  %v45 = vld [vmem:[%s1 + $0x48] sm:$0xf]
  %v46 = vld [vmem:[%s1 + $0x4c] sm:$0xf]
  %v47 = vld [vmem:[%s1 + $0x50] sm:$0xf]
  %v48 = vld [vmem:[%s1 + $0x54] sm:$0xf]
  %v49 = vld [vmem:[%s1 + $0x58] sm:$0xf]
  %v50 = vld [vmem:[%s1 + $0x5c] sm:$0xf]
  %v51 = vld [vmem:[%s1 + $0x60] sm:$0xf]
  %v52 = vld [vmem:[%s1 + $0x64] sm:$0xf]
  %v53 = vld [vmem:[%s1 + $0x68] sm:$0xf]
  %v54 = vld [vmem:[%s1 + $0x6c] sm:$0xf]
  %v55 = vld [vmem:[%s1 + $0x70] sm:$0xf]
  %v56 = vld [vmem:[%s1 + $0x74] sm:$0xf]
  %v57 = vld [vmem:[%s1 + $0x78] sm:$0xf]
  %v58 = vld [vmem:[%s1 + $0x7c] sm:$0xf]
  %v59 = vld [vmem:[%s1 + $0x80] sm:$0xf]
  %v60 = vld [vmem:[%s1 + $0x84] sm:$0xf]
  %v61 = vld [vmem:[%s1 + $0x88] sm:$0xf]
  %v62 = vld [vmem:[%s1 + $0x8c] sm:$0xf]
  %v63 = vld [vmem:[%s1 + $0x90] sm:$0xf]
  %v64 = vld [vmem:[%s1 + $0x94] sm:$0xf]
  %v65 = vld [vmem:[%s1 + $0x98] sm:$0xf]
  %v66 = vld [vmem:[%s1 + $0x9c] sm:$0xf]
  %v67 = vld [vmem:[%s1 + $0xa0] sm:$0xf]
  %v68 = vld [vmem:[%s1 + $0xa4] sm:$0xf]
  %v69 = vld [vmem:[%s1 + $0xa8] sm:$0xf]
  %v70 = vld [vmem:[%s1 + $0xac] sm:$0xf]
  %v71 = vld [vmem:[%s1 + $0xb0] sm:$0xf]
  %v72 = vld [vmem:[%s1 + $0xb4] sm:$0xf]
  %v73 = vld [vmem:[%s1 + $0xb8] sm:$0xf]
  %v74 = vld [vmem:[%s1 + $0xbc] sm:$0xf]
  %v75 = vld [vmem:[%s1 + $0xc0] sm:$0xf]
  %v76 = vld [vmem:[%s1 + $0xc4] sm:$0xf]
  %v77 = vld [vmem:[%s1 + $0xc8] sm:$0xf]
  %v78 = vld [vmem:[%s1 + $0xcc] sm:$0xf]
  %v79 = vld [vmem:[%s1 + $0xd0] sm:$0xf]
  %v80 = vld [vmem:[%s1 + $0xd4] sm:$0xf]
  %v81 = vld [vmem:[%s1 + $0xd8] sm:$0xf]
  %v82 = vld [vmem:[%s1 + $0xdc] sm:$0xf]
  %v83 = vld [vmem:[%s1 + $0xe0] sm:$0xf]
  %v84 = vld [vmem:[%s1 + $0xe4] sm:$0xf]
  %v85 = vld [vmem:[%s1 + $0xe8] sm:$0xf]
  %v86 = vld [vmem:[%s1 + $0xec] sm:$0xf]
  %v87 = vld [vmem:[%s1 + $0xf0] sm:$0xf]
  %v88 = vld [vmem:[%s1 + $0xf4] sm:$0xf]
  %v89 = vld [vmem:[%s1 + $0xf8] sm:$0xf]
  %v90 = vld [vmem:[%s1 + $0xfc] sm:$0xf]
  %v95 = vunpack.c.l.b16 %v23
  %v96 = vunpack.c.h.b16 %v23
  %v97 = vunpack.c.l.b16 %v24
  %v98 = vunpack.c.h.b16 %v24
  %v99 = vunpack.c.l.b16 %v25
  %v100 = vunpack.c.h.b16 %v25
  %v101 = vunpack.c.l.b16 %v26
  %v102 = vunpack.c.h.b16 %v26
  %v103 = vpack.c.b16 %v99, %v95
  %v104 = vpack.c.b16 %v100, %v96
  %v105 = vpack.c.b16 %v101, %v97
  %v106 = vpack.c.b16 %v102, %v98
  %v175 = vunpack.c.l.b16 %v27
  %v176 = vunpack.c.l.b16 %v28
  %v177 = vunpack.c.l.b16 %v29
  %v178 = vunpack.c.l.b16 %v30
  %v179 = vunpack.c.l.b16 %v31
  %v180 = vunpack.c.l.b16 %v32
  %v181 = vunpack.c.l.b16 %v33
  %v182 = vunpack.c.l.b16 %v34
  %v183 = vunpack.c.l.b16 %v35
  %v184 = vunpack.c.l.b16 %v36
  %v185 = vunpack.c.l.b16 %v37
  %v186 = vunpack.c.l.b16 %v38
  %v187 = vunpack.c.l.b16 %v39
  %v188 = vunpack.c.l.b16 %v40
  %v189 = vunpack.c.l.b16 %v41
  %v190 = vunpack.c.l.b16 %v42
  %v191 = vunpack.c.l.b16 %v43
  %v192 = vunpack.c.l.b16 %v44
  %v193 = vunpack.c.l.b16 %v45
  %v194 = vunpack.c.l.b16 %v46
  %v195 = vunpack.c.l.b16 %v47
  %v196 = vunpack.c.l.b16 %v48
  %v197 = vunpack.c.l.b16 %v49
  %v198 = vunpack.c.l.b16 %v50
  %v199 = vunpack.c.l.b16 %v51
  %v200 = vunpack.c.l.b16 %v52
  %v201 = vunpack.c.l.b16 %v53
  %v202 = vunpack.c.l.b16 %v54
  %v203 = vunpack.c.l.b16 %v55
  %v204 = vunpack.c.l.b16 %v56
  %v205 = vunpack.c.l.b16 %v57
  %v206 = vunpack.c.l.b16 %v58
  %v207 = vunpack.c.l.b16 %v59
  %v208 = vunpack.c.l.b16 %v60
  %v209 = vunpack.c.l.b16 %v61
  %v210 = vunpack.c.l.b16 %v62
  %v211 = vunpack.c.l.b16 %v63
  %v212 = vunpack.c.l.b16 %v64
  %v213 = vunpack.c.l.b16 %v65
  %v214 = vunpack.c.l.b16 %v66
  %v215 = vunpack.c.l.b16 %v67
  %v216 = vunpack.c.l.b16 %v68
  %v217 = vunpack.c.l.b16 %v69
  %v218 = vunpack.c.l.b16 %v70
  %v219 = vunpack.c.l.b16 %v71
  %v220 = vunpack.c.l.b16 %v72
  %v221 = vunpack.c.l.b16 %v73
  %v222 = vunpack.c.l.b16 %v74
  %v223 = vunpack.c.l.b16 %v75
  %v224 = vunpack.c.l.b16 %v76
  %v225 = vunpack.c.l.b16 %v77
  %v226 = vunpack.c.l.b16 %v78
  %v227 = vunpack.c.l.b16 %v79
  %v228 = vunpack.c.l.b16 %v80
  %v229 = vunpack.c.l.b16 %v81
  %v230 = vunpack.c.l.b16 %v82
  %v231 = vunpack.c.l.b16 %v83
  %v232 = vunpack.c.l.b16 %v84
  %v233 = vunpack.c.l.b16 %v85
  %v234 = vunpack.c.l.b16 %v86
  %v235 = vunpack.c.l.b16 %v87
  %v236 = vunpack.c.l.b16 %v88
  %v237 = vunpack.c.l.b16 %v89
  %v238 = vunpack.c.l.b16 %v90
  %v239 = vpack.c.b16 %v176, %v175
  %v240 = vpack.c.b16 %v178, %v177
  %v241 = vpack.c.b16 %v180, %v179
  %v242 = vpack.c.b16 %v182, %v181
  %v243 = vpack.c.b16 %v184, %v183
  %v244 = vpack.c.b16 %v186, %v185
  %v245 = vpack.c.b16 %v188, %v187
  %v246 = vpack.c.b16 %v190, %v189
  %v247 = vpack.c.b16 %v192, %v191
  %v248 = vpack.c.b16 %v194, %v193
  %v249 = vpack.c.b16 %v196, %v195
  %v250 = vpack.c.b16 %v198, %v197
  %v251 = vpack.c.b16 %v200, %v199
  %v252 = vpack.c.b16 %v202, %v201
  %v253 = vpack.c.b16 %v204, %v203
  %v254 = vpack.c.b16 %v206, %v205
  %v255 = vpack.c.b16 %v208, %v207
  %v256 = vpack.c.b16 %v210, %v209
  %v257 = vpack.c.b16 %v212, %v211
  %v258 = vpack.c.b16 %v214, %v213
  %v259 = vpack.c.b16 %v216, %v215
  %v260 = vpack.c.b16 %v218, %v217
  %v261 = vpack.c.b16 %v220, %v219
  %v262 = vpack.c.b16 %v222, %v221
  %v263 = vpack.c.b16 %v224, %v223
  %v264 = vpack.c.b16 %v226, %v225
  %v265 = vpack.c.b16 %v228, %v227
  %v266 = vpack.c.b16 %v230, %v229
  %v267 = vpack.c.b16 %v232, %v231
  %v268 = vpack.c.b16 %v234, %v233
  %v269 = vpack.c.b16 %v236, %v235
  %v270 = vpack.c.b16 %v238, %v237
  %303 = vmatprep.subr.bf16.mxu0 0
  %304 = vmatpush1.bf16.msra.mxu0 %v246
  %305 = vmatprep.subr.bf16.mxu0 0
  %306 = vmatpush1.bf16.msra.mxu0 %v245
  %307 = vmatprep.subr.bf16.mxu0 0
  %308 = vmatpush1.bf16.msra.mxu0 %v244
  %309 = vmatprep.subr.bf16.mxu0 0
  %310 = vmatpush1.bf16.msra.mxu0 %v243
  %311 = vmatprep.subr.bf16.mxu0 0
  %312 = vmatpush1.bf16.msra.mxu0 %v242
  %313 = vmatprep.subr.bf16.mxu0 0
  %314 = vmatpush1.bf16.msra.mxu0 %v241
  %315 = vmatprep.subr.bf16.mxu0 0
  %316 = vmatpush1.bf16.msra.mxu0 %v240
  %317 = vmatprep.subr.bf16.mxu0 0
  %318 = vmatpush1.bf16.msra.mxu0 %v239
  %319 = vmatprep.subr.bf16.mxu0 0
  %320 = vmatpush2.bf16.msra.mxu0 %v254
  %321 = vmatprep.subr.bf16.mxu0 0
  %322 = vmatpush2.bf16.msra.mxu0 %v253
  %323 = vmatprep.subr.bf16.mxu0 0
  %324 = vmatpush2.bf16.msra.mxu0 %v252
  %325 = vmatprep.subr.bf16.mxu0 0
  %326 = vmatpush2.bf16.msra.mxu0 %v251
  %327 = vmatprep.subr.bf16.mxu0 0
  %328 = vmatpush2.bf16.msra.mxu0 %v250
  %329 = vmatprep.subr.bf16.mxu0 0
  %330 = vmatpush2.bf16.msra.mxu0 %v249
  %331 = vmatprep.subr.bf16.mxu0 0
  %332 = vmatpush2.bf16.msra.mxu0 %v248
  %333 = vmatprep.subr.bf16.mxu0 0
  %334 = vmatpush2.bf16.msra.mxu0 %v247
  %335 = vmatprep.mubr.bf16.mxu0 %v104
  %336 = vmatmul.mubr.bf16.gmra.mxu0 %v103
  %v337 = vpop.f32.mrf.mxu0
  %v338 = vadd.f32 0.0, %v337
  %v339 = vpop.f32.mrf.mxu0
  %v340 = vpop.f32.mrf.mxu0
  %v341 = vadd.f32 0.0, %v340
  %v342 = vpop.f32.mrf.mxu0
  %343 = vdwg.mxu0
  %344 = vmatprep.subr.bf16.mxu0 0
  %345 = vmatpush1.bf16.msra.mxu0 %v262
  %346 = vmatprep.subr.bf16.mxu0 0
  %347 = vmatpush1.bf16.msra.mxu0 %v261
  %348 = vmatprep.subr.bf16.mxu0 0
  %349 = vmatpush1.bf16.msra.mxu0 %v260
  %350 = vmatprep.subr.bf16.mxu0 0
  %351 = vmatpush1.bf16.msra.mxu0 %v259
  %352 = vmatprep.subr.bf16.mxu0 0
  %353 = vmatpush1.bf16.msra.mxu0 %v258
  %354 = vmatprep.subr.bf16.mxu0 0
  %355 = vmatpush1.bf16.msra.mxu0 %v257
  %356 = vmatprep.subr.bf16.mxu0 0
  %357 = vmatpush1.bf16.msra.mxu0 %v256
  %358 = vmatprep.subr.bf16.mxu0 0
  %359 = vmatpush1.bf16.msra.mxu0 %v255
  %360 = vmatprep.subr.bf16.mxu0 0
  %361 = vmatpush2.bf16.msra.mxu0 %v270
  %362 = vmatprep.subr.bf16.mxu0 0
  %363 = vmatpush2.bf16.msra.mxu0 %v269
  %364 = vmatprep.subr.bf16.mxu0 0
  %365 = vmatpush2.bf16.msra.mxu0 %v268
  %366 = vmatprep.subr.bf16.mxu0 0
  %367 = vmatpush2.bf16.msra.mxu0 %v267
  %368 = vmatprep.subr.bf16.mxu0 0
  %369 = vmatpush2.bf16.msra.mxu0 %v266
  %370 = vmatprep.subr.bf16.mxu0 0
  %371 = vmatpush2.bf16.msra.mxu0 %v265
  %372 = vmatprep.subr.bf16.mxu0 0
  %373 = vmatpush2.bf16.msra.mxu0 %v264
  %374 = vmatprep.subr.bf16.mxu0 0
  %375 = vmatpush2.bf16.msra.mxu0 %v263
  %376 = vmatprep.mubr.bf16.mxu0 %v106
  %377 = vmatmul.mubr.bf16.gmra.mxu0 %v105
  %v378 = vpop.f32.mrf.mxu0
  %v379 = vadd.f32 %v338, %v378
  %v380 = vpop.f32.mrf.mxu0
  %v381 = vpop.f32.mrf.mxu0
  %v382 = vadd.f32 %v341, %v381
  %v383 = vpop.f32.mrf.mxu0
  %384 = vdwg.mxu0
  %v385 = vadd.f32 %v21, %v379
  %v386 = vadd.f32 %v22, %v382
  %387 = vst [vmem:[#allocation2] sm:$0xff] %v385
  %388 = vst [vmem:[#allocation2 + $0x8] sm:$0xff] %v386
  // Predicated region
  $region18: #{vae_forward.13} parent=0 // pred_check
    %p389 = pneg %p15
  $region19: #{vae_forward.13} parent=0 // pred_check_branch
    %391 = sbr.rel (%p389) target = $region21
  $region20: #{vae_forward.13} parent=0 // pred_region
    %v392 = vld [vmem:[#allocation2] sm:$0xff]
    %v393 = vld [vmem:[#allocation2 + $0x8] sm:$0xff]
    %v394 = vld [vmem:[%s2] sm:$0x1]
    %v396 = vlaneseq
    %v397 = vshrl.u32 %v396, 7
    %v398 = vsub.s32 0, %v397
    %v399 = vrot.slane %v394, %v398
    %v401 = vadd.f32 %v392, %v399
    %v402 = vadd.f32 %v393, %v399
    %403 = vst [vmem:[%s3] sm:$0xff] %v401
    %404 = vst [vmem:[%s3 + $0x8] sm:$0xff] %v402
  $region21: #{vae_forward.13} parent=0 // pred_fallthru
    _
  // Predicated region
  $region22: #{vae_forward.13} parent=0 // pred_check
    _
  $region23: #{vae_forward.13} parent=0 // pred_check_branch
    %406 = sbr.rel (0) target = $region25
  $region24: #{vae_forward.13} parent=0 // pred_region
    _
  $region25: #{vae_forward.13} parent=0 // pred_fallthru
    _
  // Predicated region
  $region26: #{vae_forward.13} parent=0 // pred_check
    _
  $region27: #{vae_forward.13} parent=0 // pred_check_branch
    %408 = sbr.rel (0) target = $region29
  $region28: #{vae_forward.13} parent=0 // pred_region
    _
  $region29: #{vae_forward.13} parent=0 // pred_fallthru
    _

// kernel: vae_forward.14
$region0: #{vae_forward.14}
  #allocation0 [shape = 'u32[]', space=smem, size = 0x4, offset = 0x4, fixed_abs, tag = 'smem constant byte address 0x4 - core index']
  #allocation1 [shape = 'u32[144,128]{1,0:T(1,128)}', space=vmem, size = 0x12000, scoped, tag = 'internal scratch']
  %s0 = inlined_call_operand.vmem [shape: f32[8,128], index: 0, kind: input, shape index: {}]
  %s1 = inlined_call_operand.vmem [shape: f32[128,128], index: 1, kind: input, shape index: {}]
  %s2 = inlined_call_operand.vmem [shape: f32[1,128], index: 2, kind: input, shape index: {}]
  %s3 = inlined_call_operand.vmem [shape: f32[128,128], index: 3, kind: input, shape index: {}]
  %s4 = inlined_call_operand.vmem [shape: f32[1,128], index: 4, kind: input, shape index: {}]
  %s5 = inlined_call_operand.vmem [shape: f32[8,128], index: 5, kind: input, shape index: {}]
  %s6 = inlined_call_operand.vmem [shape: f32[8,128], index: 6, kind: output, shape index: {0}]
  %s7 = inlined_call_operand.vmem [shape: f32[8,128], index: 7, kind: output, shape index: {1}]
  %s8 = inlined_call_operand.vmem [shape: f32[8,128], index: 8, kind: output, shape index: {2}]
  %9 = xla_tuple %s6, %s7, %s8
  %s10 = sld [smem:[#allocation0]]
  $region50: #{vae_forward.14} parent=0
    _
  %s12 = ssub.s32 1, %s10
  %s13 = scalar_select 0, %s12, %s10
  // Predicated region
  $region2: #{vae_forward.14} parent=0 // pred_check
    _
  $region3: #{vae_forward.14} parent=0 // pred_check_branch
    %15 = sbr.rel (0) target = $region5
  $region4: #{vae_forward.14} parent=0 // pred_region
    _
  $region5: #{vae_forward.14} parent=0 // pred_fallthru
    _
  // Predicated region
  $region6: #{vae_forward.14} parent=0 // pred_check
    _
  $region7: #{vae_forward.14} parent=0 // pred_check_branch
    %17 = sbr.rel (0) target = $region9
  $region8: #{vae_forward.14} parent=0 // pred_region
    _
  $region9: #{vae_forward.14} parent=0 // pred_fallthru
    _
  // Predicated region
  $region10: #{vae_forward.14} parent=0 // pred_check
    _
  $region11: #{vae_forward.14} parent=0 // pred_check_branch
    %19 = sbr.rel (0) target = $region13
  $region12: #{vae_forward.14} parent=0 // pred_region
    _
  $region13: #{vae_forward.14} parent=0 // pred_fallthru
    _
  // Predicated region
  $region14: #{vae_forward.14} parent=0 // pred_check
    _
  $region15: #{vae_forward.14} parent=0 // pred_check_branch
    %21 = sbr.rel (0) target = $region17
  $region16: #{vae_forward.14} parent=0 // pred_region
    _
  $region17: #{vae_forward.14} parent=0 // pred_fallthru
    _
  // Predicated region
  $region18: #{vae_forward.14} parent=0 // pred_check
    _
  $region19: #{vae_forward.14} parent=0 // pred_check_branch
    %23 = sbr.rel (0) target = $region21
  $region20: #{vae_forward.14} parent=0 // pred_region
    _
  $region21: #{vae_forward.14} parent=0 // pred_fallthru
    _
  // Predicated region
  $region22: #{vae_forward.14} parent=0 // pred_check
    _
  $region23: #{vae_forward.14} parent=0 // pred_check_branch
    %25 = sbr.rel (0) target = $region25
  $region24: #{vae_forward.14} parent=0 // pred_region
    _
  $region25: #{vae_forward.14} parent=0 // pred_fallthru
    _
  %v26 = vld [vmem:[%s0] sm:$0xff]
  %v27 = vld [vmem:[%s1] sm:$0xff]
  %v28 = vld [vmem:[%s1 + $0x8] sm:$0xff]
  %v29 = vld [vmem:[%s1 + $0x10] sm:$0xff]
  %v30 = vld [vmem:[%s1 + $0x18] sm:$0xff]
  %v31 = vld [vmem:[%s1 + $0x20] sm:$0xff]
  %v32 = vld [vmem:[%s1 + $0x28] sm:$0xff]
  %v33 = vld [vmem:[%s1 + $0x30] sm:$0xff]
  %v34 = vld [vmem:[%s1 + $0x38] sm:$0xff]
  %v35 = vld [vmem:[%s1 + $0x40] sm:$0xff]
  %v36 = vld [vmem:[%s1 + $0x48] sm:$0xff]
  %v37 = vld [vmem:[%s1 + $0x50] sm:$0xff]
  %v38 = vld [vmem:[%s1 + $0x58] sm:$0xff]
  %v39 = vld [vmem:[%s1 + $0x60] sm:$0xff]
  %v40 = vld [vmem:[%s1 + $0x68] sm:$0xff]
  %v41 = vld [vmem:[%s1 + $0x70] sm:$0xff]
  %v42 = vld [vmem:[%s1 + $0x78] sm:$0xff]
  %v43 = vld [vmem:[%s2] sm:$0x1]
  %v45 = vlaneseq
  %v46 = vshrl.u32 %v45, 7
  %v47 = vsub.s32 0, %v46
  %v48 = vrot.slane %v43, %v47
  %50 = vmatprep.subr.mxu0 0.0
  %51 = vmatpush1.msra.mxu0 %v42
  %52 = vmatprep.subr.mxu0 0.0
  %53 = vmatpush1.msra.mxu0 %v41
  %54 = vmatprep.subr.mxu0 0.0
  %55 = vmatpush1.msra.mxu0 %v40
  %56 = vmatprep.subr.mxu0 0.0
  %57 = vmatpush1.msra.mxu0 %v39
  %58 = vmatprep.subr.mxu0 0.0
  %59 = vmatpush1.msra.mxu0 %v38
  %60 = vmatprep.subr.mxu0 0.0
  %61 = vmatpush1.msra.mxu0 %v37
  %62 = vmatprep.subr.mxu0 0.0
  %63 = vmatpush1.msra.mxu0 %v36
  %64 = vmatprep.subr.mxu0 0.0
  %65 = vmatpush1.msra.mxu0 %v35
  %66 = vmatprep.subr.mxu0 0.0
  %67 = vmatpush1.msra.mxu0 %v34
  %68 = vmatprep.subr.mxu0 0.0
  %69 = vmatpush1.msra.mxu0 %v33
  %70 = vmatprep.subr.mxu0 0.0
  %71 = vmatpush1.msra.mxu0 %v32
  %72 = vmatprep.subr.mxu0 0.0
  %73 = vmatpush1.msra.mxu0 %v31
  %74 = vmatprep.subr.mxu0 0.0
  %75 = vmatpush1.msra.mxu0 %v30
  %76 = vmatprep.subr.mxu0 0.0
  %77 = vmatpush1.msra.mxu0 %v29
  %78 = vmatprep.subr.mxu0 0.0
  %79 = vmatpush1.msra.mxu0 %v28
  %80 = vmatprep.subr.mxu0 0.0
  %81 = vmatpush1.msra.mxu0 %v27
  %82 = vmatprep.subr.mxu0 0.0
  %83 = vmatpush2.msra.mxu0 0.0
  %84 = vmatprep.subr.mxu0 0.0
  %85 = vmatpush2.msra.mxu0 0.0
  %86 = vmatprep.subr.mxu0 0.0
  %87 = vmatpush2.msra.mxu0 0.0
  %88 = vmatprep.subr.mxu0 0.0
  %89 = vmatpush2.msra.mxu0 0.0
  %90 = vmatprep.subr.mxu0 0.0
  %91 = vmatpush2.msra.mxu0 0.0
  %92 = vmatprep.subr.mxu0 0.0
  %93 = vmatpush2.msra.mxu0 0.0
  %94 = vmatprep.subr.mxu0 0.0
  %95 = vmatpush2.msra.mxu0 0.0
  %96 = vmatprep.subr.mxu0 0.0
  %97 = vmatpush2.msra.mxu0 0.0
  %98 = vmatprep.subr.mxu0 0.0
  %99 = vmatpush2.msra.mxu0 0.0
  %100 = vmatprep.subr.mxu0 0.0
  %101 = vmatpush2.msra.mxu0 0.0
  %102 = vmatprep.subr.mxu0 0.0
  %103 = vmatpush2.msra.mxu0 0.0
  %104 = vmatprep.subr.mxu0 0.0
  %105 = vmatpush2.msra.mxu0 0.0
  %106 = vmatprep.subr.mxu0 0.0
  %107 = vmatpush2.msra.mxu0 0.0
  %108 = vmatprep.subr.mxu0 0.0
  %109 = vmatpush2.msra.mxu0 0.0
  %110 = vmatprep.subr.mxu0 0.0
  %111 = vmatpush2.msra.mxu0 0.0
  %112 = vmatprep.subr.mxu0 0.0
  %113 = vmatpush2.msra.mxu0 0.0
  %114 = vmatprep.mubr.f32.mxu0 0.0
  %115 = vmatmul.mubr.f32.gmra.mxu0 %v26
  %v116 = vpop.f32.mrf.mxu0
  %v117 = vadd.f32 %v48, %v116
  %v118 = vpop.f32.mrf.mxu0
  %119 = vdwg.mxu0
  %v120 = vld [vmem:[%s3] sm:$0xff]
  %v121 = vld [vmem:[%s3 + $0x8] sm:$0xff]
  %v122 = vld [vmem:[%s3 + $0x10] sm:$0xff]
  %v123 = vld [vmem:[%s3 + $0x18] sm:$0xff]
  %v124 = vld [vmem:[%s3 + $0x20] sm:$0xff]
  %v125 = vld [vmem:[%s3 + $0x28] sm:$0xff]
  %v126 = vld [vmem:[%s3 + $0x30] sm:$0xff]
  %v127 = vld [vmem:[%s3 + $0x38] sm:$0xff]
  %v128 = vld [vmem:[%s3 + $0x40] sm:$0xff]
  %v129 = vld [vmem:[%s3 + $0x48] sm:$0xff]
  %v130 = vld [vmem:[%s3 + $0x50] sm:$0xff]
  %v131 = vld [vmem:[%s3 + $0x58] sm:$0xff]
  %v132 = vld [vmem:[%s3 + $0x60] sm:$0xff]
  %v133 = vld [vmem:[%s3 + $0x68] sm:$0xff]
  %v134 = vld [vmem:[%s3 + $0x70] sm:$0xff]
  %v135 = vld [vmem:[%s3 + $0x78] sm:$0xff]
  %v136 = vld [vmem:[%s4] sm:$0x1]
  %v138 = vlaneseq
  %v139 = vshrl.u32 %v138, 7
  %v140 = vsub.s32 0, %v139
  %v141 = vrot.slane %v136, %v140
  %143 = vmatprep.subr.mxu0 0.0
  %144 = vmatpush1.msra.mxu0 %v135
  %145 = vmatprep.subr.mxu0 0.0
  %146 = vmatpush1.msra.mxu0 %v134
  %147 = vmatprep.subr.mxu0 0.0
  %148 = vmatpush1.msra.mxu0 %v133
  %149 = vmatprep.subr.mxu0 0.0
  %150 = vmatpush1.msra.mxu0 %v132
  %151 = vmatprep.subr.mxu0 0.0
  %152 = vmatpush1.msra.mxu0 %v131
  %153 = vmatprep.subr.mxu0 0.0
  %154 = vmatpush1.msra.mxu0 %v130
  %155 = vmatprep.subr.mxu0 0.0
  %156 = vmatpush1.msra.mxu0 %v129
  %157 = vmatprep.subr.mxu0 0.0
  %158 = vmatpush1.msra.mxu0 %v128
  %159 = vmatprep.subr.mxu0 0.0
  %160 = vmatpush1.msra.mxu0 %v127
  %161 = vmatprep.subr.mxu0 0.0
  %162 = vmatpush1.msra.mxu0 %v126
  %163 = vmatprep.subr.mxu0 0.0
  %164 = vmatpush1.msra.mxu0 %v125
  %165 = vmatprep.subr.mxu0 0.0
  %166 = vmatpush1.msra.mxu0 %v124
  %167 = vmatprep.subr.mxu0 0.0
  %168 = vmatpush1.msra.mxu0 %v123
  %169 = vmatprep.subr.mxu0 0.0
  %170 = vmatpush1.msra.mxu0 %v122
  %171 = vmatprep.subr.mxu0 0.0
  %172 = vmatpush1.msra.mxu0 %v121
  %173 = vmatprep.subr.mxu0 0.0
  %174 = vmatpush1.msra.mxu0 %v120
  %175 = vmatprep.subr.mxu0 0.0
  %176 = vmatpush2.msra.mxu0 0.0
  %177 = vmatprep.subr.mxu0 0.0
  %178 = vmatpush2.msra.mxu0 0.0
  %179 = vmatprep.subr.mxu0 0.0
  %180 = vmatpush2.msra.mxu0 0.0
  %181 = vmatprep.subr.mxu0 0.0
  %182 = vmatpush2.msra.mxu0 0.0
  %183 = vmatprep.subr.mxu0 0.0
  %184 = vmatpush2.msra.mxu0 0.0
  %185 = vmatprep.subr.mxu0 0.0
  %186 = vmatpush2.msra.mxu0 0.0
  %187 = vmatprep.subr.mxu0 0.0
  %188 = vmatpush2.msra.mxu0 0.0
  %189 = vmatprep.subr.mxu0 0.0
  %190 = vmatpush2.msra.mxu0 0.0
  %191 = vmatprep.subr.mxu0 0.0
  %192 = vmatpush2.msra.mxu0 0.0
  %193 = vmatprep.subr.mxu0 0.0
  %194 = vmatpush2.msra.mxu0 0.0
  %195 = vmatprep.subr.mxu0 0.0
  %196 = vmatpush2.msra.mxu0 0.0
  %197 = vmatprep.subr.mxu0 0.0
  %198 = vmatpush2.msra.mxu0 0.0
  %199 = vmatprep.subr.mxu0 0.0
  %200 = vmatpush2.msra.mxu0 0.0
  %201 = vmatprep.subr.mxu0 0.0
  %202 = vmatpush2.msra.mxu0 0.0
  %203 = vmatprep.subr.mxu0 0.0
  %204 = vmatpush2.msra.mxu0 0.0
  %205 = vmatprep.subr.mxu0 0.0
  %206 = vmatpush2.msra.mxu0 0.0
  %207 = vmatprep.mubr.f32.mxu0 0.0
  %208 = vmatmul.mubr.f32.gmra.mxu0 %v26
  %v209 = vpop.f32.mrf.mxu0
  %v210 = vadd.f32 %v141, %v209
  %v211 = vpop.f32.mrf.mxu0
  %212 = vdwg.mxu0
  %213 = vst [vmem:[%s6] sm:$0xff] %v117
  %214 = vst [vmem:[%s7] sm:$0xff] %v210
  %v215 = vmul.f32 %v210, 0.5
  %v216 = vmul.f32 %v215, 1.442695
  %v217 = vpow.pop %v216
  %v218 = vld [vmem:[%s5] sm:$0xff]
  %v219 = vmul.f32 %v217, %v218
  %v220 = vadd.f32 %v117, %v219
  %221 = vst [vmem:[%s8] sm:$0xff] %v220
  // Predicated region
  $region26: #{vae_forward.14} parent=0 // pred_check
    _
  $region27: #{vae_forward.14} parent=0 // pred_check_branch
    %223 = sbr.rel (0) target = $region29
  $region28: #{vae_forward.14} parent=0 // pred_region
    _
  $region29: #{vae_forward.14} parent=0 // pred_fallthru
    _
  // Predicated region
  $region30: #{vae_forward.14} parent=0 // pred_check
    _
  $region31: #{vae_forward.14} parent=0 // pred_check_branch
    %225 = sbr.rel (0) target = $region33
  $region32: #{vae_forward.14} parent=0 // pred_region
    _
  $region33: #{vae_forward.14} parent=0 // pred_fallthru
    _
  // Predicated region
  $region34: #{vae_forward.14} parent=0 // pred_check
    _
  $region35: #{vae_forward.14} parent=0 // pred_check_branch
    %227 = sbr.rel (0) target = $region37
  $region36: #{vae_forward.14} parent=0 // pred_region
    _
  $region37: #{vae_forward.14} parent=0 // pred_fallthru
    _
  // Predicated region
  $region38: #{vae_forward.14} parent=0 // pred_check
    _
  $region39: #{vae_forward.14} parent=0 // pred_check_branch
    %229 = sbr.rel (0) target = $region41
  $region40: #{vae_forward.14} parent=0 // pred_region
    _
  $region41: #{vae_forward.14} parent=0 // pred_fallthru
    _
  // Predicated region
  $region42: #{vae_forward.14} parent=0 // pred_check
    _
  $region43: #{vae_forward.14} parent=0 // pred_check_branch
    %231 = sbr.rel (0) target = $region45
  $region44: #{vae_forward.14} parent=0 // pred_region
    _
  $region45: #{vae_forward.14} parent=0 // pred_fallthru
    _
  // Predicated region
  $region46: #{vae_forward.14} parent=0 // pred_check
    _
  $region47: #{vae_forward.14} parent=0 // pred_check_branch
    %233 = sbr.rel (0) target = $region49
  $region48: #{vae_forward.14} parent=0 // pred_region
    _
  $region49: #{vae_forward.14} parent=0 // pred_fallthru
    _

// kernel: vae_forward.15
$region0: #{vae_forward.15}
  #allocation0 [shape = 'u32[]', space=smem, size = 0x4, offset = 0x4, fixed_abs, tag = 'smem constant byte address 0x4 - core index']
  #allocation1 [shape = 'u32[144,128]{1,0:T(1,128)}', space=vmem, size = 0x12000, scoped, tag = 'internal scratch']
  #allocation2 [shape = 'f32[16,512]{1,0:T(8,128)}', space=vmem, size = 0x8000, scoped, tag = 'scratch operand']
  %s0 = inlined_call_operand.vmem [shape: bf16[16,128], index: 0, kind: input, shape index: {}]
  %s1 = inlined_call_operand.vmem [shape: bf16[128,512], index: 1, kind: input, shape index: {}]
  %s2 = inlined_call_operand.vmem [shape: f32[1,512], index: 2, kind: input, shape index: {}]
  %s3 = inlined_call_operand.vmem [shape: bf16[16,512], index: 3, kind: output, shape index: {}]
  %s4 = sld [smem:[#allocation0]]
  $region30: #{vae_forward.15} parent=0
    _
  %s6 = ssub.s32 1, %s4
  %s7 = scalar_select 0, %s6, %s4
  // Predicated region
  $region2: #{vae_forward.15} parent=0 // pred_check
    _
  $region3: #{vae_forward.15} parent=0 // pred_check_branch
    %9 = sbr.rel (0) target = $region5
  $region4: #{vae_forward.15} parent=0 // pred_region
    _
  $region5: #{vae_forward.15} parent=0 // pred_fallthru
    _
  // Predicated region
  $region6: #{vae_forward.15} parent=0 // pred_check
    _
  $region7: #{vae_forward.15} parent=0 // pred_check_branch
    %11 = sbr.rel (0) target = $region9
  $region8: #{vae_forward.15} parent=0 // pred_region
    _
  $region9: #{vae_forward.15} parent=0 // pred_fallthru
    _
  // Predicated region
  $region10: #{vae_forward.15} parent=0 // pred_check
    _
  $region11: #{vae_forward.15} parent=0 // pred_check_branch
    %13 = sbr.rel (0) target = $region13
  $region12: #{vae_forward.15} parent=0 // pred_region
    _
  $region13: #{vae_forward.15} parent=0 // pred_fallthru
    _
  %p15 = scmp.eq.s32.totalorder 0, 0
  // Predicated region
  $region14: #{vae_forward.15} parent=0 // pred_check
    %p16 = pneg %p15
  $region15: #{vae_forward.15} parent=0 // pred_check_branch
    %18 = sbr.rel (%p16) target = $region17
  $region16: #{vae_forward.15} parent=0 // pred_region
    %19 = vst [vmem:[#allocation2] sm:$0xff] 0.0
    %20 = vst [vmem:[#allocation2 + $0x8] sm:$0xff] 0.0
    %21 = vst [vmem:[#allocation2 + $0x10] sm:$0xff] 0.0
    %22 = vst [vmem:[#allocation2 + $0x18] sm:$0xff] 0.0
    %23 = vst [vmem:[#allocation2 + $0x20] sm:$0xff] 0.0
    %24 = vst [vmem:[#allocation2 + $0x28] sm:$0xff] 0.0
    %25 = vst [vmem:[#allocation2 + $0x30] sm:$0xff] 0.0
    %26 = vst [vmem:[#allocation2 + $0x38] sm:$0xff] 0.0
  $region17: #{vae_forward.15} parent=0 // pred_fallthru
    _
  %v27 = vld [vmem:[#allocation2] sm:$0xff]
  %v28 = vld [vmem:[#allocation2 + $0x8] sm:$0xff]
  %v29 = vld [vmem:[#allocation2 + $0x10] sm:$0xff]
  %v30 = vld [vmem:[#allocation2 + $0x18] sm:$0xff]
  %v31 = vld [vmem:[#allocation2 + $0x20] sm:$0xff]
  %v32 = vld [vmem:[#allocation2 + $0x28] sm:$0xff]
  %v33 = vld [vmem:[#allocation2 + $0x30] sm:$0xff]
  %v34 = vld [vmem:[#allocation2 + $0x38] sm:$0xff]
  %v35 = vld [vmem:[%s0] sm:$0xf]
  %v36 = vld [vmem:[%s0 + $0x4] sm:$0xf]
  %v37 = vld [vmem:[%s1] sm:$0xff]
  %v38 = vld [vmem:[%s1 + $0x8] sm:$0xff]
  %v39 = vld [vmem:[%s1 + $0x10] sm:$0xff]
  %v40 = vld [vmem:[%s1 + $0x18] sm:$0xff]
  %v41 = vld [vmem:[%s1 + $0x20] sm:$0xff]
  %v42 = vld [vmem:[%s1 + $0x28] sm:$0xff]
  %v43 = vld [vmem:[%s1 + $0x30] sm:$0xff]
  %v44 = vld [vmem:[%s1 + $0x38] sm:$0xff]
  %v45 = vld [vmem:[%s1 + $0x40] sm:$0xff]
  %v46 = vld [vmem:[%s1 + $0x48] sm:$0xff]
  %v47 = vld [vmem:[%s1 + $0x50] sm:$0xff]
  %v48 = vld [vmem:[%s1 + $0x58] sm:$0xff]
  %v49 = vld [vmem:[%s1 + $0x60] sm:$0xff]
  %v50 = vld [vmem:[%s1 + $0x68] sm:$0xff]
  %v51 = vld [vmem:[%s1 + $0x70] sm:$0xff]
  %v52 = vld [vmem:[%s1 + $0x78] sm:$0xff]
  %v53 = vld [vmem:[%s1 + $0x80] sm:$0xff]
  %v54 = vld [vmem:[%s1 + $0x88] sm:$0xff]
  %v55 = vld [vmem:[%s1 + $0x90] sm:$0xff]
  %v56 = vld [vmem:[%s1 + $0x98] sm:$0xff]
  %v57 = vld [vmem:[%s1 + $0xa0] sm:$0xff]
  %v58 = vld [vmem:[%s1 + $0xa8] sm:$0xff]
  %v59 = vld [vmem:[%s1 + $0xb0] sm:$0xff]
  %v60 = vld [vmem:[%s1 + $0xb8] sm:$0xff]
  %v61 = vld [vmem:[%s1 + $0xc0] sm:$0xff]
  %v62 = vld [vmem:[%s1 + $0xc8] sm:$0xff]
  %v63 = vld [vmem:[%s1 + $0xd0] sm:$0xff]
  %v64 = vld [vmem:[%s1 + $0xd8] sm:$0xff]
  %v65 = vld [vmem:[%s1 + $0xe0] sm:$0xff]
  %v66 = vld [vmem:[%s1 + $0xe8] sm:$0xff]
  %v67 = vld [vmem:[%s1 + $0xf0] sm:$0xff]
  %v68 = vld [vmem:[%s1 + $0xf8] sm:$0xff]
  %v71 = vunpack.c.l.b16 %v35
  %v72 = vunpack.c.l.b16 %v36
  %v73 = vpack.c.b16 %v72, %v71
  %v107 = vunpack.c.l.b16 %v37
  %v108 = vunpack.c.h.b16 %v37
  %v109 = vunpack.c.l.b16 %v38
  %v110 = vunpack.c.h.b16 %v38
  %v111 = vunpack.c.l.b16 %v39
  %v112 = vunpack.c.h.b16 %v39
  %v113 = vunpack.c.l.b16 %v40
  %v114 = vunpack.c.h.b16 %v40
  %v115 = vunpack.c.l.b16 %v41
  %v116 = vunpack.c.h.b16 %v41
  %v117 = vunpack.c.l.b16 %v42
  %v118 = vunpack.c.h.b16 %v42
  %v119 = vunpack.c.l.b16 %v43
  %v120 = vunpack.c.h.b16 %v43
  %v121 = vunpack.c.l.b16 %v44
  %v122 = vunpack.c.h.b16 %v44
  %v123 = vunpack.c.l.b16 %v45
  %v124 = vunpack.c.h.b16 %v45
  %v125 = vunpack.c.l.b16 %v46
  %v126 = vunpack.c.h.b16 %v46
  %v127 = vunpack.c.l.b16 %v47
  %v128 = vunpack.c.h.b16 %v47
  %v129 = vunpack.c.l.b16 %v48
  %v130 = vunpack.c.h.b16 %v48
  %v131 = vunpack.c.l.b16 %v49
  %v132 = vunpack.c.h.b16 %v49
  %v133 = vunpack.c.l.b16 %v50
  %v134 = vunpack.c.h.b16 %v50
  %v135 = vunpack.c.l.b16 %v51
  %v136 = vunpack.c.h.b16 %v51
  %v137 = vunpack.c.l.b16 %v52
  %v138 = vunpack.c.h.b16 %v52
  %v139 = vunpack.c.l.b16 %v53
  %v140 = vunpack.c.h.b16 %v53
  %v141 = vunpack.c.l.b16 %v54
  %v142 = vunpack.c.h.b16 %v54
  %v143 = vunpack.c.l.b16 %v55
  %v144 = vunpack.c.h.b16 %v55
  %v145 = vunpack.c.l.b16 %v56
  %v146 = vunpack.c.h.b16 %v56
  %v147 = vunpack.c.l.b16 %v57
  %v148 = vunpack.c.h.b16 %v57
  %v149 = vunpack.c.l.b16 %v58
  %v150 = vunpack.c.h.b16 %v58
  %v151 = vunpack.c.l.b16 %v59
  %v152 = vunpack.c.h.b16 %v59
  %v153 = vunpack.c.l.b16 %v60
  %v154 = vunpack.c.h.b16 %v60
  %v155 = vunpack.c.l.b16 %v61
  %v156 = vunpack.c.h.b16 %v61
  %v157 = vunpack.c.l.b16 %v62
  %v158 = vunpack.c.h.b16 %v62
  %v159 = vunpack.c.l.b16 %v63
  %v160 = vunpack.c.h.b16 %v63
  %v161 = vunpack.c.l.b16 %v64
  %v162 = vunpack.c.h.b16 %v64
  %v163 = vunpack.c.l.b16 %v65
  %v164 = vunpack.c.h.b16 %v65
  %v165 = vunpack.c.l.b16 %v66
  %v166 = vunpack.c.h.b16 %v66
  %v167 = vunpack.c.l.b16 %v67
  %v168 = vunpack.c.h.b16 %v67
  %v169 = vunpack.c.l.b16 %v68
  %v170 = vunpack.c.h.b16 %v68
  %v171 = vpack.c.b16 %v111, %v107
  %v172 = vpack.c.b16 %v112, %v108
  %v173 = vpack.c.b16 %v113, %v109
  %v174 = vpack.c.b16 %v114, %v110
  %v175 = vpack.c.b16 %v119, %v115
  %v176 = vpack.c.b16 %v120, %v116
  %v177 = vpack.c.b16 %v121, %v117
  %v178 = vpack.c.b16 %v122, %v118
  %v179 = vpack.c.b16 %v127, %v123
  %v180 = vpack.c.b16 %v128, %v124
  %v181 = vpack.c.b16 %v129, %v125
  %v182 = vpack.c.b16 %v130, %v126
  %v183 = vpack.c.b16 %v135, %v131
  %v184 = vpack.c.b16 %v136, %v132
  %v185 = vpack.c.b16 %v137, %v133
  %v186 = vpack.c.b16 %v138, %v134
  %v187 = vpack.c.b16 %v143, %v139
  %v188 = vpack.c.b16 %v144, %v140
  %v189 = vpack.c.b16 %v145, %v141
  %v190 = vpack.c.b16 %v146, %v142
  %v191 = vpack.c.b16 %v151, %v147
  %v192 = vpack.c.b16 %v152, %v148
  %v193 = vpack.c.b16 %v153, %v149
  %v194 = vpack.c.b16 %v154, %v150
  %v195 = vpack.c.b16 %v159, %v155
  %v196 = vpack.c.b16 %v160, %v156
  %v197 = vpack.c.b16 %v161, %v157
  %v198 = vpack.c.b16 %v162, %v158
  %v199 = vpack.c.b16 %v167, %v163
  %v200 = vpack.c.b16 %v168, %v164
  %v201 = vpack.c.b16 %v169, %v165
  %v202 = vpack.c.b16 %v170, %v166
  %235 = vmatprep.subr.bf16.mxu0 %v200
  %236 = vmatpush1.bf16.msra.mxu0 %v199
  %237 = vmatprep.subr.bf16.mxu0 %v196
  %238 = vmatpush1.bf16.msra.mxu0 %v195
  %239 = vmatprep.subr.bf16.mxu0 %v192
  %240 = vmatpush1.bf16.msra.mxu0 %v191
  %241 = vmatprep.subr.bf16.mxu0 %v188
  %242 = vmatpush1.bf16.msra.mxu0 %v187
  %243 = vmatprep.subr.bf16.mxu0 %v184
  %244 = vmatpush1.bf16.msra.mxu0 %v183
  %245 = vmatprep.subr.bf16.mxu0 %v180
  %246 = vmatpush1.bf16.msra.mxu0 %v179
  %247 = vmatprep.subr.bf16.mxu0 %v176
  %248 = vmatpush1.bf16.msra.mxu0 %v175
  %249 = vmatprep.subr.bf16.mxu0 %v172
  %250 = vmatpush1.bf16.msra.mxu0 %v171
  %251 = vmatprep.subr.bf16.mxu0 0
  %252 = vmatpush2.bf16.msra.mxu0 0
  %253 = vmatprep.subr.bf16.mxu0 0
  %254 = vmatpush2.bf16.msra.mxu0 0
  %255 = vmatprep.subr.bf16.mxu0 0
  %256 = vmatpush2.bf16.msra.mxu0 0
  %257 = vmatprep.subr.bf16.mxu0 0
  %258 = vmatpush2.bf16.msra.mxu0 0
  %259 = vmatprep.subr.bf16.mxu0 0
  %260 = vmatpush2.bf16.msra.mxu0 0
  %261 = vmatprep.subr.bf16.mxu0 0
  %262 = vmatpush2.bf16.msra.mxu0 0
  %263 = vmatprep.subr.bf16.mxu0 0
  %264 = vmatpush2.bf16.msra.mxu0 0
  %265 = vmatprep.subr.bf16.mxu0 0
  %266 = vmatpush2.bf16.msra.mxu0 0
  %267 = vmatprep.mubr.bf16.mxu0 0
  %268 = vmatmul.mubr.bf16.gmra.mxu0 %v73
  %v269 = vpop.f32.mrf.mxu0
  %v270 = vadd.f32 0.0, %v269
  %v271 = vpop.f32.mrf.mxu0
  %v272 = vadd.f32 0.0, %v271
  %v273 = vpop.f32.mrf.mxu0
  %v274 = vadd.f32 0.0, %v273
  %v275 = vpop.f32.mrf.mxu0
  %v276 = vadd.f32 0.0, %v275
  %277 = vdwg.mxu0
  %278 = vmatprep.subr.bf16.mxu0 %v202
  %279 = vmatpush1.bf16.msra.mxu0 %v201
  %280 = vmatprep.subr.bf16.mxu0 %v198
  %281 = vmatpush1.bf16.msra.mxu0 %v197
  %282 = vmatprep.subr.bf16.mxu0 %v194
  %283 = vmatpush1.bf16.msra.mxu0 %v193
  %284 = vmatprep.subr.bf16.mxu0 %v190
  %285 = vmatpush1.bf16.msra.mxu0 %v189
  %286 = vmatprep.subr.bf16.mxu0 %v186
  %287 = vmatpush1.bf16.msra.mxu0 %v185
  %288 = vmatprep.subr.bf16.mxu0 %v182
  %289 = vmatpush1.bf16.msra.mxu0 %v181
  %290 = vmatprep.subr.bf16.mxu0 %v178
  %291 = vmatpush1.bf16.msra.mxu0 %v177
  %292 = vmatprep.subr.bf16.mxu0 %v174
  %293 = vmatpush1.bf16.msra.mxu0 %v173
  %294 = vmatprep.subr.bf16.mxu0 0
  %295 = vmatpush2.bf16.msra.mxu0 0
  %296 = vmatprep.subr.bf16.mxu0 0
  %297 = vmatpush2.bf16.msra.mxu0 0
  %298 = vmatprep.subr.bf16.mxu0 0
  %299 = vmatpush2.bf16.msra.mxu0 0
  %300 = vmatprep.subr.bf16.mxu0 0
  %301 = vmatpush2.bf16.msra.mxu0 0
  %302 = vmatprep.subr.bf16.mxu0 0
  %303 = vmatpush2.bf16.msra.mxu0 0
  %304 = vmatprep.subr.bf16.mxu0 0
  %305 = vmatpush2.bf16.msra.mxu0 0
  %306 = vmatprep.subr.bf16.mxu0 0
  %307 = vmatpush2.bf16.msra.mxu0 0
  %308 = vmatprep.subr.bf16.mxu0 0
  %309 = vmatpush2.bf16.msra.mxu0 0
  %310 = vmatprep.mubr.bf16.mxu0 0
  %311 = vmatmul.mubr.bf16.gmra.mxu0 %v73
  %v312 = vpop.f32.mrf.mxu0
  %v313 = vadd.f32 0.0, %v312
  %v314 = vpop.f32.mrf.mxu0
  %v315 = vadd.f32 0.0, %v314
  %v316 = vpop.f32.mrf.mxu0
  %v317 = vadd.f32 0.0, %v316
  %v318 = vpop.f32.mrf.mxu0
  %v319 = vadd.f32 0.0, %v318
  %320 = vdwg.mxu0
  %v321 = vadd.f32 %v27, %v270
  %v322 = vadd.f32 %v28, %v272
  %v323 = vadd.f32 %v29, %v313
  %v324 = vadd.f32 %v30, %v315
  %v325 = vadd.f32 %v31, %v274
  %v326 = vadd.f32 %v32, %v276
  %v327 = vadd.f32 %v33, %v317
  %v328 = vadd.f32 %v34, %v319
  %329 = vst [vmem:[#allocation2] sm:$0xff] %v321
  %330 = vst [vmem:[#allocation2 + $0x8] sm:$0xff] %v322
  %331 = vst [vmem:[#allocation2 + $0x10] sm:$0xff] %v323
  %332 = vst [vmem:[#allocation2 + $0x18] sm:$0xff] %v324
  %333 = vst [vmem:[#allocation2 + $0x20] sm:$0xff] %v325
  %334 = vst [vmem:[#allocation2 + $0x28] sm:$0xff] %v326
  %335 = vst [vmem:[#allocation2 + $0x30] sm:$0xff] %v327
  %336 = vst [vmem:[#allocation2 + $0x38] sm:$0xff] %v328
  // Predicated region
  $region18: #{vae_forward.15} parent=0 // pred_check
    %p337 = pneg %p15
  $region19: #{vae_forward.15} parent=0 // pred_check_branch
    %339 = sbr.rel (%p337) target = $region21
  $region20: #{vae_forward.15} parent=0 // pred_region
    %v340 = vld [vmem:[#allocation2] sm:$0xff]
    %v341 = vld [vmem:[#allocation2 + $0x8] sm:$0xff]
    %v342 = vld [vmem:[#allocation2 + $0x10] sm:$0xff]
    %v343 = vld [vmem:[#allocation2 + $0x18] sm:$0xff]
    %v344 = vld [vmem:[#allocation2 + $0x20] sm:$0xff]
    %v345 = vld [vmem:[#allocation2 + $0x28] sm:$0xff]
    %v346 = vld [vmem:[#allocation2 + $0x30] sm:$0xff]
    %v347 = vld [vmem:[#allocation2 + $0x38] sm:$0xff]
    %v348 = vld [vmem:[%s2] sm:$0xf]
    %v350 = vlaneseq
    %v351 = vshrl.u32 %v350, 7
    %v352 = vsub.s32 0, %v351
    %v353 = vrot.slane %v348, %v352
    %v354 = vlaneseq
    %v355 = vshrl.u32 %v354, 7
    %v356 = vsub.s32 1, %v355
    %v357 = vrot.slane %v348, %v356
    %v358 = vlaneseq
    %v359 = vshrl.u32 %v358, 7
    %v360 = vsub.s32 2, %v359
    %v361 = vrot.slane %v348, %v360
    %v362 = vlaneseq
    %v363 = vshrl.u32 %v362, 7
    %v364 = vsub.s32 3, %v363
    %v365 = vrot.slane %v348, %v364
    %v370 = vadd.f32 %v340, %v353
    %v371 = vadd.f32 %v341, %v357
    %v372 = vadd.f32 %v342, %v361
    %v373 = vadd.f32 %v343, %v365
    %v374 = vadd.f32 %v344, %v353
    %v375 = vadd.f32 %v345, %v357
    %v376 = vadd.f32 %v346, %v361
    %v377 = vadd.f32 %v347, %v365
    %v378 = vpack.c.bf16 %v374, %v370
    %v379 = vpack.c.bf16 %v375, %v371
    %v380 = vpack.c.bf16 %v376, %v372
    %v381 = vpack.c.bf16 %v377, %v373
    %v386 = vunpack.c.l.b16 %v378
    %v387 = vunpack.c.l.b16 %v379
    %v388 = vunpack.c.l.b16 %v380
    %v389 = vunpack.c.l.b16 %v381
    %v390 = vunpack.c.h.b16 %v378
    %v391 = vunpack.c.h.b16 %v379
    %v392 = vunpack.c.h.b16 %v380
    %v393 = vunpack.c.h.b16 %v381
    %v394 = vpack.c.b16 %v387, %v386
    %v395 = vpack.c.b16 %v389, %v388
    %v396 = vpack.c.b16 %v391, %v390
    %v397 = vpack.c.b16 %v393, %v392
    %402 = vst [vmem:[%s3] sm:$0xff] %v394
    %403 = vst [vmem:[%s3 + $0x8] sm:$0xff] %v395
    %404 = vst [vmem:[%s3 + $0x10] sm:$0xff] %v396
    %405 = vst [vmem:[%s3 + $0x18] sm:$0xff] %v397
  $region21: #{vae_forward.15} parent=0 // pred_fallthru
    _
  // Predicated region
  $region22: #{vae_forward.15} parent=0 // pred_check
    _
  $region23: #{vae_forward.15} parent=0 // pred_check_branch
    %407 = sbr.rel (0) target = $region25
  $region24: #{vae_forward.15} parent=0 // pred_region
    _
  $region25: #{vae_forward.15} parent=0 // pred_fallthru
    _
  // Predicated region
  $region26: #{vae_forward.15} parent=0 // pred_check
    _
  $region27: #{vae_forward.15} parent=0 // pred_check_branch
    %409 = sbr.rel (0) target = $region29
  $region28: #{vae_forward.15} parent=0 // pred_region
    _
  $region29: #{vae_forward.15} parent=0 // pred_fallthru
    _

// kernel: vae_forward.18
$region0: #{vae_forward.18}
  #allocation0 [shape = 'u32[]', space=smem, size = 0x4, offset = 0x4, fixed_abs, tag = 'smem constant byte address 0x4 - core index']
  #allocation1 [shape = 'u32[144,128]{1,0:T(1,128)}', space=vmem, size = 0x12000, scoped, tag = 'internal scratch']
  #allocation2 [shape = 'f32[128,128]{1,0:T(8,128)}', space=vmem, size = 0x10000, scoped, tag = 'scratch operand']
  %s0 = inlined_call_operand.vmem [shape: bf16[128,256], index: 0, kind: input, shape index: {}]
  %s1 = inlined_call_operand.vmem [shape: bf16[256,128], index: 1, kind: input, shape index: {}]
  %s2 = inlined_call_operand.vmem [shape: f32[1,128], index: 2, kind: input, shape index: {}]
  %s3 = inlined_call_operand.vmem [shape: bf16[128,128], index: 3, kind: output, shape index: {}]
  %s4 = sld [smem:[#allocation0]]
  $region30: #{vae_forward.18} parent=0
    _
  %s6 = ssub.s32 1, %s4
  %s7 = scalar_select 0, %s6, %s4
  // Predicated region
  $region2: #{vae_forward.18} parent=0 // pred_check
    _
  $region3: #{vae_forward.18} parent=0 // pred_check_branch
    %9 = sbr.rel (0) target = $region5
  $region4: #{vae_forward.18} parent=0 // pred_region
    _
  $region5: #{vae_forward.18} parent=0 // pred_fallthru
    _
  // Predicated region
  $region6: #{vae_forward.18} parent=0 // pred_check
    _
  $region7: #{vae_forward.18} parent=0 // pred_check_branch
    %11 = sbr.rel (0) target = $region9
  $region8: #{vae_forward.18} parent=0 // pred_region
    _
  $region9: #{vae_forward.18} parent=0 // pred_fallthru
    _
  // Predicated region
  $region10: #{vae_forward.18} parent=0 // pred_check
    _
  $region11: #{vae_forward.18} parent=0 // pred_check_branch
    %13 = sbr.rel (0) target = $region13
  $region12: #{vae_forward.18} parent=0 // pred_region
    _
  $region13: #{vae_forward.18} parent=0 // pred_fallthru
    _
  %p15 = scmp.eq.s32.totalorder 0, 0
  // Predicated region
  $region14: #{vae_forward.18} parent=0 // pred_check
    %p16 = pneg %p15
  $region15: #{vae_forward.18} parent=0 // pred_check_branch
    %18 = sbr.rel (%p16) target = $region17
  $region16: #{vae_forward.18} parent=0 // pred_region
    %19 = vst [vmem:[#allocation2] sm:$0xff] 0.0
    %20 = vst [vmem:[#allocation2 + $0x8] sm:$0xff] 0.0
    %21 = vst [vmem:[#allocation2 + $0x10] sm:$0xff] 0.0
    %22 = vst [vmem:[#allocation2 + $0x18] sm:$0xff] 0.0
    %23 = vst [vmem:[#allocation2 + $0x20] sm:$0xff] 0.0
    %24 = vst [vmem:[#allocation2 + $0x28] sm:$0xff] 0.0
    %25 = vst [vmem:[#allocation2 + $0x30] sm:$0xff] 0.0
    %26 = vst [vmem:[#allocation2 + $0x38] sm:$0xff] 0.0
    %27 = vst [vmem:[#allocation2 + $0x40] sm:$0xff] 0.0
    %28 = vst [vmem:[#allocation2 + $0x48] sm:$0xff] 0.0
    %29 = vst [vmem:[#allocation2 + $0x50] sm:$0xff] 0.0
    %30 = vst [vmem:[#allocation2 + $0x58] sm:$0xff] 0.0
    %31 = vst [vmem:[#allocation2 + $0x60] sm:$0xff] 0.0
    %32 = vst [vmem:[#allocation2 + $0x68] sm:$0xff] 0.0
    %33 = vst [vmem:[#allocation2 + $0x70] sm:$0xff] 0.0
    %34 = vst [vmem:[#allocation2 + $0x78] sm:$0xff] 0.0
  $region17: #{vae_forward.18} parent=0 // pred_fallthru
    _
  %v35 = vld [vmem:[#allocation2] sm:$0xff]
  %v36 = vld [vmem:[#allocation2 + $0x8] sm:$0xff]
  %v37 = vld [vmem:[#allocation2 + $0x10] sm:$0xff]
  %v38 = vld [vmem:[#allocation2 + $0x18] sm:$0xff]
  %v39 = vld [vmem:[#allocation2 + $0x20] sm:$0xff]
  %v40 = vld [vmem:[#allocation2 + $0x28] sm:$0xff]
  %v41 = vld [vmem:[#allocation2 + $0x30] sm:$0xff]
  %v42 = vld [vmem:[#allocation2 + $0x38] sm:$0xff]
  %v43 = vld [vmem:[#allocation2 + $0x40] sm:$0xff]
  %v44 = vld [vmem:[#allocation2 + $0x48] sm:$0xff]
  %v45 = vld [vmem:[#allocation2 + $0x50] sm:$0xff]
  %v46 = vld [vmem:[#allocation2 + $0x58] sm:$0xff]
  %v47 = vld [vmem:[#allocation2 + $0x60] sm:$0xff]
  %v48 = vld [vmem:[#allocation2 + $0x68] sm:$0xff]
  %v49 = vld [vmem:[#allocation2 + $0x70] sm:$0xff]
  %v50 = vld [vmem:[#allocation2 + $0x78] sm:$0xff]
  %v51 = vld [vmem:[%s0] sm:$0xff]
  %v52 = vld [vmem:[%s0 + $0x8] sm:$0xff]
  %v53 = vld [vmem:[%s0 + $0x10] sm:$0xff]
  %v54 = vld [vmem:[%s0 + $0x18] sm:$0xff]
  %v55 = vld [vmem:[%s0 + $0x20] sm:$0xff]
  %v56 = vld [vmem:[%s0 + $0x28] sm:$0xff]
  %v57 = vld [vmem:[%s0 + $0x30] sm:$0xff]
  %v58 = vld [vmem:[%s0 + $0x38] sm:$0xff]
  %v59 = vld [vmem:[%s0 + $0x40] sm:$0xff]
  %v60 = vld [vmem:[%s0 + $0x48] sm:$0xff]
  %v61 = vld [vmem:[%s0 + $0x50] sm:$0xff]
  %v62 = vld [vmem:[%s0 + $0x58] sm:$0xff]
  %v63 = vld [vmem:[%s0 + $0x60] sm:$0xff]
  %v64 = vld [vmem:[%s0 + $0x68] sm:$0xff]
  %v65 = vld [vmem:[%s0 + $0x70] sm:$0xff]
  %v66 = vld [vmem:[%s0 + $0x78] sm:$0xff]
  %v67 = vld [vmem:[%s1] sm:$0xf]
  %v68 = vld [vmem:[%s1 + $0x4] sm:$0xf]
  %v69 = vld [vmem:[%s1 + $0x8] sm:$0xf]
  %v70 = vld [vmem:[%s1 + $0xc] sm:$0xf]
  %v71 = vld [vmem:[%s1 + $0x10] sm:$0xf]
  %v72 = vld [vmem:[%s1 + $0x14] sm:$0xf]
  %v73 = vld [vmem:[%s1 + $0x18] sm:$0xf]
  %v74 = vld [vmem:[%s1 + $0x1c] sm:$0xf]
  %v75 = vld [vmem:[%s1 + $0x20] sm:$0xf]
  %v76 = vld [vmem:[%s1 + $0x24] sm:$0xf]
  %v77 = vld [vmem:[%s1 + $0x28] sm:$0xf]
  %v78 = vld [vmem:[%s1 + $0x2c] sm:$0xf]
  %v79 = vld [vmem:[%s1 + $0x30] sm:$0xf]
  %v80 = vld [vmem:[%s1 + $0x34] sm:$0xf]
  %v81 = vld [vmem:[%s1 + $0x38] sm:$0xf]
  %v82 = vld [vmem:[%s1 + $0x3c] sm:$0xf]
  %v83 = vld [vmem:[%s1 + $0x40] sm:$0xf]
  %v84 = vld [vmem:[%s1 + $0x44] sm:$0xf]
  %v85 = vld [vmem:[%s1 + $0x48] sm:$0xf]
  %v86 = vld [vmem:[%s1 + $0x4c] sm:$0xf]
  %v87 = vld [vmem:[%s1 + $0x50] sm:$0xf]
  %v88 = vld [vmem:[%s1 + $0x54] sm:$0xf]
  %v89 = vld [vmem:[%s1 + $0x58] sm:$0xf]
  %v90 = vld [vmem:[%s1 + $0x5c] sm:$0xf]
  %v91 = vld [vmem:[%s1 + $0x60] sm:$0xf]
  %v92 = vld [vmem:[%s1 + $0x64] sm:$0xf]
  %v93 = vld [vmem:[%s1 + $0x68] sm:$0xf]
  %v94 = vld [vmem:[%s1 + $0x6c] sm:$0xf]
  %v95 = vld [vmem:[%s1 + $0x70] sm:$0xf]
  %v96 = vld [vmem:[%s1 + $0x74] sm:$0xf]
  %v97 = vld [vmem:[%s1 + $0x78] sm:$0xf]
  %v98 = vld [vmem:[%s1 + $0x7c] sm:$0xf]
  %v115 = vunpack.c.l.b16 %v51
  %v116 = vunpack.c.h.b16 %v51
  %v117 = vunpack.c.l.b16 %v52
  %v118 = vunpack.c.h.b16 %v52
  %v119 = vunpack.c.l.b16 %v53
  %v120 = vunpack.c.h.b16 %v53
  %v121 = vunpack.c.l.b16 %v54
  %v122 = vunpack.c.h.b16 %v54
  %v123 = vunpack.c.l.b16 %v55
  %v124 = vunpack.c.h.b16 %v55
  %v125 = vunpack.c.l.b16 %v56
  %v126 = vunpack.c.h.b16 %v56
  %v127 = vunpack.c.l.b16 %v57
  %v128 = vunpack.c.h.b16 %v57
  %v129 = vunpack.c.l.b16 %v58
  %v130 = vunpack.c.h.b16 %v58
  %v131 = vunpack.c.l.b16 %v59
  %v132 = vunpack.c.h.b16 %v59
  %v133 = vunpack.c.l.b16 %v60
  %v134 = vunpack.c.h.b16 %v60
  %v135 = vunpack.c.l.b16 %v61
  %v136 = vunpack.c.h.b16 %v61
  %v137 = vunpack.c.l.b16 %v62
  %v138 = vunpack.c.h.b16 %v62
  %v139 = vunpack.c.l.b16 %v63
  %v140 = vunpack.c.h.b16 %v63
  %v141 = vunpack.c.l.b16 %v64
  %v142 = vunpack.c.h.b16 %v64
  %v143 = vunpack.c.l.b16 %v65
  %v144 = vunpack.c.h.b16 %v65
  %v145 = vunpack.c.l.b16 %v66
  %v146 = vunpack.c.h.b16 %v66
  %v147 = vpack.c.b16 %v117, %v115
  %v148 = vpack.c.b16 %v118, %v116
  %v149 = vpack.c.b16 %v121, %v119
  %v150 = vpack.c.b16 %v122, %v120
  %v151 = vpack.c.b16 %v125, %v123
  %v152 = vpack.c.b16 %v126, %v124
  %v153 = vpack.c.b16 %v129, %v127
  %v154 = vpack.c.b16 %v130, %v128
  %v155 = vpack.c.b16 %v133, %v131
  %v156 = vpack.c.b16 %v134, %v132
  %v157 = vpack.c.b16 %v137, %v135
  %v158 = vpack.c.b16 %v138, %v136
  %v159 = vpack.c.b16 %v141, %v139
  %v160 = vpack.c.b16 %v142, %v140
  %v161 = vpack.c.b16 %v145, %v143
  %v162 = vpack.c.b16 %v146, %v144
  %v211 = vunpack.c.l.b16 %v67
  %v212 = vunpack.c.l.b16 %v68
  %v213 = vunpack.c.l.b16 %v69
  %v214 = vunpack.c.l.b16 %v70
  %v215 = vunpack.c.l.b16 %v71
  %v216 = vunpack.c.l.b16 %v72
  %v217 = vunpack.c.l.b16 %v73
  %v218 = vunpack.c.l.b16 %v74
  %v219 = vunpack.c.l.b16 %v75
  %v220 = vunpack.c.l.b16 %v76
  %v221 = vunpack.c.l.b16 %v77
  %v222 = vunpack.c.l.b16 %v78
  %v223 = vunpack.c.l.b16 %v79
  %v224 = vunpack.c.l.b16 %v80
  %v225 = vunpack.c.l.b16 %v81
  %v226 = vunpack.c.l.b16 %v82
  %v227 = vunpack.c.l.b16 %v83
  %v228 = vunpack.c.l.b16 %v84
  %v229 = vunpack.c.l.b16 %v85
  %v230 = vunpack.c.l.b16 %v86
  %v231 = vunpack.c.l.b16 %v87
  %v232 = vunpack.c.l.b16 %v88
  %v233 = vunpack.c.l.b16 %v89
  %v234 = vunpack.c.l.b16 %v90
  %v235 = vunpack.c.l.b16 %v91
  %v236 = vunpack.c.l.b16 %v92
  %v237 = vunpack.c.l.b16 %v93
  %v238 = vunpack.c.l.b16 %v94
  %v239 = vunpack.c.l.b16 %v95
  %v240 = vunpack.c.l.b16 %v96
  %v241 = vunpack.c.l.b16 %v97
  %v242 = vunpack.c.l.b16 %v98
  %v243 = vpack.c.b16 %v212, %v211
  %v244 = vpack.c.b16 %v214, %v213
  %v245 = vpack.c.b16 %v216, %v215
  %v246 = vpack.c.b16 %v218, %v217
  %v247 = vpack.c.b16 %v220, %v219
  %v248 = vpack.c.b16 %v222, %v221
  %v249 = vpack.c.b16 %v224, %v223
  %v250 = vpack.c.b16 %v226, %v225
  %v251 = vpack.c.b16 %v228, %v227
  %v252 = vpack.c.b16 %v230, %v229
  %v253 = vpack.c.b16 %v232, %v231
  %v254 = vpack.c.b16 %v234, %v233
  %v255 = vpack.c.b16 %v236, %v235
  %v256 = vpack.c.b16 %v238, %v237
  %v257 = vpack.c.b16 %v240, %v239
  %v258 = vpack.c.b16 %v242, %v241
  %275 = vmatprep.subr.bf16.mxu0 0
  %276 = vmatpush1.bf16.msra.mxu0 %v250
  %277 = vmatprep.subr.bf16.mxu0 0
  %278 = vmatpush1.bf16.msra.mxu0 %v249
  %279 = vmatprep.subr.bf16.mxu0 0
  %280 = vmatpush1.bf16.msra.mxu0 %v248
  %281 = vmatprep.subr.bf16.mxu0 0
  %282 = vmatpush1.bf16.msra.mxu0 %v247
  %283 = vmatprep.subr.bf16.mxu0 0
  %284 = vmatpush1.bf16.msra.mxu0 %v246
  %285 = vmatprep.subr.bf16.mxu0 0
  %286 = vmatpush1.bf16.msra.mxu0 %v245
  %287 = vmatprep.subr.bf16.mxu0 0
  %288 = vmatpush1.bf16.msra.mxu0 %v244
  %289 = vmatprep.subr.bf16.mxu0 0
  %290 = vmatpush1.bf16.msra.mxu0 %v243
  %291 = vmatprep.subr.bf16.mxu0 0
  %292 = vmatpush2.bf16.msra.mxu0 %v258
  %293 = vmatprep.subr.bf16.mxu0 0
  %294 = vmatpush2.bf16.msra.mxu0 %v257
  %295 = vmatprep.subr.bf16.mxu0 0
  %296 = vmatpush2.bf16.msra.mxu0 %v256
  %297 = vmatprep.subr.bf16.mxu0 0
  %298 = vmatpush2.bf16.msra.mxu0 %v255
  %299 = vmatprep.subr.bf16.mxu0 0
  %300 = vmatpush2.bf16.msra.mxu0 %v254
  %301 = vmatprep.subr.bf16.mxu0 0
  %302 = vmatpush2.bf16.msra.mxu0 %v253
  %303 = vmatprep.subr.bf16.mxu0 0
  %304 = vmatpush2.bf16.msra.mxu0 %v252
  %305 = vmatprep.subr.bf16.mxu0 0
  %306 = vmatpush2.bf16.msra.mxu0 %v251
  %307 = vmatprep.mubr.bf16.mxu0 %v148
  %308 = vmatmul.mubr.bf16.gmra.mxu0 %v147
  %v309 = vpop.f32.mrf.mxu0
  %v310 = vadd.f32 0.0, %v309
  %v311 = vpop.f32.mrf.mxu0
  %v312 = vpop.f32.mrf.mxu0
  %v313 = vadd.f32 0.0, %v312
  %v314 = vpop.f32.mrf.mxu0
  %315 = vmatprep.mubr.bf16.mxu0 %v150
  %316 = vmatmul.mubr.bf16.gmra.mxu0 %v149
  %v317 = vpop.f32.mrf.mxu0
  %v318 = vadd.f32 0.0, %v317
  %v319 = vpop.f32.mrf.mxu0
  %v320 = vpop.f32.mrf.mxu0
  %v321 = vadd.f32 0.0, %v320
  %v322 = vpop.f32.mrf.mxu0
  %323 = vmatprep.mubr.bf16.mxu0 %v152
  %324 = vmatmul.mubr.bf16.gmra.mxu0 %v151
  %v325 = vpop.f32.mrf.mxu0
  %v326 = vadd.f32 0.0, %v325
  %v327 = vpop.f32.mrf.mxu0
  %v328 = vpop.f32.mrf.mxu0
  %v329 = vadd.f32 0.0, %v328
  %v330 = vpop.f32.mrf.mxu0
  %331 = vmatprep.mubr.bf16.mxu0 %v154
  %332 = vmatmul.mubr.bf16.gmra.mxu0 %v153
  %v333 = vpop.f32.mrf.mxu0
  %v334 = vadd.f32 0.0, %v333
  %v335 = vpop.f32.mrf.mxu0
  %v336 = vpop.f32.mrf.mxu0
  %v337 = vadd.f32 0.0, %v336
  %v338 = vpop.f32.mrf.mxu0
  %339 = vmatprep.mubr.bf16.mxu0 %v156
  %340 = vmatmul.mubr.bf16.gmra.mxu0 %v155
  %v341 = vpop.f32.mrf.mxu0
  %v342 = vadd.f32 0.0, %v341
  %v343 = vpop.f32.mrf.mxu0
  %v344 = vpop.f32.mrf.mxu0
  %v345 = vadd.f32 0.0, %v344
  %v346 = vpop.f32.mrf.mxu0
  %347 = vmatprep.mubr.bf16.mxu0 %v158
  %348 = vmatmul.mubr.bf16.gmra.mxu0 %v157
  %v349 = vpop.f32.mrf.mxu0
  %v350 = vadd.f32 0.0, %v349
  %v351 = vpop.f32.mrf.mxu0
  %v352 = vpop.f32.mrf.mxu0
  %v353 = vadd.f32 0.0, %v352
  %v354 = vpop.f32.mrf.mxu0
  %355 = vmatprep.mubr.bf16.mxu0 %v160
  %356 = vmatmul.mubr.bf16.gmra.mxu0 %v159
  %v357 = vpop.f32.mrf.mxu0
  %v358 = vadd.f32 0.0, %v357
  %v359 = vpop.f32.mrf.mxu0
  %v360 = vpop.f32.mrf.mxu0
  %v361 = vadd.f32 0.0, %v360
  %v362 = vpop.f32.mrf.mxu0
  %363 = vmatprep.mubr.bf16.mxu0 %v162
  %364 = vmatmul.mubr.bf16.gmra.mxu0 %v161
  %v365 = vpop.f32.mrf.mxu0
  %v366 = vadd.f32 0.0, %v365
  %v367 = vpop.f32.mrf.mxu0
  %v368 = vpop.f32.mrf.mxu0
  %v369 = vadd.f32 0.0, %v368
  %v370 = vpop.f32.mrf.mxu0
  %371 = vdwg.mxu0
  %v372 = vadd.f32 %v35, %v310
  %v373 = vadd.f32 %v36, %v313
  %v374 = vadd.f32 %v37, %v318
  %v375 = vadd.f32 %v38, %v321
  %v376 = vadd.f32 %v39, %v326
  %v377 = vadd.f32 %v40, %v329
  %v378 = vadd.f32 %v41, %v334
  %v379 = vadd.f32 %v42, %v337
  %v380 = vadd.f32 %v43, %v342
  %v381 = vadd.f32 %v44, %v345
  %v382 = vadd.f32 %v45, %v350
  %v383 = vadd.f32 %v46, %v353
  %v384 = vadd.f32 %v47, %v358
  %v385 = vadd.f32 %v48, %v361
  %v386 = vadd.f32 %v49, %v366
  %v387 = vadd.f32 %v50, %v369
  %388 = vst [vmem:[#allocation2] sm:$0xff] %v372
  %389 = vst [vmem:[#allocation2 + $0x8] sm:$0xff] %v373
  %390 = vst [vmem:[#allocation2 + $0x10] sm:$0xff] %v374
  %391 = vst [vmem:[#allocation2 + $0x18] sm:$0xff] %v375
  %392 = vst [vmem:[#allocation2 + $0x20] sm:$0xff] %v376
  %393 = vst [vmem:[#allocation2 + $0x28] sm:$0xff] %v377
  %394 = vst [vmem:[#allocation2 + $0x30] sm:$0xff] %v378
  %395 = vst [vmem:[#allocation2 + $0x38] sm:$0xff] %v379
  %396 = vst [vmem:[#allocation2 + $0x40] sm:$0xff] %v380
  %397 = vst [vmem:[#allocation2 + $0x48] sm:$0xff] %v381
  %398 = vst [vmem:[#allocation2 + $0x50] sm:$0xff] %v382
  %399 = vst [vmem:[#allocation2 + $0x58] sm:$0xff] %v383
  %400 = vst [vmem:[#allocation2 + $0x60] sm:$0xff] %v384
  %401 = vst [vmem:[#allocation2 + $0x68] sm:$0xff] %v385
  %402 = vst [vmem:[#allocation2 + $0x70] sm:$0xff] %v386
  %403 = vst [vmem:[#allocation2 + $0x78] sm:$0xff] %v387
  // Predicated region
  $region18: #{vae_forward.18} parent=0 // pred_check
    %p404 = pneg %p15
  $region19: #{vae_forward.18} parent=0 // pred_check_branch
    %406 = sbr.rel (%p404) target = $region21
  $region20: #{vae_forward.18} parent=0 // pred_region
    %v407 = vld [vmem:[#allocation2] sm:$0xff]
    %v408 = vld [vmem:[#allocation2 + $0x8] sm:$0xff]
    %v409 = vld [vmem:[#allocation2 + $0x10] sm:$0xff]
    %v410 = vld [vmem:[#allocation2 + $0x18] sm:$0xff]
    %v411 = vld [vmem:[#allocation2 + $0x20] sm:$0xff]
    %v412 = vld [vmem:[#allocation2 + $0x28] sm:$0xff]
    %v413 = vld [vmem:[#allocation2 + $0x30] sm:$0xff]
    %v414 = vld [vmem:[#allocation2 + $0x38] sm:$0xff]
    %v415 = vld [vmem:[#allocation2 + $0x40] sm:$0xff]
    %v416 = vld [vmem:[#allocation2 + $0x48] sm:$0xff]
    %v417 = vld [vmem:[#allocation2 + $0x50] sm:$0xff]
    %v418 = vld [vmem:[#allocation2 + $0x58] sm:$0xff]
    %v419 = vld [vmem:[#allocation2 + $0x60] sm:$0xff]
    %v420 = vld [vmem:[#allocation2 + $0x68] sm:$0xff]
    %v421 = vld [vmem:[#allocation2 + $0x70] sm:$0xff]
    %v422 = vld [vmem:[#allocation2 + $0x78] sm:$0xff]
    %v423 = vld [vmem:[%s2] sm:$0x1]
    %v425 = vlaneseq
    %v426 = vshrl.u32 %v425, 7
    %v427 = vsub.s32 0, %v426
    %v428 = vrot.slane %v423, %v427
    %v430 = vadd.f32 %v407, %v428
    %v431 = vadd.f32 %v408, %v428
    %v432 = vadd.f32 %v409, %v428
    %v433 = vadd.f32 %v410, %v428
    %v434 = vadd.f32 %v411, %v428
    %v435 = vadd.f32 %v412, %v428
    %v436 = vadd.f32 %v413, %v428
    %v437 = vadd.f32 %v414, %v428
    %v438 = vadd.f32 %v415, %v428
    %v439 = vadd.f32 %v416, %v428
    %v440 = vadd.f32 %v417, %v428
    %v441 = vadd.f32 %v418, %v428
    %v442 = vadd.f32 %v419, %v428
    %v443 = vadd.f32 %v420, %v428
    %v444 = vadd.f32 %v421, %v428
    %v445 = vadd.f32 %v422, %v428
    %v446 = vmax.f32 %v430, 0.0
    %v447 = vmax.f32 %v431, 0.0
    %v448 = vmax.f32 %v432, 0.0
    %v449 = vmax.f32 %v433, 0.0
    %v450 = vmax.f32 %v434, 0.0
    %v451 = vmax.f32 %v435, 0.0
    %v452 = vmax.f32 %v436, 0.0
    %v453 = vmax.f32 %v437, 0.0
    %v454 = vmax.f32 %v438, 0.0
    %v455 = vmax.f32 %v439, 0.0
    %v456 = vmax.f32 %v440, 0.0
    %v457 = vmax.f32 %v441, 0.0
    %v458 = vmax.f32 %v442, 0.0
    %v459 = vmax.f32 %v443, 0.0
    %v460 = vmax.f32 %v444, 0.0
    %v461 = vmax.f32 %v445, 0.0
    %v462 = vpack.c.bf16 %v447, %v446
    %v463 = vpack.c.bf16 %v449, %v448
    %v464 = vpack.c.bf16 %v451, %v450
    %v465 = vpack.c.bf16 %v453, %v452
    %v466 = vpack.c.bf16 %v455, %v454
    %v467 = vpack.c.bf16 %v457, %v456
    %v468 = vpack.c.bf16 %v459, %v458
    %v469 = vpack.c.bf16 %v461, %v460
    %v478 = vunpack.c.l.b16 %v462
    %v479 = vunpack.c.h.b16 %v462
    %v480 = vunpack.c.l.b16 %v463
    %v481 = vunpack.c.h.b16 %v463
    %v482 = vunpack.c.l.b16 %v464
    %v483 = vunpack.c.h.b16 %v464
    %v484 = vunpack.c.l.b16 %v465
    %v485 = vunpack.c.h.b16 %v465
    %v486 = vunpack.c.l.b16 %v466
    %v487 = vunpack.c.h.b16 %v466
    %v488 = vunpack.c.l.b16 %v467
    %v489 = vunpack.c.h.b16 %v467
    %v490 = vunpack.c.l.b16 %v468
    %v491 = vunpack.c.h.b16 %v468
    %v492 = vunpack.c.l.b16 %v469
    %v493 = vunpack.c.h.b16 %v469
    %v494 = vpack.c.b16 %v478, %v478
    %v495 = vpack.c.b16 %v479, %v479
    %v496 = vpack.c.b16 %v480, %v480
    %v497 = vpack.c.b16 %v481, %v481
    %v498 = vpack.c.b16 %v482, %v482
    %v499 = vpack.c.b16 %v483, %v483
    %v500 = vpack.c.b16 %v484, %v484
    %v501 = vpack.c.b16 %v485, %v485
    %v502 = vpack.c.b16 %v486, %v486
    %v503 = vpack.c.b16 %v487, %v487
    %v504 = vpack.c.b16 %v488, %v488
    %v505 = vpack.c.b16 %v489, %v489
    %v506 = vpack.c.b16 %v490, %v490
    %v507 = vpack.c.b16 %v491, %v491
    %v508 = vpack.c.b16 %v492, %v492
    %v509 = vpack.c.b16 %v493, %v493
    %526 = vst [vmem:[%s3] sm:$0xf] %v494
    %527 = vst [vmem:[%s3 + $0x4] sm:$0xf] %v495
    %528 = vst [vmem:[%s3 + $0x8] sm:$0xf] %v496
    %529 = vst [vmem:[%s3 + $0xc] sm:$0xf] %v497
    %530 = vst [vmem:[%s3 + $0x10] sm:$0xf] %v498
    %531 = vst [vmem:[%s3 + $0x14] sm:$0xf] %v499
    %532 = vst [vmem:[%s3 + $0x18] sm:$0xf] %v500
    %533 = vst [vmem:[%s3 + $0x1c] sm:$0xf] %v501
    %534 = vst [vmem:[%s3 + $0x20] sm:$0xf] %v502
    %535 = vst [vmem:[%s3 + $0x24] sm:$0xf] %v503
    %536 = vst [vmem:[%s3 + $0x28] sm:$0xf] %v504
    %537 = vst [vmem:[%s3 + $0x2c] sm:$0xf] %v505
    %538 = vst [vmem:[%s3 + $0x30] sm:$0xf] %v506
    %539 = vst [vmem:[%s3 + $0x34] sm:$0xf] %v507
    %540 = vst [vmem:[%s3 + $0x38] sm:$0xf] %v508
    %541 = vst [vmem:[%s3 + $0x3c] sm:$0xf] %v509
  $region21: #{vae_forward.18} parent=0 // pred_fallthru
    _
  // Predicated region
  $region22: #{vae_forward.18} parent=0 // pred_check
    _
  $region23: #{vae_forward.18} parent=0 // pred_check_branch
    %543 = sbr.rel (0) target = $region25
  $region24: #{vae_forward.18} parent=0 // pred_region
    _
  $region25: #{vae_forward.18} parent=0 // pred_fallthru
    _
  // Predicated region
  $region26: #{vae_forward.18} parent=0 // pred_check
    _
  $region27: #{vae_forward.18} parent=0 // pred_check_branch
    %545 = sbr.rel (0) target = $region29
  $region28: #{vae_forward.18} parent=0 // pred_region
    _
  $region29: #{vae_forward.18} parent=0 // pred_fallthru
    _

// kernel: vae_forward.17
$region0: #{vae_forward.17}
  #allocation0 [shape = 'u32[]', space=smem, size = 0x4, offset = 0x4, fixed_abs, tag = 'smem constant byte address 0x4 - core index']
  #allocation1 [shape = 'u32[144,128]{1,0:T(1,128)}', space=vmem, size = 0x12000, scoped, tag = 'internal scratch']
  #allocation2 [shape = 'f32[32,256]{1,0:T(8,128)}', space=vmem, size = 0x8000, scoped, tag = 'scratch operand']
  %s0 = inlined_call_operand.vmem [shape: bf16[32,512], index: 0, kind: input, shape index: {}]
  %s1 = inlined_call_operand.vmem [shape: bf16[512,256], index: 1, kind: input, shape index: {}]
  %s2 = inlined_call_operand.vmem [shape: f32[1,256], index: 2, kind: input, shape index: {}]
  %s3 = inlined_call_operand.vmem [shape: bf16[32,256], index: 3, kind: output, shape index: {}]
  %s4 = sld [smem:[#allocation0]]
  $region30: #{vae_forward.17} parent=0
    _
  %s6 = ssub.s32 1, %s4
  %s7 = scalar_select 0, %s6, %s4
  // Predicated region
  $region2: #{vae_forward.17} parent=0 // pred_check
    _
  $region3: #{vae_forward.17} parent=0 // pred_check_branch
    %9 = sbr.rel (0) target = $region5
  $region4: #{vae_forward.17} parent=0 // pred_region
    _
  $region5: #{vae_forward.17} parent=0 // pred_fallthru
    _
  // Predicated region
  $region6: #{vae_forward.17} parent=0 // pred_check
    _
  $region7: #{vae_forward.17} parent=0 // pred_check_branch
    %11 = sbr.rel (0) target = $region9
  $region8: #{vae_forward.17} parent=0 // pred_region
    _
  $region9: #{vae_forward.17} parent=0 // pred_fallthru
    _
  // Predicated region
  $region10: #{vae_forward.17} parent=0 // pred_check
    _
  $region11: #{vae_forward.17} parent=0 // pred_check_branch
    %13 = sbr.rel (0) target = $region13
  $region12: #{vae_forward.17} parent=0 // pred_region
    _
  $region13: #{vae_forward.17} parent=0 // pred_fallthru
    _
  %p14 = scmp.eq.s32.totalorder 0, 0
  // Predicated region
  $region14: #{vae_forward.17} parent=0 // pred_check
    %p15 = pneg %p14
  $region15: #{vae_forward.17} parent=0 // pred_check_branch
    %17 = sbr.rel (%p15) target = $region17
  $region16: #{vae_forward.17} parent=0 // pred_region
    %18 = vst [vmem:[#allocation2] sm:$0xff] 0.0
    %19 = vst [vmem:[#allocation2 + $0x8] sm:$0xff] 0.0
    %20 = vst [vmem:[#allocation2 + $0x10] sm:$0xff] 0.0
    %21 = vst [vmem:[#allocation2 + $0x18] sm:$0xff] 0.0
    %22 = vst [vmem:[#allocation2 + $0x20] sm:$0xff] 0.0
    %23 = vst [vmem:[#allocation2 + $0x28] sm:$0xff] 0.0
    %24 = vst [vmem:[#allocation2 + $0x30] sm:$0xff] 0.0
    %25 = vst [vmem:[#allocation2 + $0x38] sm:$0xff] 0.0
  $region17: #{vae_forward.17} parent=0 // pred_fallthru
    _
  %v26 = vld [vmem:[#allocation2] sm:$0xff]
  %v27 = vld [vmem:[#allocation2 + $0x8] sm:$0xff]
  %v28 = vld [vmem:[#allocation2 + $0x10] sm:$0xff]
  %v29 = vld [vmem:[#allocation2 + $0x18] sm:$0xff]
  %v30 = vld [vmem:[#allocation2 + $0x20] sm:$0xff]
  %v31 = vld [vmem:[#allocation2 + $0x28] sm:$0xff]
  %v32 = vld [vmem:[#allocation2 + $0x30] sm:$0xff]
  %v33 = vld [vmem:[#allocation2 + $0x38] sm:$0xff]
  %v34 = vld [vmem:[%s0] sm:$0xff]
  %v35 = vld [vmem:[%s0 + $0x8] sm:$0xff]
  %v36 = vld [vmem:[%s0 + $0x10] sm:$0xff]
  %v37 = vld [vmem:[%s0 + $0x18] sm:$0xff]
  %v38 = vld [vmem:[%s0 + $0x20] sm:$0xff]
  %v39 = vld [vmem:[%s0 + $0x28] sm:$0xff]
  %v40 = vld [vmem:[%s0 + $0x30] sm:$0xff]
  %v41 = vld [vmem:[%s0 + $0x38] sm:$0xff]
  %v42 = vld [vmem:[%s1] sm:$0xff]
  %v43 = vld [vmem:[%s1 + $0x8] sm:$0xff]
  %v44 = vld [vmem:[%s1 + $0x10] sm:$0xff]
  %v45 = vld [vmem:[%s1 + $0x18] sm:$0xff]
  %v46 = vld [vmem:[%s1 + $0x20] sm:$0xff]
  %v47 = vld [vmem:[%s1 + $0x28] sm:$0xff]
  %v48 = vld [vmem:[%s1 + $0x30] sm:$0xff]
  %v49 = vld [vmem:[%s1 + $0x38] sm:$0xff]
  %v50 = vld [vmem:[%s1 + $0x40] sm:$0xff]
  %v51 = vld [vmem:[%s1 + $0x48] sm:$0xff]
  %v52 = vld [vmem:[%s1 + $0x50] sm:$0xff]
  %v53 = vld [vmem:[%s1 + $0x58] sm:$0xff]
  %v54 = vld [vmem:[%s1 + $0x60] sm:$0xff]
  %v55 = vld [vmem:[%s1 + $0x68] sm:$0xff]
  %v56 = vld [vmem:[%s1 + $0x70] sm:$0xff]
  %v57 = vld [vmem:[%s1 + $0x78] sm:$0xff]
  %v58 = vld [vmem:[%s1 + $0x80] sm:$0xff]
  %v59 = vld [vmem:[%s1 + $0x88] sm:$0xff]
  %v60 = vld [vmem:[%s1 + $0x90] sm:$0xff]
  %v61 = vld [vmem:[%s1 + $0x98] sm:$0xff]
  %v62 = vld [vmem:[%s1 + $0xa0] sm:$0xff]
  %v63 = vld [vmem:[%s1 + $0xa8] sm:$0xff]
  %v64 = vld [vmem:[%s1 + $0xb0] sm:$0xff]
  %v65 = vld [vmem:[%s1 + $0xb8] sm:$0xff]
  %v66 = vld [vmem:[%s1 + $0xc0] sm:$0xff]
  %v67 = vld [vmem:[%s1 + $0xc8] sm:$0xff]
  %v68 = vld [vmem:[%s1 + $0xd0] sm:$0xff]
  %v69 = vld [vmem:[%s1 + $0xd8] sm:$0xff]
  %v70 = vld [vmem:[%s1 + $0xe0] sm:$0xff]
  %v71 = vld [vmem:[%s1 + $0xe8] sm:$0xff]
  %v72 = vld [vmem:[%s1 + $0xf0] sm:$0xff]
  %v73 = vld [vmem:[%s1 + $0xf8] sm:$0xff]
  %v74 = vld [vmem:[%s1 + $0x100] sm:$0xff]
  %v75 = vld [vmem:[%s1 + $0x108] sm:$0xff]
  %v76 = vld [vmem:[%s1 + $0x110] sm:$0xff]
  %v77 = vld [vmem:[%s1 + $0x118] sm:$0xff]
  %v78 = vld [vmem:[%s1 + $0x120] sm:$0xff]
  %v79 = vld [vmem:[%s1 + $0x128] sm:$0xff]
  %v80 = vld [vmem:[%s1 + $0x130] sm:$0xff]
  %v81 = vld [vmem:[%s1 + $0x138] sm:$0xff]
  %v82 = vld [vmem:[%s1 + $0x140] sm:$0xff]
  %v83 = vld [vmem:[%s1 + $0x148] sm:$0xff]
  %v84 = vld [vmem:[%s1 + $0x150] sm:$0xff]
  %v85 = vld [vmem:[%s1 + $0x158] sm:$0xff]
  %v86 = vld [vmem:[%s1 + $0x160] sm:$0xff]
  %v87 = vld [vmem:[%s1 + $0x168] sm:$0xff]
  %v88 = vld [vmem:[%s1 + $0x170] sm:$0xff]
  %v89 = vld [vmem:[%s1 + $0x178] sm:$0xff]
  %v90 = vld [vmem:[%s1 + $0x180] sm:$0xff]
  %v91 = vld [vmem:[%s1 + $0x188] sm:$0xff]
  %v92 = vld [vmem:[%s1 + $0x190] sm:$0xff]
  %v93 = vld [vmem:[%s1 + $0x198] sm:$0xff]
  %v94 = vld [vmem:[%s1 + $0x1a0] sm:$0xff]
  %v95 = vld [vmem:[%s1 + $0x1a8] sm:$0xff]
  %v96 = vld [vmem:[%s1 + $0x1b0] sm:$0xff]
  %v97 = vld [vmem:[%s1 + $0x1b8] sm:$0xff]
  %v98 = vld [vmem:[%s1 + $0x1c0] sm:$0xff]
  %v99 = vld [vmem:[%s1 + $0x1c8] sm:$0xff]
  %v100 = vld [vmem:[%s1 + $0x1d0] sm:$0xff]
  %v101 = vld [vmem:[%s1 + $0x1d8] sm:$0xff]
  %v102 = vld [vmem:[%s1 + $0x1e0] sm:$0xff]
  %v103 = vld [vmem:[%s1 + $0x1e8] sm:$0xff]
  %v104 = vld [vmem:[%s1 + $0x1f0] sm:$0xff]
  %v105 = vld [vmem:[%s1 + $0x1f8] sm:$0xff]
  %v114 = vunpack.c.l.b16 %v34
  %v115 = vunpack.c.h.b16 %v34
  %v116 = vunpack.c.l.b16 %v35
  %v117 = vunpack.c.h.b16 %v35
  %v118 = vunpack.c.l.b16 %v36
  %v119 = vunpack.c.h.b16 %v36
  %v120 = vunpack.c.l.b16 %v37
  %v121 = vunpack.c.h.b16 %v37
  %v122 = vunpack.c.l.b16 %v38
  %v123 = vunpack.c.h.b16 %v38
  %v124 = vunpack.c.l.b16 %v39
  %v125 = vunpack.c.h.b16 %v39
  %v126 = vunpack.c.l.b16 %v40
  %v127 = vunpack.c.h.b16 %v40
  %v128 = vunpack.c.l.b16 %v41
  %v129 = vunpack.c.h.b16 %v41
  %v130 = vpack.c.b16 %v118, %v114
  %v131 = vpack.c.b16 %v119, %v115
  %v132 = vpack.c.b16 %v120, %v116
  %v133 = vpack.c.b16 %v121, %v117
  %v134 = vpack.c.b16 %v126, %v122
  %v135 = vpack.c.b16 %v127, %v123
  %v136 = vpack.c.b16 %v128, %v124
  %v137 = vpack.c.b16 %v129, %v125
  %v210 = vunpack.c.l.b16 %v42
  %v211 = vunpack.c.h.b16 %v42
  %v212 = vunpack.c.l.b16 %v43
  %v213 = vunpack.c.h.b16 %v43
  %v214 = vunpack.c.l.b16 %v44
  %v215 = vunpack.c.h.b16 %v44
  %v216 = vunpack.c.l.b16 %v45
  %v217 = vunpack.c.h.b16 %v45
  %v218 = vunpack.c.l.b16 %v46
  %v219 = vunpack.c.h.b16 %v46
  %v220 = vunpack.c.l.b16 %v47
  %v221 = vunpack.c.h.b16 %v47
  %v222 = vunpack.c.l.b16 %v48
  %v223 = vunpack.c.h.b16 %v48
  %v224 = vunpack.c.l.b16 %v49
  %v225 = vunpack.c.h.b16 %v49
  %v226 = vunpack.c.l.b16 %v50
  %v227 = vunpack.c.h.b16 %v50
  %v228 = vunpack.c.l.b16 %v51
  %v229 = vunpack.c.h.b16 %v51
  %v230 = vunpack.c.l.b16 %v52
  %v231 = vunpack.c.h.b16 %v52
  %v232 = vunpack.c.l.b16 %v53
  %v233 = vunpack.c.h.b16 %v53
  %v234 = vunpack.c.l.b16 %v54
  %v235 = vunpack.c.h.b16 %v54
  %v236 = vunpack.c.l.b16 %v55
  %v237 = vunpack.c.h.b16 %v55
  %v238 = vunpack.c.l.b16 %v56
  %v239 = vunpack.c.h.b16 %v56
  %v240 = vunpack.c.l.b16 %v57
  %v241 = vunpack.c.h.b16 %v57
  %v242 = vunpack.c.l.b16 %v58
  %v243 = vunpack.c.h.b16 %v58
  %v244 = vunpack.c.l.b16 %v59
  %v245 = vunpack.c.h.b16 %v59
  %v246 = vunpack.c.l.b16 %v60
  %v247 = vunpack.c.h.b16 %v60
  %v248 = vunpack.c.l.b16 %v61
  %v249 = vunpack.c.h.b16 %v61
  %v250 = vunpack.c.l.b16 %v62
  %v251 = vunpack.c.h.b16 %v62
  %v252 = vunpack.c.l.b16 %v63
  %v253 = vunpack.c.h.b16 %v63
  %v254 = vunpack.c.l.b16 %v64
  %v255 = vunpack.c.h.b16 %v64
  %v256 = vunpack.c.l.b16 %v65
  %v257 = vunpack.c.h.b16 %v65
  %v258 = vunpack.c.l.b16 %v66
  %v259 = vunpack.c.h.b16 %v66
  %v260 = vunpack.c.l.b16 %v67
  %v261 = vunpack.c.h.b16 %v67
  %v262 = vunpack.c.l.b16 %v68
  %v263 = vunpack.c.h.b16 %v68
  %v264 = vunpack.c.l.b16 %v69
  %v265 = vunpack.c.h.b16 %v69
  %v266 = vunpack.c.l.b16 %v70
  %v267 = vunpack.c.h.b16 %v70
  %v268 = vunpack.c.l.b16 %v71
  %v269 = vunpack.c.h.b16 %v71
  %v270 = vunpack.c.l.b16 %v72
  %v271 = vunpack.c.h.b16 %v72
  %v272 = vunpack.c.l.b16 %v73
  %v273 = vunpack.c.h.b16 %v73
  %v274 = vunpack.c.l.b16 %v74
  %v275 = vunpack.c.h.b16 %v74
  %v276 = vunpack.c.l.b16 %v75
  %v277 = vunpack.c.h.b16 %v75
  %v278 = vunpack.c.l.b16 %v76
  %v279 = vunpack.c.h.b16 %v76
  %v280 = vunpack.c.l.b16 %v77
  %v281 = vunpack.c.h.b16 %v77
  %v282 = vunpack.c.l.b16 %v78
  %v283 = vunpack.c.h.b16 %v78
  %v284 = vunpack.c.l.b16 %v79
  %v285 = vunpack.c.h.b16 %v79
  %v286 = vunpack.c.l.b16 %v80
  %v287 = vunpack.c.h.b16 %v80
  %v288 = vunpack.c.l.b16 %v81
  %v289 = vunpack.c.h.b16 %v81
  %v290 = vunpack.c.l.b16 %v82
  %v291 = vunpack.c.h.b16 %v82
  %v292 = vunpack.c.l.b16 %v83
  %v293 = vunpack.c.h.b16 %v83
  %v294 = vunpack.c.l.b16 %v84
  %v295 = vunpack.c.h.b16 %v84
  %v296 = vunpack.c.l.b16 %v85
  %v297 = vunpack.c.h.b16 %v85
  %v298 = vunpack.c.l.b16 %v86
  %v299 = vunpack.c.h.b16 %v86
  %v300 = vunpack.c.l.b16 %v87
  %v301 = vunpack.c.h.b16 %v87
  %v302 = vunpack.c.l.b16 %v88
  %v303 = vunpack.c.h.b16 %v88
  %v304 = vunpack.c.l.b16 %v89
  %v305 = vunpack.c.h.b16 %v89
  %v306 = vunpack.c.l.b16 %v90
  %v307 = vunpack.c.h.b16 %v90
  %v308 = vunpack.c.l.b16 %v91
  %v309 = vunpack.c.h.b16 %v91
  %v310 = vunpack.c.l.b16 %v92
  %v311 = vunpack.c.h.b16 %v92
  %v312 = vunpack.c.l.b16 %v93
  %v313 = vunpack.c.h.b16 %v93
  %v314 = vunpack.c.l.b16 %v94
  %v315 = vunpack.c.h.b16 %v94
  %v316 = vunpack.c.l.b16 %v95
  %v317 = vunpack.c.h.b16 %v95
  %v318 = vunpack.c.l.b16 %v96
  %v319 = vunpack.c.h.b16 %v96
  %v320 = vunpack.c.l.b16 %v97
  %v321 = vunpack.c.h.b16 %v97
  %v322 = vunpack.c.l.b16 %v98
  %v323 = vunpack.c.h.b16 %v98
  %v324 = vunpack.c.l.b16 %v99
  %v325 = vunpack.c.h.b16 %v99
  %v326 = vunpack.c.l.b16 %v100
  %v327 = vunpack.c.h.b16 %v100
  %v328 = vunpack.c.l.b16 %v101
  %v329 = vunpack.c.h.b16 %v101
  %v330 = vunpack.c.l.b16 %v102
  %v331 = vunpack.c.h.b16 %v102
  %v332 = vunpack.c.l.b16 %v103
  %v333 = vunpack.c.h.b16 %v103
  %v334 = vunpack.c.l.b16 %v104
  %v335 = vunpack.c.h.b16 %v104
  %v336 = vunpack.c.l.b16 %v105
  %v337 = vunpack.c.h.b16 %v105
  %v338 = vpack.c.b16 %v212, %v210
  %v339 = vpack.c.b16 %v213, %v211
  %v340 = vpack.c.b16 %v216, %v214
  %v341 = vpack.c.b16 %v217, %v215
  %v342 = vpack.c.b16 %v220, %v218
  %v343 = vpack.c.b16 %v221, %v219
  %v344 = vpack.c.b16 %v224, %v222
  %v345 = vpack.c.b16 %v225, %v223
  %v346 = vpack.c.b16 %v228, %v226
  %v347 = vpack.c.b16 %v229, %v227
  %v348 = vpack.c.b16 %v232, %v230
  %v349 = vpack.c.b16 %v233, %v231
  %v350 = vpack.c.b16 %v236, %v234
  %v351 = vpack.c.b16 %v237, %v235
  %v352 = vpack.c.b16 %v240, %v238
  %v353 = vpack.c.b16 %v241, %v239
  %v354 = vpack.c.b16 %v244, %v242
  %v355 = vpack.c.b16 %v245, %v243
  %v356 = vpack.c.b16 %v248, %v246
  %v357 = vpack.c.b16 %v249, %v247
  %v358 = vpack.c.b16 %v252, %v250
  %v359 = vpack.c.b16 %v253, %v251
  %v360 = vpack.c.b16 %v256, %v254
  %v361 = vpack.c.b16 %v257, %v255
  %v362 = vpack.c.b16 %v260, %v258
  %v363 = vpack.c.b16 %v261, %v259
  %v364 = vpack.c.b16 %v264, %v262
  %v365 = vpack.c.b16 %v265, %v263
  %v366 = vpack.c.b16 %v268, %v266
  %v367 = vpack.c.b16 %v269, %v267
  %v368 = vpack.c.b16 %v272, %v270
  %v369 = vpack.c.b16 %v273, %v271
  %v370 = vpack.c.b16 %v276, %v274
  %v371 = vpack.c.b16 %v277, %v275
  %v372 = vpack.c.b16 %v280, %v278
  %v373 = vpack.c.b16 %v281, %v279
  %v374 = vpack.c.b16 %v284, %v282
  %v375 = vpack.c.b16 %v285, %v283
  %v376 = vpack.c.b16 %v288, %v286
  %v377 = vpack.c.b16 %v289, %v287
  %v378 = vpack.c.b16 %v292, %v290
  %v379 = vpack.c.b16 %v293, %v291
  %v380 = vpack.c.b16 %v296, %v294
  %v381 = vpack.c.b16 %v297, %v295
  %v382 = vpack.c.b16 %v300, %v298
  %v383 = vpack.c.b16 %v301, %v299
  %v384 = vpack.c.b16 %v304, %v302
  %v385 = vpack.c.b16 %v305, %v303
  %v386 = vpack.c.b16 %v308, %v306
  %v387 = vpack.c.b16 %v309, %v307
  %v388 = vpack.c.b16 %v312, %v310
  %v389 = vpack.c.b16 %v313, %v311
  %v390 = vpack.c.b16 %v316, %v314
  %v391 = vpack.c.b16 %v317, %v315
  %v392 = vpack.c.b16 %v320, %v318
  %v393 = vpack.c.b16 %v321, %v319
  %v394 = vpack.c.b16 %v324, %v322
  %v395 = vpack.c.b16 %v325, %v323
  %v396 = vpack.c.b16 %v328, %v326
  %v397 = vpack.c.b16 %v329, %v327
  %v398 = vpack.c.b16 %v332, %v330
  %v399 = vpack.c.b16 %v333, %v331
  %v400 = vpack.c.b16 %v336, %v334
  %v401 = vpack.c.b16 %v337, %v335
  %466 = vmatprep.subr.bf16.mxu0 %v353
  %467 = vmatpush1.bf16.msra.mxu0 %v352
  %468 = vmatprep.subr.bf16.mxu0 %v351
  %469 = vmatpush1.bf16.msra.mxu0 %v350
  %470 = vmatprep.subr.bf16.mxu0 %v349
  %471 = vmatpush1.bf16.msra.mxu0 %v348
  %472 = vmatprep.subr.bf16.mxu0 %v347
  %473 = vmatpush1.bf16.msra.mxu0 %v346
  %474 = vmatprep.subr.bf16.mxu0 %v345
  %475 = vmatpush1.bf16.msra.mxu0 %v344
  %476 = vmatprep.subr.bf16.mxu0 %v343
  %477 = vmatpush1.bf16.msra.mxu0 %v342
  %478 = vmatprep.subr.bf16.mxu0 %v341
  %479 = vmatpush1.bf16.msra.mxu0 %v340
  %480 = vmatprep.subr.bf16.mxu0 %v339
  %481 = vmatpush1.bf16.msra.mxu0 %v338
  %482 = vmatprep.subr.bf16.mxu0 %v369
  %483 = vmatpush2.bf16.msra.mxu0 %v368
  %484 = vmatprep.subr.bf16.mxu0 %v367
  %485 = vmatpush2.bf16.msra.mxu0 %v366
  %486 = vmatprep.subr.bf16.mxu0 %v365
  %487 = vmatpush2.bf16.msra.mxu0 %v364
  %488 = vmatprep.subr.bf16.mxu0 %v363
  %489 = vmatpush2.bf16.msra.mxu0 %v362
  %490 = vmatprep.subr.bf16.mxu0 %v361
  %491 = vmatpush2.bf16.msra.mxu0 %v360
  %492 = vmatprep.subr.bf16.mxu0 %v359
  %493 = vmatpush2.bf16.msra.mxu0 %v358
  %494 = vmatprep.subr.bf16.mxu0 %v357
  %495 = vmatpush2.bf16.msra.mxu0 %v356
  %496 = vmatprep.subr.bf16.mxu0 %v355
  %497 = vmatpush2.bf16.msra.mxu0 %v354
  %498 = vmatprep.mubr.bf16.mxu0 %v131
  %499 = vmatmul.mubr.bf16.gmra.mxu0 %v130
  %v500 = vpop.f32.mrf.mxu0
  %v501 = vadd.f32 0.0, %v500
  %v502 = vpop.f32.mrf.mxu0
  %v503 = vadd.f32 0.0, %v502
  %v504 = vpop.f32.mrf.mxu0
  %v505 = vadd.f32 0.0, %v504
  %v506 = vpop.f32.mrf.mxu0
  %v507 = vadd.f32 0.0, %v506
  %508 = vmatprep.mubr.bf16.mxu0 %v135
  %509 = vmatmul.mubr.bf16.gmra.mxu0 %v134
  %v510 = vpop.f32.mrf.mxu0
  %v511 = vadd.f32 0.0, %v510
  %v512 = vpop.f32.mrf.mxu0
  %v513 = vadd.f32 0.0, %v512
  %v514 = vpop.f32.mrf.mxu0
  %v515 = vadd.f32 0.0, %v514
  %v516 = vpop.f32.mrf.mxu0
  %v517 = vadd.f32 0.0, %v516
  %518 = vdwg.mxu0
  %519 = vmatprep.subr.bf16.mxu0 %v385
  %520 = vmatpush1.bf16.msra.mxu0 %v384
  %521 = vmatprep.subr.bf16.mxu0 %v383
  %522 = vmatpush1.bf16.msra.mxu0 %v382
  %523 = vmatprep.subr.bf16.mxu0 %v381
  %524 = vmatpush1.bf16.msra.mxu0 %v380
  %525 = vmatprep.subr.bf16.mxu0 %v379
  %526 = vmatpush1.bf16.msra.mxu0 %v378
  %527 = vmatprep.subr.bf16.mxu0 %v377
  %528 = vmatpush1.bf16.msra.mxu0 %v376
  %529 = vmatprep.subr.bf16.mxu0 %v375
  %530 = vmatpush1.bf16.msra.mxu0 %v374
  %531 = vmatprep.subr.bf16.mxu0 %v373
  %532 = vmatpush1.bf16.msra.mxu0 %v372
  %533 = vmatprep.subr.bf16.mxu0 %v371
  %534 = vmatpush1.bf16.msra.mxu0 %v370
  %535 = vmatprep.subr.bf16.mxu0 %v401
  %536 = vmatpush2.bf16.msra.mxu0 %v400
  %537 = vmatprep.subr.bf16.mxu0 %v399
  %538 = vmatpush2.bf16.msra.mxu0 %v398
  %539 = vmatprep.subr.bf16.mxu0 %v397
  %540 = vmatpush2.bf16.msra.mxu0 %v396
  %541 = vmatprep.subr.bf16.mxu0 %v395
  %542 = vmatpush2.bf16.msra.mxu0 %v394
  %543 = vmatprep.subr.bf16.mxu0 %v393
  %544 = vmatpush2.bf16.msra.mxu0 %v392
  %545 = vmatprep.subr.bf16.mxu0 %v391
  %546 = vmatpush2.bf16.msra.mxu0 %v390
  %547 = vmatprep.subr.bf16.mxu0 %v389
  %548 = vmatpush2.bf16.msra.mxu0 %v388
  %549 = vmatprep.subr.bf16.mxu0 %v387
  %550 = vmatpush2.bf16.msra.mxu0 %v386
  %551 = vmatprep.mubr.bf16.mxu0 %v133
  %552 = vmatmul.mubr.bf16.gmra.mxu0 %v132
  %v553 = vpop.f32.mrf.mxu0
  %v554 = vadd.f32 %v501, %v553
  %v555 = vpop.f32.mrf.mxu0
  %v556 = vadd.f32 %v503, %v555
  %v557 = vpop.f32.mrf.mxu0
  %v558 = vadd.f32 %v505, %v557
  %v559 = vpop.f32.mrf.mxu0
  %v560 = vadd.f32 %v507, %v559
  %561 = vmatprep.mubr.bf16.mxu0 %v137
  %562 = vmatmul.mubr.bf16.gmra.mxu0 %v136
  %v563 = vpop.f32.mrf.mxu0
  %v564 = vadd.f32 %v511, %v563
  %v565 = vpop.f32.mrf.mxu0
  %v566 = vadd.f32 %v513, %v565
  %v567 = vpop.f32.mrf.mxu0
  %v568 = vadd.f32 %v515, %v567
  %v569 = vpop.f32.mrf.mxu0
  %v570 = vadd.f32 %v517, %v569
  %571 = vdwg.mxu0
  %v572 = vadd.f32 %v26, %v554
  %v573 = vadd.f32 %v27, %v556
  %v574 = vadd.f32 %v28, %v558
  %v575 = vadd.f32 %v29, %v560
  %v576 = vadd.f32 %v30, %v564
  %v577 = vadd.f32 %v31, %v566
  %v578 = vadd.f32 %v32, %v568
  %v579 = vadd.f32 %v33, %v570
  %580 = vst [vmem:[#allocation2] sm:$0xff] %v572
  %581 = vst [vmem:[#allocation2 + $0x8] sm:$0xff] %v573
  %582 = vst [vmem:[#allocation2 + $0x10] sm:$0xff] %v574
  %583 = vst [vmem:[#allocation2 + $0x18] sm:$0xff] %v575
  %584 = vst [vmem:[#allocation2 + $0x20] sm:$0xff] %v576
  %585 = vst [vmem:[#allocation2 + $0x28] sm:$0xff] %v577
  %586 = vst [vmem:[#allocation2 + $0x30] sm:$0xff] %v578
  %587 = vst [vmem:[#allocation2 + $0x38] sm:$0xff] %v579
  // Predicated region
  $region18: #{vae_forward.17} parent=0 // pred_check
    %p588 = pneg %p14
  $region19: #{vae_forward.17} parent=0 // pred_check_branch
    %590 = sbr.rel (%p588) target = $region21
  $region20: #{vae_forward.17} parent=0 // pred_region
    %v591 = vld [vmem:[#allocation2] sm:$0xff]
    %v592 = vld [vmem:[#allocation2 + $0x8] sm:$0xff]
    %v593 = vld [vmem:[#allocation2 + $0x10] sm:$0xff]
    %v594 = vld [vmem:[#allocation2 + $0x18] sm:$0xff]
    %v595 = vld [vmem:[#allocation2 + $0x20] sm:$0xff]
    %v596 = vld [vmem:[#allocation2 + $0x28] sm:$0xff]
    %v597 = vld [vmem:[#allocation2 + $0x30] sm:$0xff]
    %v598 = vld [vmem:[#allocation2 + $0x38] sm:$0xff]
    %v599 = vld [vmem:[%s2] sm:$0x3]
    %v601 = vlaneseq
    %v602 = vshrl.u32 %v601, 7
    %v603 = vsub.s32 0, %v602
    %v604 = vrot.slane %v599, %v603
    %v605 = vlaneseq
    %v606 = vshrl.u32 %v605, 7
    %v607 = vsub.s32 1, %v606
    %v608 = vrot.slane %v599, %v607
    %v611 = vadd.f32 %v591, %v604
    %v612 = vadd.f32 %v592, %v608
    %v613 = vadd.f32 %v593, %v604
    %v614 = vadd.f32 %v594, %v608
    %v615 = vadd.f32 %v595, %v604
    %v616 = vadd.f32 %v596, %v608
    %v617 = vadd.f32 %v597, %v604
    %v618 = vadd.f32 %v598, %v608
    %v619 = vmax.f32 %v611, 0.0
    %v620 = vmax.f32 %v612, 0.0
    %v621 = vmax.f32 %v613, 0.0
    %v622 = vmax.f32 %v614, 0.0
    %v623 = vmax.f32 %v615, 0.0
    %v624 = vmax.f32 %v616, 0.0
    %v625 = vmax.f32 %v617, 0.0
    %v626 = vmax.f32 %v618, 0.0
    %v627 = vpack.c.bf16 %v621, %v619
    %v628 = vpack.c.bf16 %v622, %v620
    %v629 = vpack.c.bf16 %v625, %v623
    %v630 = vpack.c.bf16 %v626, %v624
    %v635 = vunpack.c.l.b16 %v627
    %v636 = vunpack.c.l.b16 %v628
    %v637 = vunpack.c.h.b16 %v627
    %v638 = vunpack.c.h.b16 %v628
    %v639 = vunpack.c.l.b16 %v629
    %v640 = vunpack.c.l.b16 %v630
    %v641 = vunpack.c.h.b16 %v629
    %v642 = vunpack.c.h.b16 %v630
    %v643 = vpack.c.b16 %v636, %v635
    %v644 = vpack.c.b16 %v638, %v637
    %v645 = vpack.c.b16 %v640, %v639
    %v646 = vpack.c.b16 %v642, %v641
    %651 = vst [vmem:[%s3] sm:$0xff] %v643
    %652 = vst [vmem:[%s3 + $0x8] sm:$0xff] %v644
    %653 = vst [vmem:[%s3 + $0x10] sm:$0xff] %v645
    %654 = vst [vmem:[%s3 + $0x18] sm:$0xff] %v646
  $region21: #{vae_forward.17} parent=0 // pred_fallthru
    _
  // Predicated region
  $region22: #{vae_forward.17} parent=0 // pred_check
    _
  $region23: #{vae_forward.17} parent=0 // pred_check_branch
    %656 = sbr.rel (0) target = $region25
  $region24: #{vae_forward.17} parent=0 // pred_region
    _
  $region25: #{vae_forward.17} parent=0 // pred_fallthru
    _
  // Predicated region
  $region26: #{vae_forward.17} parent=0 // pred_check
    _
  $region27: #{vae_forward.17} parent=0 // pred_check_branch
    %658 = sbr.rel (0) target = $region29
  $region28: #{vae_forward.17} parent=0 // pred_region
    _
  $region29: #{vae_forward.17} parent=0 // pred_fallthru
    _

// kernel: vae_forward.16
$region0: #{vae_forward.16}
  #allocation0 [shape = 'u32[]', space=smem, size = 0x4, offset = 0x4, fixed_abs, tag = 'smem constant byte address 0x4 - core index']
  #allocation1 [shape = 'u32[144,128]{1,0:T(1,128)}', space=vmem, size = 0x12000, scoped, tag = 'internal scratch']
  #allocation2 [shape = 'f32[16,512]{1,0:T(8,128)}', space=vmem, size = 0x8000, scoped, tag = 'scratch operand']
  %s0 = inlined_call_operand.vmem [shape: bf16[16,512], index: 0, kind: input, shape index: {}]
  %s1 = inlined_call_operand.vmem [shape: bf16[512,512], index: 1, kind: input, shape index: {}]
  %s2 = inlined_call_operand.vmem [shape: f32[1,512], index: 2, kind: input, shape index: {}]
  %s3 = inlined_call_operand.vmem [shape: bf16[16,512], index: 3, kind: output, shape index: {}]
  %s4 = sld [smem:[#allocation0]]
  $region30: #{vae_forward.16} parent=0
    _
  %s6 = ssub.s32 1, %s4
  %s7 = scalar_select 0, %s6, %s4
  // Predicated region
  $region2: #{vae_forward.16} parent=0 // pred_check
    _
  $region3: #{vae_forward.16} parent=0 // pred_check_branch
    %9 = sbr.rel (0) target = $region5
  $region4: #{vae_forward.16} parent=0 // pred_region
    _
  $region5: #{vae_forward.16} parent=0 // pred_fallthru
    _
  // Predicated region
  $region6: #{vae_forward.16} parent=0 // pred_check
    _
  $region7: #{vae_forward.16} parent=0 // pred_check_branch
    %11 = sbr.rel (0) target = $region9
  $region8: #{vae_forward.16} parent=0 // pred_region
    _
  $region9: #{vae_forward.16} parent=0 // pred_fallthru
    _
  // Predicated region
  $region10: #{vae_forward.16} parent=0 // pred_check
    _
  $region11: #{vae_forward.16} parent=0 // pred_check_branch
    %13 = sbr.rel (0) target = $region13
  $region12: #{vae_forward.16} parent=0 // pred_region
    _
  $region13: #{vae_forward.16} parent=0 // pred_fallthru
    _
  %p14 = scmp.eq.s32.totalorder 0, 0
  // Predicated region
  $region14: #{vae_forward.16} parent=0 // pred_check
    %p15 = pneg %p14
  $region15: #{vae_forward.16} parent=0 // pred_check_branch
    %17 = sbr.rel (%p15) target = $region17
  $region16: #{vae_forward.16} parent=0 // pred_region
    %18 = vst [vmem:[#allocation2] sm:$0xff] 0.0
    %19 = vst [vmem:[#allocation2 + $0x8] sm:$0xff] 0.0
    %20 = vst [vmem:[#allocation2 + $0x10] sm:$0xff] 0.0
    %21 = vst [vmem:[#allocation2 + $0x18] sm:$0xff] 0.0
    %22 = vst [vmem:[#allocation2 + $0x20] sm:$0xff] 0.0
    %23 = vst [vmem:[#allocation2 + $0x28] sm:$0xff] 0.0
    %24 = vst [vmem:[#allocation2 + $0x30] sm:$0xff] 0.0
    %25 = vst [vmem:[#allocation2 + $0x38] sm:$0xff] 0.0
  $region17: #{vae_forward.16} parent=0 // pred_fallthru
    _
  %v26 = vld [vmem:[#allocation2] sm:$0xff]
  %v27 = vld [vmem:[#allocation2 + $0x8] sm:$0xff]
  %v28 = vld [vmem:[#allocation2 + $0x10] sm:$0xff]
  %v29 = vld [vmem:[#allocation2 + $0x18] sm:$0xff]
  %v30 = vld [vmem:[#allocation2 + $0x20] sm:$0xff]
  %v31 = vld [vmem:[#allocation2 + $0x28] sm:$0xff]
  %v32 = vld [vmem:[#allocation2 + $0x30] sm:$0xff]
  %v33 = vld [vmem:[#allocation2 + $0x38] sm:$0xff]
  %v34 = vld [vmem:[%s0] sm:$0xff]
  %v35 = vld [vmem:[%s0 + $0x8] sm:$0xff]
  %v36 = vld [vmem:[%s0 + $0x10] sm:$0xff]
  %v37 = vld [vmem:[%s0 + $0x18] sm:$0xff]
  %v38 = vld [vmem:[%s1] sm:$0xff]
  %v39 = vld [vmem:[%s1 + $0x8] sm:$0xff]
  %v40 = vld [vmem:[%s1 + $0x10] sm:$0xff]
  %v41 = vld [vmem:[%s1 + $0x18] sm:$0xff]
  %v42 = vld [vmem:[%s1 + $0x20] sm:$0xff]
  %v43 = vld [vmem:[%s1 + $0x28] sm:$0xff]
  %v44 = vld [vmem:[%s1 + $0x30] sm:$0xff]
  %v45 = vld [vmem:[%s1 + $0x38] sm:$0xff]
  %v46 = vld [vmem:[%s1 + $0x40] sm:$0xff]
  %v47 = vld [vmem:[%s1 + $0x48] sm:$0xff]
  %v48 = vld [vmem:[%s1 + $0x50] sm:$0xff]
  %v49 = vld [vmem:[%s1 + $0x58] sm:$0xff]
  %v50 = vld [vmem:[%s1 + $0x60] sm:$0xff]
  %v51 = vld [vmem:[%s1 + $0x68] sm:$0xff]
  %v52 = vld [vmem:[%s1 + $0x70] sm:$0xff]
  %v53 = vld [vmem:[%s1 + $0x78] sm:$0xff]
  %v54 = vld [vmem:[%s1 + $0x80] sm:$0xff]
  %v55 = vld [vmem:[%s1 + $0x88] sm:$0xff]
  %v56 = vld [vmem:[%s1 + $0x90] sm:$0xff]
  %v57 = vld [vmem:[%s1 + $0x98] sm:$0xff]
  %v58 = vld [vmem:[%s1 + $0xa0] sm:$0xff]
  %v59 = vld [vmem:[%s1 + $0xa8] sm:$0xff]
  %v60 = vld [vmem:[%s1 + $0xb0] sm:$0xff]
  %v61 = vld [vmem:[%s1 + $0xb8] sm:$0xff]
  %v62 = vld [vmem:[%s1 + $0xc0] sm:$0xff]
  %v63 = vld [vmem:[%s1 + $0xc8] sm:$0xff]
  %v64 = vld [vmem:[%s1 + $0xd0] sm:$0xff]
  %v65 = vld [vmem:[%s1 + $0xd8] sm:$0xff]
  %v66 = vld [vmem:[%s1 + $0xe0] sm:$0xff]
  %v67 = vld [vmem:[%s1 + $0xe8] sm:$0xff]
  %v68 = vld [vmem:[%s1 + $0xf0] sm:$0xff]
  %v69 = vld [vmem:[%s1 + $0xf8] sm:$0xff]
  %v70 = vld [vmem:[%s1 + $0x100] sm:$0xff]
  %v71 = vld [vmem:[%s1 + $0x108] sm:$0xff]
  %v72 = vld [vmem:[%s1 + $0x110] sm:$0xff]
  %v73 = vld [vmem:[%s1 + $0x118] sm:$0xff]
  %v74 = vld [vmem:[%s1 + $0x120] sm:$0xff]
  %v75 = vld [vmem:[%s1 + $0x128] sm:$0xff]
  %v76 = vld [vmem:[%s1 + $0x130] sm:$0xff]
  %v77 = vld [vmem:[%s1 + $0x138] sm:$0xff]
  %v78 = vld [vmem:[%s1 + $0x140] sm:$0xff]
  %v79 = vld [vmem:[%s1 + $0x148] sm:$0xff]
  %v80 = vld [vmem:[%s1 + $0x150] sm:$0xff]
  %v81 = vld [vmem:[%s1 + $0x158] sm:$0xff]
  %v82 = vld [vmem:[%s1 + $0x160] sm:$0xff]
  %v83 = vld [vmem:[%s1 + $0x168] sm:$0xff]
  %v84 = vld [vmem:[%s1 + $0x170] sm:$0xff]
  %v85 = vld [vmem:[%s1 + $0x178] sm:$0xff]
  %v86 = vld [vmem:[%s1 + $0x180] sm:$0xff]
  %v87 = vld [vmem:[%s1 + $0x188] sm:$0xff]
  %v88 = vld [vmem:[%s1 + $0x190] sm:$0xff]
  %v89 = vld [vmem:[%s1 + $0x198] sm:$0xff]
  %v90 = vld [vmem:[%s1 + $0x1a0] sm:$0xff]
  %v91 = vld [vmem:[%s1 + $0x1a8] sm:$0xff]
  %v92 = vld [vmem:[%s1 + $0x1b0] sm:$0xff]
  %v93 = vld [vmem:[%s1 + $0x1b8] sm:$0xff]
  %v94 = vld [vmem:[%s1 + $0x1c0] sm:$0xff]
  %v95 = vld [vmem:[%s1 + $0x1c8] sm:$0xff]
  %v96 = vld [vmem:[%s1 + $0x1d0] sm:$0xff]
  %v97 = vld [vmem:[%s1 + $0x1d8] sm:$0xff]
  %v98 = vld [vmem:[%s1 + $0x1e0] sm:$0xff]
  %v99 = vld [vmem:[%s1 + $0x1e8] sm:$0xff]
  %v100 = vld [vmem:[%s1 + $0x1f0] sm:$0xff]
  %v101 = vld [vmem:[%s1 + $0x1f8] sm:$0xff]
  %v102 = vld [vmem:[%s1 + $0x200] sm:$0xff]
  %v103 = vld [vmem:[%s1 + $0x208] sm:$0xff]
  %v104 = vld [vmem:[%s1 + $0x210] sm:$0xff]
  %v105 = vld [vmem:[%s1 + $0x218] sm:$0xff]
  %v106 = vld [vmem:[%s1 + $0x220] sm:$0xff]
  %v107 = vld [vmem:[%s1 + $0x228] sm:$0xff]
  %v108 = vld [vmem:[%s1 + $0x230] sm:$0xff]
  %v109 = vld [vmem:[%s1 + $0x238] sm:$0xff]
  %v110 = vld [vmem:[%s1 + $0x240] sm:$0xff]
  %v111 = vld [vmem:[%s1 + $0x248] sm:$0xff]
  %v112 = vld [vmem:[%s1 + $0x250] sm:$0xff]
  %v113 = vld [vmem:[%s1 + $0x258] sm:$0xff]
  %v114 = vld [vmem:[%s1 + $0x260] sm:$0xff]
  %v115 = vld [vmem:[%s1 + $0x268] sm:$0xff]
  %v116 = vld [vmem:[%s1 + $0x270] sm:$0xff]
  %v117 = vld [vmem:[%s1 + $0x278] sm:$0xff]
  %v118 = vld [vmem:[%s1 + $0x280] sm:$0xff]
  %v119 = vld [vmem:[%s1 + $0x288] sm:$0xff]
  %v120 = vld [vmem:[%s1 + $0x290] sm:$0xff]
  %v121 = vld [vmem:[%s1 + $0x298] sm:$0xff]
  %v122 = vld [vmem:[%s1 + $0x2a0] sm:$0xff]
  %v123 = vld [vmem:[%s1 + $0x2a8] sm:$0xff]
  %v124 = vld [vmem:[%s1 + $0x2b0] sm:$0xff]
  %v125 = vld [vmem:[%s1 + $0x2b8] sm:$0xff]
  %v126 = vld [vmem:[%s1 + $0x2c0] sm:$0xff]
  %v127 = vld [vmem:[%s1 + $0x2c8] sm:$0xff]
  %v128 = vld [vmem:[%s1 + $0x2d0] sm:$0xff]
  %v129 = vld [vmem:[%s1 + $0x2d8] sm:$0xff]
  %v130 = vld [vmem:[%s1 + $0x2e0] sm:$0xff]
  %v131 = vld [vmem:[%s1 + $0x2e8] sm:$0xff]
  %v132 = vld [vmem:[%s1 + $0x2f0] sm:$0xff]
  %v133 = vld [vmem:[%s1 + $0x2f8] sm:$0xff]
  %v134 = vld [vmem:[%s1 + $0x300] sm:$0xff]
  %v135 = vld [vmem:[%s1 + $0x308] sm:$0xff]
  %v136 = vld [vmem:[%s1 + $0x310] sm:$0xff]
  %v137 = vld [vmem:[%s1 + $0x318] sm:$0xff]
  %v138 = vld [vmem:[%s1 + $0x320] sm:$0xff]
  %v139 = vld [vmem:[%s1 + $0x328] sm:$0xff]
  %v140 = vld [vmem:[%s1 + $0x330] sm:$0xff]
  %v141 = vld [vmem:[%s1 + $0x338] sm:$0xff]
  %v142 = vld [vmem:[%s1 + $0x340] sm:$0xff]
  %v143 = vld [vmem:[%s1 + $0x348] sm:$0xff]
  %v144 = vld [vmem:[%s1 + $0x350] sm:$0xff]
  %v145 = vld [vmem:[%s1 + $0x358] sm:$0xff]
  %v146 = vld [vmem:[%s1 + $0x360] sm:$0xff]
  %v147 = vld [vmem:[%s1 + $0x368] sm:$0xff]
  %v148 = vld [vmem:[%s1 + $0x370] sm:$0xff]
  %v149 = vld [vmem:[%s1 + $0x378] sm:$0xff]
  %v150 = vld [vmem:[%s1 + $0x380] sm:$0xff]
  %v151 = vld [vmem:[%s1 + $0x388] sm:$0xff]
  %v152 = vld [vmem:[%s1 + $0x390] sm:$0xff]
  %v153 = vld [vmem:[%s1 + $0x398] sm:$0xff]
  %v154 = vld [vmem:[%s1 + $0x3a0] sm:$0xff]
  %v155 = vld [vmem:[%s1 + $0x3a8] sm:$0xff]
  %v156 = vld [vmem:[%s1 + $0x3b0] sm:$0xff]
  %v157 = vld [vmem:[%s1 + $0x3b8] sm:$0xff]
  %v158 = vld [vmem:[%s1 + $0x3c0] sm:$0xff]
  %v159 = vld [vmem:[%s1 + $0x3c8] sm:$0xff]
  %v160 = vld [vmem:[%s1 + $0x3d0] sm:$0xff]
  %v161 = vld [vmem:[%s1 + $0x3d8] sm:$0xff]
  %v162 = vld [vmem:[%s1 + $0x3e0] sm:$0xff]
  %v163 = vld [vmem:[%s1 + $0x3e8] sm:$0xff]
  %v164 = vld [vmem:[%s1 + $0x3f0] sm:$0xff]
  %v165 = vld [vmem:[%s1 + $0x3f8] sm:$0xff]
  %v170 = vunpack.c.l.b16 %v34
  %v171 = vunpack.c.h.b16 %v34
  %v172 = vunpack.c.l.b16 %v35
  %v173 = vunpack.c.h.b16 %v35
  %v174 = vunpack.c.l.b16 %v36
  %v175 = vunpack.c.h.b16 %v36
  %v176 = vunpack.c.l.b16 %v37
  %v177 = vunpack.c.h.b16 %v37
  %v178 = vpack.c.b16 %v174, %v170
  %v179 = vpack.c.b16 %v175, %v171
  %v180 = vpack.c.b16 %v176, %v172
  %v181 = vpack.c.b16 %v177, %v173
  %v314 = vunpack.c.l.b16 %v38
  %v315 = vunpack.c.h.b16 %v38
  %v316 = vunpack.c.l.b16 %v39
  %v317 = vunpack.c.h.b16 %v39
  %v318 = vunpack.c.l.b16 %v40
  %v319 = vunpack.c.h.b16 %v40
  %v320 = vunpack.c.l.b16 %v41
  %v321 = vunpack.c.h.b16 %v41
  %v322 = vunpack.c.l.b16 %v42
  %v323 = vunpack.c.h.b16 %v42
  %v324 = vunpack.c.l.b16 %v43
  %v325 = vunpack.c.h.b16 %v43
  %v326 = vunpack.c.l.b16 %v44
  %v327 = vunpack.c.h.b16 %v44
  %v328 = vunpack.c.l.b16 %v45
  %v329 = vunpack.c.h.b16 %v45
  %v330 = vunpack.c.l.b16 %v46
  %v331 = vunpack.c.h.b16 %v46
  %v332 = vunpack.c.l.b16 %v47
  %v333 = vunpack.c.h.b16 %v47
  %v334 = vunpack.c.l.b16 %v48
  %v335 = vunpack.c.h.b16 %v48
  %v336 = vunpack.c.l.b16 %v49
  %v337 = vunpack.c.h.b16 %v49
  %v338 = vunpack.c.l.b16 %v50
  %v339 = vunpack.c.h.b16 %v50
  %v340 = vunpack.c.l.b16 %v51
  %v341 = vunpack.c.h.b16 %v51
  %v342 = vunpack.c.l.b16 %v52
  %v343 = vunpack.c.h.b16 %v52
  %v344 = vunpack.c.l.b16 %v53
  %v345 = vunpack.c.h.b16 %v53
  %v346 = vunpack.c.l.b16 %v54
  %v347 = vunpack.c.h.b16 %v54
  %v348 = vunpack.c.l.b16 %v55
  %v349 = vunpack.c.h.b16 %v55
  %v350 = vunpack.c.l.b16 %v56
  %v351 = vunpack.c.h.b16 %v56
  %v352 = vunpack.c.l.b16 %v57
  %v353 = vunpack.c.h.b16 %v57
  %v354 = vunpack.c.l.b16 %v58
  %v355 = vunpack.c.h.b16 %v58
  %v356 = vunpack.c.l.b16 %v59
  %v357 = vunpack.c.h.b16 %v59
  %v358 = vunpack.c.l.b16 %v60
  %v359 = vunpack.c.h.b16 %v60
  %v360 = vunpack.c.l.b16 %v61
  %v361 = vunpack.c.h.b16 %v61
  %v362 = vunpack.c.l.b16 %v62
  %v363 = vunpack.c.h.b16 %v62
  %v364 = vunpack.c.l.b16 %v63
  %v365 = vunpack.c.h.b16 %v63
  %v366 = vunpack.c.l.b16 %v64
  %v367 = vunpack.c.h.b16 %v64
  %v368 = vunpack.c.l.b16 %v65
  %v369 = vunpack.c.h.b16 %v65
  %v370 = vunpack.c.l.b16 %v66
  %v371 = vunpack.c.h.b16 %v66
  %v372 = vunpack.c.l.b16 %v67
  %v373 = vunpack.c.h.b16 %v67
  %v374 = vunpack.c.l.b16 %v68
  %v375 = vunpack.c.h.b16 %v68
  %v376 = vunpack.c.l.b16 %v69
  %v377 = vunpack.c.h.b16 %v69
  %v378 = vunpack.c.l.b16 %v70
  %v379 = vunpack.c.h.b16 %v70
  %v380 = vunpack.c.l.b16 %v71
  %v381 = vunpack.c.h.b16 %v71
  %v382 = vunpack.c.l.b16 %v72
  %v383 = vunpack.c.h.b16 %v72
  %v384 = vunpack.c.l.b16 %v73
  %v385 = vunpack.c.h.b16 %v73
  %v386 = vunpack.c.l.b16 %v74
  %v387 = vunpack.c.h.b16 %v74
  %v388 = vunpack.c.l.b16 %v75
  %v389 = vunpack.c.h.b16 %v75
  %v390 = vunpack.c.l.b16 %v76
  %v391 = vunpack.c.h.b16 %v76
  %v392 = vunpack.c.l.b16 %v77
  %v393 = vunpack.c.h.b16 %v77
  %v394 = vunpack.c.l.b16 %v78
  %v395 = vunpack.c.h.b16 %v78
  %v396 = vunpack.c.l.b16 %v79
  %v397 = vunpack.c.h.b16 %v79
  %v398 = vunpack.c.l.b16 %v80
  %v399 = vunpack.c.h.b16 %v80
  %v400 = vunpack.c.l.b16 %v81
  %v401 = vunpack.c.h.b16 %v81
  %v402 = vunpack.c.l.b16 %v82
  %v403 = vunpack.c.h.b16 %v82
  %v404 = vunpack.c.l.b16 %v83
  %v405 = vunpack.c.h.b16 %v83
  %v406 = vunpack.c.l.b16 %v84
  %v407 = vunpack.c.h.b16 %v84
  %v408 = vunpack.c.l.b16 %v85
  %v409 = vunpack.c.h.b16 %v85
  %v410 = vunpack.c.l.b16 %v86
  %v411 = vunpack.c.h.b16 %v86
  %v412 = vunpack.c.l.b16 %v87
  %v413 = vunpack.c.h.b16 %v87
  %v414 = vunpack.c.l.b16 %v88
  %v415 = vunpack.c.h.b16 %v88
  %v416 = vunpack.c.l.b16 %v89
  %v417 = vunpack.c.h.b16 %v89
  %v418 = vunpack.c.l.b16 %v90
  %v419 = vunpack.c.h.b16 %v90
  %v420 = vunpack.c.l.b16 %v91
  %v421 = vunpack.c.h.b16 %v91
  %v422 = vunpack.c.l.b16 %v92
  %v423 = vunpack.c.h.b16 %v92
  %v424 = vunpack.c.l.b16 %v93
  %v425 = vunpack.c.h.b16 %v93
  %v426 = vunpack.c.l.b16 %v94
  %v427 = vunpack.c.h.b16 %v94
  %v428 = vunpack.c.l.b16 %v95
  %v429 = vunpack.c.h.b16 %v95
  %v430 = vunpack.c.l.b16 %v96
  %v431 = vunpack.c.h.b16 %v96
  %v432 = vunpack.c.l.b16 %v97
  %v433 = vunpack.c.h.b16 %v97
  %v434 = vunpack.c.l.b16 %v98
  %v435 = vunpack.c.h.b16 %v98
  %v436 = vunpack.c.l.b16 %v99
  %v437 = vunpack.c.h.b16 %v99
  %v438 = vunpack.c.l.b16 %v100
  %v439 = vunpack.c.h.b16 %v100
  %v440 = vunpack.c.l.b16 %v101
  %v441 = vunpack.c.h.b16 %v101
  %v442 = vunpack.c.l.b16 %v102
  %v443 = vunpack.c.h.b16 %v102
  %v444 = vunpack.c.l.b16 %v103
  %v445 = vunpack.c.h.b16 %v103
  %v446 = vunpack.c.l.b16 %v104
  %v447 = vunpack.c.h.b16 %v104
  %v448 = vunpack.c.l.b16 %v105
  %v449 = vunpack.c.h.b16 %v105
  %v450 = vunpack.c.l.b16 %v106
  %v451 = vunpack.c.h.b16 %v106
  %v452 = vunpack.c.l.b16 %v107
  %v453 = vunpack.c.h.b16 %v107
  %v454 = vunpack.c.l.b16 %v108
  %v455 = vunpack.c.h.b16 %v108
  %v456 = vunpack.c.l.b16 %v109
  %v457 = vunpack.c.h.b16 %v109
  %v458 = vunpack.c.l.b16 %v110
  %v459 = vunpack.c.h.b16 %v110
  %v460 = vunpack.c.l.b16 %v111
  %v461 = vunpack.c.h.b16 %v111
  %v462 = vunpack.c.l.b16 %v112
  %v463 = vunpack.c.h.b16 %v112
  %v464 = vunpack.c.l.b16 %v113
  %v465 = vunpack.c.h.b16 %v113
  %v466 = vunpack.c.l.b16 %v114
  %v467 = vunpack.c.h.b16 %v114
  %v468 = vunpack.c.l.b16 %v115
  %v469 = vunpack.c.h.b16 %v115
  %v470 = vunpack.c.l.b16 %v116
  %v471 = vunpack.c.h.b16 %v116
  %v472 = vunpack.c.l.b16 %v117
  %v473 = vunpack.c.h.b16 %v117
  %v474 = vunpack.c.l.b16 %v118
  %v475 = vunpack.c.h.b16 %v118
  %v476 = vunpack.c.l.b16 %v119
  %v477 = vunpack.c.h.b16 %v119
  %v478 = vunpack.c.l.b16 %v120
  %v479 = vunpack.c.h.b16 %v120
  %v480 = vunpack.c.l.b16 %v121
  %v481 = vunpack.c.h.b16 %v121
  %v482 = vunpack.c.l.b16 %v122
  %v483 = vunpack.c.h.b16 %v122
  %v484 = vunpack.c.l.b16 %v123
  %v485 = vunpack.c.h.b16 %v123
  %v486 = vunpack.c.l.b16 %v124
  %v487 = vunpack.c.h.b16 %v124
  %v488 = vunpack.c.l.b16 %v125
  %v489 = vunpack.c.h.b16 %v125
  %v490 = vunpack.c.l.b16 %v126
  %v491 = vunpack.c.h.b16 %v126
  %v492 = vunpack.c.l.b16 %v127
  %v493 = vunpack.c.h.b16 %v127
  %v494 = vunpack.c.l.b16 %v128
  %v495 = vunpack.c.h.b16 %v128
  %v496 = vunpack.c.l.b16 %v129
  %v497 = vunpack.c.h.b16 %v129
  %v498 = vunpack.c.l.b16 %v130
  %v499 = vunpack.c.h.b16 %v130
  %v500 = vunpack.c.l.b16 %v131
  %v501 = vunpack.c.h.b16 %v131
  %v502 = vunpack.c.l.b16 %v132
  %v503 = vunpack.c.h.b16 %v132
  %v504 = vunpack.c.l.b16 %v133
  %v505 = vunpack.c.h.b16 %v133
  %v506 = vunpack.c.l.b16 %v134
  %v507 = vunpack.c.h.b16 %v134
  %v508 = vunpack.c.l.b16 %v135
  %v509 = vunpack.c.h.b16 %v135
  %v510 = vunpack.c.l.b16 %v136
  %v511 = vunpack.c.h.b16 %v136
  %v512 = vunpack.c.l.b16 %v137
  %v513 = vunpack.c.h.b16 %v137
  %v514 = vunpack.c.l.b16 %v138
  %v515 = vunpack.c.h.b16 %v138
  %v516 = vunpack.c.l.b16 %v139
  %v517 = vunpack.c.h.b16 %v139
  %v518 = vunpack.c.l.b16 %v140
  %v519 = vunpack.c.h.b16 %v140
  %v520 = vunpack.c.l.b16 %v141
  %v521 = vunpack.c.h.b16 %v141
  %v522 = vunpack.c.l.b16 %v142
  %v523 = vunpack.c.h.b16 %v142
  %v524 = vunpack.c.l.b16 %v143
  %v525 = vunpack.c.h.b16 %v143
  %v526 = vunpack.c.l.b16 %v144
  %v527 = vunpack.c.h.b16 %v144
  %v528 = vunpack.c.l.b16 %v145
  %v529 = vunpack.c.h.b16 %v145
  %v530 = vunpack.c.l.b16 %v146
  %v531 = vunpack.c.h.b16 %v146
  %v532 = vunpack.c.l.b16 %v147
  %v533 = vunpack.c.h.b16 %v147
  %v534 = vunpack.c.l.b16 %v148
  %v535 = vunpack.c.h.b16 %v148
  %v536 = vunpack.c.l.b16 %v149
  %v537 = vunpack.c.h.b16 %v149
  %v538 = vunpack.c.l.b16 %v150
  %v539 = vunpack.c.h.b16 %v150
  %v540 = vunpack.c.l.b16 %v151
  %v541 = vunpack.c.h.b16 %v151
  %v542 = vunpack.c.l.b16 %v152
  %v543 = vunpack.c.h.b16 %v152
  %v544 = vunpack.c.l.b16 %v153
  %v545 = vunpack.c.h.b16 %v153
  %v546 = vunpack.c.l.b16 %v154
  %v547 = vunpack.c.h.b16 %v154
  %v548 = vunpack.c.l.b16 %v155
  %v549 = vunpack.c.h.b16 %v155
  %v550 = vunpack.c.l.b16 %v156
  %v551 = vunpack.c.h.b16 %v156
  %v552 = vunpack.c.l.b16 %v157
  %v553 = vunpack.c.h.b16 %v157
  %v554 = vunpack.c.l.b16 %v158
  %v555 = vunpack.c.h.b16 %v158
  %v556 = vunpack.c.l.b16 %v159
  %v557 = vunpack.c.h.b16 %v159
  %v558 = vunpack.c.l.b16 %v160
  %v559 = vunpack.c.h.b16 %v160
  %v560 = vunpack.c.l.b16 %v161
  %v561 = vunpack.c.h.b16 %v161
  %v562 = vunpack.c.l.b16 %v162
  %v563 = vunpack.c.h.b16 %v162
  %v564 = vunpack.c.l.b16 %v163
  %v565 = vunpack.c.h.b16 %v163
  %v566 = vunpack.c.l.b16 %v164
  %v567 = vunpack.c.h.b16 %v164
  %v568 = vunpack.c.l.b16 %v165
  %v569 = vunpack.c.h.b16 %v165
  %v570 = vpack.c.b16 %v318, %v314
  %v571 = vpack.c.b16 %v319, %v315
  %v572 = vpack.c.b16 %v320, %v316
  %v573 = vpack.c.b16 %v321, %v317
  %v574 = vpack.c.b16 %v326, %v322
  %v575 = vpack.c.b16 %v327, %v323
  %v576 = vpack.c.b16 %v328, %v324
  %v577 = vpack.c.b16 %v329, %v325
  %v578 = vpack.c.b16 %v334, %v330
  %v579 = vpack.c.b16 %v335, %v331
  %v580 = vpack.c.b16 %v336, %v332
  %v581 = vpack.c.b16 %v337, %v333
  %v582 = vpack.c.b16 %v342, %v338
  %v583 = vpack.c.b16 %v343, %v339
  %v584 = vpack.c.b16 %v344, %v340
  %v585 = vpack.c.b16 %v345, %v341
  %v586 = vpack.c.b16 %v350, %v346
  %v587 = vpack.c.b16 %v351, %v347
  %v588 = vpack.c.b16 %v352, %v348
  %v589 = vpack.c.b16 %v353, %v349
  %v590 = vpack.c.b16 %v358, %v354
  %v591 = vpack.c.b16 %v359, %v355
  %v592 = vpack.c.b16 %v360, %v356
  %v593 = vpack.c.b16 %v361, %v357
  %v594 = vpack.c.b16 %v366, %v362
  %v595 = vpack.c.b16 %v367, %v363
  %v596 = vpack.c.b16 %v368, %v364
  %v597 = vpack.c.b16 %v369, %v365
  %v598 = vpack.c.b16 %v374, %v370
  %v599 = vpack.c.b16 %v375, %v371
  %v600 = vpack.c.b16 %v376, %v372
  %v601 = vpack.c.b16 %v377, %v373
  %v602 = vpack.c.b16 %v382, %v378
  %v603 = vpack.c.b16 %v383, %v379
  %v604 = vpack.c.b16 %v384, %v380
  %v605 = vpack.c.b16 %v385, %v381
  %v606 = vpack.c.b16 %v390, %v386
  %v607 = vpack.c.b16 %v391, %v387
  %v608 = vpack.c.b16 %v392, %v388
  %v609 = vpack.c.b16 %v393, %v389
  %v610 = vpack.c.b16 %v398, %v394
  %v611 = vpack.c.b16 %v399, %v395
  %v612 = vpack.c.b16 %v400, %v396
  %v613 = vpack.c.b16 %v401, %v397
  %v614 = vpack.c.b16 %v406, %v402
  %v615 = vpack.c.b16 %v407, %v403
  %v616 = vpack.c.b16 %v408, %v404
  %v617 = vpack.c.b16 %v409, %v405
  %v618 = vpack.c.b16 %v414, %v410
  %v619 = vpack.c.b16 %v415, %v411
  %v620 = vpack.c.b16 %v416, %v412
  %v621 = vpack.c.b16 %v417, %v413
  %v622 = vpack.c.b16 %v422, %v418
  %v623 = vpack.c.b16 %v423, %v419
  %v624 = vpack.c.b16 %v424, %v420
  %v625 = vpack.c.b16 %v425, %v421
  %v626 = vpack.c.b16 %v430, %v426
  %v627 = vpack.c.b16 %v431, %v427
  %v628 = vpack.c.b16 %v432, %v428
  %v629 = vpack.c.b16 %v433, %v429
  %v630 = vpack.c.b16 %v438, %v434
  %v631 = vpack.c.b16 %v439, %v435
  %v632 = vpack.c.b16 %v440, %v436
  %v633 = vpack.c.b16 %v441, %v437
  %v634 = vpack.c.b16 %v446, %v442
  %v635 = vpack.c.b16 %v447, %v443
  %v636 = vpack.c.b16 %v448, %v444
  %v637 = vpack.c.b16 %v449, %v445
  %v638 = vpack.c.b16 %v454, %v450
  %v639 = vpack.c.b16 %v455, %v451
  %v640 = vpack.c.b16 %v456, %v452
  %v641 = vpack.c.b16 %v457, %v453
  %v642 = vpack.c.b16 %v462, %v458
  %v643 = vpack.c.b16 %v463, %v459
  %v644 = vpack.c.b16 %v464, %v460
  %v645 = vpack.c.b16 %v465, %v461
  %v646 = vpack.c.b16 %v470, %v466
  %v647 = vpack.c.b16 %v471, %v467
  %v648 = vpack.c.b16 %v472, %v468
  %v649 = vpack.c.b16 %v473, %v469
  %v650 = vpack.c.b16 %v478, %v474
  %v651 = vpack.c.b16 %v479, %v475
  %v652 = vpack.c.b16 %v480, %v476
  %v653 = vpack.c.b16 %v481, %v477
  %v654 = vpack.c.b16 %v486, %v482
  %v655 = vpack.c.b16 %v487, %v483
  %v656 = vpack.c.b16 %v488, %v484
  %v657 = vpack.c.b16 %v489, %v485
  %v658 = vpack.c.b16 %v494, %v490
  %v659 = vpack.c.b16 %v495, %v491
  %v660 = vpack.c.b16 %v496, %v492
  %v661 = vpack.c.b16 %v497, %v493
  %v662 = vpack.c.b16 %v502, %v498
  %v663 = vpack.c.b16 %v503, %v499
  %v664 = vpack.c.b16 %v504, %v500
  %v665 = vpack.c.b16 %v505, %v501
  %v666 = vpack.c.b16 %v510, %v506
  %v667 = vpack.c.b16 %v511, %v507
  %v668 = vpack.c.b16 %v512, %v508
  %v669 = vpack.c.b16 %v513, %v509
  %v670 = vpack.c.b16 %v518, %v514
  %v671 = vpack.c.b16 %v519, %v515
  %v672 = vpack.c.b16 %v520, %v516
  %v673 = vpack.c.b16 %v521, %v517
  %v674 = vpack.c.b16 %v526, %v522
  %v675 = vpack.c.b16 %v527, %v523
  %v676 = vpack.c.b16 %v528, %v524
  %v677 = vpack.c.b16 %v529, %v525
  %v678 = vpack.c.b16 %v534, %v530
  %v679 = vpack.c.b16 %v535, %v531
  %v680 = vpack.c.b16 %v536, %v532
  %v681 = vpack.c.b16 %v537, %v533
  %v682 = vpack.c.b16 %v542, %v538
  %v683 = vpack.c.b16 %v543, %v539
  %v684 = vpack.c.b16 %v544, %v540
  %v685 = vpack.c.b16 %v545, %v541
  %v686 = vpack.c.b16 %v550, %v546
  %v687 = vpack.c.b16 %v551, %v547
  %v688 = vpack.c.b16 %v552, %v548
  %v689 = vpack.c.b16 %v553, %v549
  %v690 = vpack.c.b16 %v558, %v554
  %v691 = vpack.c.b16 %v559, %v555
  %v692 = vpack.c.b16 %v560, %v556
  %v693 = vpack.c.b16 %v561, %v557
  %v694 = vpack.c.b16 %v566, %v562
  %v695 = vpack.c.b16 %v567, %v563
  %v696 = vpack.c.b16 %v568, %v564
  %v697 = vpack.c.b16 %v569, %v565
  %826 = vmatprep.subr.bf16.mxu0 %v599
  %827 = vmatpush1.bf16.msra.mxu0 %v598
  %828 = vmatprep.subr.bf16.mxu0 %v595
  %829 = vmatpush1.bf16.msra.mxu0 %v594
  %830 = vmatprep.subr.bf16.mxu0 %v591
  %831 = vmatpush1.bf16.msra.mxu0 %v590
  %832 = vmatprep.subr.bf16.mxu0 %v587
  %833 = vmatpush1.bf16.msra.mxu0 %v586
  %834 = vmatprep.subr.bf16.mxu0 %v583
  %835 = vmatpush1.bf16.msra.mxu0 %v582
  %836 = vmatprep.subr.bf16.mxu0 %v579
  %837 = vmatpush1.bf16.msra.mxu0 %v578
  %838 = vmatprep.subr.bf16.mxu0 %v575
  %839 = vmatpush1.bf16.msra.mxu0 %v574
  %840 = vmatprep.subr.bf16.mxu0 %v571
  %841 = vmatpush1.bf16.msra.mxu0 %v570
  %842 = vmatprep.subr.bf16.mxu0 %v631
  %843 = vmatpush2.bf16.msra.mxu0 %v630
  %844 = vmatprep.subr.bf16.mxu0 %v627
  %845 = vmatpush2.bf16.msra.mxu0 %v626
  %846 = vmatprep.subr.bf16.mxu0 %v623
  %847 = vmatpush2.bf16.msra.mxu0 %v622
  %848 = vmatprep.subr.bf16.mxu0 %v619
  %849 = vmatpush2.bf16.msra.mxu0 %v618
  %850 = vmatprep.subr.bf16.mxu0 %v615
  %851 = vmatpush2.bf16.msra.mxu0 %v614
  %852 = vmatprep.subr.bf16.mxu0 %v611
  %853 = vmatpush2.bf16.msra.mxu0 %v610
  %854 = vmatprep.subr.bf16.mxu0 %v607
  %855 = vmatpush2.bf16.msra.mxu0 %v606
  %856 = vmatprep.subr.bf16.mxu0 %v603
  %857 = vmatpush2.bf16.msra.mxu0 %v602
  %858 = vmatprep.mubr.bf16.mxu0 %v179
  %859 = vmatmul.mubr.bf16.gmra.mxu0 %v178
  %v860 = vpop.f32.mrf.mxu0
  %v861 = vadd.f32 0.0, %v860
  %v862 = vpop.f32.mrf.mxu0
  %v863 = vadd.f32 0.0, %v862
  %v864 = vpop.f32.mrf.mxu0
  %v865 = vadd.f32 0.0, %v864
  %v866 = vpop.f32.mrf.mxu0
  %v867 = vadd.f32 0.0, %v866
  %868 = vdwg.mxu0
  %869 = vmatprep.subr.bf16.mxu0 %v663
  %870 = vmatpush1.bf16.msra.mxu0 %v662
  %871 = vmatprep.subr.bf16.mxu0 %v659
  %872 = vmatpush1.bf16.msra.mxu0 %v658
  %873 = vmatprep.subr.bf16.mxu0 %v655
  %874 = vmatpush1.bf16.msra.mxu0 %v654
  %875 = vmatprep.subr.bf16.mxu0 %v651
  %876 = vmatpush1.bf16.msra.mxu0 %v650
  %877 = vmatprep.subr.bf16.mxu0 %v647
  %878 = vmatpush1.bf16.msra.mxu0 %v646
  %879 = vmatprep.subr.bf16.mxu0 %v643
  %880 = vmatpush1.bf16.msra.mxu0 %v642
  %881 = vmatprep.subr.bf16.mxu0 %v639
  %882 = vmatpush1.bf16.msra.mxu0 %v638
  %883 = vmatprep.subr.bf16.mxu0 %v635
  %884 = vmatpush1.bf16.msra.mxu0 %v634
  %885 = vmatprep.subr.bf16.mxu0 %v695
  %886 = vmatpush2.bf16.msra.mxu0 %v694
  %887 = vmatprep.subr.bf16.mxu0 %v691
  %888 = vmatpush2.bf16.msra.mxu0 %v690
  %889 = vmatprep.subr.bf16.mxu0 %v687
  %890 = vmatpush2.bf16.msra.mxu0 %v686
  %891 = vmatprep.subr.bf16.mxu0 %v683
  %892 = vmatpush2.bf16.msra.mxu0 %v682
  %893 = vmatprep.subr.bf16.mxu0 %v679
  %894 = vmatpush2.bf16.msra.mxu0 %v678
  %895 = vmatprep.subr.bf16.mxu0 %v675
  %896 = vmatpush2.bf16.msra.mxu0 %v674
  %897 = vmatprep.subr.bf16.mxu0 %v671
  %898 = vmatpush2.bf16.msra.mxu0 %v670
  %899 = vmatprep.subr.bf16.mxu0 %v667
  %900 = vmatpush2.bf16.msra.mxu0 %v666
  %901 = vmatprep.mubr.bf16.mxu0 %v181
  %902 = vmatmul.mubr.bf16.gmra.mxu0 %v180
  %v903 = vpop.f32.mrf.mxu0
  %v904 = vadd.f32 %v861, %v903
  %v905 = vpop.f32.mrf.mxu0
  %v906 = vadd.f32 %v863, %v905
  %v907 = vpop.f32.mrf.mxu0
  %v908 = vadd.f32 %v865, %v907
  %v909 = vpop.f32.mrf.mxu0
  %v910 = vadd.f32 %v867, %v909
  %911 = vdwg.mxu0
  %912 = vmatprep.subr.bf16.mxu0 %v601
  %913 = vmatpush1.bf16.msra.mxu0 %v600
  %914 = vmatprep.subr.bf16.mxu0 %v597
  %915 = vmatpush1.bf16.msra.mxu0 %v596
  %916 = vmatprep.subr.bf16.mxu0 %v593
  %917 = vmatpush1.bf16.msra.mxu0 %v592
  %918 = vmatprep.subr.bf16.mxu0 %v589
  %919 = vmatpush1.bf16.msra.mxu0 %v588
  %920 = vmatprep.subr.bf16.mxu0 %v585
  %921 = vmatpush1.bf16.msra.mxu0 %v584
  %922 = vmatprep.subr.bf16.mxu0 %v581
  %923 = vmatpush1.bf16.msra.mxu0 %v580
  %924 = vmatprep.subr.bf16.mxu0 %v577
  %925 = vmatpush1.bf16.msra.mxu0 %v576
  %926 = vmatprep.subr.bf16.mxu0 %v573
  %927 = vmatpush1.bf16.msra.mxu0 %v572
  %928 = vmatprep.subr.bf16.mxu0 %v633
  %929 = vmatpush2.bf16.msra.mxu0 %v632
  %930 = vmatprep.subr.bf16.mxu0 %v629
  %931 = vmatpush2.bf16.msra.mxu0 %v628
  %932 = vmatprep.subr.bf16.mxu0 %v625
  %933 = vmatpush2.bf16.msra.mxu0 %v624
  %934 = vmatprep.subr.bf16.mxu0 %v621
  %935 = vmatpush2.bf16.msra.mxu0 %v620
  %936 = vmatprep.subr.bf16.mxu0 %v617
  %937 = vmatpush2.bf16.msra.mxu0 %v616
  %938 = vmatprep.subr.bf16.mxu0 %v613
  %939 = vmatpush2.bf16.msra.mxu0 %v612
  %940 = vmatprep.subr.bf16.mxu0 %v609
  %941 = vmatpush2.bf16.msra.mxu0 %v608
  %942 = vmatprep.subr.bf16.mxu0 %v605
  %943 = vmatpush2.bf16.msra.mxu0 %v604
  %944 = vmatprep.mubr.bf16.mxu0 %v179
  %945 = vmatmul.mubr.bf16.gmra.mxu0 %v178
  %v946 = vpop.f32.mrf.mxu0
  %v947 = vadd.f32 0.0, %v946
  %v948 = vpop.f32.mrf.mxu0
  %v949 = vadd.f32 0.0, %v948
  %v950 = vpop.f32.mrf.mxu0
  %v951 = vadd.f32 0.0, %v950
  %v952 = vpop.f32.mrf.mxu0
  %v953 = vadd.f32 0.0, %v952
  %954 = vdwg.mxu0
  %955 = vmatprep.subr.bf16.mxu0 %v665
  %956 = vmatpush1.bf16.msra.mxu0 %v664
  %957 = vmatprep.subr.bf16.mxu0 %v661
  %958 = vmatpush1.bf16.msra.mxu0 %v660
  %959 = vmatprep.subr.bf16.mxu0 %v657
  %960 = vmatpush1.bf16.msra.mxu0 %v656
  %961 = vmatprep.subr.bf16.mxu0 %v653
  %962 = vmatpush1.bf16.msra.mxu0 %v652
  %963 = vmatprep.subr.bf16.mxu0 %v649
  %964 = vmatpush1.bf16.msra.mxu0 %v648
  %965 = vmatprep.subr.bf16.mxu0 %v645
  %966 = vmatpush1.bf16.msra.mxu0 %v644
  %967 = vmatprep.subr.bf16.mxu0 %v641
  %968 = vmatpush1.bf16.msra.mxu0 %v640
  %969 = vmatprep.subr.bf16.mxu0 %v637
  %970 = vmatpush1.bf16.msra.mxu0 %v636
  %971 = vmatprep.subr.bf16.mxu0 %v697
  %972 = vmatpush2.bf16.msra.mxu0 %v696
  %973 = vmatprep.subr.bf16.mxu0 %v693
  %974 = vmatpush2.bf16.msra.mxu0 %v692
  %975 = vmatprep.subr.bf16.mxu0 %v689
  %976 = vmatpush2.bf16.msra.mxu0 %v688
  %977 = vmatprep.subr.bf16.mxu0 %v685
  %978 = vmatpush2.bf16.msra.mxu0 %v684
  %979 = vmatprep.subr.bf16.mxu0 %v681
  %980 = vmatpush2.bf16.msra.mxu0 %v680
  %981 = vmatprep.subr.bf16.mxu0 %v677
  %982 = vmatpush2.bf16.msra.mxu0 %v676
  %983 = vmatprep.subr.bf16.mxu0 %v673
  %984 = vmatpush2.bf16.msra.mxu0 %v672
  %985 = vmatprep.subr.bf16.mxu0 %v669
  %986 = vmatpush2.bf16.msra.mxu0 %v668
  %987 = vmatprep.mubr.bf16.mxu0 %v181
  %988 = vmatmul.mubr.bf16.gmra.mxu0 %v180
  %v989 = vpop.f32.mrf.mxu0
  %v990 = vadd.f32 %v947, %v989
  %v991 = vpop.f32.mrf.mxu0
  %v992 = vadd.f32 %v949, %v991
  %v993 = vpop.f32.mrf.mxu0
  %v994 = vadd.f32 %v951, %v993
  %v995 = vpop.f32.mrf.mxu0
  %v996 = vadd.f32 %v953, %v995
  %997 = vdwg.mxu0
  %v998 = vadd.f32 %v26, %v904
  %v999 = vadd.f32 %v27, %v906
  %v1000 = vadd.f32 %v28, %v990
  %v1001 = vadd.f32 %v29, %v992
  %v1002 = vadd.f32 %v30, %v908
  %v1003 = vadd.f32 %v31, %v910
  %v1004 = vadd.f32 %v32, %v994
  %v1005 = vadd.f32 %v33, %v996
  %1006 = vst [vmem:[#allocation2] sm:$0xff] %v998
  %1007 = vst [vmem:[#allocation2 + $0x8] sm:$0xff] %v999
  %1008 = vst [vmem:[#allocation2 + $0x10] sm:$0xff] %v1000
  %1009 = vst [vmem:[#allocation2 + $0x18] sm:$0xff] %v1001
  %1010 = vst [vmem:[#allocation2 + $0x20] sm:$0xff] %v1002
  %1011 = vst [vmem:[#allocation2 + $0x28] sm:$0xff] %v1003
  %1012 = vst [vmem:[#allocation2 + $0x30] sm:$0xff] %v1004
  %1013 = vst [vmem:[#allocation2 + $0x38] sm:$0xff] %v1005
  // Predicated region
  $region18: #{vae_forward.16} parent=0 // pred_check
    %p1014 = pneg %p14
  $region19: #{vae_forward.16} parent=0 // pred_check_branch
    %1016 = sbr.rel (%p1014) target = $region21
  $region20: #{vae_forward.16} parent=0 // pred_region
    %v1017 = vld [vmem:[#allocation2] sm:$0xff]
    %v1018 = vld [vmem:[#allocation2 + $0x8] sm:$0xff]
    %v1019 = vld [vmem:[#allocation2 + $0x10] sm:$0xff]
    %v1020 = vld [vmem:[#allocation2 + $0x18] sm:$0xff]
    %v1021 = vld [vmem:[#allocation2 + $0x20] sm:$0xff]
    %v1022 = vld [vmem:[#allocation2 + $0x28] sm:$0xff]
    %v1023 = vld [vmem:[#allocation2 + $0x30] sm:$0xff]
    %v1024 = vld [vmem:[#allocation2 + $0x38] sm:$0xff]
    %v1025 = vld [vmem:[%s2] sm:$0xf]
    %v1027 = vlaneseq
    %v1028 = vshrl.u32 %v1027, 7
    %v1029 = vsub.s32 0, %v1028
    %v1030 = vrot.slane %v1025, %v1029
    %v1031 = vlaneseq
    %v1032 = vshrl.u32 %v1031, 7
    %v1033 = vsub.s32 1, %v1032
    %v1034 = vrot.slane %v1025, %v1033
    %v1035 = vlaneseq
    %v1036 = vshrl.u32 %v1035, 7
    %v1037 = vsub.s32 2, %v1036
    %v1038 = vrot.slane %v1025, %v1037
    %v1039 = vlaneseq
    %v1040 = vshrl.u32 %v1039, 7
    %v1041 = vsub.s32 3, %v1040
    %v1042 = vrot.slane %v1025, %v1041
    %v1047 = vadd.f32 %v1017, %v1030
    %v1048 = vadd.f32 %v1018, %v1034
    %v1049 = vadd.f32 %v1019, %v1038
    %v1050 = vadd.f32 %v1020, %v1042
    %v1051 = vadd.f32 %v1021, %v1030
    %v1052 = vadd.f32 %v1022, %v1034
    %v1053 = vadd.f32 %v1023, %v1038
    %v1054 = vadd.f32 %v1024, %v1042
    %v1055 = vmax.f32 %v1047, 0.0
    %v1056 = vmax.f32 %v1048, 0.0
    %v1057 = vmax.f32 %v1049, 0.0
    %v1058 = vmax.f32 %v1050, 0.0
    %v1059 = vmax.f32 %v1051, 0.0
    %v1060 = vmax.f32 %v1052, 0.0
    %v1061 = vmax.f32 %v1053, 0.0
    %v1062 = vmax.f32 %v1054, 0.0
    %v1063 = vpack.c.bf16 %v1059, %v1055
    %v1064 = vpack.c.bf16 %v1060, %v1056
    %v1065 = vpack.c.bf16 %v1061, %v1057
    %v1066 = vpack.c.bf16 %v1062, %v1058
    %v1071 = vunpack.c.l.b16 %v1063
    %v1072 = vunpack.c.l.b16 %v1064
    %v1073 = vunpack.c.l.b16 %v1065
    %v1074 = vunpack.c.l.b16 %v1066
    %v1075 = vunpack.c.h.b16 %v1063
    %v1076 = vunpack.c.h.b16 %v1064
    %v1077 = vunpack.c.h.b16 %v1065
    %v1078 = vunpack.c.h.b16 %v1066
    %v1079 = vpack.c.b16 %v1072, %v1071
    %v1080 = vpack.c.b16 %v1074, %v1073
    %v1081 = vpack.c.b16 %v1076, %v1075
    %v1082 = vpack.c.b16 %v1078, %v1077
    %1087 = vst [vmem:[%s3] sm:$0xff] %v1079
    %1088 = vst [vmem:[%s3 + $0x8] sm:$0xff] %v1080
    %1089 = vst [vmem:[%s3 + $0x10] sm:$0xff] %v1081
    %1090 = vst [vmem:[%s3 + $0x18] sm:$0xff] %v1082
  $region21: #{vae_forward.16} parent=0 // pred_fallthru
    _
  // Predicated region
  $region22: #{vae_forward.16} parent=0 // pred_check
    _
  $region23: #{vae_forward.16} parent=0 // pred_check_branch
    %1092 = sbr.rel (0) target = $region25
  $region24: #{vae_forward.16} parent=0 // pred_region
    _
  $region25: #{vae_forward.16} parent=0 // pred_fallthru
    _
  // Predicated region
  $region26: #{vae_forward.16} parent=0 // pred_check
    _
  $region27: #{vae_forward.16} parent=0 // pred_check_branch
    %1094 = sbr.rel (0) target = $region29
  $region28: #{vae_forward.16} parent=0 // pred_region
    _
  $region29: #{vae_forward.16} parent=0 // pred_fallthru
    _

// kernel: vae_forward.19
$region0: #{vae_forward.19}
  #allocation0 [shape = 'u32[]', space=smem, size = 0x4, offset = 0x4, fixed_abs, tag = 'smem constant byte address 0x4 - core index']
  #allocation1 [shape = 'u32[144,128]{1,0:T(1,128)}', space=vmem, size = 0x12000, scoped, tag = 'internal scratch']
  #allocation2 [shape = 'f32[256,128]{1,0:T(8,128)}', space=vmem, size = 0x20000, scoped, tag = 'scratch operand']
  %s0 = inlined_call_operand.vmem [shape: bf16[512,384], index: 0, kind: input, shape index: {}]
  %s1 = inlined_call_operand.vmem [shape: bf16[384,128], index: 1, kind: input, shape index: {}]
  %s2 = inlined_call_operand.vmem [shape: f32[1,128], index: 2, kind: input, shape index: {}]
  %s3 = inlined_call_operand.vmem [shape: f32[512,128], index: 3, kind: output, shape index: {}]
  %s4 = sld [smem:[#allocation0]]
  $region53: #{vae_forward.19} parent=0
    _
  %s6 = ssub.s32 1, %s4
  %s7 = scalar_select 0, %s6, %s4
  loop: start=0, step=1, limit=4
  $region2: #{vae_forward.19} parent=0 // loop_pre_header
    _
  $region3: #{vae_forward.19} parent=0 // loop_header
    %s9 = sphi 0, %s13
    %p10 = scmp.ge.s32.totalorder %s9, 4
    %s16 = sphi 0, %s35
    %s17 = sphi 0, %s31
    %s18 = sphi 0, %s27
    %s19 = sphi 0, %s16
    %s20 = sphi 0, %s17
    %s21 = sphi 0, %s18
    %s22 = sphi 0, %s19
    %s23 = sphi 0, %s20
    %s24 = sphi 0, %s21
    %s40 = sphi 0, %s42
    %s43 = sphi 0, %s40
    %s44 = sphi 0, %s43
    %s60 = sphi 0, %s44
    %s68 = sphi 0, %s70
    %s71 = sphi 0, %s68
    %s72 = sphi 0, %s71
    %s88 = sphi 0, %s72
    %s94 = sphi 0, %s96
    %s97 = sphi 0, %s94
    %s98 = sphi 0, %s97
    %s114 = sphi 0, %s98
    %s122 = sphi 0, %s124
    %s125 = sphi 0, %s122
    %s126 = sphi 0, %s125
    %s142 = sphi 0, %s126
  $region4: #{vae_forward.19} parent=0 // loop_header_branch
    %12 = sbr.rel (%p10) target = $region8
  $region5: #{vae_forward.19} parent=0 // loop_body
    %s14 = ssub.s32 %s9, 1
    %s15 = ssub.s32 %s9, 2
    %s25 = sadd.s32 1, %s18
    %p26 = scmp.ge.s32.totalorder %s25, 1
    %s27 = scalar_select %p26, 0, %s25
    %s28 = sadd.s32 1, %s17
    %s29 = scalar_select %p26, %s28, %s17
    %p30 = scmp.ge.s32.totalorder %s29, 1
    %s31 = scalar_select %p30, 0, %s29
    %s32 = sadd.s32 1, %s16
    %s33 = scalar_select %p30, %s32, %s16
    %p34 = scmp.ge.s32.totalorder %s33, 2
    %s35 = scalar_select %p34, 0, %s33
    %s36 = ssub.s32 %s16, %s35
    %s37 = ssub.s32 %s18, %s27
    %s38 = sor.u32 %s36, %s37
    %p39 = scmp.eq.s32.totalorder %s38, 0
    %s41 = sadd.s32 %s40, 1
    %s42 = scalar_select %p39, %s40, %s41
    %p45 = pneg %p39
    %p46 = scmp.eq.s32.totalorder %s9, 1
    %p47 = por %p45, %p46
    %p48 = scmp.ne.s32.totalorder %s40, %s43
    %p49 = scmp.eq.s32.totalorder %s9, 0
    %p50 = por %p48, %p49
    %p51 = scmp.ne.s32.totalorder %s40, %s43
    %p52 = scmp.eq.s32.totalorder %s14, 1
    %p53 = por %p51, %p52
    %p54 = scmp.ne.s32.totalorder %s43, %s44
    %p55 = scmp.eq.s32.totalorder %s14, 0
    %p56 = por %p54, %p55
    %p57 = scmp.ne.s32.totalorder %s43, %s44
    %p58 = scmp.eq.s32.totalorder %s15, 1
    %p59 = por %p57, %p58
    %p61 = scmp.ne.s32.totalorder %s44, %s60
    %p62 = scmp.eq.s32.totalorder %s15, 0
    %p63 = por %p61, %p62
    %s64 = ssub.s32 %s18, %s27
    %s65 = ssub.s32 %s17, %s31
    %s66 = sor.u32 %s64, %s65
    %p67 = scmp.eq.s32.totalorder %s66, 0
    %s69 = sadd.s32 %s68, 1
    %s70 = scalar_select %p67, %s68, %s69
    %p73 = pneg %p67
    %p74 = scmp.eq.s32.totalorder %s9, 1
    %p75 = por %p73, %p74
    %p76 = scmp.ne.s32.totalorder %s68, %s71
    %p77 = scmp.eq.s32.totalorder %s9, 0
    %p78 = por %p76, %p77
    %p79 = scmp.ne.s32.totalorder %s68, %s71
    %p80 = scmp.eq.s32.totalorder %s14, 1
    %p81 = por %p79, %p80
    %p82 = scmp.ne.s32.totalorder %s71, %s72
    %p83 = scmp.eq.s32.totalorder %s14, 0
    %p84 = por %p82, %p83
    %p85 = scmp.ne.s32.totalorder %s71, %s72
    %p86 = scmp.eq.s32.totalorder %s15, 1
    %p87 = por %p85, %p86
    %p89 = scmp.ne.s32.totalorder %s72, %s88
    %p90 = scmp.eq.s32.totalorder %s15, 0
    %p91 = por %p89, %p90
    %s92 = ssub.s32 %s17, %s31
    %p93 = scmp.eq.s32.totalorder %s92, 0
    %s95 = sadd.s32 %s94, 1
    %s96 = scalar_select %p93, %s94, %s95
    %p99 = pneg %p93
    %p100 = scmp.eq.s32.totalorder %s9, 1
    %p101 = por %p99, %p100
    %p102 = scmp.ne.s32.totalorder %s94, %s97
    %p103 = scmp.eq.s32.totalorder %s9, 0
    %p104 = por %p102, %p103
    %p105 = scmp.ne.s32.totalorder %s94, %s97
    %p106 = scmp.eq.s32.totalorder %s14, 1
    %p107 = por %p105, %p106
    %p108 = scmp.ne.s32.totalorder %s97, %s98
    %p109 = scmp.eq.s32.totalorder %s14, 0
    %p110 = por %p108, %p109
    %p111 = scmp.ne.s32.totalorder %s97, %s98
    %p112 = scmp.eq.s32.totalorder %s15, 1
    %p113 = por %p111, %p112
    %p115 = scmp.ne.s32.totalorder %s98, %s114
    %p116 = scmp.eq.s32.totalorder %s15, 0
    %p117 = por %p115, %p116
    %s118 = ssub.s32 %s16, %s35
    %s119 = ssub.s32 %s17, %s31
    %s120 = sor.u32 %s118, %s119
    %p121 = scmp.eq.s32.totalorder %s120, 0
    %s123 = sadd.s32 %s122, 1
    %s124 = scalar_select %p121, %s122, %s123
    %p127 = pneg %p121
    %p128 = scmp.eq.s32.totalorder %s9, 1
    %p129 = por %p127, %p128
    %p130 = scmp.ne.s32.totalorder %s122, %s125
    %p131 = scmp.eq.s32.totalorder %s9, 0
    %p132 = por %p130, %p131
    %p133 = scmp.ne.s32.totalorder %s122, %s125
    %p134 = scmp.eq.s32.totalorder %s14, 1
    %p135 = por %p133, %p134
    %p136 = scmp.ne.s32.totalorder %s125, %s126
    %p137 = scmp.eq.s32.totalorder %s14, 0
    %p138 = por %p136, %p137
    %p139 = scmp.ne.s32.totalorder %s125, %s126
    %p140 = scmp.eq.s32.totalorder %s15, 1
    %p141 = por %p139, %p140
    %p143 = scmp.ne.s32.totalorder %s126, %s142
    %p144 = scmp.eq.s32.totalorder %s15, 0
    %p145 = por %p143, %p144
    %p146 = scmp.le.s32.totalorder 1, %s9
    %p147 = scmp.lt.s32.totalorder %s9, 3
    %p148 = pnand %p146, %p147
    %p149 = pneg %p148
    // Predicated region
    $region9: #{vae_forward.19} parent=5 // pred_check
      _
    $region10: #{vae_forward.19} parent=5 // pred_check_branch
      %151 = sbr.rel (%p148) target = $region12
    $region11: #{vae_forward.19} parent=5 // pred_region
      %s152 = ssub.s32 %s9, 1
      // Predicated region
      $region13: #{vae_forward.19} parent=11 // pred_check
        %p153 = pneg %p84
      $region14: #{vae_forward.19} parent=11 // pred_check_branch
        %155 = sbr.rel (%p153) target = $region16
      $region15: #{vae_forward.19} parent=11 // pred_region
        %s156 = smul.u32 48, %s21
        %p157 = scmp.lt.s32.totalorder %s156, 47
        %s158 = scalar_select %p157, %s156, 47
        %p159 = scmp.lt.s32.totalorder %s20, 0
        %s160 = scalar_select %p159, %s20, 0
        %s161 = sadd.s32 %s160, %s158
        %s162 = smul.addr %s161, 4
        %s163 = scalar_lea.vmem %s1, %s162
        %s164 = smul.u32 48, %s21
      $region16: #{vae_forward.19} parent=11 // pred_fallthru
        _
      // Predicated region
      $region17: #{vae_forward.19} parent=11 // pred_check
        %p165 = pneg %p110
      $region18: #{vae_forward.19} parent=11 // pred_check_branch
        %167 = sbr.rel (%p165) target = $region20
      $region19: #{vae_forward.19} parent=11 // pred_region
        %p168 = scmp.lt.s32.totalorder %s20, 0
        %s169 = scalar_select %p168, %s20, 0
        %s170 = scalar_lea.vmem %s2, %s169
      $region20: #{vae_forward.19} parent=11 // pred_fallthru
        _
    $region12: #{vae_forward.19} parent=5 // pred_fallthru
      _
    %p171 = scmp.lt.s32.totalorder %s9, 2
    // Predicated region
    $region21: #{vae_forward.19} parent=5 // pred_check
      %p172 = pneg %p171
    $region22: #{vae_forward.19} parent=5 // pred_check_branch
      %174 = sbr.rel (%p172) target = $region24
    $region23: #{vae_forward.19} parent=5 // pred_region
      // Predicated region
      $region25: #{vae_forward.19} parent=23 // pred_check
        %p175 = pneg %p50
      $region26: #{vae_forward.19} parent=23 // pred_check_branch
        %177 = sbr.rel (%p175) target = $region28
      $region27: #{vae_forward.19} parent=23 // pred_region
        %s178 = smul.u32 32, %s16
        %s179 = smul.u32 3, %s18
        %p180 = scmp.lt.s32.totalorder %s178, 63
        %s181 = scalar_select %p180, %s178, 63
        %p182 = scmp.lt.s32.totalorder %s179, 2
        %s183 = scalar_select %p182, %s179, 2
        %s184 = smul.addr %s181, 3
        %s185 = sadd.s32 %s183, %s184
        %s186 = smul.addr %s185, 4
        %s187 = scalar_lea.vmem %s0, %s186
        %s188 = smul.u32 32, %s16
        %s189 = smul.u32 3, %s18
      $region28: #{vae_forward.19} parent=23 // pred_fallthru
        _
    $region24: #{vae_forward.19} parent=5 // pred_fallthru
      _
    %p190 = scmp.le.s32.totalorder 1, %s9
    %p191 = scmp.lt.s32.totalorder %s9, 3
    %p192 = pnand %p190, %p191
    %p193 = pneg %p192
    // Predicated region
    $region29: #{vae_forward.19} parent=5 // pred_check
      _
    $region30: #{vae_forward.19} parent=5 // pred_check_branch
      %195 = sbr.rel (%p192) target = $region32
    $region31: #{vae_forward.19} parent=5 // pred_region
      %s196 = ssub.s32 %s9, 1
      %s197 = smul.u32 32, %s19
      %s198 = smul.u32 3, %s21
      %p199 = scmp.lt.s32.totalorder %s197, 63
      %s200 = scalar_select %p199, %s197, 63
      %p201 = scmp.lt.s32.totalorder %s198, 2
      %s202 = scalar_select %p201, %s198, 2
      %s203 = smul.addr %s200, 3
      %s204 = sadd.s32 %s202, %s203
      %s205 = smul.addr %s204, 4
      %s206 = scalar_lea.vmem %s0, %s205
      %p207 = pneg %p56
      %p208 = pneg %p53
      %s209 = smul.u32 48, %s21
      %p210 = scmp.lt.s32.totalorder %s209, 47
      %s211 = scalar_select %p210, %s209, 47
      %p212 = scmp.lt.s32.totalorder %s20, 0
      %s213 = scalar_select %p212, %s20, 0
      %s214 = sadd.s32 %s213, %s211
      %s215 = smul.addr %s214, 4
      %s216 = scalar_lea.vmem %s1, %s215
      %p217 = pneg %p84
      %p218 = pneg %p81
      %p219 = scmp.lt.s32.totalorder %s20, 0
      %s220 = scalar_select %p219, %s20, 0
      %s221 = scalar_lea.vmem %s2, %s220
      %p222 = pneg %p110
      %p223 = pneg %p107
      %p224 = pneg %p138
      %p225 = pneg %p135
      %s226 = smul.u32 32, %s19
      %p227 = scmp.lt.s32.totalorder %s226, 63
      %s228 = scalar_select %p227, %s226, 63
      %p229 = scmp.lt.s32.totalorder %s20, 0
      %s230 = scalar_select %p229, %s20, 0
      %s231 = sadd.s32 %s230, %s228
      %s232 = smul.addr %s231, 8
      %s233 = scalar_lea.vmem %s3, %s232
      %s234 = smul.u32 32, %s19
      %s235 = smul.u32 3, %s21
      %p236 = scmp.lt.s32.totalorder %s234, 63
      %s237 = scalar_select %p236, %s234, 63
      %p238 = scmp.lt.s32.totalorder %s235, 2
      %s239 = scalar_select %p238, %s235, 2
      %s240 = smul.addr %s237, 3
      %s241 = sadd.s32 %s239, %s240
      %s242 = smul.addr %s241, 4
      %s243 = scalar_lea.vmem %s0, %s242
      %s244 = smul.u32 32, %s19
      %s245 = smul.u32 3, %s21
      %s246 = smul.u32 48, %s21
      %p247 = scmp.lt.s32.totalorder %s246, 47
      %s248 = scalar_select %p247, %s246, 47
      %p249 = scmp.lt.s32.totalorder %s20, 0
      %s250 = scalar_select %p249, %s20, 0
      %s251 = sadd.s32 %s250, %s248
      %s252 = smul.addr %s251, 4
      %s253 = scalar_lea.vmem %s1, %s252
      %s254 = smul.u32 48, %s21
      %p255 = scmp.lt.s32.totalorder %s20, 0
      %s256 = scalar_select %p255, %s20, 0
      %s257 = scalar_lea.vmem %s2, %s256
      %s258 = smul.u32 32, %s19
      %p259 = scmp.lt.s32.totalorder %s258, 63
      %s260 = scalar_select %p259, %s258, 63
      %p261 = scmp.lt.s32.totalorder %s20, 0
      %s262 = scalar_select %p261, %s20, 0
      %s263 = sadd.s32 %s262, %s260
      %s264 = smul.addr %s263, 8
      %s265 = scalar_lea.vmem %s3, %s264
      %s266 = smul.u32 32, %s19
      %p268 = scmp.eq.s32.totalorder %s21, 0
      // Predicated region
      $region33: #{vae_forward.19} parent=31 // pred_check
        %p269 = pneg %p268
      $region34: #{vae_forward.19} parent=31 // pred_check_branch
        %271 = sbr.rel (%p269) target = $region36
      $region35: #{vae_forward.19} parent=31 // pred_region
        %272 = vst [vmem:[#allocation2] sm:$0xff] 0.0
        %273 = vst [vmem:[#allocation2 + $0x8] sm:$0xff] 0.0
        %274 = vst [vmem:[#allocation2 + $0x10] sm:$0xff] 0.0
        %275 = vst [vmem:[#allocation2 + $0x18] sm:$0xff] 0.0
        %276 = vst [vmem:[#allocation2 + $0x20] sm:$0xff] 0.0
        %277 = vst [vmem:[#allocation2 + $0x28] sm:$0xff] 0.0
        %278 = vst [vmem:[#allocation2 + $0x30] sm:$0xff] 0.0
        %279 = vst [vmem:[#allocation2 + $0x38] sm:$0xff] 0.0
        %280 = vst [vmem:[#allocation2 + $0x40] sm:$0xff] 0.0
        %281 = vst [vmem:[#allocation2 + $0x48] sm:$0xff] 0.0
        %282 = vst [vmem:[#allocation2 + $0x50] sm:$0xff] 0.0
        %283 = vst [vmem:[#allocation2 + $0x58] sm:$0xff] 0.0
        %284 = vst [vmem:[#allocation2 + $0x60] sm:$0xff] 0.0
        %285 = vst [vmem:[#allocation2 + $0x68] sm:$0xff] 0.0
        %286 = vst [vmem:[#allocation2 + $0x70] sm:$0xff] 0.0
        %287 = vst [vmem:[#allocation2 + $0x78] sm:$0xff] 0.0
        %288 = vst [vmem:[#allocation2 + $0x80] sm:$0xff] 0.0
        %289 = vst [vmem:[#allocation2 + $0x88] sm:$0xff] 0.0
        %290 = vst [vmem:[#allocation2 + $0x90] sm:$0xff] 0.0
        %291 = vst [vmem:[#allocation2 + $0x98] sm:$0xff] 0.0
        %292 = vst [vmem:[#allocation2 + $0xa0] sm:$0xff] 0.0
        %293 = vst [vmem:[#allocation2 + $0xa8] sm:$0xff] 0.0
        %294 = vst [vmem:[#allocation2 + $0xb0] sm:$0xff] 0.0
        %295 = vst [vmem:[#allocation2 + $0xb8] sm:$0xff] 0.0
        %296 = vst [vmem:[#allocation2 + $0xc0] sm:$0xff] 0.0
        %297 = vst [vmem:[#allocation2 + $0xc8] sm:$0xff] 0.0
        %298 = vst [vmem:[#allocation2 + $0xd0] sm:$0xff] 0.0
        %299 = vst [vmem:[#allocation2 + $0xd8] sm:$0xff] 0.0
        %300 = vst [vmem:[#allocation2 + $0xe0] sm:$0xff] 0.0
        %301 = vst [vmem:[#allocation2 + $0xe8] sm:$0xff] 0.0
        %302 = vst [vmem:[#allocation2 + $0xf0] sm:$0xff] 0.0
        %303 = vst [vmem:[#allocation2 + $0xf8] sm:$0xff] 0.0
      $region36: #{vae_forward.19} parent=31 // pred_fallthru
        _
      %v304 = vld [vmem:[#allocation2] sm:$0xff]
      %v305 = vld [vmem:[#allocation2 + $0x8] sm:$0xff]
      %v306 = vld [vmem:[#allocation2 + $0x10] sm:$0xff]
      %v307 = vld [vmem:[#allocation2 + $0x18] sm:$0xff]
      %v308 = vld [vmem:[#allocation2 + $0x20] sm:$0xff]
      %v309 = vld [vmem:[#allocation2 + $0x28] sm:$0xff]
      %v310 = vld [vmem:[#allocation2 + $0x30] sm:$0xff]
      %v311 = vld [vmem:[#allocation2 + $0x38] sm:$0xff]
      %v312 = vld [vmem:[#allocation2 + $0x40] sm:$0xff]
      %v313 = vld [vmem:[#allocation2 + $0x48] sm:$0xff]
      %v314 = vld [vmem:[#allocation2 + $0x50] sm:$0xff]
      %v315 = vld [vmem:[#allocation2 + $0x58] sm:$0xff]
      %v316 = vld [vmem:[#allocation2 + $0x60] sm:$0xff]
      %v317 = vld [vmem:[#allocation2 + $0x68] sm:$0xff]
      %v318 = vld [vmem:[#allocation2 + $0x70] sm:$0xff]
      %v319 = vld [vmem:[#allocation2 + $0x78] sm:$0xff]
      %v320 = vld [vmem:[#allocation2 + $0x80] sm:$0xff]
      %v321 = vld [vmem:[#allocation2 + $0x88] sm:$0xff]
      %v322 = vld [vmem:[#allocation2 + $0x90] sm:$0xff]
      %v323 = vld [vmem:[#allocation2 + $0x98] sm:$0xff]
      %v324 = vld [vmem:[#allocation2 + $0xa0] sm:$0xff]
      %v325 = vld [vmem:[#allocation2 + $0xa8] sm:$0xff]
      %v326 = vld [vmem:[#allocation2 + $0xb0] sm:$0xff]
      %v327 = vld [vmem:[#allocation2 + $0xb8] sm:$0xff]
      %v328 = vld [vmem:[#allocation2 + $0xc0] sm:$0xff]
      %v329 = vld [vmem:[#allocation2 + $0xc8] sm:$0xff]
      %v330 = vld [vmem:[#allocation2 + $0xd0] sm:$0xff]
      %v331 = vld [vmem:[#allocation2 + $0xd8] sm:$0xff]
      %v332 = vld [vmem:[#allocation2 + $0xe0] sm:$0xff]
      %v333 = vld [vmem:[#allocation2 + $0xe8] sm:$0xff]
      %v334 = vld [vmem:[#allocation2 + $0xf0] sm:$0xff]
      %v335 = vld [vmem:[#allocation2 + $0xf8] sm:$0xff]
      %v336 = vld [vmem:[%s243] sm:$0xff]
      %v337 = vld [vmem:[%s243 + $0x8] sm:$0xf]
      %v338 = vld [vmem:[%s243 + $0xc] sm:$0xff]
      %v339 = vld [vmem:[%s243 + $0x14] sm:$0xf]
      %v340 = vld [vmem:[%s243 + $0x18] sm:$0xff]
      %v341 = vld [vmem:[%s243 + $0x20] sm:$0xf]
      %v342 = vld [vmem:[%s243 + $0x24] sm:$0xff]
      %v343 = vld [vmem:[%s243 + $0x2c] sm:$0xf]
      %v344 = vld [vmem:[%s243 + $0x30] sm:$0xff]
      %v345 = vld [vmem:[%s243 + $0x38] sm:$0xf]
      %v346 = vld [vmem:[%s243 + $0x3c] sm:$0xff]
      %v347 = vld [vmem:[%s243 + $0x44] sm:$0xf]
      %v348 = vld [vmem:[%s243 + $0x48] sm:$0xff]
      %v349 = vld [vmem:[%s243 + $0x50] sm:$0xf]
      %v350 = vld [vmem:[%s243 + $0x54] sm:$0xff]
      %v351 = vld [vmem:[%s243 + $0x5c] sm:$0xf]
      %v352 = vld [vmem:[%s243 + $0x60] sm:$0xff]
      %v353 = vld [vmem:[%s243 + $0x68] sm:$0xf]
      %v354 = vld [vmem:[%s243 + $0x6c] sm:$0xff]
      %v355 = vld [vmem:[%s243 + $0x74] sm:$0xf]
      %v356 = vld [vmem:[%s243 + $0x78] sm:$0xff]
      %v357 = vld [vmem:[%s243 + $0x80] sm:$0xf]
      %v358 = vld [vmem:[%s243 + $0x84] sm:$0xff]
      %v359 = vld [vmem:[%s243 + $0x8c] sm:$0xf]
      %v360 = vld [vmem:[%s243 + $0x90] sm:$0xff]
      %v361 = vld [vmem:[%s243 + $0x98] sm:$0xf]
      %v362 = vld [vmem:[%s243 + $0x9c] sm:$0xff]
      %v363 = vld [vmem:[%s243 + $0xa4] sm:$0xf]
      %v364 = vld [vmem:[%s243 + $0xa8] sm:$0xff]
      %v365 = vld [vmem:[%s243 + $0xb0] sm:$0xf]
      %v366 = vld [vmem:[%s243 + $0xb4] sm:$0xff]
      %v367 = vld [vmem:[%s243 + $0xbc] sm:$0xf]
      %v368 = vld [vmem:[%s243 + $0xc0] sm:$0xff]
      %v369 = vld [vmem:[%s243 + $0xc8] sm:$0xf]
      %v370 = vld [vmem:[%s243 + $0xcc] sm:$0xff]
      %v371 = vld [vmem:[%s243 + $0xd4] sm:$0xf]
      %v372 = vld [vmem:[%s243 + $0xd8] sm:$0xff]
      %v373 = vld [vmem:[%s243 + $0xe0] sm:$0xf]
      %v374 = vld [vmem:[%s243 + $0xe4] sm:$0xff]
      %v375 = vld [vmem:[%s243 + $0xec] sm:$0xf]
      %v376 = vld [vmem:[%s243 + $0xf0] sm:$0xff]
      %v377 = vld [vmem:[%s243 + $0xf8] sm:$0xf]
      %v378 = vld [vmem:[%s243 + $0xfc] sm:$0xff]
      %v379 = vld [vmem:[%s243 + $0x104] sm:$0xf]
      %v380 = vld [vmem:[%s243 + $0x108] sm:$0xff]
      %v381 = vld [vmem:[%s243 + $0x110] sm:$0xf]
      %v382 = vld [vmem:[%s243 + $0x114] sm:$0xff]
      %v383 = vld [vmem:[%s243 + $0x11c] sm:$0xf]
      %v384 = vld [vmem:[%s243 + $0x120] sm:$0xff]
      %v385 = vld [vmem:[%s243 + $0x128] sm:$0xf]
      %v386 = vld [vmem:[%s243 + $0x12c] sm:$0xff]
      %v387 = vld [vmem:[%s243 + $0x134] sm:$0xf]
      %v388 = vld [vmem:[%s243 + $0x138] sm:$0xff]
      %v389 = vld [vmem:[%s243 + $0x140] sm:$0xf]
      %v390 = vld [vmem:[%s243 + $0x144] sm:$0xff]
      %v391 = vld [vmem:[%s243 + $0x14c] sm:$0xf]
      %v392 = vld [vmem:[%s243 + $0x150] sm:$0xff]
      %v393 = vld [vmem:[%s243 + $0x158] sm:$0xf]
      %v394 = vld [vmem:[%s243 + $0x15c] sm:$0xff]
      %v395 = vld [vmem:[%s243 + $0x164] sm:$0xf]
      %v396 = vld [vmem:[%s243 + $0x168] sm:$0xff]
      %v397 = vld [vmem:[%s243 + $0x170] sm:$0xf]
      %v398 = vld [vmem:[%s243 + $0x174] sm:$0xff]
      %v399 = vld [vmem:[%s243 + $0x17c] sm:$0xf]
      %v400 = vld [vmem:[%s253] sm:$0xf]
      %v401 = vld [vmem:[%s253 + $0x4] sm:$0xf]
      %v402 = vld [vmem:[%s253 + $0x8] sm:$0xf]
      %v403 = vld [vmem:[%s253 + $0xc] sm:$0xf]
      %v404 = vld [vmem:[%s253 + $0x10] sm:$0xf]
      %v405 = vld [vmem:[%s253 + $0x14] sm:$0xf]
      %v406 = vld [vmem:[%s253 + $0x18] sm:$0xf]
      %v407 = vld [vmem:[%s253 + $0x1c] sm:$0xf]
      %v408 = vld [vmem:[%s253 + $0x20] sm:$0xf]
      %v409 = vld [vmem:[%s253 + $0x24] sm:$0xf]
      %v410 = vld [vmem:[%s253 + $0x28] sm:$0xf]
      %v411 = vld [vmem:[%s253 + $0x2c] sm:$0xf]
      %v412 = vld [vmem:[%s253 + $0x30] sm:$0xf]
      %v413 = vld [vmem:[%s253 + $0x34] sm:$0xf]
      %v414 = vld [vmem:[%s253 + $0x38] sm:$0xf]
      %v415 = vld [vmem:[%s253 + $0x3c] sm:$0xf]
      %v416 = vld [vmem:[%s253 + $0x40] sm:$0xf]
      %v417 = vld [vmem:[%s253 + $0x44] sm:$0xf]
      %v418 = vld [vmem:[%s253 + $0x48] sm:$0xf]
      %v419 = vld [vmem:[%s253 + $0x4c] sm:$0xf]
      %v420 = vld [vmem:[%s253 + $0x50] sm:$0xf]
      %v421 = vld [vmem:[%s253 + $0x54] sm:$0xf]
      %v422 = vld [vmem:[%s253 + $0x58] sm:$0xf]
      %v423 = vld [vmem:[%s253 + $0x5c] sm:$0xf]
      %v424 = vld [vmem:[%s253 + $0x60] sm:$0xf]
      %v425 = vld [vmem:[%s253 + $0x64] sm:$0xf]
      %v426 = vld [vmem:[%s253 + $0x68] sm:$0xf]
      %v427 = vld [vmem:[%s253 + $0x6c] sm:$0xf]
      %v428 = vld [vmem:[%s253 + $0x70] sm:$0xf]
      %v429 = vld [vmem:[%s253 + $0x74] sm:$0xf]
      %v430 = vld [vmem:[%s253 + $0x78] sm:$0xf]
      %v431 = vld [vmem:[%s253 + $0x7c] sm:$0xf]
      %v432 = vld [vmem:[%s253 + $0x80] sm:$0xf]
      %v433 = vld [vmem:[%s253 + $0x84] sm:$0xf]
      %v434 = vld [vmem:[%s253 + $0x88] sm:$0xf]
      %v435 = vld [vmem:[%s253 + $0x8c] sm:$0xf]
      %v436 = vld [vmem:[%s253 + $0x90] sm:$0xf]
      %v437 = vld [vmem:[%s253 + $0x94] sm:$0xf]
      %v438 = vld [vmem:[%s253 + $0x98] sm:$0xf]
      %v439 = vld [vmem:[%s253 + $0x9c] sm:$0xf]
      %v440 = vld [vmem:[%s253 + $0xa0] sm:$0xf]
      %v441 = vld [vmem:[%s253 + $0xa4] sm:$0xf]
      %v442 = vld [vmem:[%s253 + $0xa8] sm:$0xf]
      %v443 = vld [vmem:[%s253 + $0xac] sm:$0xf]
      %v444 = vld [vmem:[%s253 + $0xb0] sm:$0xf]
      %v445 = vld [vmem:[%s253 + $0xb4] sm:$0xf]
      %v446 = vld [vmem:[%s253 + $0xb8] sm:$0xf]
      %v447 = vld [vmem:[%s253 + $0xbc] sm:$0xf]
      %v512 = vunpack.c.l.b16 %v336
      %v513 = vunpack.c.h.b16 %v336
      %v514 = vunpack.c.l.b16 %v337
      %v515 = vunpack.c.l.b16 %v338
      %v516 = vunpack.c.h.b16 %v338
      %v517 = vunpack.c.l.b16 %v339
      %v518 = vunpack.c.l.b16 %v340
      %v519 = vunpack.c.h.b16 %v340
      %v520 = vunpack.c.l.b16 %v341
      %v521 = vunpack.c.l.b16 %v342
      %v522 = vunpack.c.h.b16 %v342
      %v523 = vunpack.c.l.b16 %v343
      %v524 = vunpack.c.l.b16 %v344
      %v525 = vunpack.c.h.b16 %v344
      %v526 = vunpack.c.l.b16 %v345
      %v527 = vunpack.c.l.b16 %v346
      %v528 = vunpack.c.h.b16 %v346
      %v529 = vunpack.c.l.b16 %v347
      %v530 = vunpack.c.l.b16 %v348
      %v531 = vunpack.c.h.b16 %v348
      %v532 = vunpack.c.l.b16 %v349
      %v533 = vunpack.c.l.b16 %v350
      %v534 = vunpack.c.h.b16 %v350
      %v535 = vunpack.c.l.b16 %v351
      %v536 = vunpack.c.l.b16 %v352
      %v537 = vunpack.c.h.b16 %v352
      %v538 = vunpack.c.l.b16 %v353
      %v539 = vunpack.c.l.b16 %v354
      %v540 = vunpack.c.h.b16 %v354
      %v541 = vunpack.c.l.b16 %v355
      %v542 = vunpack.c.l.b16 %v356
      %v543 = vunpack.c.h.b16 %v356
      %v544 = vunpack.c.l.b16 %v357
      %v545 = vunpack.c.l.b16 %v358
      %v546 = vunpack.c.h.b16 %v358
      %v547 = vunpack.c.l.b16 %v359
      %v548 = vunpack.c.l.b16 %v360
      %v549 = vunpack.c.h.b16 %v360
      %v550 = vunpack.c.l.b16 %v361
      %v551 = vunpack.c.l.b16 %v362
      %v552 = vunpack.c.h.b16 %v362
      %v553 = vunpack.c.l.b16 %v363
      %v554 = vunpack.c.l.b16 %v364
      %v555 = vunpack.c.h.b16 %v364
      %v556 = vunpack.c.l.b16 %v365
      %v557 = vunpack.c.l.b16 %v366
      %v558 = vunpack.c.h.b16 %v366
      %v559 = vunpack.c.l.b16 %v367
      %v560 = vunpack.c.l.b16 %v368
      %v561 = vunpack.c.h.b16 %v368
      %v562 = vunpack.c.l.b16 %v369
      %v563 = vunpack.c.l.b16 %v370
      %v564 = vunpack.c.h.b16 %v370
      %v565 = vunpack.c.l.b16 %v371
      %v566 = vunpack.c.l.b16 %v372
      %v567 = vunpack.c.h.b16 %v372
      %v568 = vunpack.c.l.b16 %v373
      %v569 = vunpack.c.l.b16 %v374
      %v570 = vunpack.c.h.b16 %v374
      %v571 = vunpack.c.l.b16 %v375
      %v572 = vunpack.c.l.b16 %v376
      %v573 = vunpack.c.h.b16 %v376
      %v574 = vunpack.c.l.b16 %v377
      %v575 = vunpack.c.l.b16 %v378
      %v576 = vunpack.c.h.b16 %v378
      %v577 = vunpack.c.l.b16 %v379
      %v578 = vunpack.c.l.b16 %v380
      %v579 = vunpack.c.h.b16 %v380
      %v580 = vunpack.c.l.b16 %v381
      %v581 = vunpack.c.l.b16 %v382
      %v582 = vunpack.c.h.b16 %v382
      %v583 = vunpack.c.l.b16 %v383
      %v584 = vunpack.c.l.b16 %v384
      %v585 = vunpack.c.h.b16 %v384
      %v586 = vunpack.c.l.b16 %v385
      %v587 = vunpack.c.l.b16 %v386
      %v588 = vunpack.c.h.b16 %v386
      %v589 = vunpack.c.l.b16 %v387
      %v590 = vunpack.c.l.b16 %v388
      %v591 = vunpack.c.h.b16 %v388
      %v592 = vunpack.c.l.b16 %v389
      %v593 = vunpack.c.l.b16 %v390
      %v594 = vunpack.c.h.b16 %v390
      %v595 = vunpack.c.l.b16 %v391
      %v596 = vunpack.c.l.b16 %v392
      %v597 = vunpack.c.h.b16 %v392
      %v598 = vunpack.c.l.b16 %v393
      %v599 = vunpack.c.l.b16 %v394
      %v600 = vunpack.c.h.b16 %v394
      %v601 = vunpack.c.l.b16 %v395
      %v602 = vunpack.c.l.b16 %v396
      %v603 = vunpack.c.h.b16 %v396
      %v604 = vunpack.c.l.b16 %v397
      %v605 = vunpack.c.l.b16 %v398
      %v606 = vunpack.c.h.b16 %v398
      %v607 = vunpack.c.l.b16 %v399
      %v608 = vpack.c.b16 %v515, %v512
      %v609 = vpack.c.b16 %v516, %v513
      %v610 = vpack.c.b16 %v517, %v514
      %v611 = vpack.c.b16 %v521, %v518
      %v612 = vpack.c.b16 %v522, %v519
      %v613 = vpack.c.b16 %v523, %v520
      %v614 = vpack.c.b16 %v527, %v524
      %v615 = vpack.c.b16 %v528, %v525
      %v616 = vpack.c.b16 %v529, %v526
      %v617 = vpack.c.b16 %v533, %v530
      %v618 = vpack.c.b16 %v534, %v531
      %v619 = vpack.c.b16 %v535, %v532
      %v620 = vpack.c.b16 %v539, %v536
      %v621 = vpack.c.b16 %v540, %v537
      %v622 = vpack.c.b16 %v541, %v538
      %v623 = vpack.c.b16 %v545, %v542
      %v624 = vpack.c.b16 %v546, %v543
      %v625 = vpack.c.b16 %v547, %v544
      %v626 = vpack.c.b16 %v551, %v548
      %v627 = vpack.c.b16 %v552, %v549
      %v628 = vpack.c.b16 %v553, %v550
      %v629 = vpack.c.b16 %v557, %v554
      %v630 = vpack.c.b16 %v558, %v555
      %v631 = vpack.c.b16 %v559, %v556
      %v632 = vpack.c.b16 %v563, %v560
      %v633 = vpack.c.b16 %v564, %v561
      %v634 = vpack.c.b16 %v565, %v562
      %v635 = vpack.c.b16 %v569, %v566
      %v636 = vpack.c.b16 %v570, %v567
      %v637 = vpack.c.b16 %v571, %v568
      %v638 = vpack.c.b16 %v575, %v572
      %v639 = vpack.c.b16 %v576, %v573
      %v640 = vpack.c.b16 %v577, %v574
      %v641 = vpack.c.b16 %v581, %v578
      %v642 = vpack.c.b16 %v582, %v579
      %v643 = vpack.c.b16 %v583, %v580
      %v644 = vpack.c.b16 %v587, %v584
      %v645 = vpack.c.b16 %v588, %v585
      %v646 = vpack.c.b16 %v589, %v586
      %v647 = vpack.c.b16 %v593, %v590
      %v648 = vpack.c.b16 %v594, %v591
      %v649 = vpack.c.b16 %v595, %v592
      %v650 = vpack.c.b16 %v599, %v596
      %v651 = vpack.c.b16 %v600, %v597
      %v652 = vpack.c.b16 %v601, %v598
      %v653 = vpack.c.b16 %v605, %v602
      %v654 = vpack.c.b16 %v606, %v603
      %v655 = vpack.c.b16 %v607, %v604
      %v752 = vunpack.c.l.b16 %v400
      %v753 = vunpack.c.l.b16 %v401
      %v754 = vunpack.c.l.b16 %v402
      %v755 = vunpack.c.l.b16 %v403
      %v756 = vunpack.c.l.b16 %v404
      %v757 = vunpack.c.l.b16 %v405
      %v758 = vunpack.c.l.b16 %v406
      %v759 = vunpack.c.l.b16 %v407
      %v760 = vunpack.c.l.b16 %v408
      %v761 = vunpack.c.l.b16 %v409
      %v762 = vunpack.c.l.b16 %v410
      %v763 = vunpack.c.l.b16 %v411
      %v764 = vunpack.c.l.b16 %v412
      %v765 = vunpack.c.l.b16 %v413
      %v766 = vunpack.c.l.b16 %v414
      %v767 = vunpack.c.l.b16 %v415
      %v768 = vunpack.c.l.b16 %v416
      %v769 = vunpack.c.l.b16 %v417
      %v770 = vunpack.c.l.b16 %v418
      %v771 = vunpack.c.l.b16 %v419
      %v772 = vunpack.c.l.b16 %v420
      %v773 = vunpack.c.l.b16 %v421
      %v774 = vunpack.c.l.b16 %v422
      %v775 = vunpack.c.l.b16 %v423
      %v776 = vunpack.c.l.b16 %v424
      %v777 = vunpack.c.l.b16 %v425
      %v778 = vunpack.c.l.b16 %v426
      %v779 = vunpack.c.l.b16 %v427
      %v780 = vunpack.c.l.b16 %v428
      %v781 = vunpack.c.l.b16 %v429
      %v782 = vunpack.c.l.b16 %v430
      %v783 = vunpack.c.l.b16 %v431
      %v784 = vunpack.c.l.b16 %v432
      %v785 = vunpack.c.l.b16 %v433
      %v786 = vunpack.c.l.b16 %v434
      %v787 = vunpack.c.l.b16 %v435
      %v788 = vunpack.c.l.b16 %v436
      %v789 = vunpack.c.l.b16 %v437
      %v790 = vunpack.c.l.b16 %v438
      %v791 = vunpack.c.l.b16 %v439
      %v792 = vunpack.c.l.b16 %v440
      %v793 = vunpack.c.l.b16 %v441
      %v794 = vunpack.c.l.b16 %v442
      %v795 = vunpack.c.l.b16 %v443
      %v796 = vunpack.c.l.b16 %v444
      %v797 = vunpack.c.l.b16 %v445
      %v798 = vunpack.c.l.b16 %v446
      %v799 = vunpack.c.l.b16 %v447
      %v800 = vpack.c.b16 %v753, %v752
      %v801 = vpack.c.b16 %v755, %v754
      %v802 = vpack.c.b16 %v757, %v756
      %v803 = vpack.c.b16 %v759, %v758
      %v804 = vpack.c.b16 %v761, %v760
      %v805 = vpack.c.b16 %v763, %v762
      %v806 = vpack.c.b16 %v765, %v764
      %v807 = vpack.c.b16 %v767, %v766
      %v808 = vpack.c.b16 %v769, %v768
      %v809 = vpack.c.b16 %v771, %v770
      %v810 = vpack.c.b16 %v773, %v772
      %v811 = vpack.c.b16 %v775, %v774
      %v812 = vpack.c.b16 %v777, %v776
      %v813 = vpack.c.b16 %v779, %v778
      %v814 = vpack.c.b16 %v781, %v780
      %v815 = vpack.c.b16 %v783, %v782
      %v816 = vpack.c.b16 %v785, %v784
      %v817 = vpack.c.b16 %v787, %v786
      %v818 = vpack.c.b16 %v789, %v788
      %v819 = vpack.c.b16 %v791, %v790
      %v820 = vpack.c.b16 %v793, %v792
      %v821 = vpack.c.b16 %v795, %v794
      %v822 = vpack.c.b16 %v797, %v796
      %v823 = vpack.c.b16 %v799, %v798
      %848 = vmatprep.subr.bf16.mxu0 0
      %849 = vmatpush1.bf16.msra.mxu0 %v807
      %850 = vmatprep.subr.bf16.mxu0 0
      %851 = vmatpush1.bf16.msra.mxu0 %v806
      %852 = vmatprep.subr.bf16.mxu0 0
      %853 = vmatpush1.bf16.msra.mxu0 %v805
      %854 = vmatprep.subr.bf16.mxu0 0
      %855 = vmatpush1.bf16.msra.mxu0 %v804
      %856 = vmatprep.subr.bf16.mxu0 0
      %857 = vmatpush1.bf16.msra.mxu0 %v803
      %858 = vmatprep.subr.bf16.mxu0 0
      %859 = vmatpush1.bf16.msra.mxu0 %v802
      %860 = vmatprep.subr.bf16.mxu0 0
      %861 = vmatpush1.bf16.msra.mxu0 %v801
      %862 = vmatprep.subr.bf16.mxu0 0
      %863 = vmatpush1.bf16.msra.mxu0 %v800
      %864 = vmatprep.subr.bf16.mxu0 0
      %865 = vmatpush2.bf16.msra.mxu0 %v815
      %866 = vmatprep.subr.bf16.mxu0 0
      %867 = vmatpush2.bf16.msra.mxu0 %v814
      %868 = vmatprep.subr.bf16.mxu0 0
      %869 = vmatpush2.bf16.msra.mxu0 %v813
      %870 = vmatprep.subr.bf16.mxu0 0
      %871 = vmatpush2.bf16.msra.mxu0 %v812
      %872 = vmatprep.subr.bf16.mxu0 0
      %873 = vmatpush2.bf16.msra.mxu0 %v811
      %874 = vmatprep.subr.bf16.mxu0 0
      %875 = vmatpush2.bf16.msra.mxu0 %v810
      %876 = vmatprep.subr.bf16.mxu0 0
      %877 = vmatpush2.bf16.msra.mxu0 %v809
      %878 = vmatprep.subr.bf16.mxu0 0
      %879 = vmatpush2.bf16.msra.mxu0 %v808
      %880 = vmatprep.mubr.bf16.mxu0 %v609
      %881 = vmatmul.mubr.bf16.gmra.mxu0 %v608
      %v882 = vpop.f32.mrf.mxu0
      %v883 = vadd.f32 0.0, %v882
      %v884 = vpop.f32.mrf.mxu0
      %v885 = vpop.f32.mrf.mxu0
      %v886 = vadd.f32 0.0, %v885
      %v887 = vpop.f32.mrf.mxu0
      %888 = vmatprep.mubr.bf16.mxu0 %v612
      %889 = vmatmul.mubr.bf16.gmra.mxu0 %v611
      %v890 = vpop.f32.mrf.mxu0
      %v891 = vadd.f32 0.0, %v890
      %v892 = vpop.f32.mrf.mxu0
      %v893 = vpop.f32.mrf.mxu0
      %v894 = vadd.f32 0.0, %v893
      %v895 = vpop.f32.mrf.mxu0
      %896 = vmatprep.mubr.bf16.mxu0 %v615
      %897 = vmatmul.mubr.bf16.gmra.mxu0 %v614
      %v898 = vpop.f32.mrf.mxu0
      %v899 = vadd.f32 0.0, %v898
      %v900 = vpop.f32.mrf.mxu0
      %v901 = vpop.f32.mrf.mxu0
      %v902 = vadd.f32 0.0, %v901
      %v903 = vpop.f32.mrf.mxu0
      %904 = vmatprep.mubr.bf16.mxu0 %v618
      %905 = vmatmul.mubr.bf16.gmra.mxu0 %v617
      %v906 = vpop.f32.mrf.mxu0
      %v907 = vadd.f32 0.0, %v906
      %v908 = vpop.f32.mrf.mxu0
      %v909 = vpop.f32.mrf.mxu0
      %v910 = vadd.f32 0.0, %v909
      %v911 = vpop.f32.mrf.mxu0
      %912 = vmatprep.mubr.bf16.mxu0 %v621
      %913 = vmatmul.mubr.bf16.gmra.mxu0 %v620
      %v914 = vpop.f32.mrf.mxu0
      %v915 = vadd.f32 0.0, %v914
      %v916 = vpop.f32.mrf.mxu0
      %v917 = vpop.f32.mrf.mxu0
      %v918 = vadd.f32 0.0, %v917
      %v919 = vpop.f32.mrf.mxu0
      %920 = vmatprep.mubr.bf16.mxu0 %v624
      %921 = vmatmul.mubr.bf16.gmra.mxu0 %v623
      %v922 = vpop.f32.mrf.mxu0
      %v923 = vadd.f32 0.0, %v922
      %v924 = vpop.f32.mrf.mxu0
      %v925 = vpop.f32.mrf.mxu0
      %v926 = vadd.f32 0.0, %v925
      %v927 = vpop.f32.mrf.mxu0
      %928 = vmatprep.mubr.bf16.mxu0 %v627
      %929 = vmatmul.mubr.bf16.gmra.mxu0 %v626
      %v930 = vpop.f32.mrf.mxu0
      %v931 = vadd.f32 0.0, %v930
      %v932 = vpop.f32.mrf.mxu0
      %v933 = vpop.f32.mrf.mxu0
      %v934 = vadd.f32 0.0, %v933
      %v935 = vpop.f32.mrf.mxu0
      %936 = vmatprep.mubr.bf16.mxu0 %v630
      %937 = vmatmul.mubr.bf16.gmra.mxu0 %v629
      %v938 = vpop.f32.mrf.mxu0
      %v939 = vadd.f32 0.0, %v938
      %v940 = vpop.f32.mrf.mxu0
      %v941 = vpop.f32.mrf.mxu0
      %v942 = vadd.f32 0.0, %v941
      %v943 = vpop.f32.mrf.mxu0
      %944 = vmatprep.mubr.bf16.mxu0 %v633
      %945 = vmatmul.mubr.bf16.gmra.mxu0 %v632
      %v946 = vpop.f32.mrf.mxu0
      %v947 = vadd.f32 0.0, %v946
      %v948 = vpop.f32.mrf.mxu0
      %v949 = vpop.f32.mrf.mxu0
      %v950 = vadd.f32 0.0, %v949
      %v951 = vpop.f32.mrf.mxu0
      %952 = vmatprep.mubr.bf16.mxu0 %v636
      %953 = vmatmul.mubr.bf16.gmra.mxu0 %v635
      %v954 = vpop.f32.mrf.mxu0
      %v955 = vadd.f32 0.0, %v954
      %v956 = vpop.f32.mrf.mxu0
      %v957 = vpop.f32.mrf.mxu0
      %v958 = vadd.f32 0.0, %v957
      %v959 = vpop.f32.mrf.mxu0
      %960 = vmatprep.mubr.bf16.mxu0 %v639
      %961 = vmatmul.mubr.bf16.gmra.mxu0 %v638
      %v962 = vpop.f32.mrf.mxu0
      %v963 = vadd.f32 0.0, %v962
      %v964 = vpop.f32.mrf.mxu0
      %v965 = vpop.f32.mrf.mxu0
      %v966 = vadd.f32 0.0, %v965
      %v967 = vpop.f32.mrf.mxu0
      %968 = vmatprep.mubr.bf16.mxu0 %v642
      %969 = vmatmul.mubr.bf16.gmra.mxu0 %v641
      %v970 = vpop.f32.mrf.mxu0
      %v971 = vadd.f32 0.0, %v970
      %v972 = vpop.f32.mrf.mxu0
      %v973 = vpop.f32.mrf.mxu0
      %v974 = vadd.f32 0.0, %v973
      %v975 = vpop.f32.mrf.mxu0
      %976 = vmatprep.mubr.bf16.mxu0 %v645
      %977 = vmatmul.mubr.bf16.gmra.mxu0 %v644
      %v978 = vpop.f32.mrf.mxu0
      %v979 = vadd.f32 0.0, %v978
      %v980 = vpop.f32.mrf.mxu0
      %v981 = vpop.f32.mrf.mxu0
      %v982 = vadd.f32 0.0, %v981
      %v983 = vpop.f32.mrf.mxu0
      %984 = vmatprep.mubr.bf16.mxu0 %v648
      %985 = vmatmul.mubr.bf16.gmra.mxu0 %v647
      %v986 = vpop.f32.mrf.mxu0
      %v987 = vadd.f32 0.0, %v986
      %v988 = vpop.f32.mrf.mxu0
      %v989 = vpop.f32.mrf.mxu0
      %v990 = vadd.f32 0.0, %v989
      %v991 = vpop.f32.mrf.mxu0
      %992 = vmatprep.mubr.bf16.mxu0 %v651
      %993 = vmatmul.mubr.bf16.gmra.mxu0 %v650
      %v994 = vpop.f32.mrf.mxu0
      %v995 = vadd.f32 0.0, %v994
      %v996 = vpop.f32.mrf.mxu0
      %v997 = vpop.f32.mrf.mxu0
      %v998 = vadd.f32 0.0, %v997
      %v999 = vpop.f32.mrf.mxu0
      %1000 = vmatprep.mubr.bf16.mxu0 %v654
      %1001 = vmatmul.mubr.bf16.gmra.mxu0 %v653
      %v1002 = vpop.f32.mrf.mxu0
      %v1003 = vadd.f32 0.0, %v1002
      %v1004 = vpop.f32.mrf.mxu0
      %v1005 = vpop.f32.mrf.mxu0
      %v1006 = vadd.f32 0.0, %v1005
      %v1007 = vpop.f32.mrf.mxu0
      %1008 = vdwg.mxu0
      %1009 = vmatprep.subr.bf16.mxu0 0
      %1010 = vmatpush1.bf16.msra.mxu0 %v823
      %1011 = vmatprep.subr.bf16.mxu0 0
      %1012 = vmatpush1.bf16.msra.mxu0 %v822
      %1013 = vmatprep.subr.bf16.mxu0 0
      %1014 = vmatpush1.bf16.msra.mxu0 %v821
      %1015 = vmatprep.subr.bf16.mxu0 0
      %1016 = vmatpush1.bf16.msra.mxu0 %v820
      %1017 = vmatprep.subr.bf16.mxu0 0
      %1018 = vmatpush1.bf16.msra.mxu0 %v819
      %1019 = vmatprep.subr.bf16.mxu0 0
      %1020 = vmatpush1.bf16.msra.mxu0 %v818
      %1021 = vmatprep.subr.bf16.mxu0 0
      %1022 = vmatpush1.bf16.msra.mxu0 %v817
      %1023 = vmatprep.subr.bf16.mxu0 0
      %1024 = vmatpush1.bf16.msra.mxu0 %v816
      %1025 = vmatprep.subr.bf16.mxu0 0
      %1026 = vmatpush2.bf16.msra.mxu0 0
      %1027 = vmatprep.subr.bf16.mxu0 0
      %1028 = vmatpush2.bf16.msra.mxu0 0
      %1029 = vmatprep.subr.bf16.mxu0 0
      %1030 = vmatpush2.bf16.msra.mxu0 0
      %1031 = vmatprep.subr.bf16.mxu0 0
      %1032 = vmatpush2.bf16.msra.mxu0 0
      %1033 = vmatprep.subr.bf16.mxu0 0
      %1034 = vmatpush2.bf16.msra.mxu0 0
      %1035 = vmatprep.subr.bf16.mxu0 0
      %1036 = vmatpush2.bf16.msra.mxu0 0
      %1037 = vmatprep.subr.bf16.mxu0 0
      %1038 = vmatpush2.bf16.msra.mxu0 0
      %1039 = vmatprep.subr.bf16.mxu0 0
      %1040 = vmatpush2.bf16.msra.mxu0 0
      %1041 = vmatprep.mubr.bf16.mxu0 0
      %1042 = vmatmul.mubr.bf16.gmra.mxu0 %v610
      %v1043 = vpop.f32.mrf.mxu0
      %v1044 = vadd.f32 %v883, %v1043
      %v1045 = vpop.f32.mrf.mxu0
      %v1046 = vpop.f32.mrf.mxu0
      %v1047 = vadd.f32 %v886, %v1046
      %v1048 = vpop.f32.mrf.mxu0
      %1049 = vmatprep.mubr.bf16.mxu0 0
      %1050 = vmatmul.mubr.bf16.gmra.mxu0 %v613
      %v1051 = vpop.f32.mrf.mxu0
      %v1052 = vadd.f32 %v891, %v1051
      %v1053 = vpop.f32.mrf.mxu0
      %v1054 = vpop.f32.mrf.mxu0
      %v1055 = vadd.f32 %v894, %v1054
      %v1056 = vpop.f32.mrf.mxu0
      %1057 = vmatprep.mubr.bf16.mxu0 0
      %1058 = vmatmul.mubr.bf16.gmra.mxu0 %v616
      %v1059 = vpop.f32.mrf.mxu0
      %v1060 = vadd.f32 %v899, %v1059
      %v1061 = vpop.f32.mrf.mxu0
      %v1062 = vpop.f32.mrf.mxu0
      %v1063 = vadd.f32 %v902, %v1062
      %v1064 = vpop.f32.mrf.mxu0
      %1065 = vmatprep.mubr.bf16.mxu0 0
      %1066 = vmatmul.mubr.bf16.gmra.mxu0 %v619
      %v1067 = vpop.f32.mrf.mxu0
      %v1068 = vadd.f32 %v907, %v1067
      %v1069 = vpop.f32.mrf.mxu0
      %v1070 = vpop.f32.mrf.mxu0
      %v1071 = vadd.f32 %v910, %v1070
      %v1072 = vpop.f32.mrf.mxu0
      %1073 = vmatprep.mubr.bf16.mxu0 0
      %1074 = vmatmul.mubr.bf16.gmra.mxu0 %v622
      %v1075 = vpop.f32.mrf.mxu0
      %v1076 = vadd.f32 %v915, %v1075
      %v1077 = vpop.f32.mrf.mxu0
      %v1078 = vpop.f32.mrf.mxu0
      %v1079 = vadd.f32 %v918, %v1078
      %v1080 = vpop.f32.mrf.mxu0
      %1081 = vmatprep.mubr.bf16.mxu0 0
      %1082 = vmatmul.mubr.bf16.gmra.mxu0 %v625
      %v1083 = vpop.f32.mrf.mxu0
      %v1084 = vadd.f32 %v923, %v1083
      %v1085 = vpop.f32.mrf.mxu0
      %v1086 = vpop.f32.mrf.mxu0
      %v1087 = vadd.f32 %v926, %v1086
      %v1088 = vpop.f32.mrf.mxu0
      %1089 = vmatprep.mubr.bf16.mxu0 0
      %1090 = vmatmul.mubr.bf16.gmra.mxu0 %v628
      %v1091 = vpop.f32.mrf.mxu0
      %v1092 = vadd.f32 %v931, %v1091
      %v1093 = vpop.f32.mrf.mxu0
      %v1094 = vpop.f32.mrf.mxu0
      %v1095 = vadd.f32 %v934, %v1094
      %v1096 = vpop.f32.mrf.mxu0
      %1097 = vmatprep.mubr.bf16.mxu0 0
      %1098 = vmatmul.mubr.bf16.gmra.mxu0 %v631
      %v1099 = vpop.f32.mrf.mxu0
      %v1100 = vadd.f32 %v939, %v1099
      %v1101 = vpop.f32.mrf.mxu0
      %v1102 = vpop.f32.mrf.mxu0
      %v1103 = vadd.f32 %v942, %v1102
      %v1104 = vpop.f32.mrf.mxu0
      %1105 = vmatprep.mubr.bf16.mxu0 0
      %1106 = vmatmul.mubr.bf16.gmra.mxu0 %v634
      %v1107 = vpop.f32.mrf.mxu0
      %v1108 = vadd.f32 %v947, %v1107
      %v1109 = vpop.f32.mrf.mxu0
      %v1110 = vpop.f32.mrf.mxu0
      %v1111 = vadd.f32 %v950, %v1110
      %v1112 = vpop.f32.mrf.mxu0
      %1113 = vmatprep.mubr.bf16.mxu0 0
      %1114 = vmatmul.mubr.bf16.gmra.mxu0 %v637
      %v1115 = vpop.f32.mrf.mxu0
      %v1116 = vadd.f32 %v955, %v1115
      %v1117 = vpop.f32.mrf.mxu0
      %v1118 = vpop.f32.mrf.mxu0
      %v1119 = vadd.f32 %v958, %v1118
      %v1120 = vpop.f32.mrf.mxu0
      %1121 = vmatprep.mubr.bf16.mxu0 0
      %1122 = vmatmul.mubr.bf16.gmra.mxu0 %v640
      %v1123 = vpop.f32.mrf.mxu0
      %v1124 = vadd.f32 %v963, %v1123
      %v1125 = vpop.f32.mrf.mxu0
      %v1126 = vpop.f32.mrf.mxu0
      %v1127 = vadd.f32 %v966, %v1126
      %v1128 = vpop.f32.mrf.mxu0
      %1129 = vmatprep.mubr.bf16.mxu0 0
      %1130 = vmatmul.mubr.bf16.gmra.mxu0 %v643
      %v1131 = vpop.f32.mrf.mxu0
      %v1132 = vadd.f32 %v971, %v1131
      %v1133 = vpop.f32.mrf.mxu0
      %v1134 = vpop.f32.mrf.mxu0
      %v1135 = vadd.f32 %v974, %v1134
      %v1136 = vpop.f32.mrf.mxu0
      %1137 = vmatprep.mubr.bf16.mxu0 0
      %1138 = vmatmul.mubr.bf16.gmra.mxu0 %v646
      %v1139 = vpop.f32.mrf.mxu0
      %v1140 = vadd.f32 %v979, %v1139
      %v1141 = vpop.f32.mrf.mxu0
      %v1142 = vpop.f32.mrf.mxu0
      %v1143 = vadd.f32 %v982, %v1142
      %v1144 = vpop.f32.mrf.mxu0
      %1145 = vmatprep.mubr.bf16.mxu0 0
      %1146 = vmatmul.mubr.bf16.gmra.mxu0 %v649
      %v1147 = vpop.f32.mrf.mxu0
      %v1148 = vadd.f32 %v987, %v1147
      %v1149 = vpop.f32.mrf.mxu0
      %v1150 = vpop.f32.mrf.mxu0
      %v1151 = vadd.f32 %v990, %v1150
      %v1152 = vpop.f32.mrf.mxu0
      %1153 = vmatprep.mubr.bf16.mxu0 0
      %1154 = vmatmul.mubr.bf16.gmra.mxu0 %v652
      %v1155 = vpop.f32.mrf.mxu0
      %v1156 = vadd.f32 %v995, %v1155
      %v1157 = vpop.f32.mrf.mxu0
      %v1158 = vpop.f32.mrf.mxu0
      %v1159 = vadd.f32 %v998, %v1158
      %v1160 = vpop.f32.mrf.mxu0
      %1161 = vmatprep.mubr.bf16.mxu0 0
      %1162 = vmatmul.mubr.bf16.gmra.mxu0 %v655
      %v1163 = vpop.f32.mrf.mxu0
      %v1164 = vadd.f32 %v1003, %v1163
      %v1165 = vpop.f32.mrf.mxu0
      %v1166 = vpop.f32.mrf.mxu0
      %v1167 = vadd.f32 %v1006, %v1166
      %v1168 = vpop.f32.mrf.mxu0
      %1169 = vdwg.mxu0
      %v1170 = vadd.f32 %v304, %v1044
      %v1171 = vadd.f32 %v305, %v1047
      %v1172 = vadd.f32 %v306, %v1052
      %v1173 = vadd.f32 %v307, %v1055
      %v1174 = vadd.f32 %v308, %v1060
      %v1175 = vadd.f32 %v309, %v1063
      %v1176 = vadd.f32 %v310, %v1068
      %v1177 = vadd.f32 %v311, %v1071
      %v1178 = vadd.f32 %v312, %v1076
      %v1179 = vadd.f32 %v313, %v1079
      %v1180 = vadd.f32 %v314, %v1084
      %v1181 = vadd.f32 %v315, %v1087
      %v1182 = vadd.f32 %v316, %v1092
      %v1183 = vadd.f32 %v317, %v1095
      %v1184 = vadd.f32 %v318, %v1100
      %v1185 = vadd.f32 %v319, %v1103
      %v1186 = vadd.f32 %v320, %v1108
      %v1187 = vadd.f32 %v321, %v1111
      %v1188 = vadd.f32 %v322, %v1116
      %v1189 = vadd.f32 %v323, %v1119
      %v1190 = vadd.f32 %v324, %v1124
      %v1191 = vadd.f32 %v325, %v1127
      %v1192 = vadd.f32 %v326, %v1132
      %v1193 = vadd.f32 %v327, %v1135
      %v1194 = vadd.f32 %v328, %v1140
      %v1195 = vadd.f32 %v329, %v1143
      %v1196 = vadd.f32 %v330, %v1148
      %v1197 = vadd.f32 %v331, %v1151
      %v1198 = vadd.f32 %v332, %v1156
      %v1199 = vadd.f32 %v333, %v1159
      %v1200 = vadd.f32 %v334, %v1164
      %v1201 = vadd.f32 %v335, %v1167
      %1202 = vst [vmem:[#allocation2] sm:$0xff] %v1170
      %1203 = vst [vmem:[#allocation2 + $0x8] sm:$0xff] %v1171
      %1204 = vst [vmem:[#allocation2 + $0x10] sm:$0xff] %v1172
      %1205 = vst [vmem:[#allocation2 + $0x18] sm:$0xff] %v1173
      %1206 = vst [vmem:[#allocation2 + $0x20] sm:$0xff] %v1174
      %1207 = vst [vmem:[#allocation2 + $0x28] sm:$0xff] %v1175
      %1208 = vst [vmem:[#allocation2 + $0x30] sm:$0xff] %v1176
      %1209 = vst [vmem:[#allocation2 + $0x38] sm:$0xff] %v1177
      %1210 = vst [vmem:[#allocation2 + $0x40] sm:$0xff] %v1178
      %1211 = vst [vmem:[#allocation2 + $0x48] sm:$0xff] %v1179
      %1212 = vst [vmem:[#allocation2 + $0x50] sm:$0xff] %v1180
      %1213 = vst [vmem:[#allocation2 + $0x58] sm:$0xff] %v1181
      %1214 = vst [vmem:[#allocation2 + $0x60] sm:$0xff] %v1182
      %1215 = vst [vmem:[#allocation2 + $0x68] sm:$0xff] %v1183
      %1216 = vst [vmem:[#allocation2 + $0x70] sm:$0xff] %v1184
      %1217 = vst [vmem:[#allocation2 + $0x78] sm:$0xff] %v1185
      %1218 = vst [vmem:[#allocation2 + $0x80] sm:$0xff] %v1186
      %1219 = vst [vmem:[#allocation2 + $0x88] sm:$0xff] %v1187
      %1220 = vst [vmem:[#allocation2 + $0x90] sm:$0xff] %v1188
      %1221 = vst [vmem:[#allocation2 + $0x98] sm:$0xff] %v1189
      %1222 = vst [vmem:[#allocation2 + $0xa0] sm:$0xff] %v1190
      %1223 = vst [vmem:[#allocation2 + $0xa8] sm:$0xff] %v1191
      %1224 = vst [vmem:[#allocation2 + $0xb0] sm:$0xff] %v1192
      %1225 = vst [vmem:[#allocation2 + $0xb8] sm:$0xff] %v1193
      %1226 = vst [vmem:[#allocation2 + $0xc0] sm:$0xff] %v1194
      %1227 = vst [vmem:[#allocation2 + $0xc8] sm:$0xff] %v1195
      %1228 = vst [vmem:[#allocation2 + $0xd0] sm:$0xff] %v1196
      %1229 = vst [vmem:[#allocation2 + $0xd8] sm:$0xff] %v1197
      %1230 = vst [vmem:[#allocation2 + $0xe0] sm:$0xff] %v1198
      %1231 = vst [vmem:[#allocation2 + $0xe8] sm:$0xff] %v1199
      %1232 = vst [vmem:[#allocation2 + $0xf0] sm:$0xff] %v1200
      %1233 = vst [vmem:[#allocation2 + $0xf8] sm:$0xff] %v1201
      // Predicated region
      $region37: #{vae_forward.19} parent=31 // pred_check
        %p1234 = pneg %p268
      $region38: #{vae_forward.19} parent=31 // pred_check_branch
        %1236 = sbr.rel (%p1234) target = $region40
      $region39: #{vae_forward.19} parent=31 // pred_region
        %v1237 = vld [vmem:[#allocation2] sm:$0xff]
        %v1238 = vld [vmem:[#allocation2 + $0x8] sm:$0xff]
        %v1239 = vld [vmem:[#allocation2 + $0x10] sm:$0xff]
        %v1240 = vld [vmem:[#allocation2 + $0x18] sm:$0xff]
        %v1241 = vld [vmem:[#allocation2 + $0x20] sm:$0xff]
        %v1242 = vld [vmem:[#allocation2 + $0x28] sm:$0xff]
        %v1243 = vld [vmem:[#allocation2 + $0x30] sm:$0xff]
        %v1244 = vld [vmem:[#allocation2 + $0x38] sm:$0xff]
        %v1245 = vld [vmem:[#allocation2 + $0x40] sm:$0xff]
        %v1246 = vld [vmem:[#allocation2 + $0x48] sm:$0xff]
        %v1247 = vld [vmem:[#allocation2 + $0x50] sm:$0xff]
        %v1248 = vld [vmem:[#allocation2 + $0x58] sm:$0xff]
        %v1249 = vld [vmem:[#allocation2 + $0x60] sm:$0xff]
        %v1250 = vld [vmem:[#allocation2 + $0x68] sm:$0xff]
        %v1251 = vld [vmem:[#allocation2 + $0x70] sm:$0xff]
        %v1252 = vld [vmem:[#allocation2 + $0x78] sm:$0xff]
        %v1253 = vld [vmem:[#allocation2 + $0x80] sm:$0xff]
        %v1254 = vld [vmem:[#allocation2 + $0x88] sm:$0xff]
        %v1255 = vld [vmem:[#allocation2 + $0x90] sm:$0xff]
        %v1256 = vld [vmem:[#allocation2 + $0x98] sm:$0xff]
        %v1257 = vld [vmem:[#allocation2 + $0xa0] sm:$0xff]
        %v1258 = vld [vmem:[#allocation2 + $0xa8] sm:$0xff]
        %v1259 = vld [vmem:[#allocation2 + $0xb0] sm:$0xff]
        %v1260 = vld [vmem:[#allocation2 + $0xb8] sm:$0xff]
        %v1261 = vld [vmem:[#allocation2 + $0xc0] sm:$0xff]
        %v1262 = vld [vmem:[#allocation2 + $0xc8] sm:$0xff]
        %v1263 = vld [vmem:[#allocation2 + $0xd0] sm:$0xff]
        %v1264 = vld [vmem:[#allocation2 + $0xd8] sm:$0xff]
        %v1265 = vld [vmem:[#allocation2 + $0xe0] sm:$0xff]
        %v1266 = vld [vmem:[#allocation2 + $0xe8] sm:$0xff]
        %v1267 = vld [vmem:[#allocation2 + $0xf0] sm:$0xff]
        %v1268 = vld [vmem:[#allocation2 + $0xf8] sm:$0xff]
        %v1269 = vld [vmem:[%s257] sm:$0x1]
        %v1271 = vlaneseq
        %v1272 = vshrl.u32 %v1271, 7
        %v1273 = vsub.s32 0, %v1272
        %v1274 = vrot.slane %v1269, %v1273
        %v1276 = vadd.f32 %v1237, %v1274
        %v1277 = vadd.f32 %v1238, %v1274
        %v1278 = vadd.f32 %v1239, %v1274
        %v1279 = vadd.f32 %v1240, %v1274
        %v1280 = vadd.f32 %v1241, %v1274
        %v1281 = vadd.f32 %v1242, %v1274
        %v1282 = vadd.f32 %v1243, %v1274
        %v1283 = vadd.f32 %v1244, %v1274
        %v1284 = vadd.f32 %v1245, %v1274
        %v1285 = vadd.f32 %v1246, %v1274
        %v1286 = vadd.f32 %v1247, %v1274
        %v1287 = vadd.f32 %v1248, %v1274
        %v1288 = vadd.f32 %v1249, %v1274
        %v1289 = vadd.f32 %v1250, %v1274
        %v1290 = vadd.f32 %v1251, %v1274
        %v1291 = vadd.f32 %v1252, %v1274
        %v1292 = vadd.f32 %v1253, %v1274
        %v1293 = vadd.f32 %v1254, %v1274
        %v1294 = vadd.f32 %v1255, %v1274
        %v1295 = vadd.f32 %v1256, %v1274
        %v1296 = vadd.f32 %v1257, %v1274
        %v1297 = vadd.f32 %v1258, %v1274
        %v1298 = vadd.f32 %v1259, %v1274
        %v1299 = vadd.f32 %v1260, %v1274
        %v1300 = vadd.f32 %v1261, %v1274
        %v1301 = vadd.f32 %v1262, %v1274
        %v1302 = vadd.f32 %v1263, %v1274
        %v1303 = vadd.f32 %v1264, %v1274
        %v1304 = vadd.f32 %v1265, %v1274
        %v1305 = vadd.f32 %v1266, %v1274
        %v1306 = vadd.f32 %v1267, %v1274
        %v1307 = vadd.f32 %v1268, %v1274
        %v1308 = vsub.f32 0.0, %v1276
        %v1309 = vsub.f32 0.0, %v1277
        %v1310 = vsub.f32 0.0, %v1278
        %v1311 = vsub.f32 0.0, %v1279
        %v1312 = vsub.f32 0.0, %v1280
        %v1313 = vsub.f32 0.0, %v1281
        %v1314 = vsub.f32 0.0, %v1282
        %v1315 = vsub.f32 0.0, %v1283
        %v1316 = vsub.f32 0.0, %v1284
        %v1317 = vsub.f32 0.0, %v1285
        %v1318 = vsub.f32 0.0, %v1286
        %v1319 = vsub.f32 0.0, %v1287
        %v1320 = vsub.f32 0.0, %v1288
        %v1321 = vsub.f32 0.0, %v1289
        %v1322 = vsub.f32 0.0, %v1290
        %v1323 = vsub.f32 0.0, %v1291
        %v1324 = vsub.f32 0.0, %v1292
        %v1325 = vsub.f32 0.0, %v1293
        %v1326 = vsub.f32 0.0, %v1294
        %v1327 = vsub.f32 0.0, %v1295
        %v1328 = vsub.f32 0.0, %v1296
        %v1329 = vsub.f32 0.0, %v1297
        %v1330 = vsub.f32 0.0, %v1298
        %v1331 = vsub.f32 0.0, %v1299
        %v1332 = vsub.f32 0.0, %v1300
        %v1333 = vsub.f32 0.0, %v1301
        %v1334 = vsub.f32 0.0, %v1302
        %v1335 = vsub.f32 0.0, %v1303
        %v1336 = vsub.f32 0.0, %v1304
        %v1337 = vsub.f32 0.0, %v1305
        %v1338 = vsub.f32 0.0, %v1306
        %v1339 = vsub.f32 0.0, %v1307
        %v1340 = vmul.f32 %v1308, 1.442695
        %v1341 = vpow.pop %v1340
        %v1342 = vmul.f32 %v1309, 1.442695
        %v1343 = vpow.pop %v1342
        %v1344 = vmul.f32 %v1310, 1.442695
        %v1345 = vpow.pop %v1344
        %v1346 = vmul.f32 %v1311, 1.442695
        %v1347 = vpow.pop %v1346
        %v1348 = vmul.f32 %v1312, 1.442695
        %v1349 = vpow.pop %v1348
        %v1350 = vmul.f32 %v1313, 1.442695
        %v1351 = vpow.pop %v1350
        %v1352 = vmul.f32 %v1314, 1.442695
        %v1353 = vpow.pop %v1352
        %v1354 = vmul.f32 %v1315, 1.442695
        %v1355 = vpow.pop %v1354
        %v1356 = vmul.f32 %v1316, 1.442695
        %v1357 = vpow.pop %v1356
        %v1358 = vmul.f32 %v1317, 1.442695
        %v1359 = vpow.pop %v1358
        %v1360 = vmul.f32 %v1318, 1.442695
        %v1361 = vpow.pop %v1360
        %v1362 = vmul.f32 %v1319, 1.442695
        %v1363 = vpow.pop %v1362
        %v1364 = vmul.f32 %v1320, 1.442695
        %v1365 = vpow.pop %v1364
        %v1366 = vmul.f32 %v1321, 1.442695
        %v1367 = vpow.pop %v1366
        %v1368 = vmul.f32 %v1322, 1.442695
        %v1369 = vpow.pop %v1368
        %v1370 = vmul.f32 %v1323, 1.442695
        %v1371 = vpow.pop %v1370
        %v1372 = vmul.f32 %v1324, 1.442695
        %v1373 = vpow.pop %v1372
        %v1374 = vmul.f32 %v1325, 1.442695
        %v1375 = vpow.pop %v1374
        %v1376 = vmul.f32 %v1326, 1.442695
        %v1377 = vpow.pop %v1376
        %v1378 = vmul.f32 %v1327, 1.442695
        %v1379 = vpow.pop %v1378
        %v1380 = vmul.f32 %v1328, 1.442695
        %v1381 = vpow.pop %v1380
        %v1382 = vmul.f32 %v1329, 1.442695
        %v1383 = vpow.pop %v1382
        %v1384 = vmul.f32 %v1330, 1.442695
        %v1385 = vpow.pop %v1384
        %v1386 = vmul.f32 %v1331, 1.442695
        %v1387 = vpow.pop %v1386
        %v1388 = vmul.f32 %v1332, 1.442695
        %v1389 = vpow.pop %v1388
        %v1390 = vmul.f32 %v1333, 1.442695
        %v1391 = vpow.pop %v1390
        %v1392 = vmul.f32 %v1334, 1.442695
        %v1393 = vpow.pop %v1392
        %v1394 = vmul.f32 %v1335, 1.442695
        %v1395 = vpow.pop %v1394
        %v1396 = vmul.f32 %v1336, 1.442695
        %v1397 = vpow.pop %v1396
        %v1398 = vmul.f32 %v1337, 1.442695
        %v1399 = vpow.pop %v1398
        %v1400 = vmul.f32 %v1338, 1.442695
        %v1401 = vpow.pop %v1400
        %v1402 = vmul.f32 %v1339, 1.442695
        %v1403 = vpow.pop %v1402
        %v1404 = vadd.f32 %v1341, 1.0
        %v1405 = vadd.f32 %v1343, 1.0
        %v1406 = vadd.f32 %v1345, 1.0
        %v1407 = vadd.f32 %v1347, 1.0
        %v1408 = vadd.f32 %v1349, 1.0
        %v1409 = vadd.f32 %v1351, 1.0
        %v1410 = vadd.f32 %v1353, 1.0
        %v1411 = vadd.f32 %v1355, 1.0
        %v1412 = vadd.f32 %v1357, 1.0
        %v1413 = vadd.f32 %v1359, 1.0
        %v1414 = vadd.f32 %v1361, 1.0
        %v1415 = vadd.f32 %v1363, 1.0
        %v1416 = vadd.f32 %v1365, 1.0
        %v1417 = vadd.f32 %v1367, 1.0
        %v1418 = vadd.f32 %v1369, 1.0
        %v1419 = vadd.f32 %v1371, 1.0
        %v1420 = vadd.f32 %v1373, 1.0
        %v1421 = vadd.f32 %v1375, 1.0
        %v1422 = vadd.f32 %v1377, 1.0
        %v1423 = vadd.f32 %v1379, 1.0
        %v1424 = vadd.f32 %v1381, 1.0
        %v1425 = vadd.f32 %v1383, 1.0
        %v1426 = vadd.f32 %v1385, 1.0
        %v1427 = vadd.f32 %v1387, 1.0
        %v1428 = vadd.f32 %v1389, 1.0
        %v1429 = vadd.f32 %v1391, 1.0
        %v1430 = vadd.f32 %v1393, 1.0
        %v1431 = vadd.f32 %v1395, 1.0
        %v1432 = vadd.f32 %v1397, 1.0
        %v1433 = vadd.f32 %v1399, 1.0
        %v1434 = vadd.f32 %v1401, 1.0
        %v1435 = vadd.f32 %v1403, 1.0
        %v1436 = vrcp.pop %v1404
        %v1437 = vrcp.pop %v1405
        %v1438 = vrcp.pop %v1406
        %v1439 = vrcp.pop %v1407
        %v1440 = vrcp.pop %v1408
        %v1441 = vrcp.pop %v1409
        %v1442 = vrcp.pop %v1410
        %v1443 = vrcp.pop %v1411
        %v1444 = vrcp.pop %v1412
        %v1445 = vrcp.pop %v1413
        %v1446 = vrcp.pop %v1414
        %v1447 = vrcp.pop %v1415
        %v1448 = vrcp.pop %v1416
        %v1449 = vrcp.pop %v1417
        %v1450 = vrcp.pop %v1418
        %v1451 = vrcp.pop %v1419
        %v1452 = vrcp.pop %v1420
        %v1453 = vrcp.pop %v1421
        %v1454 = vrcp.pop %v1422
        %v1455 = vrcp.pop %v1423
        %v1456 = vrcp.pop %v1424
        %v1457 = vrcp.pop %v1425
        %v1458 = vrcp.pop %v1426
        %v1459 = vrcp.pop %v1427
        %v1460 = vrcp.pop %v1428
        %v1461 = vrcp.pop %v1429
        %v1462 = vrcp.pop %v1430
        %v1463 = vrcp.pop %v1431
        %v1464 = vrcp.pop %v1432
        %v1465 = vrcp.pop %v1433
        %v1466 = vrcp.pop %v1434
        %v1467 = vrcp.pop %v1435
        %v1468 = vmax.f32 %v1436, 0.0
        %v1469 = vmax.f32 %v1437, 0.0
        %v1470 = vmax.f32 %v1438, 0.0
        %v1471 = vmax.f32 %v1439, 0.0
        %v1472 = vmax.f32 %v1440, 0.0
        %v1473 = vmax.f32 %v1441, 0.0
        %v1474 = vmax.f32 %v1442, 0.0
        %v1475 = vmax.f32 %v1443, 0.0
        %v1476 = vmax.f32 %v1444, 0.0
        %v1477 = vmax.f32 %v1445, 0.0
        %v1478 = vmax.f32 %v1446, 0.0
        %v1479 = vmax.f32 %v1447, 0.0
        %v1480 = vmax.f32 %v1448, 0.0
        %v1481 = vmax.f32 %v1449, 0.0
        %v1482 = vmax.f32 %v1450, 0.0
        %v1483 = vmax.f32 %v1451, 0.0
        %v1484 = vmax.f32 %v1452, 0.0
        %v1485 = vmax.f32 %v1453, 0.0
        %v1486 = vmax.f32 %v1454, 0.0
        %v1487 = vmax.f32 %v1455, 0.0
        %v1488 = vmax.f32 %v1456, 0.0
        %v1489 = vmax.f32 %v1457, 0.0
        %v1490 = vmax.f32 %v1458, 0.0
        %v1491 = vmax.f32 %v1459, 0.0
        %v1492 = vmax.f32 %v1460, 0.0
        %v1493 = vmax.f32 %v1461, 0.0
        %v1494 = vmax.f32 %v1462, 0.0
        %v1495 = vmax.f32 %v1463, 0.0
        %v1496 = vmax.f32 %v1464, 0.0
        %v1497 = vmax.f32 %v1465, 0.0
        %v1498 = vmax.f32 %v1466, 0.0
        %v1499 = vmax.f32 %v1467, 0.0
        %v1500 = vmin.f32 %v1468, 1.0
        %v1501 = vmin.f32 %v1469, 1.0
        %v1502 = vmin.f32 %v1470, 1.0
        %v1503 = vmin.f32 %v1471, 1.0
        %v1504 = vmin.f32 %v1472, 1.0
        %v1505 = vmin.f32 %v1473, 1.0
        %v1506 = vmin.f32 %v1474, 1.0
        %v1507 = vmin.f32 %v1475, 1.0
        %v1508 = vmin.f32 %v1476, 1.0
        %v1509 = vmin.f32 %v1477, 1.0
        %v1510 = vmin.f32 %v1478, 1.0
        %v1511 = vmin.f32 %v1479, 1.0
        %v1512 = vmin.f32 %v1480, 1.0
        %v1513 = vmin.f32 %v1481, 1.0
        %v1514 = vmin.f32 %v1482, 1.0
        %v1515 = vmin.f32 %v1483, 1.0
        %v1516 = vmin.f32 %v1484, 1.0
        %v1517 = vmin.f32 %v1485, 1.0
        %v1518 = vmin.f32 %v1486, 1.0
        %v1519 = vmin.f32 %v1487, 1.0
        %v1520 = vmin.f32 %v1488, 1.0
        %v1521 = vmin.f32 %v1489, 1.0
        %v1522 = vmin.f32 %v1490, 1.0
        %v1523 = vmin.f32 %v1491, 1.0
        %v1524 = vmin.f32 %v1492, 1.0
        %v1525 = vmin.f32 %v1493, 1.0
        %v1526 = vmin.f32 %v1494, 1.0
        %v1527 = vmin.f32 %v1495, 1.0
        %v1528 = vmin.f32 %v1496, 1.0
        %v1529 = vmin.f32 %v1497, 1.0
        %v1530 = vmin.f32 %v1498, 1.0
        %v1531 = vmin.f32 %v1499, 1.0
        %1532 = vst [vmem:[%s265] sm:$0xff] %v1500
        %1533 = vst [vmem:[%s265 + $0x8] sm:$0xff] %v1501
        %1534 = vst [vmem:[%s265 + $0x10] sm:$0xff] %v1502
        %1535 = vst [vmem:[%s265 + $0x18] sm:$0xff] %v1503
        %1536 = vst [vmem:[%s265 + $0x20] sm:$0xff] %v1504
        %1537 = vst [vmem:[%s265 + $0x28] sm:$0xff] %v1505
        %1538 = vst [vmem:[%s265 + $0x30] sm:$0xff] %v1506
        %1539 = vst [vmem:[%s265 + $0x38] sm:$0xff] %v1507
        %1540 = vst [vmem:[%s265 + $0x40] sm:$0xff] %v1508
        %1541 = vst [vmem:[%s265 + $0x48] sm:$0xff] %v1509
        %1542 = vst [vmem:[%s265 + $0x50] sm:$0xff] %v1510
        %1543 = vst [vmem:[%s265 + $0x58] sm:$0xff] %v1511
        %1544 = vst [vmem:[%s265 + $0x60] sm:$0xff] %v1512
        %1545 = vst [vmem:[%s265 + $0x68] sm:$0xff] %v1513
        %1546 = vst [vmem:[%s265 + $0x70] sm:$0xff] %v1514
        %1547 = vst [vmem:[%s265 + $0x78] sm:$0xff] %v1515
        %1548 = vst [vmem:[%s265 + $0x80] sm:$0xff] %v1516
        %1549 = vst [vmem:[%s265 + $0x88] sm:$0xff] %v1517
        %1550 = vst [vmem:[%s265 + $0x90] sm:$0xff] %v1518
        %1551 = vst [vmem:[%s265 + $0x98] sm:$0xff] %v1519
        %1552 = vst [vmem:[%s265 + $0xa0] sm:$0xff] %v1520
        %1553 = vst [vmem:[%s265 + $0xa8] sm:$0xff] %v1521
        %1554 = vst [vmem:[%s265 + $0xb0] sm:$0xff] %v1522
        %1555 = vst [vmem:[%s265 + $0xb8] sm:$0xff] %v1523
        %1556 = vst [vmem:[%s265 + $0xc0] sm:$0xff] %v1524
        %1557 = vst [vmem:[%s265 + $0xc8] sm:$0xff] %v1525
        %1558 = vst [vmem:[%s265 + $0xd0] sm:$0xff] %v1526
        %1559 = vst [vmem:[%s265 + $0xd8] sm:$0xff] %v1527
        %1560 = vst [vmem:[%s265 + $0xe0] sm:$0xff] %v1528
        %1561 = vst [vmem:[%s265 + $0xe8] sm:$0xff] %v1529
        %1562 = vst [vmem:[%s265 + $0xf0] sm:$0xff] %v1530
        %1563 = vst [vmem:[%s265 + $0xf8] sm:$0xff] %v1531
      $region40: #{vae_forward.19} parent=31 // pred_fallthru
        _
      %s1564 = smul.u32 32, %s19
      %p1565 = scmp.lt.s32.totalorder %s1564, 63
      %s1566 = scalar_select %p1565, %s1564, 63
      %p1567 = scmp.lt.s32.totalorder %s20, 0
      %s1568 = scalar_select %p1567, %s20, 0
      %s1569 = sadd.s32 %s1568, %s1566
      %s1570 = smul.addr %s1569, 8
      %s1571 = scalar_lea.vmem %s3, %s1570
      // Predicated region
      $region41: #{vae_forward.19} parent=31 // pred_check
        %p1572 = pneg %p135
      $region42: #{vae_forward.19} parent=31 // pred_check_branch
        %1574 = sbr.rel (%p1572) target = $region44
      $region43: #{vae_forward.19} parent=31 // pred_region
        %s1575 = smul.u32 32, %s19
      $region44: #{vae_forward.19} parent=31 // pred_fallthru
        _
    $region32: #{vae_forward.19} parent=5 // pred_fallthru
      _
    %p1576 = scmp.le.s32.totalorder 2, %s9
    // Predicated region
    $region45: #{vae_forward.19} parent=5 // pred_check
      %p1577 = pneg %p1576
    $region46: #{vae_forward.19} parent=5 // pred_check_branch
      %1579 = sbr.rel (%p1577) target = $region48
    $region47: #{vae_forward.19} parent=5 // pred_region
      %s1580 = ssub.s32 %s9, 2
      // Predicated region
      $region49: #{vae_forward.19} parent=47 // pred_check
        %p1581 = pneg %p141
      $region50: #{vae_forward.19} parent=47 // pred_check_branch
        %1583 = sbr.rel (%p1581) target = $region52
      $region51: #{vae_forward.19} parent=47 // pred_region
        %s1584 = smul.u32 32, %s22
        %p1585 = scmp.lt.s32.totalorder %s1584, 63
        %s1586 = scalar_select %p1585, %s1584, 63
        %p1587 = scmp.lt.s32.totalorder %s23, 0
        %s1588 = scalar_select %p1587, %s23, 0
        %s1589 = sadd.s32 %s1588, %s1586
        %s1590 = smul.addr %s1589, 8
        %s1591 = scalar_lea.vmem %s3, %s1590
      $region52: #{vae_forward.19} parent=47 // pred_fallthru
        _
    $region48: #{vae_forward.19} parent=5 // pred_fallthru
      _
  $region6: #{vae_forward.19} parent=0 // loop_footer
    %s13 = sadd.s32 1, %s9
  $region7: #{vae_forward.19} parent=0 // loop_footer_branch
    %8 = sbr.rel target = $region3
  $region8: #{vae_forward.19} parent=0 // loop_exit
    _

</llo_original>
